<compile_context>
chip_gen: v7x
topology: tpu7x:2x2x1
jax: 0.10.0
libtpu: 0.0.40
codegen_flags: <defaults>
</compile_context>

<pallas_src>
import functools
import numpy as np
import jax
import jax.numpy as jnp
from jax.experimental import pallas as pl
from jax.experimental.pallas import tpu as pltpu

# ----------------------------- small synthetic config -----------------------------
CONV_LAYERS = [(1, 24, 10, 5), (24, 24, 3, 2)]   # (C_in, C_out, kernel, stride)
CONV_DIM = 24                                     # feature-extractor output dim
HIDDEN = 32                                       # transformer hidden size
NUM_HEADS = 4
HEAD_DIM = HIDDEN // NUM_HEADS
INTERMEDIATE = 64
NUM_LAYERS = 2
VOCAB = 16
POS_KERNEL = 4                                    # positional conv (even -> drop last)
POS_GROUPS = 4
LN_EPS = 1e-5


# ----------------------------- the fused Pallas kernel -----------------------------
def _syllabert_fused_kernel(
        pe_ref, po_ref,                      # conv1 im2col patches, even/odd output frames
        w1_ref, gng_ref, gnb_ref,            # conv1 weight (K1*Cin, C), GroupNorm gamma/beta
        w2_ref,                              # conv2 per-tap weights (K2, C, C)
        pm_ref,                              # syllable pooling matrix (1, S, T2)
        fg_ref, fb_ref, fw_ref, fbias_ref,   # feature projection LN + Linear
        eg_ref, eb_ref,                      # encoder shared LayerNorm
        vm_ref,                              # valid-syllable mask (1, S, 1)
        mask_ref,                            # additive attention key mask (1, 1, S)
        pw_ref, pb_ref,                      # positional conv per-tap block-diag weights / bias
        ln1g_ref, ln1b_ref,
        wq_ref, bq_ref, wk_ref, bk_ref, wv_ref, bv_ref, wo_ref, ob_ref,
        ln2g_ref, ln2b_ref, f1w_ref, f1b_ref, f2w_ref, f2b_ref,
        pjw_ref, pjb_ref,                    # vocab projection
        o_ref,                               # output logits (1, S, V)
        hp_ref,                              # VMEM scratch (S + 2*pad, H) for pos-conv padding
        *, seq, num_layers, num_heads, head_dim, pos_k, eps):

    def layer_norm(x, g, b):
        mean = jnp.mean(x, axis=-1, keepdims=True)
        var = jnp.mean(jnp.square(x - mean), axis=-1, keepdims=True)
        return (x - mean) * jax.lax.rsqrt(var + eps) * g + b

    # ---- conv1 (split into even / odd output frames) + GroupNorm(G == C) + GELU ----
    y_e = jnp.dot(pe_ref[0], w1_ref[...], preferred_element_type=jnp.float32)   # (T1e, C)
    y_o = jnp.dot(po_ref[0], w1_ref[...], preferred_element_type=jnp.float32)   # (T1o, C)
    t1 = y_e.shape[0] + y_o.shape[0]
    # GroupNorm with num_groups == channels: per-channel statistics over all time frames.
    mean = (jnp.sum(y_e, axis=0, keepdims=True)
            + jnp.sum(y_o, axis=0, keepdims=True)) / t1
    var = (jnp.sum(jnp.square(y_e - mean), axis=0, keepdims=True)
           + jnp.sum(jnp.square(y_o - mean), axis=0, keepdims=True)) / t1
    inv = jax.lax.rsqrt(var + eps)
    # TODO(synk): torch nn.GELU defaults to erf-gelu; tanh approximation used for robust
    # Mosaic lowering of the transcendental.
    y_e = jax.nn.gelu((y_e - mean) * inv * gng_ref[...] + gnb_ref[...], approximate=True)
    y_o = jax.nn.gelu((y_o - mean) * inv * gng_ref[...] + gnb_ref[...], approximate=True)

    # ---- conv2 (kernel 3, stride 2) as three contiguous-slice matmuls + GELU ----
    t2 = pm_ref.shape[2]                      # number of conv2 output frames
    feats = (jnp.dot(y_e[0:t2, :], w2_ref[0], preferred_element_type=jnp.float32)
             + jnp.dot(y_o[0:t2, :], w2_ref[1], preferred_element_type=jnp.float32)
             + jnp.dot(y_e[1:t2 + 1, :], w2_ref[2], preferred_element_type=jnp.float32))
    feats = jax.nn.gelu(feats, approximate=True)

    # ---- syllable mean-pooling (host-built pooling matrix -> one matmul) ----
    pooled = jnp.dot(pm_ref[0], feats, preferred_element_type=jnp.float32)       # (S, C)

    # ---- feature projection (LN + Linear) + encoder shared LN + pad-row zeroing ----
    xn = layer_norm(pooled, fg_ref[...], fb_ref[...])
    proj = jnp.dot(xn, fw_ref[...], preferred_element_type=jnp.float32) + fbias_ref[...]
    proj = layer_norm(proj, eg_ref[...], eb_ref[...])
    h = proj * vm_ref[0]                       # zero padded syllable rows (encoder masking)

    # ---- positional grouped conv: zero-pad in VMEM scratch, per-tap block-diag matmuls ----
    hp_ref[...] = jnp.zeros_like(hp_ref)
    hp_ref[2:2 + seq, :] = h
    s_out = seq + 1                            # S + 2*pad - K + 1 (pad=2, K=4)
    pos = pb_ref[...]
    for k in range(pos_k):
        pos = pos + jnp.dot(hp_ref[k:k + s_out, :], pw_ref[k],
                            preferred_element_type=jnp.float32)
    h = h + jax.nn.gelu(pos[:seq, :], approximate=True)   # HubertSamePadLayer trims last row

    # ---- stable-layer-norm transformer stack (pre-LN attention / FFN) ----
    mask_add = mask_ref[0]                     # (1, S) additive key mask (-1e9 on padding)
    scale = head_dim ** -0.5
    for l in range(num_layers):
        h2 = layer_norm(h, ln1g_ref[l], ln1b_ref[l])
        attn = jnp.zeros_like(h)
        for hh in range(num_heads):
            idx = l * num_heads + hh
            q = jnp.dot(h2, wq_ref[idx], preferred_element_type=jnp.float32) + bq_ref[idx]
            k = jnp.dot(h2, wk_ref[idx], preferred_element_type=jnp.float32) + bk_ref[idx]
            v = jnp.dot(h2, wv_ref[idx], preferred_element_type=jnp.float32) + bv_ref[idx]
            s = jax.lax.dot_general(q * scale, k, (((1,), (1,)), ((), ())),
                                    preferred_element_type=jnp.float32) + mask_add
            s = s - jnp.max(s, axis=-1, keepdims=True)
            p = jnp.exp(s)
            p = p / jnp.sum(p, axis=-1, keepdims=True)
            head = jnp.dot(p, v, preferred_element_type=jnp.float32)            # (S, dh)
            # output projection folded per head: sum_h head_h @ Wo[rows_h, :]
            attn = attn + jnp.dot(head, wo_ref[idx], preferred_element_type=jnp.float32)
        h = h + attn + ob_ref[l]
        h2 = layer_norm(h, ln2g_ref[l], ln2b_ref[l])
        ff = jnp.dot(h2, f1w_ref[l], preferred_element_type=jnp.float32) + f1b_ref[l]
        ff = jax.nn.gelu(ff, approximate=True)
        ff = jnp.dot(ff, f2w_ref[l], preferred_element_type=jnp.float32) + f2b_ref[l]
        h = h + ff

    # encoder final LayerNorm + SyllaBERT's extra shared LayerNorm (same params)
    h = layer_norm(h, eg_ref[...], eb_ref[...])
    h = layer_norm(h, eg_ref[...], eb_ref[...])
    o_ref[0] = (jnp.dot(h, pjw_ref[...], preferred_element_type=jnp.float32)
                + pjb_ref[...]).astype(o_ref.dtype)


# ----------------------------- kernel wrapper -----------------------------
def syllabert_fused(pe, po, w1, gn_g, gn_b, w2_taps, pool_mat, fp_ln_g, fp_ln_b,
                    fp_w, fp_b, enc_g, enc_b, valid, mask_add,
                    pos_tap_w, pos_b, stacked, proj_w, proj_b):
    B, T1e, K1 = pe.shape
    T1o = po.shape[1]
    C = w1.shape[1]
    S, T2 = pool_mat.shape[1], pool_mat.shape[2]
    H = fp_w.shape[1]
    V = proj_w.shape[1]
    L, NH, dh, I = NUM_LAYERS, NUM_HEADS, HEAD_DIM, INTERMEDIATE
    K2 = w2_taps.shape[0]
    pad = POS_KERNEL // 2

    def full(shape):
        return pl.BlockSpec(shape, lambda b, _n=len(shape): (0,) * _n)

    in_specs = [
        pl.BlockSpec((1, T1e, K1), lambda b: (b, 0, 0)),   # conv1 even patches
        pl.BlockSpec((1, T1o, K1), lambda b: (b, 0, 0)),   # conv1 odd patches
        full((K1, C)), full((1, C)), full((1, C)),         # conv1 weight, GroupNorm g/b
        full((K2, C, C)),                                  # conv2 per-tap weights
        pl.BlockSpec((1, S, T2), lambda b: (b, 0, 0)),     # pooling matrix
        full((1, C)), full((1, C)), full((C, H)), full((1, H)),   # feature projection
        full((1, H)), full((1, H)),                        # encoder shared LN g/b
        pl.BlockSpec((1, S, 1), lambda b: (b, 0, 0)),      # valid mask
        pl.BlockSpec((1, 1, S), lambda b: (b, 0, 0)),      # additive attention mask
        full((POS_KERNEL, H, H)), full((1, H)),            # positional conv
        full((L, 1, H)), full((L, 1, H)),                  # ln1 g/b
        full((L * NH, H, dh)), full((L * NH, 1, dh)),      # wq, bq
        full((L * NH, H, dh)), full((L * NH, 1, dh)),      # wk, bk
        full((L * NH, H, dh)), full((L * NH, 1, dh)),      # wv, bv
        full((L * NH, dh, H)), full((L, 1, H)),            # wo (per-head rows), ob
        full((L, 1, H)), full((L, 1, H)),                  # ln2 g/b
        full((L, H, I)), full((L, 1, I)),                  # ff1
        full((L, I, H)), full((L, 1, H)),                  # ff2
        full((H, V)), full((1, V)),                        # vocab projection
    ]
    return pl.pallas_call(
        functools.partial(_syllabert_fused_kernel, seq=S, num_layers=L, num_heads=NH,
                          head_dim=dh, pos_k=POS_KERNEL, eps=LN_EPS),
        out_shape=jax.ShapeDtypeStruct((B, S, V), jnp.float32),
        grid=(B,),
        in_specs=in_specs,
        out_specs=pl.BlockSpec((1, S, V), lambda b: (b, 0, 0)),
        scratch_shapes=[pltpu.VMEM((S + 2 * pad, H), jnp.float32)],
        compiler_params=pltpu.CompilerParams(dimension_semantics=("parallel",)),
    )(pe, po, w1, gn_g.reshape(1, C), gn_b.reshape(1, C), w2_taps, pool_mat,
      fp_ln_g.reshape(1, C), fp_ln_b.reshape(1, C), fp_w, fp_b.reshape(1, H),
      enc_g.reshape(1, H), enc_b.reshape(1, H), valid, mask_add,
      pos_tap_w, pos_b.reshape(1, H),
      stacked["ln1_g"], stacked["ln1_b"],
      stacked["wq"], stacked["bq"], stacked["wk"], stacked["bk"],
      stacked["wv"], stacked["bv"], stacked["wo"], stacked["ob"],
      stacked["ln2_g"], stacked["ln2_b"],
      stacked["f1w"], stacked["f1b"], stacked["f2w"], stacked["f2b"],
      proj_w, proj_b.reshape(1, V))


# ----------------------------- host/XLA glue -----------------------------
def _im2col_time(x, kernel, stride):
    """x: (B, T, C) -> (B, T_out, K*C) patches via XLA strided slices (no gather)."""
    B, T, C = x.shape
    t_out = (T - kernel) // stride + 1
    taps = []
    for k in range(kernel):
        end = k + (t_out - 1) * stride + 1
        taps.append(jax.lax.slice(x, (0, k, 0), (B, end, C), (1, stride, 1)))
    return jnp.concatenate(taps, axis=-1)


def _conv_weight_to_matrix(w):
    """PyTorch (C_out, C_in, K) conv weight -> (K*C_in, C_out) im2col matmul matrix."""
    c_out, c_in, k = w.shape
    return jnp.transpose(w, (2, 1, 0)).reshape(k * c_in, c_out)


def _posconv_tap_weights(pos_w):
    """Grouped positional-conv weight (C_out, C_in/groups, K) -> per-tap block-diagonal
    (K, C_in, C_out) matrices so the grouped conv becomes K small matmuls."""
    c_out, cg, k = pos_w.shape
    w = jnp.zeros((k, c_out, c_out), jnp.float32)
    for g in range(POS_GROUPS):
        lo, hi = g * cg, (g + 1) * cg
        blk = jnp.transpose(pos_w[lo:hi, :, :], (2, 1, 0))   # (K, in_local, out_local)
        w = w.at[:, lo:hi, lo:hi].set(blk)
    return w


def _stack_layer_params(layers):
    H, NH, dh, I = HIDDEN, NUM_HEADS, HEAD_DIM, INTERMEDIATE

    def per_head_w(name):
        return jnp.stack([lp[name][:, h * dh:(h + 1) * dh]
                          for lp in layers for h in range(NH)])

    def per_head_b(name):
        return jnp.stack([lp[name][h * dh:(h + 1) * dh].reshape(1, dh)
                          for lp in layers for h in range(NH)])

    return {
        "ln1_g": jnp.stack([lp["ln1_g"].reshape(1, H) for lp in layers]),
        "ln1_b": jnp.stack([lp["ln1_b"].reshape(1, H) for lp in layers]),
        "wq": per_head_w("q_w"), "bq": per_head_b("q_b"),
        "wk": per_head_w("k_w"), "bk": per_head_b("k_b"),
        "wv": per_head_w("v_w"), "bv": per_head_b("v_b"),
        "wo": jnp.stack([lp["o_w"][h * dh:(h + 1) * dh, :]
                         for lp in layers for h in range(NH)]),
        "ob": jnp.stack([lp["o_b"].reshape(1, H) for lp in layers]),
        "ln2_g": jnp.stack([lp["ln2_g"].reshape(1, H) for lp in layers]),
        "ln2_b": jnp.stack([lp["ln2_b"].reshape(1, H) for lp in layers]),
        "f1w": jnp.stack([lp["ff1_w"] for lp in layers]),
        "f1b": jnp.stack([lp["ff1_b"].reshape(1, I) for lp in layers]),
        "f2w": jnp.stack([lp["ff2_w"] for lp in layers]),
        "f2b": jnp.stack([lp["ff2_b"].reshape(1, H) for lp in layers]),
    }


@jax.jit
def _device_forward(params, waveforms, pool_mat, valid, mask_add):
    """All device compute (im2col prep + the single fused Pallas kernel) under one jit."""
    B = waveforms.shape[0]
    x_cl = waveforms[:, 0, :, None].astype(jnp.float32)           # (B, T, 1)
    _, _, k1, s1 = CONV_LAYERS[0]
    p1 = _im2col_time(x_cl, k1, s1)                               # (B, T1, k1)
    T1, K1 = p1.shape[1], p1.shape[2]
    pe = jax.lax.slice(p1, (0, 0, 0), (B, T1, K1), (1, 2, 1))     # even conv1 frames
    po = jax.lax.slice(p1, (0, 1, 0), (B, T1, K1), (1, 2, 1))     # odd conv1 frames
    w1 = _conv_weight_to_matrix(params["convs"][0]["w"])
    w2_taps = jnp.transpose(params["convs"][1]["w"], (2, 1, 0))   # (K2, C_in, C_out)
    stacked = _stack_layer_params(params["layers"])
    pos_tap_w = _posconv_tap_weights(params["pos_w"])
    return syllabert_fused(pe, po, w1, params["gn_gamma"], params["gn_beta"], w2_taps,
                           pool_mat, params["fp_ln_g"], params["fp_ln_b"],
                           params["fp_w"], params["fp_b"],
                           params["enc_ln_g"], params["enc_ln_b"], valid, mask_add,
                           pos_tap_w, params["pos_b"], stacked,
                           params["proj_w"], params["proj_b"])


# ----------------------------- deterministic parameters -----------------------------
def init_params(key):
    keys = jax.random.split(key, 64)
    it = iter(keys)

    def nrm(shape):
        return jax.random.normal(next(it), shape, jnp.float32) * 0.02

    params = {}
    params["convs"] = [{"w": nrm((cout, cin, k))} for (cin, cout, k, s) in CONV_LAYERS]
    params["gn_gamma"] = jnp.ones((CONV_LAYERS[0][1],), jnp.float32)
    params["gn_beta"] = jnp.zeros((CONV_LAYERS[0][1],), jnp.float32)
    params["fp_ln_g"] = jnp.ones((CONV_DIM,), jnp.float32)
    params["fp_ln_b"] = jnp.zeros((CONV_DIM,), jnp.float32)
    params["fp_w"] = nrm((CONV_DIM, HIDDEN))
    params["fp_b"] = jnp.zeros((HIDDEN,), jnp.float32)
    params["pos_w"] = nrm((HIDDEN, HIDDEN // POS_GROUPS, POS_KERNEL))
    params["pos_b"] = jnp.zeros((HIDDEN,), jnp.float32)
    params["enc_ln_g"] = jnp.ones((HIDDEN,), jnp.float32)
    params["enc_ln_b"] = jnp.zeros((HIDDEN,), jnp.float32)
    layers = []
    for _ in range(NUM_LAYERS):
        layers.append({
            "q_w": nrm((HIDDEN, HIDDEN)), "q_b": jnp.zeros((HIDDEN,), jnp.float32),
            "k_w": nrm((HIDDEN, HIDDEN)), "k_b": jnp.zeros((HIDDEN,), jnp.float32),
            "v_w": nrm((HIDDEN, HIDDEN)), "v_b": jnp.zeros((HIDDEN,), jnp.float32),
            "o_w": nrm((HIDDEN, HIDDEN)), "o_b": jnp.zeros((HIDDEN,), jnp.float32),
            "ln1_g": jnp.ones((HIDDEN,), jnp.float32), "ln1_b": jnp.zeros((HIDDEN,), jnp.float32),
            "ff1_w": nrm((HIDDEN, INTERMEDIATE)), "ff1_b": jnp.zeros((INTERMEDIATE,), jnp.float32),
            "ff2_w": nrm((INTERMEDIATE, HIDDEN)), "ff2_b": jnp.zeros((HIDDEN,), jnp.float32),
            "ln2_g": jnp.ones((HIDDEN,), jnp.float32), "ln2_b": jnp.zeros((HIDDEN,), jnp.float32),
        })
    params["layers"] = layers
    params["proj_w"] = nrm((HIDDEN, VOCAB))
    params["proj_b"] = jnp.zeros((VOCAB,), jnp.float32)
    return params


# ----------------------------- host-side segmentation -----------------------------
def segment_waveform(wav_np, sampling_rate):
    # TODO(synk): the original `segment_waveform` is an external syllable segmenter;
    # this deterministic energy-run segmentation stands in for it (same interface).
    win = 100
    n_win = len(wav_np) // win
    energies = np.array([float(np.mean(wav_np[i * win:(i + 1) * win] ** 2))
                         for i in range(n_win)])
    thr = energies.mean() if n_win > 0 else 0.0
    sylls, start = [], None
    for i in range(n_win):
        above = energies[i] >= thr
        if above and start is None:
            start = i
        elif not above and start is not None:
            s_s, e_s = start * win / sampling_rate, i * win / sampling_rate
            sylls.append((s_s, 0.5 * (s_s + e_s), e_s))
            start = None
    if start is not None:
        s_s, e_s = start * win / sampling_rate, n_win * win / sampling_rate
        sylls.append((s_s, 0.5 * (s_s + e_s), e_s))
    return sylls, None, None


# ----------------------------- forward pass -----------------------------
def syllabert_forward(params, waveforms, sampling_rate=16000):
    """waveforms: (B, 1, T_samples) -> list of length B, each (n_syll_i, VOCAB)."""
    B, _, T = waveforms.shape

    # static conv geometry
    t_frames = T
    for (_, _, k, s) in CONV_LAYERS:
        t_frames = (t_frames - k) // s + 1
    conv_stride = int(np.prod([s for (_, _, _, s) in CONV_LAYERS]))

    # ---- host-side segmentation FIRST: one device->host transfer, before any kernel ----
    wav_np = np.asarray(waveforms)
    pool_mats, counts = [], []
    for b in range(B):
        sylls, _, _ = segment_waveform(wav_np[b, 0], sampling_rate)
        segments = []
        for start_s, _, end_s in sylls:
            s_fr = np.floor(start_s * sampling_rate / conv_stride)
            e_fr = np.ceil(end_s * sampling_rate / conv_stride)
            s_fr = int(max(0, min(s_fr, t_frames - 1)))
            e_fr = int(max(s_fr + 1, min(e_fr, t_frames)))
            segments.append((s_fr, e_fr))
        if not segments:
            P = np.full((1, t_frames), 1.0 / t_frames, np.float32)
        else:
            P = np.zeros((len(segments), t_frames), np.float32)
            for i, (s, e) in enumerate(segments):
                P[i, s:e] = 1.0 / (e - s)
        pool_mats.append(P)
        counts.append(P.shape[0])

    max_syll = max(counts)
    pool_np = np.zeros((B, max_syll, t_frames), np.float32)
    valid_np = np.zeros((B, max_syll, 1), np.float32)
    for b in range(B):
        L = counts[b]
        pool_np[b, :L] = pool_mats[b]
        valid_np[b, :L, 0] = 1.0
    pool_mat = jnp.asarray(pool_np)
    valid = jnp.asarray(valid_np)
    # large finite additive key mask (avoids -inf - -inf NaN risk of finfo.min)
    mask_add = jnp.asarray(((1.0 - valid_np[:, :, 0]) * -1e9).astype(np.float32)[:, None, :])

    # ---- device compute: ONE fused Pallas kernel under one jit ----
    logits = _device_forward(params, waveforms, pool_mat, valid, mask_add)   # (B, S, VOCAB)

    return [logits[b, :counts[b]] for b in range(B)]


if __name__ == "__main__":
    key = jax.random.PRNGKey(0)
    pkey, wkey = jax.random.split(key)
    params = init_params(pkey)
    waveforms = jax.random.normal(wkey, (2, 1, 1600), jnp.float32)   # (B, 1, T_samples)
    outputs = syllabert_forward(params, waveforms, sampling_rate=16000)
    for o in outputs:
        jax.block_until_ready(o)
        assert not bool(jnp.isnan(o).any()), "NaN in output"
        assert o.ndim == 2 and o.shape[1] == VOCAB
    print("KERNEL_OK")
</pallas_src>

<mosaic_0001>
module attributes {stable_mosaic.version = 11 : i64} {
  func.func @_syllabert_fused_kernel(%arg0: i32, %arg1: memref<1x160x10xf32, #tpu.memory_space<vmem>>, %arg2: memref<1x159x10xf32, #tpu.memory_space<vmem>>, %arg3: memref<10x24xf32, #tpu.memory_space<vmem>>, %arg4: memref<1x24xf32, #tpu.memory_space<vmem>>, %arg5: memref<1x24xf32, #tpu.memory_space<vmem>>, %arg6: memref<3x24x24xf32, #tpu.memory_space<vmem>>, %arg7: memref<1x5x159xf32, #tpu.memory_space<vmem>>, %arg8: memref<1x24xf32, #tpu.memory_space<vmem>>, %arg9: memref<1x24xf32, #tpu.memory_space<vmem>>, %arg10: memref<24x32xf32, #tpu.memory_space<vmem>>, %arg11: memref<1x32xf32, #tpu.memory_space<vmem>>, %arg12: memref<1x32xf32, #tpu.memory_space<vmem>>, %arg13: memref<1x32xf32, #tpu.memory_space<vmem>>, %arg14: memref<1x5x1xf32, #tpu.memory_space<vmem>>, %arg15: memref<1x1x5xf32, #tpu.memory_space<vmem>>, %arg16: memref<4x32x32xf32, #tpu.memory_space<vmem>>, %arg17: memref<1x32xf32, #tpu.memory_space<vmem>>, %arg18: memref<2x1x32xf32, #tpu.memory_space<vmem>>, %arg19: memref<2x1x32xf32, #tpu.memory_space<vmem>>, %arg20: memref<8x32x8xf32, #tpu.memory_space<vmem>>, %arg21: memref<8x1x8xf32, #tpu.memory_space<vmem>>, %arg22: memref<8x32x8xf32, #tpu.memory_space<vmem>>, %arg23: memref<8x1x8xf32, #tpu.memory_space<vmem>>, %arg24: memref<8x32x8xf32, #tpu.memory_space<vmem>>, %arg25: memref<8x1x8xf32, #tpu.memory_space<vmem>>, %arg26: memref<8x8x32xf32, #tpu.memory_space<vmem>>, %arg27: memref<2x1x32xf32, #tpu.memory_space<vmem>>, %arg28: memref<2x1x32xf32, #tpu.memory_space<vmem>>, %arg29: memref<2x1x32xf32, #tpu.memory_space<vmem>>, %arg30: memref<2x32x64xf32, #tpu.memory_space<vmem>>, %arg31: memref<2x1x64xf32, #tpu.memory_space<vmem>>, %arg32: memref<2x64x32xf32, #tpu.memory_space<vmem>>, %arg33: memref<2x1x32xf32, #tpu.memory_space<vmem>>, %arg34: memref<32x16xf32, #tpu.memory_space<vmem>>, %arg35: memref<1x16xf32, #tpu.memory_space<vmem>>, %arg36: memref<1x5x16xf32, #tpu.memory_space<vmem>>, %arg37: memref<9x32xf32, #tpu.memory_space<vmem>>) attributes {dimension_semantics = [#tpu.dimension_semantics<parallel>], iteration_bounds = array<i64: 2>, scalar_prefetch = 0 : i64, scratch_operands = 1 : i64, tpu.core_type = #tpu.core_type<tc>, window_params = [{transform_indices = @transform_0, window_bounds = array<i64: 1, 160, 10>}, {transform_indices = @transform_1, window_bounds = array<i64: 1, 159, 10>}, {pipeline_mode = #tpu.pipeline_mode<synchronous>, transform_indices = @transform_2, window_bounds = array<i64: 10, 24>}, {pipeline_mode = #tpu.pipeline_mode<synchronous>, transform_indices = @transform_3, window_bounds = array<i64: 1, 24>}, {pipeline_mode = #tpu.pipeline_mode<synchronous>, transform_indices = @transform_4, window_bounds = array<i64: 1, 24>}, {pipeline_mode = #tpu.pipeline_mode<synchronous>, transform_indices = @transform_5, window_bounds = array<i64: 3, 24, 24>}, {transform_indices = @transform_6, window_bounds = array<i64: 1, 5, 159>}, {pipeline_mode = #tpu.pipeline_mode<synchronous>, transform_indices = @transform_7, window_bounds = array<i64: 1, 24>}, {pipeline_mode = #tpu.pipeline_mode<synchronous>, transform_indices = @transform_8, window_bounds = array<i64: 1, 24>}, {pipeline_mode = #tpu.pipeline_mode<synchronous>, transform_indices = @transform_9, window_bounds = array<i64: 24, 32>}, {pipeline_mode = #tpu.pipeline_mode<synchronous>, transform_indices = @transform_10, window_bounds = array<i64: 1, 32>}, {pipeline_mode = #tpu.pipeline_mode<synchronous>, transform_indices = @transform_11, window_bounds = array<i64: 1, 32>}, {pipeline_mode = #tpu.pipeline_mode<synchronous>, transform_indices = @transform_12, window_bounds = array<i64: 1, 32>}, {transform_indices = @transform_13, window_bounds = array<i64: 1, 5, 1>}, {transform_indices = @transform_14, window_bounds = array<i64: 1, 1, 5>}, {pipeline_mode = #tpu.pipeline_mode<synchronous>, transform_indices = @transform_15, window_bounds = array<i64: 4, 32, 32>}, {pipeline_mode = #tpu.pipeline_mode<synchronous>, transform_indices = @transform_16, window_bounds = array<i64: 1, 32>}, {pipeline_mode = #tpu.pipeline_mode<synchronous>, transform_indices = @transform_17, window_bounds = array<i64: 2, 1, 32>}, {pipeline_mode = #tpu.pipeline_mode<synchronous>, transform_indices = @transform_18, window_bounds = array<i64: 2, 1, 32>}, {pipeline_mode = #tpu.pipeline_mode<synchronous>, transform_indices = @transform_19, window_bounds = array<i64: 8, 32, 8>}, {pipeline_mode = #tpu.pipeline_mode<synchronous>, transform_indices = @transform_20, window_bounds = array<i64: 8, 1, 8>}, {pipeline_mode = #tpu.pipeline_mode<synchronous>, transform_indices = @transform_21, window_bounds = array<i64: 8, 32, 8>}, {pipeline_mode = #tpu.pipeline_mode<synchronous>, transform_indices = @transform_22, window_bounds = array<i64: 8, 1, 8>}, {pipeline_mode = #tpu.pipeline_mode<synchronous>, transform_indices = @transform_23, window_bounds = array<i64: 8, 32, 8>}, {pipeline_mode = #tpu.pipeline_mode<synchronous>, transform_indices = @transform_24, window_bounds = array<i64: 8, 1, 8>}, {pipeline_mode = #tpu.pipeline_mode<synchronous>, transform_indices = @transform_25, window_bounds = array<i64: 8, 8, 32>}, {pipeline_mode = #tpu.pipeline_mode<synchronous>, transform_indices = @transform_26, window_bounds = array<i64: 2, 1, 32>}, {pipeline_mode = #tpu.pipeline_mode<synchronous>, transform_indices = @transform_27, window_bounds = array<i64: 2, 1, 32>}, {pipeline_mode = #tpu.pipeline_mode<synchronous>, transform_indices = @transform_28, window_bounds = array<i64: 2, 1, 32>}, {pipeline_mode = #tpu.pipeline_mode<synchronous>, transform_indices = @transform_29, window_bounds = array<i64: 2, 32, 64>}, {pipeline_mode = #tpu.pipeline_mode<synchronous>, transform_indices = @transform_30, window_bounds = array<i64: 2, 1, 64>}, {pipeline_mode = #tpu.pipeline_mode<synchronous>, transform_indices = @transform_31, window_bounds = array<i64: 2, 64, 32>}, {pipeline_mode = #tpu.pipeline_mode<synchronous>, transform_indices = @transform_32, window_bounds = array<i64: 2, 1, 32>}, {pipeline_mode = #tpu.pipeline_mode<synchronous>, transform_indices = @transform_33, window_bounds = array<i64: 32, 16>}, {pipeline_mode = #tpu.pipeline_mode<synchronous>, transform_indices = @transform_34, window_bounds = array<i64: 1, 16>}, {transform_indices = @transform_35, window_bounds = array<i64: 1, 5, 16>}]} {
    %c0 = arith.constant 0 : index
    %c0_0 = arith.constant 0 : index
    %c0_1 = arith.constant 0 : index
    %0 = vector.load %arg1[%c0, %c0_0, %c0_1] : memref<1x160x10xf32, #tpu.memory_space<vmem>>, vector<1x160x10xf32>
    %1 = vector.shape_cast %0 : vector<1x160x10xf32> to vector<160x10xf32>
    %c0_2 = arith.constant 0 : index
    %c0_3 = arith.constant 0 : index
    %2 = vector.load %arg3[%c0_2, %c0_3] : memref<10x24xf32, #tpu.memory_space<vmem>>, vector<10x24xf32>
    %cst = arith.constant dense<0.000000e+00> : vector<160x24xf32>
    %3 = tpu.matmul %1, %2, %cst {dimension_numbers = #tpu.dot_dimension_numbers<[1], [0], [0], [1], [0, 0, 1, 1], [], []>} : vector<160x10xf32>, vector<10x24xf32>, vector<160x24xf32> -> vector<160x24xf32>
    %c0_4 = arith.constant 0 : index
    %c0_5 = arith.constant 0 : index
    %c0_6 = arith.constant 0 : index
    %4 = vector.load %arg2[%c0_4, %c0_5, %c0_6] : memref<1x159x10xf32, #tpu.memory_space<vmem>>, vector<1x159x10xf32>
    %5 = vector.shape_cast %4 : vector<1x159x10xf32> to vector<159x10xf32>
    %c0_7 = arith.constant 0 : index
    %c0_8 = arith.constant 0 : index
    %6 = vector.load %arg3[%c0_7, %c0_8] : memref<10x24xf32, #tpu.memory_space<vmem>>, vector<10x24xf32>
    %cst_9 = arith.constant dense<0.000000e+00> : vector<159x24xf32>
    %7 = tpu.matmul %5, %6, %cst_9 {dimension_numbers = #tpu.dot_dimension_numbers<[1], [0], [0], [1], [0, 0, 1, 1], [], []>} : vector<159x10xf32>, vector<10x24xf32>, vector<159x24xf32> -> vector<159x24xf32>
    %cst_10 = arith.constant dense<0.000000e+00> : vector<24xf32>
    %8 = vector.multi_reduction <add>, %3, %cst_10 [0] : vector<160x24xf32> to vector<24xf32>
    %9 = vector.shape_cast %8 : vector<24xf32> to vector<1x24xf32>
    %cst_11 = arith.constant dense<0.000000e+00> : vector<24xf32>
    %10 = vector.multi_reduction <add>, %7, %cst_11 [0] : vector<159x24xf32> to vector<24xf32>
    %11 = vector.shape_cast %10 : vector<24xf32> to vector<1x24xf32>
    %12 = arith.addf %9, %11 : vector<1x24xf32>
    %cst_12 = arith.constant 3.190000e+02 : f32
    %13 = vector.broadcast %cst_12 : f32 to vector<1x24xf32>
    %14 = arith.divf %12, %13 : vector<1x24xf32>
    %15 = vector.broadcast %14 : vector<1x24xf32> to vector<160x24xf32>
    %16 = arith.subf %3, %15 : vector<160x24xf32>
    %17 = arith.mulf %16, %16 : vector<160x24xf32>
    %cst_13 = arith.constant dense<0.000000e+00> : vector<24xf32>
    %18 = vector.multi_reduction <add>, %17, %cst_13 [0] : vector<160x24xf32> to vector<24xf32>
    %19 = vector.shape_cast %18 : vector<24xf32> to vector<1x24xf32>
    %20 = vector.broadcast %14 : vector<1x24xf32> to vector<159x24xf32>
    %21 = arith.subf %7, %20 : vector<159x24xf32>
    %22 = arith.mulf %21, %21 : vector<159x24xf32>
    %cst_14 = arith.constant dense<0.000000e+00> : vector<24xf32>
    %23 = vector.multi_reduction <add>, %22, %cst_14 [0] : vector<159x24xf32> to vector<24xf32>
    %24 = vector.shape_cast %23 : vector<24xf32> to vector<1x24xf32>
    %25 = arith.addf %19, %24 : vector<1x24xf32>
    %cst_15 = arith.constant 3.190000e+02 : f32
    %26 = vector.broadcast %cst_15 : f32 to vector<1x24xf32>
    %27 = arith.divf %25, %26 : vector<1x24xf32>
    %cst_16 = arith.constant 9.99999974E-6 : f32
    %28 = vector.broadcast %cst_16 : f32 to vector<1x24xf32>
    %29 = arith.addf %27, %28 : vector<1x24xf32>
    %30 = math.rsqrt %29 : vector<1x24xf32>
    %31 = vector.broadcast %14 : vector<1x24xf32> to vector<160x24xf32>
    %32 = arith.subf %3, %31 : vector<160x24xf32>
    %33 = vector.broadcast %30 : vector<1x24xf32> to vector<160x24xf32>
    %34 = arith.mulf %32, %33 : vector<160x24xf32>
    %c0_17 = arith.constant 0 : index
    %c0_18 = arith.constant 0 : index
    %35 = vector.load %arg4[%c0_17, %c0_18] : memref<1x24xf32, #tpu.memory_space<vmem>>, vector<1x24xf32>
    %36 = vector.broadcast %35 : vector<1x24xf32> to vector<160x24xf32>
    %37 = arith.mulf %34, %36 : vector<160x24xf32>
    %c0_19 = arith.constant 0 : index
    %c0_20 = arith.constant 0 : index
    %38 = vector.load %arg5[%c0_19, %c0_20] : memref<1x24xf32, #tpu.memory_space<vmem>>, vector<1x24xf32>
    %39 = vector.broadcast %38 : vector<1x24xf32> to vector<160x24xf32>
    %40 = arith.addf %37, %39 : vector<160x24xf32>
    %41 = arith.mulf %40, %40 : vector<160x24xf32>
    %42 = arith.mulf %40, %41 : vector<160x24xf32>
    %cst_21 = arith.constant 4.471500e-02 : f32
    %43 = vector.broadcast %cst_21 : f32 to vector<160x24xf32>
    %44 = arith.mulf %43, %42 : vector<160x24xf32>
    %45 = arith.addf %40, %44 : vector<160x24xf32>
    %cst_22 = arith.constant 0.797884583 : f32
    %46 = vector.broadcast %cst_22 : f32 to vector<160x24xf32>
    %47 = arith.mulf %46, %45 : vector<160x24xf32>
    %48 = math.tanh %47 : vector<160x24xf32>
    %cst_23 = arith.constant 1.000000e+00 : f32
    %49 = vector.broadcast %cst_23 : f32 to vector<160x24xf32>
    %50 = arith.addf %49, %48 : vector<160x24xf32>
    %cst_24 = arith.constant 5.000000e-01 : f32
    %51 = vector.broadcast %cst_24 : f32 to vector<160x24xf32>
    %52 = arith.mulf %51, %50 : vector<160x24xf32>
    %53 = arith.mulf %40, %52 : vector<160x24xf32>
    %54 = vector.broadcast %14 : vector<1x24xf32> to vector<159x24xf32>
    %55 = arith.subf %7, %54 : vector<159x24xf32>
    %56 = vector.broadcast %30 : vector<1x24xf32> to vector<159x24xf32>
    %57 = arith.mulf %55, %56 : vector<159x24xf32>
    %c0_25 = arith.constant 0 : index
    %c0_26 = arith.constant 0 : index
    %58 = vector.load %arg4[%c0_25, %c0_26] : memref<1x24xf32, #tpu.memory_space<vmem>>, vector<1x24xf32>
    %59 = vector.broadcast %58 : vector<1x24xf32> to vector<159x24xf32>
    %60 = arith.mulf %57, %59 : vector<159x24xf32>
    %c0_27 = arith.constant 0 : index
    %c0_28 = arith.constant 0 : index
    %61 = vector.load %arg5[%c0_27, %c0_28] : memref<1x24xf32, #tpu.memory_space<vmem>>, vector<1x24xf32>
    %62 = vector.broadcast %61 : vector<1x24xf32> to vector<159x24xf32>
    %63 = arith.addf %60, %62 : vector<159x24xf32>
    %64 = arith.mulf %63, %63 : vector<159x24xf32>
    %65 = arith.mulf %63, %64 : vector<159x24xf32>
    %cst_29 = arith.constant 4.471500e-02 : f32
    %66 = vector.broadcast %cst_29 : f32 to vector<159x24xf32>
    %67 = arith.mulf %66, %65 : vector<159x24xf32>
    %68 = arith.addf %63, %67 : vector<159x24xf32>
    %cst_30 = arith.constant 0.797884583 : f32
    %69 = vector.broadcast %cst_30 : f32 to vector<159x24xf32>
    %70 = arith.mulf %69, %68 : vector<159x24xf32>
    %71 = math.tanh %70 : vector<159x24xf32>
    %cst_31 = arith.constant 1.000000e+00 : f32
    %72 = vector.broadcast %cst_31 : f32 to vector<159x24xf32>
    %73 = arith.addf %72, %71 : vector<159x24xf32>
    %cst_32 = arith.constant 5.000000e-01 : f32
    %74 = vector.broadcast %cst_32 : f32 to vector<159x24xf32>
    %75 = arith.mulf %74, %73 : vector<159x24xf32>
    %76 = arith.mulf %63, %75 : vector<159x24xf32>
    %77 = vector.extract_strided_slice %53 {offsets = [0, 0], sizes = [159, 24], strides = [1, 1]} : vector<160x24xf32> to vector<159x24xf32>
    %c0_33 = arith.constant 0 : index
    %c0_34 = arith.constant 0 : index
    %c0_35 = arith.constant 0 : index
    %78 = vector.load %arg6[%c0_33, %c0_34, %c0_35] : memref<3x24x24xf32, #tpu.memory_space<vmem>>, vector<1x24x24xf32>
    %79 = vector.shape_cast %78 : vector<1x24x24xf32> to vector<24x24xf32>
    %cst_36 = arith.constant dense<0.000000e+00> : vector<159x24xf32>
    %80 = tpu.matmul %77, %79, %cst_36 {dimension_numbers = #tpu.dot_dimension_numbers<[1], [0], [0], [1], [0, 0, 1, 1], [], []>} : vector<159x24xf32>, vector<24x24xf32>, vector<159x24xf32> -> vector<159x24xf32>
    %c1 = arith.constant 1 : index
    %c0_37 = arith.constant 0 : index
    %c0_38 = arith.constant 0 : index
    %81 = vector.load %arg6[%c1, %c0_37, %c0_38] : memref<3x24x24xf32, #tpu.memory_space<vmem>>, vector<1x24x24xf32>
    %82 = vector.shape_cast %81 : vector<1x24x24xf32> to vector<24x24xf32>
    %cst_39 = arith.constant dense<0.000000e+00> : vector<159x24xf32>
    %83 = tpu.matmul %76, %82, %cst_39 {dimension_numbers = #tpu.dot_dimension_numbers<[1], [0], [0], [1], [0, 0, 1, 1], [], []>} : vector<159x24xf32>, vector<24x24xf32>, vector<159x24xf32> -> vector<159x24xf32>
    %84 = arith.addf %80, %83 : vector<159x24xf32>
    %85 = vector.extract_strided_slice %53 {offsets = [1, 0], sizes = [159, 24], strides = [1, 1]} : vector<160x24xf32> to vector<159x24xf32>
    %c2 = arith.constant 2 : index
    %c0_40 = arith.constant 0 : index
    %c0_41 = arith.constant 0 : index
    %86 = vector.load %arg6[%c2, %c0_40, %c0_41] : memref<3x24x24xf32, #tpu.memory_space<vmem>>, vector<1x24x24xf32>
    %87 = vector.shape_cast %86 : vector<1x24x24xf32> to vector<24x24xf32>
    %cst_42 = arith.constant dense<0.000000e+00> : vector<159x24xf32>
    %88 = tpu.matmul %85, %87, %cst_42 {dimension_numbers = #tpu.dot_dimension_numbers<[1], [0], [0], [1], [0, 0, 1, 1], [], []>} : vector<159x24xf32>, vector<24x24xf32>, vector<159x24xf32> -> vector<159x24xf32>
    %89 = arith.addf %84, %88 : vector<159x24xf32>
    %90 = arith.mulf %89, %89 : vector<159x24xf32>
    %91 = arith.mulf %89, %90 : vector<159x24xf32>
    %cst_43 = arith.constant 4.471500e-02 : f32
    %92 = vector.broadcast %cst_43 : f32 to vector<159x24xf32>
    %93 = arith.mulf %92, %91 : vector<159x24xf32>
    %94 = arith.addf %89, %93 : vector<159x24xf32>
    %cst_44 = arith.constant 0.797884583 : f32
    %95 = vector.broadcast %cst_44 : f32 to vector<159x24xf32>
    %96 = arith.mulf %95, %94 : vector<159x24xf32>
    %97 = math.tanh %96 : vector<159x24xf32>
    %cst_45 = arith.constant 1.000000e+00 : f32
    %98 = vector.broadcast %cst_45 : f32 to vector<159x24xf32>
    %99 = arith.addf %98, %97 : vector<159x24xf32>
    %cst_46 = arith.constant 5.000000e-01 : f32
    %100 = vector.broadcast %cst_46 : f32 to vector<159x24xf32>
    %101 = arith.mulf %100, %99 : vector<159x24xf32>
    %102 = arith.mulf %89, %101 : vector<159x24xf32>
    %c0_47 = arith.constant 0 : index
    %c0_48 = arith.constant 0 : index
    %c0_49 = arith.constant 0 : index
    %103 = vector.load %arg7[%c0_47, %c0_48, %c0_49] : memref<1x5x159xf32, #tpu.memory_space<vmem>>, vector<1x5x159xf32>
    %104 = vector.shape_cast %103 : vector<1x5x159xf32> to vector<5x159xf32>
    %cst_50 = arith.constant dense<0.000000e+00> : vector<5x24xf32>
    %105 = tpu.matmul %104, %102, %cst_50 {dimension_numbers = #tpu.dot_dimension_numbers<[1], [0], [0], [1], [0, 0, 1, 1], [], []>} : vector<5x159xf32>, vector<159x24xf32>, vector<5x24xf32> -> vector<5x24xf32>
    %c0_51 = arith.constant 0 : index
    %c0_52 = arith.constant 0 : index
    %106 = vector.load %arg8[%c0_51, %c0_52] : memref<1x24xf32, #tpu.memory_space<vmem>>, vector<1x24xf32>
    %c0_53 = arith.constant 0 : index
    %c0_54 = arith.constant 0 : index
    %107 = vector.load %arg9[%c0_53, %c0_54] : memref<1x24xf32, #tpu.memory_space<vmem>>, vector<1x24xf32>
    %cst_55 = arith.constant dense<0.000000e+00> : vector<5xf32>
    %108 = vector.multi_reduction <add>, %105, %cst_55 [1] : vector<5x24xf32> to vector<5xf32>
    %109 = vector.shape_cast %108 : vector<5xf32> to vector<5x1xf32>
    %cst_56 = arith.constant 2.400000e+01 : f32
    %110 = vector.broadcast %cst_56 : f32 to vector<5x1xf32>
    %111 = arith.divf %109, %110 : vector<5x1xf32>
    %112 = vector.broadcast %111 : vector<5x1xf32> to vector<5x24xf32>
    %113 = arith.subf %105, %112 : vector<5x24xf32>
    %114 = arith.mulf %113, %113 : vector<5x24xf32>
    %cst_57 = arith.constant dense<0.000000e+00> : vector<5xf32>
    %115 = vector.multi_reduction <add>, %114, %cst_57 [1] : vector<5x24xf32> to vector<5xf32>
    %116 = vector.shape_cast %115 : vector<5xf32> to vector<5x1xf32>
    %cst_58 = arith.constant 2.400000e+01 : f32
    %117 = vector.broadcast %cst_58 : f32 to vector<5x1xf32>
    %118 = arith.divf %116, %117 : vector<5x1xf32>
    %119 = vector.broadcast %111 : vector<5x1xf32> to vector<5x24xf32>
    %120 = arith.subf %105, %119 : vector<5x24xf32>
    %cst_59 = arith.constant 9.99999974E-6 : f32
    %121 = vector.broadcast %cst_59 : f32 to vector<5x1xf32>
    %122 = arith.addf %118, %121 : vector<5x1xf32>
    %123 = math.rsqrt %122 : vector<5x1xf32>
    %124 = vector.broadcast %123 : vector<5x1xf32> to vector<5x24xf32>
    %125 = arith.mulf %120, %124 : vector<5x24xf32>
    %126 = vector.broadcast %106 : vector<1x24xf32> to vector<5x24xf32>
    %127 = arith.mulf %125, %126 : vector<5x24xf32>
    %128 = vector.broadcast %107 : vector<1x24xf32> to vector<5x24xf32>
    %129 = arith.addf %127, %128 : vector<5x24xf32>
    %c0_60 = arith.constant 0 : index
    %c0_61 = arith.constant 0 : index
    %130 = vector.load %arg10[%c0_60, %c0_61] : memref<24x32xf32, #tpu.memory_space<vmem>>, vector<24x32xf32>
    %cst_62 = arith.constant dense<0.000000e+00> : vector<5x32xf32>
    %131 = tpu.matmul %129, %130, %cst_62 {dimension_numbers = #tpu.dot_dimension_numbers<[1], [0], [0], [1], [0, 0, 1, 1], [], []>} : vector<5x24xf32>, vector<24x32xf32>, vector<5x32xf32> -> vector<5x32xf32>
    %c0_63 = arith.constant 0 : index
    %c0_64 = arith.constant 0 : index
    %132 = vector.load %arg11[%c0_63, %c0_64] : memref<1x32xf32, #tpu.memory_space<vmem>>, vector<1x32xf32>
    %133 = vector.broadcast %132 : vector<1x32xf32> to vector<5x32xf32>
    %134 = arith.addf %131, %133 : vector<5x32xf32>
    %c0_65 = arith.constant 0 : index
    %c0_66 = arith.constant 0 : index
    %135 = vector.load %arg12[%c0_65, %c0_66] : memref<1x32xf32, #tpu.memory_space<vmem>>, vector<1x32xf32>
    %c0_67 = arith.constant 0 : index
    %c0_68 = arith.constant 0 : index
    %136 = vector.load %arg13[%c0_67, %c0_68] : memref<1x32xf32, #tpu.memory_space<vmem>>, vector<1x32xf32>
    %cst_69 = arith.constant dense<0.000000e+00> : vector<5xf32>
    %137 = vector.multi_reduction <add>, %134, %cst_69 [1] : vector<5x32xf32> to vector<5xf32>
    %138 = vector.shape_cast %137 : vector<5xf32> to vector<5x1xf32>
    %cst_70 = arith.constant 3.200000e+01 : f32
    %139 = vector.broadcast %cst_70 : f32 to vector<5x1xf32>
    %140 = arith.divf %138, %139 : vector<5x1xf32>
    %141 = vector.broadcast %140 : vector<5x1xf32> to vector<5x32xf32>
    %142 = arith.subf %134, %141 : vector<5x32xf32>
    %143 = arith.mulf %142, %142 : vector<5x32xf32>
    %cst_71 = arith.constant dense<0.000000e+00> : vector<5xf32>
    %144 = vector.multi_reduction <add>, %143, %cst_71 [1] : vector<5x32xf32> to vector<5xf32>
    %145 = vector.shape_cast %144 : vector<5xf32> to vector<5x1xf32>
    %cst_72 = arith.constant 3.200000e+01 : f32
    %146 = vector.broadcast %cst_72 : f32 to vector<5x1xf32>
    %147 = arith.divf %145, %146 : vector<5x1xf32>
    %148 = vector.broadcast %140 : vector<5x1xf32> to vector<5x32xf32>
    %149 = arith.subf %134, %148 : vector<5x32xf32>
    %cst_73 = arith.constant 9.99999974E-6 : f32
    %150 = vector.broadcast %cst_73 : f32 to vector<5x1xf32>
    %151 = arith.addf %147, %150 : vector<5x1xf32>
    %152 = math.rsqrt %151 : vector<5x1xf32>
    %153 = vector.broadcast %152 : vector<5x1xf32> to vector<5x32xf32>
    %154 = arith.mulf %149, %153 : vector<5x32xf32>
    %155 = vector.broadcast %135 : vector<1x32xf32> to vector<5x32xf32>
    %156 = arith.mulf %154, %155 : vector<5x32xf32>
    %157 = vector.broadcast %136 : vector<1x32xf32> to vector<5x32xf32>
    %158 = arith.addf %156, %157 : vector<5x32xf32>
    %c0_74 = arith.constant 0 : index
    %c0_75 = arith.constant 0 : index
    %c0_76 = arith.constant 0 : index
    %159 = vector.load %arg14[%c0_74, %c0_75, %c0_76] : memref<1x5x1xf32, #tpu.memory_space<vmem>>, vector<1x5x1xf32>
    %160 = vector.shape_cast %159 : vector<1x5x1xf32> to vector<5x1xf32>
    %161 = vector.broadcast %160 : vector<5x1xf32> to vector<5x32xf32>
    %162 = arith.mulf %158, %161 : vector<5x32xf32>
    %cst_77 = arith.constant 0.000000e+00 : f32
    %163 = vector.broadcast %cst_77 : f32 to vector<9x32xf32>
    %c0_78 = arith.constant 0 : index
    %c0_79 = arith.constant 0 : index
    %164 = vector.load %arg37[%c0_78, %c0_79] : memref<9x32xf32, #tpu.memory_space<vmem>>, vector<9x32xf32>
    tpu.vector_store %arg37[%c0_78, %c0_79], %163 {strides = array<i32>} : memref<9x32xf32, #tpu.memory_space<vmem>>, vector<9x32xf32>,
    %c2_80 = arith.constant 2 : index
    %c0_81 = arith.constant 0 : index
    %165 = vector.load %arg37[%c2_80, %c0_81] : memref<9x32xf32, #tpu.memory_space<vmem>>, vector<5x32xf32>
    tpu.vector_store %arg37[%c2_80, %c0_81], %162 {strides = array<i32>} : memref<9x32xf32, #tpu.memory_space<vmem>>, vector<5x32xf32>,
    %c0_82 = arith.constant 0 : index
    %c0_83 = arith.constant 0 : index
    %166 = vector.load %arg17[%c0_82, %c0_83] : memref<1x32xf32, #tpu.memory_space<vmem>>, vector<1x32xf32>
    %c0_84 = arith.constant 0 : index
    %c0_85 = arith.constant 0 : index
    %167 = vector.load %arg37[%c0_84, %c0_85] : memref<9x32xf32, #tpu.memory_space<vmem>>, vector<6x32xf32>
    %c0_86 = arith.constant 0 : index
    %c0_87 = arith.constant 0 : index
    %c0_88 = arith.constant 0 : index
    %168 = vector.load %arg16[%c0_86, %c0_87, %c0_88] : memref<4x32x32xf32, #tpu.memory_space<vmem>>, vector<1x32x32xf32>
    %169 = vector.shape_cast %168 : vector<1x32x32xf32> to vector<32x32xf32>
    %cst_89 = arith.constant dense<0.000000e+00> : vector<6x32xf32>
    %170 = tpu.matmul %167, %169, %cst_89 {dimension_numbers = #tpu.dot_dimension_numbers<[1], [0], [0], [1], [0, 0, 1, 1], [], []>} : vector<6x32xf32>, vector<32x32xf32>, vector<6x32xf32> -> vector<6x32xf32>
    %171 = vector.broadcast %166 : vector<1x32xf32> to vector<6x32xf32>
    %172 = arith.addf %171, %170 : vector<6x32xf32>
    %c1_90 = arith.constant 1 : index
    %c0_91 = arith.constant 0 : index
    %173 = vector.load %arg37[%c1_90, %c0_91] : memref<9x32xf32, #tpu.memory_space<vmem>>, vector<6x32xf32>
    %c1_92 = arith.constant 1 : index
    %c0_93 = arith.constant 0 : index
    %c0_94 = arith.constant 0 : index
    %174 = vector.load %arg16[%c1_92, %c0_93, %c0_94] : memref<4x32x32xf32, #tpu.memory_space<vmem>>, vector<1x32x32xf32>
    %175 = vector.shape_cast %174 : vector<1x32x32xf32> to vector<32x32xf32>
    %cst_95 = arith.constant dense<0.000000e+00> : vector<6x32xf32>
    %176 = tpu.matmul %173, %175, %cst_95 {dimension_numbers = #tpu.dot_dimension_numbers<[1], [0], [0], [1], [0, 0, 1, 1], [], []>} : vector<6x32xf32>, vector<32x32xf32>, vector<6x32xf32> -> vector<6x32xf32>
    %177 = arith.addf %172, %176 : vector<6x32xf32>
    %c2_96 = arith.constant 2 : index
    %c0_97 = arith.constant 0 : index
    %178 = vector.load %arg37[%c2_96, %c0_97] : memref<9x32xf32, #tpu.memory_space<vmem>>, vector<6x32xf32>
    %c2_98 = arith.constant 2 : index
    %c0_99 = arith.constant 0 : index
    %c0_100 = arith.constant 0 : index
    %179 = vector.load %arg16[%c2_98, %c0_99, %c0_100] : memref<4x32x32xf32, #tpu.memory_space<vmem>>, vector<1x32x32xf32>
    %180 = vector.shape_cast %179 : vector<1x32x32xf32> to vector<32x32xf32>
    %cst_101 = arith.constant dense<0.000000e+00> : vector<6x32xf32>
    %181 = tpu.matmul %178, %180, %cst_101 {dimension_numbers = #tpu.dot_dimension_numbers<[1], [0], [0], [1], [0, 0, 1, 1], [], []>} : vector<6x32xf32>, vector<32x32xf32>, vector<6x32xf32> -> vector<6x32xf32>
    %182 = arith.addf %177, %181 : vector<6x32xf32>
    %c3 = arith.constant 3 : index
    %c0_102 = arith.constant 0 : index
    %183 = vector.load %arg37[%c3, %c0_102] : memref<9x32xf32, #tpu.memory_space<vmem>>, vector<6x32xf32>
    %c3_103 = arith.constant 3 : index
    %c0_104 = arith.constant 0 : index
    %c0_105 = arith.constant 0 : index
    %184 = vector.load %arg16[%c3_103, %c0_104, %c0_105] : memref<4x32x32xf32, #tpu.memory_space<vmem>>, vector<1x32x32xf32>
    %185 = vector.shape_cast %184 : vector<1x32x32xf32> to vector<32x32xf32>
    %cst_106 = arith.constant dense<0.000000e+00> : vector<6x32xf32>
    %186 = tpu.matmul %183, %185, %cst_106 {dimension_numbers = #tpu.dot_dimension_numbers<[1], [0], [0], [1], [0, 0, 1, 1], [], []>} : vector<6x32xf32>, vector<32x32xf32>, vector<6x32xf32> -> vector<6x32xf32>
    %187 = arith.addf %182, %186 : vector<6x32xf32>
    %188 = vector.extract_strided_slice %187 {offsets = [0, 0], sizes = [5, 32], strides = [1, 1]} : vector<6x32xf32> to vector<5x32xf32>
    %189 = arith.mulf %188, %188 : vector<5x32xf32>
    %190 = arith.mulf %188, %189 : vector<5x32xf32>
    %cst_107 = arith.constant 4.471500e-02 : f32
    %191 = vector.broadcast %cst_107 : f32 to vector<5x32xf32>
    %192 = arith.mulf %191, %190 : vector<5x32xf32>
    %193 = arith.addf %188, %192 : vector<5x32xf32>
    %cst_108 = arith.constant 0.797884583 : f32
    %194 = vector.broadcast %cst_108 : f32 to vector<5x32xf32>
    %195 = arith.mulf %194, %193 : vector<5x32xf32>
    %196 = math.tanh %195 : vector<5x32xf32>
    %cst_109 = arith.constant 1.000000e+00 : f32
    %197 = vector.broadcast %cst_109 : f32 to vector<5x32xf32>
    %198 = arith.addf %197, %196 : vector<5x32xf32>
    %cst_110 = arith.constant 5.000000e-01 : f32
    %199 = vector.broadcast %cst_110 : f32 to vector<5x32xf32>
    %200 = arith.mulf %199, %198 : vector<5x32xf32>
    %201 = arith.mulf %188, %200 : vector<5x32xf32>
    %202 = arith.addf %162, %201 : vector<5x32xf32>
    %c0_111 = arith.constant 0 : index
    %c0_112 = arith.constant 0 : index
    %c0_113 = arith.constant 0 : index
    %203 = vector.load %arg15[%c0_111, %c0_112, %c0_113] : memref<1x1x5xf32, #tpu.memory_space<vmem>>, vector<1x1x5xf32>
    %204 = vector.shape_cast %203 : vector<1x1x5xf32> to vector<1x5xf32>
    %c0_114 = arith.constant 0 : index
    %c0_115 = arith.constant 0 : index
    %c0_116 = arith.constant 0 : index
    %205 = vector.load %arg18[%c0_114, %c0_115, %c0_116] : memref<2x1x32xf32, #tpu.memory_space<vmem>>, vector<1x1x32xf32>
    %206 = vector.shape_cast %205 : vector<1x1x32xf32> to vector<1x32xf32>
    %c0_117 = arith.constant 0 : index
    %c0_118 = arith.constant 0 : index
    %c0_119 = arith.constant 0 : index
    %207 = vector.load %arg19[%c0_117, %c0_118, %c0_119] : memref<2x1x32xf32, #tpu.memory_space<vmem>>, vector<1x1x32xf32>
    %208 = vector.shape_cast %207 : vector<1x1x32xf32> to vector<1x32xf32>
    %cst_120 = arith.constant dense<0.000000e+00> : vector<5xf32>
    %209 = vector.multi_reduction <add>, %202, %cst_120 [1] : vector<5x32xf32> to vector<5xf32>
    %210 = vector.shape_cast %209 : vector<5xf32> to vector<5x1xf32>
    %cst_121 = arith.constant 3.200000e+01 : f32
    %211 = vector.broadcast %cst_121 : f32 to vector<5x1xf32>
    %212 = arith.divf %210, %211 : vector<5x1xf32>
    %213 = vector.broadcast %212 : vector<5x1xf32> to vector<5x32xf32>
    %214 = arith.subf %202, %213 : vector<5x32xf32>
    %215 = arith.mulf %214, %214 : vector<5x32xf32>
    %cst_122 = arith.constant dense<0.000000e+00> : vector<5xf32>
    %216 = vector.multi_reduction <add>, %215, %cst_122 [1] : vector<5x32xf32> to vector<5xf32>
    %217 = vector.shape_cast %216 : vector<5xf32> to vector<5x1xf32>
    %cst_123 = arith.constant 3.200000e+01 : f32
    %218 = vector.broadcast %cst_123 : f32 to vector<5x1xf32>
    %219 = arith.divf %217, %218 : vector<5x1xf32>
    %220 = vector.broadcast %212 : vector<5x1xf32> to vector<5x32xf32>
    %221 = arith.subf %202, %220 : vector<5x32xf32>
    %cst_124 = arith.constant 9.99999974E-6 : f32
    %222 = vector.broadcast %cst_124 : f32 to vector<5x1xf32>
    %223 = arith.addf %219, %222 : vector<5x1xf32>
    %224 = math.rsqrt %223 : vector<5x1xf32>
    %225 = vector.broadcast %224 : vector<5x1xf32> to vector<5x32xf32>
    %226 = arith.mulf %221, %225 : vector<5x32xf32>
    %227 = vector.broadcast %206 : vector<1x32xf32> to vector<5x32xf32>
    %228 = arith.mulf %226, %227 : vector<5x32xf32>
    %229 = vector.broadcast %208 : vector<1x32xf32> to vector<5x32xf32>
    %230 = arith.addf %228, %229 : vector<5x32xf32>
    %cst_125 = arith.constant 0.000000e+00 : f32
    %231 = vector.broadcast %cst_125 : f32 to vector<5x32xf32>
    %c0_126 = arith.constant 0 : index
    %c0_127 = arith.constant 0 : index
    %c0_128 = arith.constant 0 : index
    %232 = vector.load %arg20[%c0_126, %c0_127, %c0_128] : memref<8x32x8xf32, #tpu.memory_space<vmem>>, vector<1x32x8xf32>
    %233 = vector.shape_cast %232 : vector<1x32x8xf32> to vector<32x8xf32>
    %cst_129 = arith.constant dense<0.000000e+00> : vector<5x8xf32>
    %234 = tpu.matmul %230, %233, %cst_129 {dimension_numbers = #tpu.dot_dimension_numbers<[1], [0], [0], [1], [0, 0, 1, 1], [], []>} : vector<5x32xf32>, vector<32x8xf32>, vector<5x8xf32> -> vector<5x8xf32>
    %c0_130 = arith.constant 0 : index
    %c0_131 = arith.constant 0 : index
    %c0_132 = arith.constant 0 : index
    %235 = vector.load %arg21[%c0_130, %c0_131, %c0_132] : memref<8x1x8xf32, #tpu.memory_space<vmem>>, vector<1x1x8xf32>
    %236 = vector.shape_cast %235 : vector<1x1x8xf32> to vector<1x8xf32>
    %237 = vector.broadcast %236 : vector<1x8xf32> to vector<5x8xf32>
    %238 = arith.addf %234, %237 : vector<5x8xf32>
    %c0_133 = arith.constant 0 : index
    %c0_134 = arith.constant 0 : index
    %c0_135 = arith.constant 0 : index
    %239 = vector.load %arg22[%c0_133, %c0_134, %c0_135] : memref<8x32x8xf32, #tpu.memory_space<vmem>>, vector<1x32x8xf32>
    %240 = vector.shape_cast %239 : vector<1x32x8xf32> to vector<32x8xf32>
    %cst_136 = arith.constant dense<0.000000e+00> : vector<5x8xf32>
    %241 = tpu.matmul %230, %240, %cst_136 {dimension_numbers = #tpu.dot_dimension_numbers<[1], [0], [0], [1], [0, 0, 1, 1], [], []>} : vector<5x32xf32>, vector<32x8xf32>, vector<5x8xf32> -> vector<5x8xf32>
    %c0_137 = arith.constant 0 : index
    %c0_138 = arith.constant 0 : index
    %c0_139 = arith.constant 0 : index
    %242 = vector.load %arg23[%c0_137, %c0_138, %c0_139] : memref<8x1x8xf32, #tpu.memory_space<vmem>>, vector<1x1x8xf32>
    %243 = vector.shape_cast %242 : vector<1x1x8xf32> to vector<1x8xf32>
    %244 = vector.broadcast %243 : vector<1x8xf32> to vector<5x8xf32>
    %245 = arith.addf %241, %244 : vector<5x8xf32>
    %c0_140 = arith.constant 0 : index
    %c0_141 = arith.constant 0 : index
    %c0_142 = arith.constant 0 : index
    %246 = vector.load %arg24[%c0_140, %c0_141, %c0_142] : memref<8x32x8xf32, #tpu.memory_space<vmem>>, vector<1x32x8xf32>
    %247 = vector.shape_cast %246 : vector<1x32x8xf32> to vector<32x8xf32>
    %cst_143 = arith.constant dense<0.000000e+00> : vector<5x8xf32>
    %248 = tpu.matmul %230, %247, %cst_143 {dimension_numbers = #tpu.dot_dimension_numbers<[1], [0], [0], [1], [0, 0, 1, 1], [], []>} : vector<5x32xf32>, vector<32x8xf32>, vector<5x8xf32> -> vector<5x8xf32>
    %c0_144 = arith.constant 0 : index
    %c0_145 = arith.constant 0 : index
    %c0_146 = arith.constant 0 : index
    %249 = vector.load %arg25[%c0_144, %c0_145, %c0_146] : memref<8x1x8xf32, #tpu.memory_space<vmem>>, vector<1x1x8xf32>
    %250 = vector.shape_cast %249 : vector<1x1x8xf32> to vector<1x8xf32>
    %251 = vector.broadcast %250 : vector<1x8xf32> to vector<5x8xf32>
    %252 = arith.addf %248, %251 : vector<5x8xf32>
    %cst_147 = arith.constant 0.353553385 : f32
    %253 = vector.broadcast %cst_147 : f32 to vector<5x8xf32>
    %254 = arith.mulf %238, %253 : vector<5x8xf32>
    %cst_148 = arith.constant dense<0.000000e+00> : vector<5x5xf32>
    %255 = tpu.matmul %254, %245, %cst_148 {dimension_numbers = #tpu.dot_dimension_numbers<[1], [1], [0], [0], [0, 0, 1, 0], [], []>} : vector<5x8xf32>, vector<5x8xf32>, vector<5x5xf32> -> vector<5x5xf32>
    %256 = vector.broadcast %204 : vector<1x5xf32> to vector<5x5xf32>
    %257 = arith.addf %255, %256 : vector<5x5xf32>
    %cst_149 = arith.constant dense<0xFF800000> : vector<5xf32>
    %258 = vector.multi_reduction <maximumf>, %257, %cst_149 [1] : vector<5x5xf32> to vector<5xf32>
    %259 = vector.shape_cast %258 : vector<5xf32> to vector<5x1xf32>
    %260 = vector.broadcast %259 : vector<5x1xf32> to vector<5x5xf32>
    %261 = arith.subf %257, %260 : vector<5x5xf32>
    %262 = math.exp %261 : vector<5x5xf32>
    %cst_150 = arith.constant dense<0.000000e+00> : vector<5xf32>
    %263 = vector.multi_reduction <add>, %262, %cst_150 [1] : vector<5x5xf32> to vector<5xf32>
    %264 = vector.shape_cast %263 : vector<5xf32> to vector<5x1xf32>
    %265 = vector.broadcast %264 : vector<5x1xf32> to vector<5x5xf32>
    %266 = arith.divf %262, %265 : vector<5x5xf32>
    %cst_151 = arith.constant dense<0.000000e+00> : vector<5x8xf32>
    %267 = tpu.matmul %266, %252, %cst_151 {dimension_numbers = #tpu.dot_dimension_numbers<[1], [0], [0], [1], [0, 0, 1, 1], [], []>} : vector<5x5xf32>, vector<5x8xf32>, vector<5x8xf32> -> vector<5x8xf32>
    %c0_152 = arith.constant 0 : index
    %c0_153 = arith.constant 0 : index
    %c0_154 = arith.constant 0 : index
    %268 = vector.load %arg26[%c0_152, %c0_153, %c0_154] : memref<8x8x32xf32, #tpu.memory_space<vmem>>, vector<1x8x32xf32>
    %269 = vector.shape_cast %268 : vector<1x8x32xf32> to vector<8x32xf32>
    %cst_155 = arith.constant dense<0.000000e+00> : vector<5x32xf32>
    %270 = tpu.matmul %267, %269, %cst_155 {dimension_numbers = #tpu.dot_dimension_numbers<[1], [0], [0], [1], [0, 0, 1, 1], [], []>} : vector<5x8xf32>, vector<8x32xf32>, vector<5x32xf32> -> vector<5x32xf32>
    %271 = arith.addf %231, %270 : vector<5x32xf32>
    %c1_156 = arith.constant 1 : index
    %c0_157 = arith.constant 0 : index
    %c0_158 = arith.constant 0 : index
    %272 = vector.load %arg20[%c1_156, %c0_157, %c0_158] : memref<8x32x8xf32, #tpu.memory_space<vmem>>, vector<1x32x8xf32>
    %273 = vector.shape_cast %272 : vector<1x32x8xf32> to vector<32x8xf32>
    %cst_159 = arith.constant dense<0.000000e+00> : vector<5x8xf32>
    %274 = tpu.matmul %230, %273, %cst_159 {dimension_numbers = #tpu.dot_dimension_numbers<[1], [0], [0], [1], [0, 0, 1, 1], [], []>} : vector<5x32xf32>, vector<32x8xf32>, vector<5x8xf32> -> vector<5x8xf32>
    %c1_160 = arith.constant 1 : index
    %c0_161 = arith.constant 0 : index
    %c0_162 = arith.constant 0 : index
    %275 = vector.load %arg21[%c1_160, %c0_161, %c0_162] : memref<8x1x8xf32, #tpu.memory_space<vmem>>, vector<1x1x8xf32>
    %276 = vector.shape_cast %275 : vector<1x1x8xf32> to vector<1x8xf32>
    %277 = vector.broadcast %276 : vector<1x8xf32> to vector<5x8xf32>
    %278 = arith.addf %274, %277 : vector<5x8xf32>
    %c1_163 = arith.constant 1 : index
    %c0_164 = arith.constant 0 : index
    %c0_165 = arith.constant 0 : index
    %279 = vector.load %arg22[%c1_163, %c0_164, %c0_165] : memref<8x32x8xf32, #tpu.memory_space<vmem>>, vector<1x32x8xf32>
    %280 = vector.shape_cast %279 : vector<1x32x8xf32> to vector<32x8xf32>
    %cst_166 = arith.constant dense<0.000000e+00> : vector<5x8xf32>
    %281 = tpu.matmul %230, %280, %cst_166 {dimension_numbers = #tpu.dot_dimension_numbers<[1], [0], [0], [1], [0, 0, 1, 1], [], []>} : vector<5x32xf32>, vector<32x8xf32>, vector<5x8xf32> -> vector<5x8xf32>
    %c1_167 = arith.constant 1 : index
    %c0_168 = arith.constant 0 : index
    %c0_169 = arith.constant 0 : index
    %282 = vector.load %arg23[%c1_167, %c0_168, %c0_169] : memref<8x1x8xf32, #tpu.memory_space<vmem>>, vector<1x1x8xf32>
    %283 = vector.shape_cast %282 : vector<1x1x8xf32> to vector<1x8xf32>
    %284 = vector.broadcast %283 : vector<1x8xf32> to vector<5x8xf32>
    %285 = arith.addf %281, %284 : vector<5x8xf32>
    %c1_170 = arith.constant 1 : index
    %c0_171 = arith.constant 0 : index
    %c0_172 = arith.constant 0 : index
    %286 = vector.load %arg24[%c1_170, %c0_171, %c0_172] : memref<8x32x8xf32, #tpu.memory_space<vmem>>, vector<1x32x8xf32>
    %287 = vector.shape_cast %286 : vector<1x32x8xf32> to vector<32x8xf32>
    %cst_173 = arith.constant dense<0.000000e+00> : vector<5x8xf32>
    %288 = tpu.matmul %230, %287, %cst_173 {dimension_numbers = #tpu.dot_dimension_numbers<[1], [0], [0], [1], [0, 0, 1, 1], [], []>} : vector<5x32xf32>, vector<32x8xf32>, vector<5x8xf32> -> vector<5x8xf32>
    %c1_174 = arith.constant 1 : index
    %c0_175 = arith.constant 0 : index
    %c0_176 = arith.constant 0 : index
    %289 = vector.load %arg25[%c1_174, %c0_175, %c0_176] : memref<8x1x8xf32, #tpu.memory_space<vmem>>, vector<1x1x8xf32>
    %290 = vector.shape_cast %289 : vector<1x1x8xf32> to vector<1x8xf32>
    %291 = vector.broadcast %290 : vector<1x8xf32> to vector<5x8xf32>
    %292 = arith.addf %288, %291 : vector<5x8xf32>
    %cst_177 = arith.constant 0.353553385 : f32
    %293 = vector.broadcast %cst_177 : f32 to vector<5x8xf32>
    %294 = arith.mulf %278, %293 : vector<5x8xf32>
    %cst_178 = arith.constant dense<0.000000e+00> : vector<5x5xf32>
    %295 = tpu.matmul %294, %285, %cst_178 {dimension_numbers = #tpu.dot_dimension_numbers<[1], [1], [0], [0], [0, 0, 1, 0], [], []>} : vector<5x8xf32>, vector<5x8xf32>, vector<5x5xf32> -> vector<5x5xf32>
    %296 = vector.broadcast %204 : vector<1x5xf32> to vector<5x5xf32>
    %297 = arith.addf %295, %296 : vector<5x5xf32>
    %cst_179 = arith.constant dense<0xFF800000> : vector<5xf32>
    %298 = vector.multi_reduction <maximumf>, %297, %cst_179 [1] : vector<5x5xf32> to vector<5xf32>
    %299 = vector.shape_cast %298 : vector<5xf32> to vector<5x1xf32>
    %300 = vector.broadcast %299 : vector<5x1xf32> to vector<5x5xf32>
    %301 = arith.subf %297, %300 : vector<5x5xf32>
    %302 = math.exp %301 : vector<5x5xf32>
    %cst_180 = arith.constant dense<0.000000e+00> : vector<5xf32>
    %303 = vector.multi_reduction <add>, %302, %cst_180 [1] : vector<5x5xf32> to vector<5xf32>
    %304 = vector.shape_cast %303 : vector<5xf32> to vector<5x1xf32>
    %305 = vector.broadcast %304 : vector<5x1xf32> to vector<5x5xf32>
    %306 = arith.divf %302, %305 : vector<5x5xf32>
    %cst_181 = arith.constant dense<0.000000e+00> : vector<5x8xf32>
    %307 = tpu.matmul %306, %292, %cst_181 {dimension_numbers = #tpu.dot_dimension_numbers<[1], [0], [0], [1], [0, 0, 1, 1], [], []>} : vector<5x5xf32>, vector<5x8xf32>, vector<5x8xf32> -> vector<5x8xf32>
    %c1_182 = arith.constant 1 : index
    %c0_183 = arith.constant 0 : index
    %c0_184 = arith.constant 0 : index
    %308 = vector.load %arg26[%c1_182, %c0_183, %c0_184] : memref<8x8x32xf32, #tpu.memory_space<vmem>>, vector<1x8x32xf32>
    %309 = vector.shape_cast %308 : vector<1x8x32xf32> to vector<8x32xf32>
    %cst_185 = arith.constant dense<0.000000e+00> : vector<5x32xf32>
    %310 = tpu.matmul %307, %309, %cst_185 {dimension_numbers = #tpu.dot_dimension_numbers<[1], [0], [0], [1], [0, 0, 1, 1], [], []>} : vector<5x8xf32>, vector<8x32xf32>, vector<5x32xf32> -> vector<5x32xf32>
    %311 = arith.addf %271, %310 : vector<5x32xf32>
    %c2_186 = arith.constant 2 : index
    %c0_187 = arith.constant 0 : index
    %c0_188 = arith.constant 0 : index
    %312 = vector.load %arg20[%c2_186, %c0_187, %c0_188] : memref<8x32x8xf32, #tpu.memory_space<vmem>>, vector<1x32x8xf32>
    %313 = vector.shape_cast %312 : vector<1x32x8xf32> to vector<32x8xf32>
    %cst_189 = arith.constant dense<0.000000e+00> : vector<5x8xf32>
    %314 = tpu.matmul %230, %313, %cst_189 {dimension_numbers = #tpu.dot_dimension_numbers<[1], [0], [0], [1], [0, 0, 1, 1], [], []>} : vector<5x32xf32>, vector<32x8xf32>, vector<5x8xf32> -> vector<5x8xf32>
    %c2_190 = arith.constant 2 : index
    %c0_191 = arith.constant 0 : index
    %c0_192 = arith.constant 0 : index
    %315 = vector.load %arg21[%c2_190, %c0_191, %c0_192] : memref<8x1x8xf32, #tpu.memory_space<vmem>>, vector<1x1x8xf32>
    %316 = vector.shape_cast %315 : vector<1x1x8xf32> to vector<1x8xf32>
    %317 = vector.broadcast %316 : vector<1x8xf32> to vector<5x8xf32>
    %318 = arith.addf %314, %317 : vector<5x8xf32>
    %c2_193 = arith.constant 2 : index
    %c0_194 = arith.constant 0 : index
    %c0_195 = arith.constant 0 : index
    %319 = vector.load %arg22[%c2_193, %c0_194, %c0_195] : memref<8x32x8xf32, #tpu.memory_space<vmem>>, vector<1x32x8xf32>
    %320 = vector.shape_cast %319 : vector<1x32x8xf32> to vector<32x8xf32>
    %cst_196 = arith.constant dense<0.000000e+00> : vector<5x8xf32>
    %321 = tpu.matmul %230, %320, %cst_196 {dimension_numbers = #tpu.dot_dimension_numbers<[1], [0], [0], [1], [0, 0, 1, 1], [], []>} : vector<5x32xf32>, vector<32x8xf32>, vector<5x8xf32> -> vector<5x8xf32>
    %c2_197 = arith.constant 2 : index
    %c0_198 = arith.constant 0 : index
    %c0_199 = arith.constant 0 : index
    %322 = vector.load %arg23[%c2_197, %c0_198, %c0_199] : memref<8x1x8xf32, #tpu.memory_space<vmem>>, vector<1x1x8xf32>
    %323 = vector.shape_cast %322 : vector<1x1x8xf32> to vector<1x8xf32>
    %324 = vector.broadcast %323 : vector<1x8xf32> to vector<5x8xf32>
    %325 = arith.addf %321, %324 : vector<5x8xf32>
    %c2_200 = arith.constant 2 : index
    %c0_201 = arith.constant 0 : index
    %c0_202 = arith.constant 0 : index
    %326 = vector.load %arg24[%c2_200, %c0_201, %c0_202] : memref<8x32x8xf32, #tpu.memory_space<vmem>>, vector<1x32x8xf32>
    %327 = vector.shape_cast %326 : vector<1x32x8xf32> to vector<32x8xf32>
    %cst_203 = arith.constant dense<0.000000e+00> : vector<5x8xf32>
    %328 = tpu.matmul %230, %327, %cst_203 {dimension_numbers = #tpu.dot_dimension_numbers<[1], [0], [0], [1], [0, 0, 1, 1], [], []>} : vector<5x32xf32>, vector<32x8xf32>, vector<5x8xf32> -> vector<5x8xf32>
    %c2_204 = arith.constant 2 : index
    %c0_205 = arith.constant 0 : index
    %c0_206 = arith.constant 0 : index
    %329 = vector.load %arg25[%c2_204, %c0_205, %c0_206] : memref<8x1x8xf32, #tpu.memory_space<vmem>>, vector<1x1x8xf32>
    %330 = vector.shape_cast %329 : vector<1x1x8xf32> to vector<1x8xf32>
    %331 = vector.broadcast %330 : vector<1x8xf32> to vector<5x8xf32>
    %332 = arith.addf %328, %331 : vector<5x8xf32>
    %cst_207 = arith.constant 0.353553385 : f32
    %333 = vector.broadcast %cst_207 : f32 to vector<5x8xf32>
    %334 = arith.mulf %318, %333 : vector<5x8xf32>
    %cst_208 = arith.constant dense<0.000000e+00> : vector<5x5xf32>
    %335 = tpu.matmul %334, %325, %cst_208 {dimension_numbers = #tpu.dot_dimension_numbers<[1], [1], [0], [0], [0, 0, 1, 0], [], []>} : vector<5x8xf32>, vector<5x8xf32>, vector<5x5xf32> -> vector<5x5xf32>
    %336 = vector.broadcast %204 : vector<1x5xf32> to vector<5x5xf32>
    %337 = arith.addf %335, %336 : vector<5x5xf32>
    %cst_209 = arith.constant dense<0xFF800000> : vector<5xf32>
    %338 = vector.multi_reduction <maximumf>, %337, %cst_209 [1] : vector<5x5xf32> to vector<5xf32>
    %339 = vector.shape_cast %338 : vector<5xf32> to vector<5x1xf32>
    %340 = vector.broadcast %339 : vector<5x1xf32> to vector<5x5xf32>
    %341 = arith.subf %337, %340 : vector<5x5xf32>
    %342 = math.exp %341 : vector<5x5xf32>
    %cst_210 = arith.constant dense<0.000000e+00> : vector<5xf32>
    %343 = vector.multi_reduction <add>, %342, %cst_210 [1] : vector<5x5xf32> to vector<5xf32>
    %344 = vector.shape_cast %343 : vector<5xf32> to vector<5x1xf32>
    %345 = vector.broadcast %344 : vector<5x1xf32> to vector<5x5xf32>
    %346 = arith.divf %342, %345 : vector<5x5xf32>
    %cst_211 = arith.constant dense<0.000000e+00> : vector<5x8xf32>
    %347 = tpu.matmul %346, %332, %cst_211 {dimension_numbers = #tpu.dot_dimension_numbers<[1], [0], [0], [1], [0, 0, 1, 1], [], []>} : vector<5x5xf32>, vector<5x8xf32>, vector<5x8xf32> -> vector<5x8xf32>
    %c2_212 = arith.constant 2 : index
    %c0_213 = arith.constant 0 : index
    %c0_214 = arith.constant 0 : index
    %348 = vector.load %arg26[%c2_212, %c0_213, %c0_214] : memref<8x8x32xf32, #tpu.memory_space<vmem>>, vector<1x8x32xf32>
    %349 = vector.shape_cast %348 : vector<1x8x32xf32> to vector<8x32xf32>
    %cst_215 = arith.constant dense<0.000000e+00> : vector<5x32xf32>
    %350 = tpu.matmul %347, %349, %cst_215 {dimension_numbers = #tpu.dot_dimension_numbers<[1], [0], [0], [1], [0, 0, 1, 1], [], []>} : vector<5x8xf32>, vector<8x32xf32>, vector<5x32xf32> -> vector<5x32xf32>
    %351 = arith.addf %311, %350 : vector<5x32xf32>
    %c3_216 = arith.constant 3 : index
    %c0_217 = arith.constant 0 : index
    %c0_218 = arith.constant 0 : index
    %352 = vector.load %arg20[%c3_216, %c0_217, %c0_218] : memref<8x32x8xf32, #tpu.memory_space<vmem>>, vector<1x32x8xf32>
    %353 = vector.shape_cast %352 : vector<1x32x8xf32> to vector<32x8xf32>
    %cst_219 = arith.constant dense<0.000000e+00> : vector<5x8xf32>
    %354 = tpu.matmul %230, %353, %cst_219 {dimension_numbers = #tpu.dot_dimension_numbers<[1], [0], [0], [1], [0, 0, 1, 1], [], []>} : vector<5x32xf32>, vector<32x8xf32>, vector<5x8xf32> -> vector<5x8xf32>
    %c3_220 = arith.constant 3 : index
    %c0_221 = arith.constant 0 : index
    %c0_222 = arith.constant 0 : index
    %355 = vector.load %arg21[%c3_220, %c0_221, %c0_222] : memref<8x1x8xf32, #tpu.memory_space<vmem>>, vector<1x1x8xf32>
    %356 = vector.shape_cast %355 : vector<1x1x8xf32> to vector<1x8xf32>
    %357 = vector.broadcast %356 : vector<1x8xf32> to vector<5x8xf32>
    %358 = arith.addf %354, %357 : vector<5x8xf32>
    %c3_223 = arith.constant 3 : index
    %c0_224 = arith.constant 0 : index
    %c0_225 = arith.constant 0 : index
    %359 = vector.load %arg22[%c3_223, %c0_224, %c0_225] : memref<8x32x8xf32, #tpu.memory_space<vmem>>, vector<1x32x8xf32>
    %360 = vector.shape_cast %359 : vector<1x32x8xf32> to vector<32x8xf32>
    %cst_226 = arith.constant dense<0.000000e+00> : vector<5x8xf32>
    %361 = tpu.matmul %230, %360, %cst_226 {dimension_numbers = #tpu.dot_dimension_numbers<[1], [0], [0], [1], [0, 0, 1, 1], [], []>} : vector<5x32xf32>, vector<32x8xf32>, vector<5x8xf32> -> vector<5x8xf32>
    %c3_227 = arith.constant 3 : index
    %c0_228 = arith.constant 0 : index
    %c0_229 = arith.constant 0 : index
    %362 = vector.load %arg23[%c3_227, %c0_228, %c0_229] : memref<8x1x8xf32, #tpu.memory_space<vmem>>, vector<1x1x8xf32>
    %363 = vector.shape_cast %362 : vector<1x1x8xf32> to vector<1x8xf32>
    %364 = vector.broadcast %363 : vector<1x8xf32> to vector<5x8xf32>
    %365 = arith.addf %361, %364 : vector<5x8xf32>
    %c3_230 = arith.constant 3 : index
    %c0_231 = arith.constant 0 : index
    %c0_232 = arith.constant 0 : index
    %366 = vector.load %arg24[%c3_230, %c0_231, %c0_232] : memref<8x32x8xf32, #tpu.memory_space<vmem>>, vector<1x32x8xf32>
    %367 = vector.shape_cast %366 : vector<1x32x8xf32> to vector<32x8xf32>
    %cst_233 = arith.constant dense<0.000000e+00> : vector<5x8xf32>
    %368 = tpu.matmul %230, %367, %cst_233 {dimension_numbers = #tpu.dot_dimension_numbers<[1], [0], [0], [1], [0, 0, 1, 1], [], []>} : vector<5x32xf32>, vector<32x8xf32>, vector<5x8xf32> -> vector<5x8xf32>
    %c3_234 = arith.constant 3 : index
    %c0_235 = arith.constant 0 : index
    %c0_236 = arith.constant 0 : index
    %369 = vector.load %arg25[%c3_234, %c0_235, %c0_236] : memref<8x1x8xf32, #tpu.memory_space<vmem>>, vector<1x1x8xf32>
    %370 = vector.shape_cast %369 : vector<1x1x8xf32> to vector<1x8xf32>
    %371 = vector.broadcast %370 : vector<1x8xf32> to vector<5x8xf32>
    %372 = arith.addf %368, %371 : vector<5x8xf32>
    %cst_237 = arith.constant 0.353553385 : f32
    %373 = vector.broadcast %cst_237 : f32 to vector<5x8xf32>
    %374 = arith.mulf %358, %373 : vector<5x8xf32>
    %cst_238 = arith.constant dense<0.000000e+00> : vector<5x5xf32>
    %375 = tpu.matmul %374, %365, %cst_238 {dimension_numbers = #tpu.dot_dimension_numbers<[1], [1], [0], [0], [0, 0, 1, 0], [], []>} : vector<5x8xf32>, vector<5x8xf32>, vector<5x5xf32> -> vector<5x5xf32>
    %376 = vector.broadcast %204 : vector<1x5xf32> to vector<5x5xf32>
    %377 = arith.addf %375, %376 : vector<5x5xf32>
    %cst_239 = arith.constant dense<0xFF800000> : vector<5xf32>
    %378 = vector.multi_reduction <maximumf>, %377, %cst_239 [1] : vector<5x5xf32> to vector<5xf32>
    %379 = vector.shape_cast %378 : vector<5xf32> to vector<5x1xf32>
    %380 = vector.broadcast %379 : vector<5x1xf32> to vector<5x5xf32>
    %381 = arith.subf %377, %380 : vector<5x5xf32>
    %382 = math.exp %381 : vector<5x5xf32>
    %cst_240 = arith.constant dense<0.000000e+00> : vector<5xf32>
    %383 = vector.multi_reduction <add>, %382, %cst_240 [1] : vector<5x5xf32> to vector<5xf32>
    %384 = vector.shape_cast %383 : vector<5xf32> to vector<5x1xf32>
    %385 = vector.broadcast %384 : vector<5x1xf32> to vector<5x5xf32>
    %386 = arith.divf %382, %385 : vector<5x5xf32>
    %cst_241 = arith.constant dense<0.000000e+00> : vector<5x8xf32>
    %387 = tpu.matmul %386, %372, %cst_241 {dimension_numbers = #tpu.dot_dimension_numbers<[1], [0], [0], [1], [0, 0, 1, 1], [], []>} : vector<5x5xf32>, vector<5x8xf32>, vector<5x8xf32> -> vector<5x8xf32>
    %c3_242 = arith.constant 3 : index
    %c0_243 = arith.constant 0 : index
    %c0_244 = arith.constant 0 : index
    %388 = vector.load %arg26[%c3_242, %c0_243, %c0_244] : memref<8x8x32xf32, #tpu.memory_space<vmem>>, vector<1x8x32xf32>
    %389 = vector.shape_cast %388 : vector<1x8x32xf32> to vector<8x32xf32>
    %cst_245 = arith.constant dense<0.000000e+00> : vector<5x32xf32>
    %390 = tpu.matmul %387, %389, %cst_245 {dimension_numbers = #tpu.dot_dimension_numbers<[1], [0], [0], [1], [0, 0, 1, 1], [], []>} : vector<5x8xf32>, vector<8x32xf32>, vector<5x32xf32> -> vector<5x32xf32>
    %391 = arith.addf %351, %390 : vector<5x32xf32>
    %392 = arith.addf %202, %391 : vector<5x32xf32>
    %c0_246 = arith.constant 0 : index
    %c0_247 = arith.constant 0 : index
    %c0_248 = arith.constant 0 : index
    %393 = vector.load %arg27[%c0_246, %c0_247, %c0_248] : memref<2x1x32xf32, #tpu.memory_space<vmem>>, vector<1x1x32xf32>
    %394 = vector.shape_cast %393 : vector<1x1x32xf32> to vector<1x32xf32>
    %395 = vector.broadcast %394 : vector<1x32xf32> to vector<5x32xf32>
    %396 = arith.addf %392, %395 : vector<5x32xf32>
    %c0_249 = arith.constant 0 : index
    %c0_250 = arith.constant 0 : index
    %c0_251 = arith.constant 0 : index
    %397 = vector.load %arg28[%c0_249, %c0_250, %c0_251] : memref<2x1x32xf32, #tpu.memory_space<vmem>>, vector<1x1x32xf32>
    %398 = vector.shape_cast %397 : vector<1x1x32xf32> to vector<1x32xf32>
    %c0_252 = arith.constant 0 : index
    %c0_253 = arith.constant 0 : index
    %c0_254 = arith.constant 0 : index
    %399 = vector.load %arg29[%c0_252, %c0_253, %c0_254] : memref<2x1x32xf32, #tpu.memory_space<vmem>>, vector<1x1x32xf32>
    %400 = vector.shape_cast %399 : vector<1x1x32xf32> to vector<1x32xf32>
    %cst_255 = arith.constant dense<0.000000e+00> : vector<5xf32>
    %401 = vector.multi_reduction <add>, %396, %cst_255 [1] : vector<5x32xf32> to vector<5xf32>
    %402 = vector.shape_cast %401 : vector<5xf32> to vector<5x1xf32>
    %cst_256 = arith.constant 3.200000e+01 : f32
    %403 = vector.broadcast %cst_256 : f32 to vector<5x1xf32>
    %404 = arith.divf %402, %403 : vector<5x1xf32>
    %405 = vector.broadcast %404 : vector<5x1xf32> to vector<5x32xf32>
    %406 = arith.subf %396, %405 : vector<5x32xf32>
    %407 = arith.mulf %406, %406 : vector<5x32xf32>
    %cst_257 = arith.constant dense<0.000000e+00> : vector<5xf32>
    %408 = vector.multi_reduction <add>, %407, %cst_257 [1] : vector<5x32xf32> to vector<5xf32>
    %409 = vector.shape_cast %408 : vector<5xf32> to vector<5x1xf32>
    %cst_258 = arith.constant 3.200000e+01 : f32
    %410 = vector.broadcast %cst_258 : f32 to vector<5x1xf32>
    %411 = arith.divf %409, %410 : vector<5x1xf32>
    %412 = vector.broadcast %404 : vector<5x1xf32> to vector<5x32xf32>
    %413 = arith.subf %396, %412 : vector<5x32xf32>
    %cst_259 = arith.constant 9.99999974E-6 : f32
    %414 = vector.broadcast %cst_259 : f32 to vector<5x1xf32>
    %415 = arith.addf %411, %414 : vector<5x1xf32>
    %416 = math.rsqrt %415 : vector<5x1xf32>
    %417 = vector.broadcast %416 : vector<5x1xf32> to vector<5x32xf32>
    %418 = arith.mulf %413, %417 : vector<5x32xf32>
    %419 = vector.broadcast %398 : vector<1x32xf32> to vector<5x32xf32>
    %420 = arith.mulf %418, %419 : vector<5x32xf32>
    %421 = vector.broadcast %400 : vector<1x32xf32> to vector<5x32xf32>
    %422 = arith.addf %420, %421 : vector<5x32xf32>
    %c0_260 = arith.constant 0 : index
    %c0_261 = arith.constant 0 : index
    %c0_262 = arith.constant 0 : index
    %423 = vector.load %arg30[%c0_260, %c0_261, %c0_262] : memref<2x32x64xf32, #tpu.memory_space<vmem>>, vector<1x32x64xf32>
    %424 = vector.shape_cast %423 : vector<1x32x64xf32> to vector<32x64xf32>
    %cst_263 = arith.constant dense<0.000000e+00> : vector<5x64xf32>
    %425 = tpu.matmul %422, %424, %cst_263 {dimension_numbers = #tpu.dot_dimension_numbers<[1], [0], [0], [1], [0, 0, 1, 1], [], []>} : vector<5x32xf32>, vector<32x64xf32>, vector<5x64xf32> -> vector<5x64xf32>
    %c0_264 = arith.constant 0 : index
    %c0_265 = arith.constant 0 : index
    %c0_266 = arith.constant 0 : index
    %426 = vector.load %arg31[%c0_264, %c0_265, %c0_266] : memref<2x1x64xf32, #tpu.memory_space<vmem>>, vector<1x1x64xf32>
    %427 = vector.shape_cast %426 : vector<1x1x64xf32> to vector<1x64xf32>
    %428 = vector.broadcast %427 : vector<1x64xf32> to vector<5x64xf32>
    %429 = arith.addf %425, %428 : vector<5x64xf32>
    %430 = arith.mulf %429, %429 : vector<5x64xf32>
    %431 = arith.mulf %429, %430 : vector<5x64xf32>
    %cst_267 = arith.constant 4.471500e-02 : f32
    %432 = vector.broadcast %cst_267 : f32 to vector<5x64xf32>
    %433 = arith.mulf %432, %431 : vector<5x64xf32>
    %434 = arith.addf %429, %433 : vector<5x64xf32>
    %cst_268 = arith.constant 0.797884583 : f32
    %435 = vector.broadcast %cst_268 : f32 to vector<5x64xf32>
    %436 = arith.mulf %435, %434 : vector<5x64xf32>
    %437 = math.tanh %436 : vector<5x64xf32>
    %cst_269 = arith.constant 1.000000e+00 : f32
    %438 = vector.broadcast %cst_269 : f32 to vector<5x64xf32>
    %439 = arith.addf %438, %437 : vector<5x64xf32>
    %cst_270 = arith.constant 5.000000e-01 : f32
    %440 = vector.broadcast %cst_270 : f32 to vector<5x64xf32>
    %441 = arith.mulf %440, %439 : vector<5x64xf32>
    %442 = arith.mulf %429, %441 : vector<5x64xf32>
    %c0_271 = arith.constant 0 : index
    %c0_272 = arith.constant 0 : index
    %c0_273 = arith.constant 0 : index
    %443 = vector.load %arg32[%c0_271, %c0_272, %c0_273] : memref<2x64x32xf32, #tpu.memory_space<vmem>>, vector<1x64x32xf32>
    %444 = vector.shape_cast %443 : vector<1x64x32xf32> to vector<64x32xf32>
    %cst_274 = arith.constant dense<0.000000e+00> : vector<5x32xf32>
    %445 = tpu.matmul %442, %444, %cst_274 {dimension_numbers = #tpu.dot_dimension_numbers<[1], [0], [0], [1], [0, 0, 1, 1], [], []>} : vector<5x64xf32>, vector<64x32xf32>, vector<5x32xf32> -> vector<5x32xf32>
    %c0_275 = arith.constant 0 : index
    %c0_276 = arith.constant 0 : index
    %c0_277 = arith.constant 0 : index
    %446 = vector.load %arg33[%c0_275, %c0_276, %c0_277] : memref<2x1x32xf32, #tpu.memory_space<vmem>>, vector<1x1x32xf32>
    %447 = vector.shape_cast %446 : vector<1x1x32xf32> to vector<1x32xf32>
    %448 = vector.broadcast %447 : vector<1x32xf32> to vector<5x32xf32>
    %449 = arith.addf %445, %448 : vector<5x32xf32>
    %450 = arith.addf %396, %449 : vector<5x32xf32>
    %c1_278 = arith.constant 1 : index
    %c0_279 = arith.constant 0 : index
    %c0_280 = arith.constant 0 : index
    %451 = vector.load %arg18[%c1_278, %c0_279, %c0_280] : memref<2x1x32xf32, #tpu.memory_space<vmem>>, vector<1x1x32xf32>
    %452 = vector.shape_cast %451 : vector<1x1x32xf32> to vector<1x32xf32>
    %c1_281 = arith.constant 1 : index
    %c0_282 = arith.constant 0 : index
    %c0_283 = arith.constant 0 : index
    %453 = vector.load %arg19[%c1_281, %c0_282, %c0_283] : memref<2x1x32xf32, #tpu.memory_space<vmem>>, vector<1x1x32xf32>
    %454 = vector.shape_cast %453 : vector<1x1x32xf32> to vector<1x32xf32>
    %cst_284 = arith.constant dense<0.000000e+00> : vector<5xf32>
    %455 = vector.multi_reduction <add>, %450, %cst_284 [1] : vector<5x32xf32> to vector<5xf32>
    %456 = vector.shape_cast %455 : vector<5xf32> to vector<5x1xf32>
    %cst_285 = arith.constant 3.200000e+01 : f32
    %457 = vector.broadcast %cst_285 : f32 to vector<5x1xf32>
    %458 = arith.divf %456, %457 : vector<5x1xf32>
    %459 = vector.broadcast %458 : vector<5x1xf32> to vector<5x32xf32>
    %460 = arith.subf %450, %459 : vector<5x32xf32>
    %461 = arith.mulf %460, %460 : vector<5x32xf32>
    %cst_286 = arith.constant dense<0.000000e+00> : vector<5xf32>
    %462 = vector.multi_reduction <add>, %461, %cst_286 [1] : vector<5x32xf32> to vector<5xf32>
    %463 = vector.shape_cast %462 : vector<5xf32> to vector<5x1xf32>
    %cst_287 = arith.constant 3.200000e+01 : f32
    %464 = vector.broadcast %cst_287 : f32 to vector<5x1xf32>
    %465 = arith.divf %463, %464 : vector<5x1xf32>
    %466 = vector.broadcast %458 : vector<5x1xf32> to vector<5x32xf32>
    %467 = arith.subf %450, %466 : vector<5x32xf32>
    %cst_288 = arith.constant 9.99999974E-6 : f32
    %468 = vector.broadcast %cst_288 : f32 to vector<5x1xf32>
    %469 = arith.addf %465, %468 : vector<5x1xf32>
    %470 = math.rsqrt %469 : vector<5x1xf32>
    %471 = vector.broadcast %470 : vector<5x1xf32> to vector<5x32xf32>
    %472 = arith.mulf %467, %471 : vector<5x32xf32>
    %473 = vector.broadcast %452 : vector<1x32xf32> to vector<5x32xf32>
    %474 = arith.mulf %472, %473 : vector<5x32xf32>
    %475 = vector.broadcast %454 : vector<1x32xf32> to vector<5x32xf32>
    %476 = arith.addf %474, %475 : vector<5x32xf32>
    %cst_289 = arith.constant 0.000000e+00 : f32
    %477 = vector.broadcast %cst_289 : f32 to vector<5x32xf32>
    %c4 = arith.constant 4 : index
    %c0_290 = arith.constant 0 : index
    %c0_291 = arith.constant 0 : index
    %478 = vector.load %arg20[%c4, %c0_290, %c0_291] : memref<8x32x8xf32, #tpu.memory_space<vmem>>, vector<1x32x8xf32>
    %479 = vector.shape_cast %478 : vector<1x32x8xf32> to vector<32x8xf32>
    %cst_292 = arith.constant dense<0.000000e+00> : vector<5x8xf32>
    %480 = tpu.matmul %476, %479, %cst_292 {dimension_numbers = #tpu.dot_dimension_numbers<[1], [0], [0], [1], [0, 0, 1, 1], [], []>} : vector<5x32xf32>, vector<32x8xf32>, vector<5x8xf32> -> vector<5x8xf32>
    %c4_293 = arith.constant 4 : index
    %c0_294 = arith.constant 0 : index
    %c0_295 = arith.constant 0 : index
    %481 = vector.load %arg21[%c4_293, %c0_294, %c0_295] : memref<8x1x8xf32, #tpu.memory_space<vmem>>, vector<1x1x8xf32>
    %482 = vector.shape_cast %481 : vector<1x1x8xf32> to vector<1x8xf32>
    %483 = vector.broadcast %482 : vector<1x8xf32> to vector<5x8xf32>
    %484 = arith.addf %480, %483 : vector<5x8xf32>
    %c4_296 = arith.constant 4 : index
    %c0_297 = arith.constant 0 : index
    %c0_298 = arith.constant 0 : index
    %485 = vector.load %arg22[%c4_296, %c0_297, %c0_298] : memref<8x32x8xf32, #tpu.memory_space<vmem>>, vector<1x32x8xf32>
    %486 = vector.shape_cast %485 : vector<1x32x8xf32> to vector<32x8xf32>
    %cst_299 = arith.constant dense<0.000000e+00> : vector<5x8xf32>
    %487 = tpu.matmul %476, %486, %cst_299 {dimension_numbers = #tpu.dot_dimension_numbers<[1], [0], [0], [1], [0, 0, 1, 1], [], []>} : vector<5x32xf32>, vector<32x8xf32>, vector<5x8xf32> -> vector<5x8xf32>
    %c4_300 = arith.constant 4 : index
    %c0_301 = arith.constant 0 : index
    %c0_302 = arith.constant 0 : index
    %488 = vector.load %arg23[%c4_300, %c0_301, %c0_302] : memref<8x1x8xf32, #tpu.memory_space<vmem>>, vector<1x1x8xf32>
    %489 = vector.shape_cast %488 : vector<1x1x8xf32> to vector<1x8xf32>
    %490 = vector.broadcast %489 : vector<1x8xf32> to vector<5x8xf32>
    %491 = arith.addf %487, %490 : vector<5x8xf32>
    %c4_303 = arith.constant 4 : index
    %c0_304 = arith.constant 0 : index
    %c0_305 = arith.constant 0 : index
    %492 = vector.load %arg24[%c4_303, %c0_304, %c0_305] : memref<8x32x8xf32, #tpu.memory_space<vmem>>, vector<1x32x8xf32>
    %493 = vector.shape_cast %492 : vector<1x32x8xf32> to vector<32x8xf32>
    %cst_306 = arith.constant dense<0.000000e+00> : vector<5x8xf32>
    %494 = tpu.matmul %476, %493, %cst_306 {dimension_numbers = #tpu.dot_dimension_numbers<[1], [0], [0], [1], [0, 0, 1, 1], [], []>} : vector<5x32xf32>, vector<32x8xf32>, vector<5x8xf32> -> vector<5x8xf32>
    %c4_307 = arith.constant 4 : index
    %c0_308 = arith.constant 0 : index
    %c0_309 = arith.constant 0 : index
    %495 = vector.load %arg25[%c4_307, %c0_308, %c0_309] : memref<8x1x8xf32, #tpu.memory_space<vmem>>, vector<1x1x8xf32>
    %496 = vector.shape_cast %495 : vector<1x1x8xf32> to vector<1x8xf32>
    %497 = vector.broadcast %496 : vector<1x8xf32> to vector<5x8xf32>
    %498 = arith.addf %494, %497 : vector<5x8xf32>
    %cst_310 = arith.constant 0.353553385 : f32
    %499 = vector.broadcast %cst_310 : f32 to vector<5x8xf32>
    %500 = arith.mulf %484, %499 : vector<5x8xf32>
    %cst_311 = arith.constant dense<0.000000e+00> : vector<5x5xf32>
    %501 = tpu.matmul %500, %491, %cst_311 {dimension_numbers = #tpu.dot_dimension_numbers<[1], [1], [0], [0], [0, 0, 1, 0], [], []>} : vector<5x8xf32>, vector<5x8xf32>, vector<5x5xf32> -> vector<5x5xf32>
    %502 = vector.broadcast %204 : vector<1x5xf32> to vector<5x5xf32>
    %503 = arith.addf %501, %502 : vector<5x5xf32>
    %cst_312 = arith.constant dense<0xFF800000> : vector<5xf32>
    %504 = vector.multi_reduction <maximumf>, %503, %cst_312 [1] : vector<5x5xf32> to vector<5xf32>
    %505 = vector.shape_cast %504 : vector<5xf32> to vector<5x1xf32>
    %506 = vector.broadcast %505 : vector<5x1xf32> to vector<5x5xf32>
    %507 = arith.subf %503, %506 : vector<5x5xf32>
    %508 = math.exp %507 : vector<5x5xf32>
    %cst_313 = arith.constant dense<0.000000e+00> : vector<5xf32>
    %509 = vector.multi_reduction <add>, %508, %cst_313 [1] : vector<5x5xf32> to vector<5xf32>
    %510 = vector.shape_cast %509 : vector<5xf32> to vector<5x1xf32>
    %511 = vector.broadcast %510 : vector<5x1xf32> to vector<5x5xf32>
    %512 = arith.divf %508, %511 : vector<5x5xf32>
    %cst_314 = arith.constant dense<0.000000e+00> : vector<5x8xf32>
    %513 = tpu.matmul %512, %498, %cst_314 {dimension_numbers = #tpu.dot_dimension_numbers<[1], [0], [0], [1], [0, 0, 1, 1], [], []>} : vector<5x5xf32>, vector<5x8xf32>, vector<5x8xf32> -> vector<5x8xf32>
    %c4_315 = arith.constant 4 : index
    %c0_316 = arith.constant 0 : index
    %c0_317 = arith.constant 0 : index
    %514 = vector.load %arg26[%c4_315, %c0_316, %c0_317] : memref<8x8x32xf32, #tpu.memory_space<vmem>>, vector<1x8x32xf32>
    %515 = vector.shape_cast %514 : vector<1x8x32xf32> to vector<8x32xf32>
    %cst_318 = arith.constant dense<0.000000e+00> : vector<5x32xf32>
    %516 = tpu.matmul %513, %515, %cst_318 {dimension_numbers = #tpu.dot_dimension_numbers<[1], [0], [0], [1], [0, 0, 1, 1], [], []>} : vector<5x8xf32>, vector<8x32xf32>, vector<5x32xf32> -> vector<5x32xf32>
    %517 = arith.addf %477, %516 : vector<5x32xf32>
    %c5 = arith.constant 5 : index
    %c0_319 = arith.constant 0 : index
    %c0_320 = arith.constant 0 : index
    %518 = vector.load %arg20[%c5, %c0_319, %c0_320] : memref<8x32x8xf32, #tpu.memory_space<vmem>>, vector<1x32x8xf32>
    %519 = vector.shape_cast %518 : vector<1x32x8xf32> to vector<32x8xf32>
    %cst_321 = arith.constant dense<0.000000e+00> : vector<5x8xf32>
    %520 = tpu.matmul %476, %519, %cst_321 {dimension_numbers = #tpu.dot_dimension_numbers<[1], [0], [0], [1], [0, 0, 1, 1], [], []>} : vector<5x32xf32>, vector<32x8xf32>, vector<5x8xf32> -> vector<5x8xf32>
    %c5_322 = arith.constant 5 : index
    %c0_323 = arith.constant 0 : index
    %c0_324 = arith.constant 0 : index
    %521 = vector.load %arg21[%c5_322, %c0_323, %c0_324] : memref<8x1x8xf32, #tpu.memory_space<vmem>>, vector<1x1x8xf32>
    %522 = vector.shape_cast %521 : vector<1x1x8xf32> to vector<1x8xf32>
    %523 = vector.broadcast %522 : vector<1x8xf32> to vector<5x8xf32>
    %524 = arith.addf %520, %523 : vector<5x8xf32>
    %c5_325 = arith.constant 5 : index
    %c0_326 = arith.constant 0 : index
    %c0_327 = arith.constant 0 : index
    %525 = vector.load %arg22[%c5_325, %c0_326, %c0_327] : memref<8x32x8xf32, #tpu.memory_space<vmem>>, vector<1x32x8xf32>
    %526 = vector.shape_cast %525 : vector<1x32x8xf32> to vector<32x8xf32>
    %cst_328 = arith.constant dense<0.000000e+00> : vector<5x8xf32>
    %527 = tpu.matmul %476, %526, %cst_328 {dimension_numbers = #tpu.dot_dimension_numbers<[1], [0], [0], [1], [0, 0, 1, 1], [], []>} : vector<5x32xf32>, vector<32x8xf32>, vector<5x8xf32> -> vector<5x8xf32>
    %c5_329 = arith.constant 5 : index
    %c0_330 = arith.constant 0 : index
    %c0_331 = arith.constant 0 : index
    %528 = vector.load %arg23[%c5_329, %c0_330, %c0_331] : memref<8x1x8xf32, #tpu.memory_space<vmem>>, vector<1x1x8xf32>
    %529 = vector.shape_cast %528 : vector<1x1x8xf32> to vector<1x8xf32>
    %530 = vector.broadcast %529 : vector<1x8xf32> to vector<5x8xf32>
    %531 = arith.addf %527, %530 : vector<5x8xf32>
    %c5_332 = arith.constant 5 : index
    %c0_333 = arith.constant 0 : index
    %c0_334 = arith.constant 0 : index
    %532 = vector.load %arg24[%c5_332, %c0_333, %c0_334] : memref<8x32x8xf32, #tpu.memory_space<vmem>>, vector<1x32x8xf32>
    %533 = vector.shape_cast %532 : vector<1x32x8xf32> to vector<32x8xf32>
    %cst_335 = arith.constant dense<0.000000e+00> : vector<5x8xf32>
    %534 = tpu.matmul %476, %533, %cst_335 {dimension_numbers = #tpu.dot_dimension_numbers<[1], [0], [0], [1], [0, 0, 1, 1], [], []>} : vector<5x32xf32>, vector<32x8xf32>, vector<5x8xf32> -> vector<5x8xf32>
    %c5_336 = arith.constant 5 : index
    %c0_337 = arith.constant 0 : index
    %c0_338 = arith.constant 0 : index
    %535 = vector.load %arg25[%c5_336, %c0_337, %c0_338] : memref<8x1x8xf32, #tpu.memory_space<vmem>>, vector<1x1x8xf32>
    %536 = vector.shape_cast %535 : vector<1x1x8xf32> to vector<1x8xf32>
    %537 = vector.broadcast %536 : vector<1x8xf32> to vector<5x8xf32>
    %538 = arith.addf %534, %537 : vector<5x8xf32>
    %cst_339 = arith.constant 0.353553385 : f32
    %539 = vector.broadcast %cst_339 : f32 to vector<5x8xf32>
    %540 = arith.mulf %524, %539 : vector<5x8xf32>
    %cst_340 = arith.constant dense<0.000000e+00> : vector<5x5xf32>
    %541 = tpu.matmul %540, %531, %cst_340 {dimension_numbers = #tpu.dot_dimension_numbers<[1], [1], [0], [0], [0, 0, 1, 0], [], []>} : vector<5x8xf32>, vector<5x8xf32>, vector<5x5xf32> -> vector<5x5xf32>
    %542 = vector.broadcast %204 : vector<1x5xf32> to vector<5x5xf32>
    %543 = arith.addf %541, %542 : vector<5x5xf32>
    %cst_341 = arith.constant dense<0xFF800000> : vector<5xf32>
    %544 = vector.multi_reduction <maximumf>, %543, %cst_341 [1] : vector<5x5xf32> to vector<5xf32>
    %545 = vector.shape_cast %544 : vector<5xf32> to vector<5x1xf32>
    %546 = vector.broadcast %545 : vector<5x1xf32> to vector<5x5xf32>
    %547 = arith.subf %543, %546 : vector<5x5xf32>
    %548 = math.exp %547 : vector<5x5xf32>
    %cst_342 = arith.constant dense<0.000000e+00> : vector<5xf32>
    %549 = vector.multi_reduction <add>, %548, %cst_342 [1] : vector<5x5xf32> to vector<5xf32>
    %550 = vector.shape_cast %549 : vector<5xf32> to vector<5x1xf32>
    %551 = vector.broadcast %550 : vector<5x1xf32> to vector<5x5xf32>
    %552 = arith.divf %548, %551 : vector<5x5xf32>
    %cst_343 = arith.constant dense<0.000000e+00> : vector<5x8xf32>
    %553 = tpu.matmul %552, %538, %cst_343 {dimension_numbers = #tpu.dot_dimension_numbers<[1], [0], [0], [1], [0, 0, 1, 1], [], []>} : vector<5x5xf32>, vector<5x8xf32>, vector<5x8xf32> -> vector<5x8xf32>
    %c5_344 = arith.constant 5 : index
    %c0_345 = arith.constant 0 : index
    %c0_346 = arith.constant 0 : index
    %554 = vector.load %arg26[%c5_344, %c0_345, %c0_346] : memref<8x8x32xf32, #tpu.memory_space<vmem>>, vector<1x8x32xf32>
    %555 = vector.shape_cast %554 : vector<1x8x32xf32> to vector<8x32xf32>
    %cst_347 = arith.constant dense<0.000000e+00> : vector<5x32xf32>
    %556 = tpu.matmul %553, %555, %cst_347 {dimension_numbers = #tpu.dot_dimension_numbers<[1], [0], [0], [1], [0, 0, 1, 1], [], []>} : vector<5x8xf32>, vector<8x32xf32>, vector<5x32xf32> -> vector<5x32xf32>
    %557 = arith.addf %517, %556 : vector<5x32xf32>
    %c6 = arith.constant 6 : index
    %c0_348 = arith.constant 0 : index
    %c0_349 = arith.constant 0 : index
    %558 = vector.load %arg20[%c6, %c0_348, %c0_349] : memref<8x32x8xf32, #tpu.memory_space<vmem>>, vector<1x32x8xf32>
    %559 = vector.shape_cast %558 : vector<1x32x8xf32> to vector<32x8xf32>
    %cst_350 = arith.constant dense<0.000000e+00> : vector<5x8xf32>
    %560 = tpu.matmul %476, %559, %cst_350 {dimension_numbers = #tpu.dot_dimension_numbers<[1], [0], [0], [1], [0, 0, 1, 1], [], []>} : vector<5x32xf32>, vector<32x8xf32>, vector<5x8xf32> -> vector<5x8xf32>
    %c6_351 = arith.constant 6 : index
    %c0_352 = arith.constant 0 : index
    %c0_353 = arith.constant 0 : index
    %561 = vector.load %arg21[%c6_351, %c0_352, %c0_353] : memref<8x1x8xf32, #tpu.memory_space<vmem>>, vector<1x1x8xf32>
    %562 = vector.shape_cast %561 : vector<1x1x8xf32> to vector<1x8xf32>
    %563 = vector.broadcast %562 : vector<1x8xf32> to vector<5x8xf32>
    %564 = arith.addf %560, %563 : vector<5x8xf32>
    %c6_354 = arith.constant 6 : index
    %c0_355 = arith.constant 0 : index
    %c0_356 = arith.constant 0 : index
    %565 = vector.load %arg22[%c6_354, %c0_355, %c0_356] : memref<8x32x8xf32, #tpu.memory_space<vmem>>, vector<1x32x8xf32>
    %566 = vector.shape_cast %565 : vector<1x32x8xf32> to vector<32x8xf32>
    %cst_357 = arith.constant dense<0.000000e+00> : vector<5x8xf32>
    %567 = tpu.matmul %476, %566, %cst_357 {dimension_numbers = #tpu.dot_dimension_numbers<[1], [0], [0], [1], [0, 0, 1, 1], [], []>} : vector<5x32xf32>, vector<32x8xf32>, vector<5x8xf32> -> vector<5x8xf32>
    %c6_358 = arith.constant 6 : index
    %c0_359 = arith.constant 0 : index
    %c0_360 = arith.constant 0 : index
    %568 = vector.load %arg23[%c6_358, %c0_359, %c0_360] : memref<8x1x8xf32, #tpu.memory_space<vmem>>, vector<1x1x8xf32>
    %569 = vector.shape_cast %568 : vector<1x1x8xf32> to vector<1x8xf32>
    %570 = vector.broadcast %569 : vector<1x8xf32> to vector<5x8xf32>
    %571 = arith.addf %567, %570 : vector<5x8xf32>
    %c6_361 = arith.constant 6 : index
    %c0_362 = arith.constant 0 : index
    %c0_363 = arith.constant 0 : index
    %572 = vector.load %arg24[%c6_361, %c0_362, %c0_363] : memref<8x32x8xf32, #tpu.memory_space<vmem>>, vector<1x32x8xf32>
    %573 = vector.shape_cast %572 : vector<1x32x8xf32> to vector<32x8xf32>
    %cst_364 = arith.constant dense<0.000000e+00> : vector<5x8xf32>
    %574 = tpu.matmul %476, %573, %cst_364 {dimension_numbers = #tpu.dot_dimension_numbers<[1], [0], [0], [1], [0, 0, 1, 1], [], []>} : vector<5x32xf32>, vector<32x8xf32>, vector<5x8xf32> -> vector<5x8xf32>
    %c6_365 = arith.constant 6 : index
    %c0_366 = arith.constant 0 : index
    %c0_367 = arith.constant 0 : index
    %575 = vector.load %arg25[%c6_365, %c0_366, %c0_367] : memref<8x1x8xf32, #tpu.memory_space<vmem>>, vector<1x1x8xf32>
    %576 = vector.shape_cast %575 : vector<1x1x8xf32> to vector<1x8xf32>
    %577 = vector.broadcast %576 : vector<1x8xf32> to vector<5x8xf32>
    %578 = arith.addf %574, %577 : vector<5x8xf32>
    %cst_368 = arith.constant 0.353553385 : f32
    %579 = vector.broadcast %cst_368 : f32 to vector<5x8xf32>
    %580 = arith.mulf %564, %579 : vector<5x8xf32>
    %cst_369 = arith.constant dense<0.000000e+00> : vector<5x5xf32>
    %581 = tpu.matmul %580, %571, %cst_369 {dimension_numbers = #tpu.dot_dimension_numbers<[1], [1], [0], [0], [0, 0, 1, 0], [], []>} : vector<5x8xf32>, vector<5x8xf32>, vector<5x5xf32> -> vector<5x5xf32>
    %582 = vector.broadcast %204 : vector<1x5xf32> to vector<5x5xf32>
    %583 = arith.addf %581, %582 : vector<5x5xf32>
    %cst_370 = arith.constant dense<0xFF800000> : vector<5xf32>
    %584 = vector.multi_reduction <maximumf>, %583, %cst_370 [1] : vector<5x5xf32> to vector<5xf32>
    %585 = vector.shape_cast %584 : vector<5xf32> to vector<5x1xf32>
    %586 = vector.broadcast %585 : vector<5x1xf32> to vector<5x5xf32>
    %587 = arith.subf %583, %586 : vector<5x5xf32>
    %588 = math.exp %587 : vector<5x5xf32>
    %cst_371 = arith.constant dense<0.000000e+00> : vector<5xf32>
    %589 = vector.multi_reduction <add>, %588, %cst_371 [1] : vector<5x5xf32> to vector<5xf32>
    %590 = vector.shape_cast %589 : vector<5xf32> to vector<5x1xf32>
    %591 = vector.broadcast %590 : vector<5x1xf32> to vector<5x5xf32>
    %592 = arith.divf %588, %591 : vector<5x5xf32>
    %cst_372 = arith.constant dense<0.000000e+00> : vector<5x8xf32>
    %593 = tpu.matmul %592, %578, %cst_372 {dimension_numbers = #tpu.dot_dimension_numbers<[1], [0], [0], [1], [0, 0, 1, 1], [], []>} : vector<5x5xf32>, vector<5x8xf32>, vector<5x8xf32> -> vector<5x8xf32>
    %c6_373 = arith.constant 6 : index
    %c0_374 = arith.constant 0 : index
    %c0_375 = arith.constant 0 : index
    %594 = vector.load %arg26[%c6_373, %c0_374, %c0_375] : memref<8x8x32xf32, #tpu.memory_space<vmem>>, vector<1x8x32xf32>
    %595 = vector.shape_cast %594 : vector<1x8x32xf32> to vector<8x32xf32>
    %cst_376 = arith.constant dense<0.000000e+00> : vector<5x32xf32>
    %596 = tpu.matmul %593, %595, %cst_376 {dimension_numbers = #tpu.dot_dimension_numbers<[1], [0], [0], [1], [0, 0, 1, 1], [], []>} : vector<5x8xf32>, vector<8x32xf32>, vector<5x32xf32> -> vector<5x32xf32>
    %597 = arith.addf %557, %596 : vector<5x32xf32>
    %c7 = arith.constant 7 : index
    %c0_377 = arith.constant 0 : index
    %c0_378 = arith.constant 0 : index
    %598 = vector.load %arg20[%c7, %c0_377, %c0_378] : memref<8x32x8xf32, #tpu.memory_space<vmem>>, vector<1x32x8xf32>
    %599 = vector.shape_cast %598 : vector<1x32x8xf32> to vector<32x8xf32>
    %cst_379 = arith.constant dense<0.000000e+00> : vector<5x8xf32>
    %600 = tpu.matmul %476, %599, %cst_379 {dimension_numbers = #tpu.dot_dimension_numbers<[1], [0], [0], [1], [0, 0, 1, 1], [], []>} : vector<5x32xf32>, vector<32x8xf32>, vector<5x8xf32> -> vector<5x8xf32>
    %c7_380 = arith.constant 7 : index
    %c0_381 = arith.constant 0 : index
    %c0_382 = arith.constant 0 : index
    %601 = vector.load %arg21[%c7_380, %c0_381, %c0_382] : memref<8x1x8xf32, #tpu.memory_space<vmem>>, vector<1x1x8xf32>
    %602 = vector.shape_cast %601 : vector<1x1x8xf32> to vector<1x8xf32>
    %603 = vector.broadcast %602 : vector<1x8xf32> to vector<5x8xf32>
    %604 = arith.addf %600, %603 : vector<5x8xf32>
    %c7_383 = arith.constant 7 : index
    %c0_384 = arith.constant 0 : index
    %c0_385 = arith.constant 0 : index
    %605 = vector.load %arg22[%c7_383, %c0_384, %c0_385] : memref<8x32x8xf32, #tpu.memory_space<vmem>>, vector<1x32x8xf32>
    %606 = vector.shape_cast %605 : vector<1x32x8xf32> to vector<32x8xf32>
    %cst_386 = arith.constant dense<0.000000e+00> : vector<5x8xf32>
    %607 = tpu.matmul %476, %606, %cst_386 {dimension_numbers = #tpu.dot_dimension_numbers<[1], [0], [0], [1], [0, 0, 1, 1], [], []>} : vector<5x32xf32>, vector<32x8xf32>, vector<5x8xf32> -> vector<5x8xf32>
    %c7_387 = arith.constant 7 : index
    %c0_388 = arith.constant 0 : index
    %c0_389 = arith.constant 0 : index
    %608 = vector.load %arg23[%c7_387, %c0_388, %c0_389] : memref<8x1x8xf32, #tpu.memory_space<vmem>>, vector<1x1x8xf32>
    %609 = vector.shape_cast %608 : vector<1x1x8xf32> to vector<1x8xf32>
    %610 = vector.broadcast %609 : vector<1x8xf32> to vector<5x8xf32>
    %611 = arith.addf %607, %610 : vector<5x8xf32>
    %c7_390 = arith.constant 7 : index
    %c0_391 = arith.constant 0 : index
    %c0_392 = arith.constant 0 : index
    %612 = vector.load %arg24[%c7_390, %c0_391, %c0_392] : memref<8x32x8xf32, #tpu.memory_space<vmem>>, vector<1x32x8xf32>
    %613 = vector.shape_cast %612 : vector<1x32x8xf32> to vector<32x8xf32>
    %cst_393 = arith.constant dense<0.000000e+00> : vector<5x8xf32>
    %614 = tpu.matmul %476, %613, %cst_393 {dimension_numbers = #tpu.dot_dimension_numbers<[1], [0], [0], [1], [0, 0, 1, 1], [], []>} : vector<5x32xf32>, vector<32x8xf32>, vector<5x8xf32> -> vector<5x8xf32>
    %c7_394 = arith.constant 7 : index
    %c0_395 = arith.constant 0 : index
    %c0_396 = arith.constant 0 : index
    %615 = vector.load %arg25[%c7_394, %c0_395, %c0_396] : memref<8x1x8xf32, #tpu.memory_space<vmem>>, vector<1x1x8xf32>
    %616 = vector.shape_cast %615 : vector<1x1x8xf32> to vector<1x8xf32>
    %617 = vector.broadcast %616 : vector<1x8xf32> to vector<5x8xf32>
    %618 = arith.addf %614, %617 : vector<5x8xf32>
    %cst_397 = arith.constant 0.353553385 : f32
    %619 = vector.broadcast %cst_397 : f32 to vector<5x8xf32>
    %620 = arith.mulf %604, %619 : vector<5x8xf32>
    %cst_398 = arith.constant dense<0.000000e+00> : vector<5x5xf32>
    %621 = tpu.matmul %620, %611, %cst_398 {dimension_numbers = #tpu.dot_dimension_numbers<[1], [1], [0], [0], [0, 0, 1, 0], [], []>} : vector<5x8xf32>, vector<5x8xf32>, vector<5x5xf32> -> vector<5x5xf32>
    %622 = vector.broadcast %204 : vector<1x5xf32> to vector<5x5xf32>
    %623 = arith.addf %621, %622 : vector<5x5xf32>
    %cst_399 = arith.constant dense<0xFF800000> : vector<5xf32>
    %624 = vector.multi_reduction <maximumf>, %623, %cst_399 [1] : vector<5x5xf32> to vector<5xf32>
    %625 = vector.shape_cast %624 : vector<5xf32> to vector<5x1xf32>
    %626 = vector.broadcast %625 : vector<5x1xf32> to vector<5x5xf32>
    %627 = arith.subf %623, %626 : vector<5x5xf32>
    %628 = math.exp %627 : vector<5x5xf32>
    %cst_400 = arith.constant dense<0.000000e+00> : vector<5xf32>
    %629 = vector.multi_reduction <add>, %628, %cst_400 [1] : vector<5x5xf32> to vector<5xf32>
    %630 = vector.shape_cast %629 : vector<5xf32> to vector<5x1xf32>
    %631 = vector.broadcast %630 : vector<5x1xf32> to vector<5x5xf32>
    %632 = arith.divf %628, %631 : vector<5x5xf32>
    %cst_401 = arith.constant dense<0.000000e+00> : vector<5x8xf32>
    %633 = tpu.matmul %632, %618, %cst_401 {dimension_numbers = #tpu.dot_dimension_numbers<[1], [0], [0], [1], [0, 0, 1, 1], [], []>} : vector<5x5xf32>, vector<5x8xf32>, vector<5x8xf32> -> vector<5x8xf32>
    %c7_402 = arith.constant 7 : index
    %c0_403 = arith.constant 0 : index
    %c0_404 = arith.constant 0 : index
    %634 = vector.load %arg26[%c7_402, %c0_403, %c0_404] : memref<8x8x32xf32, #tpu.memory_space<vmem>>, vector<1x8x32xf32>
    %635 = vector.shape_cast %634 : vector<1x8x32xf32> to vector<8x32xf32>
    %cst_405 = arith.constant dense<0.000000e+00> : vector<5x32xf32>
    %636 = tpu.matmul %633, %635, %cst_405 {dimension_numbers = #tpu.dot_dimension_numbers<[1], [0], [0], [1], [0, 0, 1, 1], [], []>} : vector<5x8xf32>, vector<8x32xf32>, vector<5x32xf32> -> vector<5x32xf32>
    %637 = arith.addf %597, %636 : vector<5x32xf32>
    %638 = arith.addf %450, %637 : vector<5x32xf32>
    %c1_406 = arith.constant 1 : index
    %c0_407 = arith.constant 0 : index
    %c0_408 = arith.constant 0 : index
    %639 = vector.load %arg27[%c1_406, %c0_407, %c0_408] : memref<2x1x32xf32, #tpu.memory_space<vmem>>, vector<1x1x32xf32>
    %640 = vector.shape_cast %639 : vector<1x1x32xf32> to vector<1x32xf32>
    %641 = vector.broadcast %640 : vector<1x32xf32> to vector<5x32xf32>
    %642 = arith.addf %638, %641 : vector<5x32xf32>
    %c1_409 = arith.constant 1 : index
    %c0_410 = arith.constant 0 : index
    %c0_411 = arith.constant 0 : index
    %643 = vector.load %arg28[%c1_409, %c0_410, %c0_411] : memref<2x1x32xf32, #tpu.memory_space<vmem>>, vector<1x1x32xf32>
    %644 = vector.shape_cast %643 : vector<1x1x32xf32> to vector<1x32xf32>
    %c1_412 = arith.constant 1 : index
    %c0_413 = arith.constant 0 : index
    %c0_414 = arith.constant 0 : index
    %645 = vector.load %arg29[%c1_412, %c0_413, %c0_414] : memref<2x1x32xf32, #tpu.memory_space<vmem>>, vector<1x1x32xf32>
    %646 = vector.shape_cast %645 : vector<1x1x32xf32> to vector<1x32xf32>
    %cst_415 = arith.constant dense<0.000000e+00> : vector<5xf32>
    %647 = vector.multi_reduction <add>, %642, %cst_415 [1] : vector<5x32xf32> to vector<5xf32>
    %648 = vector.shape_cast %647 : vector<5xf32> to vector<5x1xf32>
    %cst_416 = arith.constant 3.200000e+01 : f32
    %649 = vector.broadcast %cst_416 : f32 to vector<5x1xf32>
    %650 = arith.divf %648, %649 : vector<5x1xf32>
    %651 = vector.broadcast %650 : vector<5x1xf32> to vector<5x32xf32>
    %652 = arith.subf %642, %651 : vector<5x32xf32>
    %653 = arith.mulf %652, %652 : vector<5x32xf32>
    %cst_417 = arith.constant dense<0.000000e+00> : vector<5xf32>
    %654 = vector.multi_reduction <add>, %653, %cst_417 [1] : vector<5x32xf32> to vector<5xf32>
    %655 = vector.shape_cast %654 : vector<5xf32> to vector<5x1xf32>
    %cst_418 = arith.constant 3.200000e+01 : f32
    %656 = vector.broadcast %cst_418 : f32 to vector<5x1xf32>
    %657 = arith.divf %655, %656 : vector<5x1xf32>
    %658 = vector.broadcast %650 : vector<5x1xf32> to vector<5x32xf32>
    %659 = arith.subf %642, %658 : vector<5x32xf32>
    %cst_419 = arith.constant 9.99999974E-6 : f32
    %660 = vector.broadcast %cst_419 : f32 to vector<5x1xf32>
    %661 = arith.addf %657, %660 : vector<5x1xf32>
    %662 = math.rsqrt %661 : vector<5x1xf32>
    %663 = vector.broadcast %662 : vector<5x1xf32> to vector<5x32xf32>
    %664 = arith.mulf %659, %663 : vector<5x32xf32>
    %665 = vector.broadcast %644 : vector<1x32xf32> to vector<5x32xf32>
    %666 = arith.mulf %664, %665 : vector<5x32xf32>
    %667 = vector.broadcast %646 : vector<1x32xf32> to vector<5x32xf32>
    %668 = arith.addf %666, %667 : vector<5x32xf32>
    %c1_420 = arith.constant 1 : index
    %c0_421 = arith.constant 0 : index
    %c0_422 = arith.constant 0 : index
    %669 = vector.load %arg30[%c1_420, %c0_421, %c0_422] : memref<2x32x64xf32, #tpu.memory_space<vmem>>, vector<1x32x64xf32>
    %670 = vector.shape_cast %669 : vector<1x32x64xf32> to vector<32x64xf32>
    %cst_423 = arith.constant dense<0.000000e+00> : vector<5x64xf32>
    %671 = tpu.matmul %668, %670, %cst_423 {dimension_numbers = #tpu.dot_dimension_numbers<[1], [0], [0], [1], [0, 0, 1, 1], [], []>} : vector<5x32xf32>, vector<32x64xf32>, vector<5x64xf32> -> vector<5x64xf32>
    %c1_424 = arith.constant 1 : index
    %c0_425 = arith.constant 0 : index
    %c0_426 = arith.constant 0 : index
    %672 = vector.load %arg31[%c1_424, %c0_425, %c0_426] : memref<2x1x64xf32, #tpu.memory_space<vmem>>, vector<1x1x64xf32>
    %673 = vector.shape_cast %672 : vector<1x1x64xf32> to vector<1x64xf32>
    %674 = vector.broadcast %673 : vector<1x64xf32> to vector<5x64xf32>
    %675 = arith.addf %671, %674 : vector<5x64xf32>
    %676 = arith.mulf %675, %675 : vector<5x64xf32>
    %677 = arith.mulf %675, %676 : vector<5x64xf32>
    %cst_427 = arith.constant 4.471500e-02 : f32
    %678 = vector.broadcast %cst_427 : f32 to vector<5x64xf32>
    %679 = arith.mulf %678, %677 : vector<5x64xf32>
    %680 = arith.addf %675, %679 : vector<5x64xf32>
    %cst_428 = arith.constant 0.797884583 : f32
    %681 = vector.broadcast %cst_428 : f32 to vector<5x64xf32>
    %682 = arith.mulf %681, %680 : vector<5x64xf32>
    %683 = math.tanh %682 : vector<5x64xf32>
    %cst_429 = arith.constant 1.000000e+00 : f32
    %684 = vector.broadcast %cst_429 : f32 to vector<5x64xf32>
    %685 = arith.addf %684, %683 : vector<5x64xf32>
    %cst_430 = arith.constant 5.000000e-01 : f32
    %686 = vector.broadcast %cst_430 : f32 to vector<5x64xf32>
    %687 = arith.mulf %686, %685 : vector<5x64xf32>
    %688 = arith.mulf %675, %687 : vector<5x64xf32>
    %c1_431 = arith.constant 1 : index
    %c0_432 = arith.constant 0 : index
    %c0_433 = arith.constant 0 : index
    %689 = vector.load %arg32[%c1_431, %c0_432, %c0_433] : memref<2x64x32xf32, #tpu.memory_space<vmem>>, vector<1x64x32xf32>
    %690 = vector.shape_cast %689 : vector<1x64x32xf32> to vector<64x32xf32>
    %cst_434 = arith.constant dense<0.000000e+00> : vector<5x32xf32>
    %691 = tpu.matmul %688, %690, %cst_434 {dimension_numbers = #tpu.dot_dimension_numbers<[1], [0], [0], [1], [0, 0, 1, 1], [], []>} : vector<5x64xf32>, vector<64x32xf32>, vector<5x32xf32> -> vector<5x32xf32>
    %c1_435 = arith.constant 1 : index
    %c0_436 = arith.constant 0 : index
    %c0_437 = arith.constant 0 : index
    %692 = vector.load %arg33[%c1_435, %c0_436, %c0_437] : memref<2x1x32xf32, #tpu.memory_space<vmem>>, vector<1x1x32xf32>
    %693 = vector.shape_cast %692 : vector<1x1x32xf32> to vector<1x32xf32>
    %694 = vector.broadcast %693 : vector<1x32xf32> to vector<5x32xf32>
    %695 = arith.addf %691, %694 : vector<5x32xf32>
    %696 = arith.addf %642, %695 : vector<5x32xf32>
    %c0_438 = arith.constant 0 : index
    %c0_439 = arith.constant 0 : index
    %697 = vector.load %arg12[%c0_438, %c0_439] : memref<1x32xf32, #tpu.memory_space<vmem>>, vector<1x32xf32>
    %c0_440 = arith.constant 0 : index
    %c0_441 = arith.constant 0 : index
    %698 = vector.load %arg13[%c0_440, %c0_441] : memref<1x32xf32, #tpu.memory_space<vmem>>, vector<1x32xf32>
    %cst_442 = arith.constant dense<0.000000e+00> : vector<5xf32>
    %699 = vector.multi_reduction <add>, %696, %cst_442 [1] : vector<5x32xf32> to vector<5xf32>
    %700 = vector.shape_cast %699 : vector<5xf32> to vector<5x1xf32>
    %cst_443 = arith.constant 3.200000e+01 : f32
    %701 = vector.broadcast %cst_443 : f32 to vector<5x1xf32>
    %702 = arith.divf %700, %701 : vector<5x1xf32>
    %703 = vector.broadcast %702 : vector<5x1xf32> to vector<5x32xf32>
    %704 = arith.subf %696, %703 : vector<5x32xf32>
    %705 = arith.mulf %704, %704 : vector<5x32xf32>
    %cst_444 = arith.constant dense<0.000000e+00> : vector<5xf32>
    %706 = vector.multi_reduction <add>, %705, %cst_444 [1] : vector<5x32xf32> to vector<5xf32>
    %707 = vector.shape_cast %706 : vector<5xf32> to vector<5x1xf32>
    %cst_445 = arith.constant 3.200000e+01 : f32
    %708 = vector.broadcast %cst_445 : f32 to vector<5x1xf32>
    %709 = arith.divf %707, %708 : vector<5x1xf32>
    %710 = vector.broadcast %702 : vector<5x1xf32> to vector<5x32xf32>
    %711 = arith.subf %696, %710 : vector<5x32xf32>
    %cst_446 = arith.constant 9.99999974E-6 : f32
    %712 = vector.broadcast %cst_446 : f32 to vector<5x1xf32>
    %713 = arith.addf %709, %712 : vector<5x1xf32>
    %714 = math.rsqrt %713 : vector<5x1xf32>
    %715 = vector.broadcast %714 : vector<5x1xf32> to vector<5x32xf32>
    %716 = arith.mulf %711, %715 : vector<5x32xf32>
    %717 = vector.broadcast %697 : vector<1x32xf32> to vector<5x32xf32>
    %718 = arith.mulf %716, %717 : vector<5x32xf32>
    %719 = vector.broadcast %698 : vector<1x32xf32> to vector<5x32xf32>
    %720 = arith.addf %718, %719 : vector<5x32xf32>
    %c0_447 = arith.constant 0 : index
    %c0_448 = arith.constant 0 : index
    %721 = vector.load %arg12[%c0_447, %c0_448] : memref<1x32xf32, #tpu.memory_space<vmem>>, vector<1x32xf32>
    %c0_449 = arith.constant 0 : index
    %c0_450 = arith.constant 0 : index
    %722 = vector.load %arg13[%c0_449, %c0_450] : memref<1x32xf32, #tpu.memory_space<vmem>>, vector<1x32xf32>
    %cst_451 = arith.constant dense<0.000000e+00> : vector<5xf32>
    %723 = vector.multi_reduction <add>, %720, %cst_451 [1] : vector<5x32xf32> to vector<5xf32>
    %724 = vector.shape_cast %723 : vector<5xf32> to vector<5x1xf32>
    %cst_452 = arith.constant 3.200000e+01 : f32
    %725 = vector.broadcast %cst_452 : f32 to vector<5x1xf32>
    %726 = arith.divf %724, %725 : vector<5x1xf32>
    %727 = vector.broadcast %726 : vector<5x1xf32> to vector<5x32xf32>
    %728 = arith.subf %720, %727 : vector<5x32xf32>
    %729 = arith.mulf %728, %728 : vector<5x32xf32>
    %cst_453 = arith.constant dense<0.000000e+00> : vector<5xf32>
    %730 = vector.multi_reduction <add>, %729, %cst_453 [1] : vector<5x32xf32> to vector<5xf32>
    %731 = vector.shape_cast %730 : vector<5xf32> to vector<5x1xf32>
    %cst_454 = arith.constant 3.200000e+01 : f32
    %732 = vector.broadcast %cst_454 : f32 to vector<5x1xf32>
    %733 = arith.divf %731, %732 : vector<5x1xf32>
    %734 = vector.broadcast %726 : vector<5x1xf32> to vector<5x32xf32>
    %735 = arith.subf %720, %734 : vector<5x32xf32>
    %cst_455 = arith.constant 9.99999974E-6 : f32
    %736 = vector.broadcast %cst_455 : f32 to vector<5x1xf32>
    %737 = arith.addf %733, %736 : vector<5x1xf32>
    %738 = math.rsqrt %737 : vector<5x1xf32>
    %739 = vector.broadcast %738 : vector<5x1xf32> to vector<5x32xf32>
    %740 = arith.mulf %735, %739 : vector<5x32xf32>
    %741 = vector.broadcast %721 : vector<1x32xf32> to vector<5x32xf32>
    %742 = arith.mulf %740, %741 : vector<5x32xf32>
    %743 = vector.broadcast %722 : vector<1x32xf32> to vector<5x32xf32>
    %744 = arith.addf %742, %743 : vector<5x32xf32>
    %c0_456 = arith.constant 0 : index
    %c0_457 = arith.constant 0 : index
    %745 = vector.load %arg34[%c0_456, %c0_457] : memref<32x16xf32, #tpu.memory_space<vmem>>, vector<32x16xf32>
    %cst_458 = arith.constant dense<0.000000e+00> : vector<5x16xf32>
    %746 = tpu.matmul %744, %745, %cst_458 {dimension_numbers = #tpu.dot_dimension_numbers<[1], [0], [0], [1], [0, 0, 1, 1], [], []>} : vector<5x32xf32>, vector<32x16xf32>, vector<5x16xf32> -> vector<5x16xf32>
    %c0_459 = arith.constant 0 : index
    %c0_460 = arith.constant 0 : index
    %747 = vector.load %arg35[%c0_459, %c0_460] : memref<1x16xf32, #tpu.memory_space<vmem>>, vector<1x16xf32>
    %748 = vector.broadcast %747 : vector<1x16xf32> to vector<5x16xf32>
    %749 = arith.addf %746, %748 : vector<5x16xf32>
    %c0_461 = arith.constant 0 : index
    %c0_462 = arith.constant 0 : index
    %c0_463 = arith.constant 0 : index
    %750 = vector.load %arg36[%c0_461, %c0_462, %c0_463] : memref<1x5x16xf32, #tpu.memory_space<vmem>>, vector<1x5x16xf32>
    %751 = vector.shape_cast %750 : vector<1x5x16xf32> to vector<5x16xf32>
    %752 = vector.shape_cast %749 : vector<5x16xf32> to vector<1x5x16xf32>
    tpu.vector_store %arg36[%c0_461, %c0_462, %c0_463], %752 {strides = array<i32>} : memref<1x5x16xf32, #tpu.memory_space<vmem>>, vector<1x5x16xf32>,
    return
  }
  func.func @transform_0(%arg0: i32) -> (i32, i32, i32) {
    %c0_i32 = arith.constant 0 : i32
    %c0_i32_0 = arith.constant 0 : i32
    %c0_i32_1 = arith.constant 0 : i32
    return %arg0, %c0_i32, %c0_i32_0 : i32, i32, i32
  }
  func.func @transform_1(%arg0: i32) -> (i32, i32, i32) {
    %c0_i32 = arith.constant 0 : i32
    %c0_i32_0 = arith.constant 0 : i32
    %c0_i32_1 = arith.constant 0 : i32
    return %arg0, %c0_i32, %c0_i32_0 : i32, i32, i32
  }
  func.func @transform_2(%arg0: i32) -> (i32, i32) {
    %c0_i32 = arith.constant 0 : i32
    %c0_i32_0 = arith.constant 0 : i32
    %c0_i32_1 = arith.constant 0 : i32
    return %c0_i32, %c0_i32_0 : i32, i32
  }
  func.func @transform_3(%arg0: i32) -> (i32, i32) {
    %c0_i32 = arith.constant 0 : i32
    %c0_i32_0 = arith.constant 0 : i32
    %c0_i32_1 = arith.constant 0 : i32
    return %c0_i32, %c0_i32_0 : i32, i32
  }
  func.func @transform_4(%arg0: i32) -> (i32, i32) {
    %c0_i32 = arith.constant 0 : i32
    %c0_i32_0 = arith.constant 0 : i32
    %c0_i32_1 = arith.constant 0 : i32
    return %c0_i32, %c0_i32_0 : i32, i32
  }
  func.func @transform_5(%arg0: i32) -> (i32, i32, i32) {
    %c0_i32 = arith.constant 0 : i32
    %c0_i32_0 = arith.constant 0 : i32
    %c0_i32_1 = arith.constant 0 : i32
    %c0_i32_2 = arith.constant 0 : i32
    return %c0_i32, %c0_i32_0, %c0_i32_1 : i32, i32, i32
  }
  func.func @transform_6(%arg0: i32) -> (i32, i32, i32) {
    %c0_i32 = arith.constant 0 : i32
    %c0_i32_0 = arith.constant 0 : i32
    %c0_i32_1 = arith.constant 0 : i32
    return %arg0, %c0_i32, %c0_i32_0 : i32, i32, i32
  }
  func.func @transform_7(%arg0: i32) -> (i32, i32) {
    %c0_i32 = arith.constant 0 : i32
    %c0_i32_0 = arith.constant 0 : i32
    %c0_i32_1 = arith.constant 0 : i32
    return %c0_i32, %c0_i32_0 : i32, i32
  }
  func.func @transform_8(%arg0: i32) -> (i32, i32) {
    %c0_i32 = arith.constant 0 : i32
    %c0_i32_0 = arith.constant 0 : i32
    %c0_i32_1 = arith.constant 0 : i32
    return %c0_i32, %c0_i32_0 : i32, i32
  }
  func.func @transform_9(%arg0: i32) -> (i32, i32) {
    %c0_i32 = arith.constant 0 : i32
    %c0_i32_0 = arith.constant 0 : i32
    %c0_i32_1 = arith.constant 0 : i32
    return %c0_i32, %c0_i32_0 : i32, i32
  }
  func.func @transform_10(%arg0: i32) -> (i32, i32) {
    %c0_i32 = arith.constant 0 : i32
    %c0_i32_0 = arith.constant 0 : i32
    %c0_i32_1 = arith.constant 0 : i32
    return %c0_i32, %c0_i32_0 : i32, i32
  }
  func.func @transform_11(%arg0: i32) -> (i32, i32) {
    %c0_i32 = arith.constant 0 : i32
    %c0_i32_0 = arith.constant 0 : i32
    %c0_i32_1 = arith.constant 0 : i32
    return %c0_i32, %c0_i32_0 : i32, i32
  }
  func.func @transform_12(%arg0: i32) -> (i32, i32) {
    %c0_i32 = arith.constant 0 : i32
    %c0_i32_0 = arith.constant 0 : i32
    %c0_i32_1 = arith.constant 0 : i32
    return %c0_i32, %c0_i32_0 : i32, i32
  }
  func.func @transform_13(%arg0: i32) -> (i32, i32, i32) {
    %c0_i32 = arith.constant 0 : i32
    %c0_i32_0 = arith.constant 0 : i32
    %c0_i32_1 = arith.constant 0 : i32
    return %arg0, %c0_i32, %c0_i32_0 : i32, i32, i32
  }
  func.func @transform_14(%arg0: i32) -> (i32, i32, i32) {
    %c0_i32 = arith.constant 0 : i32
    %c0_i32_0 = arith.constant 0 : i32
    %c0_i32_1 = arith.constant 0 : i32
    return %arg0, %c0_i32, %c0_i32_0 : i32, i32, i32
  }
  func.func @transform_15(%arg0: i32) -> (i32, i32, i32) {
    %c0_i32 = arith.constant 0 : i32
    %c0_i32_0 = arith.constant 0 : i32
    %c0_i32_1 = arith.constant 0 : i32
    %c0_i32_2 = arith.constant 0 : i32
    return %c0_i32, %c0_i32_0, %c0_i32_1 : i32, i32, i32
  }
  func.func @transform_16(%arg0: i32) -> (i32, i32) {
    %c0_i32 = arith.constant 0 : i32
    %c0_i32_0 = arith.constant 0 : i32
    %c0_i32_1 = arith.constant 0 : i32
    return %c0_i32, %c0_i32_0 : i32, i32
  }
  func.func @transform_17(%arg0: i32) -> (i32, i32, i32) {
    %c0_i32 = arith.constant 0 : i32
    %c0_i32_0 = arith.constant 0 : i32
    %c0_i32_1 = arith.constant 0 : i32
    %c0_i32_2 = arith.constant 0 : i32
    return %c0_i32, %c0_i32_0, %c0_i32_1 : i32, i32, i32
  }
  func.func @transform_18(%arg0: i32) -> (i32, i32, i32) {
    %c0_i32 = arith.constant 0 : i32
    %c0_i32_0 = arith.constant 0 : i32
    %c0_i32_1 = arith.constant 0 : i32
    %c0_i32_2 = arith.constant 0 : i32
    return %c0_i32, %c0_i32_0, %c0_i32_1 : i32, i32, i32
  }
  func.func @transform_19(%arg0: i32) -> (i32, i32, i32) {
    %c0_i32 = arith.constant 0 : i32
    %c0_i32_0 = arith.constant 0 : i32
    %c0_i32_1 = arith.constant 0 : i32
    %c0_i32_2 = arith.constant 0 : i32
    return %c0_i32, %c0_i32_0, %c0_i32_1 : i32, i32, i32
  }
  func.func @transform_20(%arg0: i32) -> (i32, i32, i32) {
    %c0_i32 = arith.constant 0 : i32
    %c0_i32_0 = arith.constant 0 : i32
    %c0_i32_1 = arith.constant 0 : i32
    %c0_i32_2 = arith.constant 0 : i32
    return %c0_i32, %c0_i32_0, %c0_i32_1 : i32, i32, i32
  }
  func.func @transform_21(%arg0: i32) -> (i32, i32, i32) {
    %c0_i32 = arith.constant 0 : i32
    %c0_i32_0 = arith.constant 0 : i32
    %c0_i32_1 = arith.constant 0 : i32
    %c0_i32_2 = arith.constant 0 : i32
    return %c0_i32, %c0_i32_0, %c0_i32_1 : i32, i32, i32
  }
  func.func @transform_22(%arg0: i32) -> (i32, i32, i32) {
    %c0_i32 = arith.constant 0 : i32
    %c0_i32_0 = arith.constant 0 : i32
    %c0_i32_1 = arith.constant 0 : i32
    %c0_i32_2 = arith.constant 0 : i32
    return %c0_i32, %c0_i32_0, %c0_i32_1 : i32, i32, i32
  }
  func.func @transform_23(%arg0: i32) -> (i32, i32, i32) {
    %c0_i32 = arith.constant 0 : i32
    %c0_i32_0 = arith.constant 0 : i32
    %c0_i32_1 = arith.constant 0 : i32
    %c0_i32_2 = arith.constant 0 : i32
    return %c0_i32, %c0_i32_0, %c0_i32_1 : i32, i32, i32
  }
  func.func @transform_24(%arg0: i32) -> (i32, i32, i32) {
    %c0_i32 = arith.constant 0 : i32
    %c0_i32_0 = arith.constant 0 : i32
    %c0_i32_1 = arith.constant 0 : i32
    %c0_i32_2 = arith.constant 0 : i32
    return %c0_i32, %c0_i32_0, %c0_i32_1 : i32, i32, i32
  }
  func.func @transform_25(%arg0: i32) -> (i32, i32, i32) {
    %c0_i32 = arith.constant 0 : i32
    %c0_i32_0 = arith.constant 0 : i32
    %c0_i32_1 = arith.constant 0 : i32
    %c0_i32_2 = arith.constant 0 : i32
    return %c0_i32, %c0_i32_0, %c0_i32_1 : i32, i32, i32
  }
  func.func @transform_26(%arg0: i32) -> (i32, i32, i32) {
    %c0_i32 = arith.constant 0 : i32
    %c0_i32_0 = arith.constant 0 : i32
    %c0_i32_1 = arith.constant 0 : i32
    %c0_i32_2 = arith.constant 0 : i32
    return %c0_i32, %c0_i32_0, %c0_i32_1 : i32, i32, i32
  }
  func.func @transform_27(%arg0: i32) -> (i32, i32, i32) {
    %c0_i32 = arith.constant 0 : i32
    %c0_i32_0 = arith.constant 0 : i32
    %c0_i32_1 = arith.constant 0 : i32
    %c0_i32_2 = arith.constant 0 : i32
    return %c0_i32, %c0_i32_0, %c0_i32_1 : i32, i32, i32
  }
  func.func @transform_28(%arg0: i32) -> (i32, i32, i32) {
    %c0_i32 = arith.constant 0 : i32
    %c0_i32_0 = arith.constant 0 : i32
    %c0_i32_1 = arith.constant 0 : i32
    %c0_i32_2 = arith.constant 0 : i32
    return %c0_i32, %c0_i32_0, %c0_i32_1 : i32, i32, i32
  }
  func.func @transform_29(%arg0: i32) -> (i32, i32, i32) {
    %c0_i32 = arith.constant 0 : i32
    %c0_i32_0 = arith.constant 0 : i32
    %c0_i32_1 = arith.constant 0 : i32
    %c0_i32_2 = arith.constant 0 : i32
    return %c0_i32, %c0_i32_0, %c0_i32_1 : i32, i32, i32
  }
  func.func @transform_30(%arg0: i32) -> (i32, i32, i32) {
    %c0_i32 = arith.constant 0 : i32
    %c0_i32_0 = arith.constant 0 : i32
    %c0_i32_1 = arith.constant 0 : i32
    %c0_i32_2 = arith.constant 0 : i32
    return %c0_i32, %c0_i32_0, %c0_i32_1 : i32, i32, i32
  }
  func.func @transform_31(%arg0: i32) -> (i32, i32, i32) {
    %c0_i32 = arith.constant 0 : i32
    %c0_i32_0 = arith.constant 0 : i32
    %c0_i32_1 = arith.constant 0 : i32
    %c0_i32_2 = arith.constant 0 : i32
    return %c0_i32, %c0_i32_0, %c0_i32_1 : i32, i32, i32
  }
  func.func @transform_32(%arg0: i32) -> (i32, i32, i32) {
    %c0_i32 = arith.constant 0 : i32
    %c0_i32_0 = arith.constant 0 : i32
    %c0_i32_1 = arith.constant 0 : i32
    %c0_i32_2 = arith.constant 0 : i32
    return %c0_i32, %c0_i32_0, %c0_i32_1 : i32, i32, i32
  }
  func.func @transform_33(%arg0: i32) -> (i32, i32) {
    %c0_i32 = arith.constant 0 : i32
    %c0_i32_0 = arith.constant 0 : i32
    %c0_i32_1 = arith.constant 0 : i32
    return %c0_i32, %c0_i32_0 : i32, i32
  }
  func.func @transform_34(%arg0: i32) -> (i32, i32) {
    %c0_i32 = arith.constant 0 : i32
    %c0_i32_0 = arith.constant 0 : i32
    %c0_i32_1 = arith.constant 0 : i32
    return %c0_i32, %c0_i32_0 : i32, i32
  }
  func.func @transform_35(%arg0: i32) -> (i32, i32, i32) {
    %c0_i32 = arith.constant 0 : i32
    %c0_i32_0 = arith.constant 0 : i32
    %c0_i32_1 = arith.constant 0 : i32
    return %arg0, %c0_i32, %c0_i32_0 : i32, i32, i32
  }
}

</mosaic_0001>

<llo_original>
// kernel: _device_forward.1
$region0: #{_device_forward.1}
  #allocation0 [shape = 'u32[]', space=smem, size = 0x4, offset = 0x4, fixed_abs, tag = 'smem constant byte address 0x4 - core index']
  #allocation1 [shape = 'u32[144,128]{1,0:T(1,128)}', space=vmem, size = 0x12000, scoped, tag = 'internal scratch']
  #allocation2 [shape = 'f32[9,32]{1,0:T(8,128)}', space=vmem, size = 0x2000, scoped, tag = 'scratch operand']
  %s0 = inlined_call_operand.smem [shape: u32[36], index: -1, kind: input, shape index: {}]
  %s1 = sld [smem:[%s0]]
  %s2 = scalar_lea.smem %s0, 1
  %s3 = sld [smem:[%s2]]
  %s4 = scalar_lea.smem %s0, 2
  %s5 = sld [smem:[%s4]]
  %s6 = scalar_lea.smem %s0, 3
  %s7 = sld [smem:[%s6]]
  %s8 = scalar_lea.smem %s0, 4
  %s9 = sld [smem:[%s8]]
  %s10 = scalar_lea.smem %s0, 5
  %s11 = sld [smem:[%s10]]
  %s12 = scalar_lea.smem %s0, 6
  %s13 = sld [smem:[%s12]]
  %s14 = scalar_lea.smem %s0, 7
  %s15 = sld [smem:[%s14]]
  %s16 = scalar_lea.smem %s0, 8
  %s17 = sld [smem:[%s16]]
  %s18 = scalar_lea.smem %s0, 9
  %s19 = sld [smem:[%s18]]
  %s20 = scalar_lea.smem %s0, 10
  %s21 = sld [smem:[%s20]]
  %s22 = scalar_lea.smem %s0, 11
  %s23 = sld [smem:[%s22]]
  %s24 = scalar_lea.smem %s0, 12
  %s25 = sld [smem:[%s24]]
  %s26 = scalar_lea.smem %s0, 13
  %s27 = sld [smem:[%s26]]
  %s28 = scalar_lea.smem %s0, 14
  %s29 = sld [smem:[%s28]]
  %s30 = scalar_lea.smem %s0, 15
  %s31 = sld [smem:[%s30]]
  %s32 = scalar_lea.smem %s0, 16
  %s33 = sld [smem:[%s32]]
  %s34 = scalar_lea.smem %s0, 17
  %s35 = sld [smem:[%s34]]
  %s36 = scalar_lea.smem %s0, 18
  %s37 = sld [smem:[%s36]]
  %s38 = scalar_lea.smem %s0, 19
  %s39 = sld [smem:[%s38]]
  %s40 = scalar_lea.smem %s0, 20
  %s41 = sld [smem:[%s40]]
  %s42 = scalar_lea.smem %s0, 21
  %s43 = sld [smem:[%s42]]
  %s44 = scalar_lea.smem %s0, 22
  %s45 = sld [smem:[%s44]]
  %s46 = scalar_lea.smem %s0, 23
  %s47 = sld [smem:[%s46]]
  %s48 = scalar_lea.smem %s0, 24
  %s49 = sld [smem:[%s48]]
  %s50 = scalar_lea.smem %s0, 25
  %s51 = sld [smem:[%s50]]
  %s52 = scalar_lea.smem %s0, 26
  %s53 = sld [smem:[%s52]]
  %s54 = scalar_lea.smem %s0, 27
  %s55 = sld [smem:[%s54]]
  %s56 = scalar_lea.smem %s0, 28
  %s57 = sld [smem:[%s56]]
  %s58 = scalar_lea.smem %s0, 29
  %s59 = sld [smem:[%s58]]
  %s60 = scalar_lea.smem %s0, 30
  %s61 = sld [smem:[%s60]]
  %s62 = scalar_lea.smem %s0, 31
  %s63 = sld [smem:[%s62]]
  %s64 = scalar_lea.smem %s0, 32
  %s65 = sld [smem:[%s64]]
  %s66 = scalar_lea.smem %s0, 33
  %s67 = sld [smem:[%s66]]
  %s68 = scalar_lea.smem %s0, 34
  %s69 = sld [smem:[%s68]]
  %s70 = scalar_lea.smem %s0, 35
  %s71 = sld [smem:[%s70]]
  %s72 = sld [smem:[#allocation0]]
  $region173: #{_device_forward.1} parent=0
    _
  %s74 = ssub.s32 1, %s72
  %s75 = scalar_select 0, %s74, %s72
  loop: start=0, step=1, limit=4
  $region2: #{_device_forward.1} parent=0 // loop_pre_header
    _
  $region3: #{_device_forward.1} parent=0 // loop_header
    %s77 = sphi 0, %s81
    %p78 = scmp.ge.s32.totalorder %s77, 4
    %s87 = sphi 0, %s89
    %s90 = sphi 0, %s87
    %s91 = sphi 0, %s90
    %s107 = sphi 0, %s91
    %s113 = sphi 0, %s115
    %s116 = sphi 0, %s113
    %s117 = sphi 0, %s116
    %s133 = sphi 0, %s117
    %s137 = sphi 0, %s137
    %s139 = sphi 0, %s137
    %s140 = sphi 0, %s139
    %s154 = sphi 0, %s140
    %s158 = sphi 0, %s158
    %s160 = sphi 0, %s158
    %s161 = sphi 0, %s160
    %s175 = sphi 0, %s161
    %s179 = sphi 0, %s179
    %s181 = sphi 0, %s179
    %s182 = sphi 0, %s181
    %s196 = sphi 0, %s182
    %s200 = sphi 0, %s200
    %s202 = sphi 0, %s200
    %s203 = sphi 0, %s202
    %s217 = sphi 0, %s203
    %s223 = sphi 0, %s225
    %s226 = sphi 0, %s223
    %s227 = sphi 0, %s226
    %s243 = sphi 0, %s227
    %s247 = sphi 0, %s247
    %s249 = sphi 0, %s247
    %s250 = sphi 0, %s249
    %s264 = sphi 0, %s250
    %s268 = sphi 0, %s268
    %s270 = sphi 0, %s268
    %s271 = sphi 0, %s270
    %s285 = sphi 0, %s271
    %s289 = sphi 0, %s289
    %s291 = sphi 0, %s289
    %s292 = sphi 0, %s291
    %s306 = sphi 0, %s292
    %s310 = sphi 0, %s310
    %s312 = sphi 0, %s310
    %s313 = sphi 0, %s312
    %s327 = sphi 0, %s313
    %s331 = sphi 0, %s331
    %s333 = sphi 0, %s331
    %s334 = sphi 0, %s333
    %s348 = sphi 0, %s334
    %s352 = sphi 0, %s352
    %s354 = sphi 0, %s352
    %s355 = sphi 0, %s354
    %s369 = sphi 0, %s355
    %s375 = sphi 0, %s377
    %s378 = sphi 0, %s375
    %s379 = sphi 0, %s378
    %s395 = sphi 0, %s379
    %s401 = sphi 0, %s403
    %s404 = sphi 0, %s401
    %s405 = sphi 0, %s404
    %s421 = sphi 0, %s405
    %s425 = sphi 0, %s425
    %s427 = sphi 0, %s425
    %s428 = sphi 0, %s427
    %s442 = sphi 0, %s428
    %s446 = sphi 0, %s446
    %s448 = sphi 0, %s446
    %s449 = sphi 0, %s448
    %s463 = sphi 0, %s449
    %s467 = sphi 0, %s467
    %s469 = sphi 0, %s467
    %s470 = sphi 0, %s469
    %s484 = sphi 0, %s470
    %s488 = sphi 0, %s488
    %s490 = sphi 0, %s488
    %s491 = sphi 0, %s490
    %s505 = sphi 0, %s491
    %s509 = sphi 0, %s509
    %s511 = sphi 0, %s509
    %s512 = sphi 0, %s511
    %s526 = sphi 0, %s512
    %s530 = sphi 0, %s530
    %s532 = sphi 0, %s530
    %s533 = sphi 0, %s532
    %s547 = sphi 0, %s533
    %s551 = sphi 0, %s551
    %s553 = sphi 0, %s551
    %s554 = sphi 0, %s553
    %s568 = sphi 0, %s554
    %s572 = sphi 0, %s572
    %s574 = sphi 0, %s572
    %s575 = sphi 0, %s574
    %s589 = sphi 0, %s575
    %s593 = sphi 0, %s593
    %s595 = sphi 0, %s593
    %s596 = sphi 0, %s595
    %s610 = sphi 0, %s596
    %s614 = sphi 0, %s614
    %s616 = sphi 0, %s614
    %s617 = sphi 0, %s616
    %s631 = sphi 0, %s617
    %s635 = sphi 0, %s635
    %s637 = sphi 0, %s635
    %s638 = sphi 0, %s637
    %s652 = sphi 0, %s638
    %s656 = sphi 0, %s656
    %s658 = sphi 0, %s656
    %s659 = sphi 0, %s658
    %s673 = sphi 0, %s659
    %s677 = sphi 0, %s677
    %s679 = sphi 0, %s677
    %s680 = sphi 0, %s679
    %s694 = sphi 0, %s680
    %s698 = sphi 0, %s698
    %s700 = sphi 0, %s698
    %s701 = sphi 0, %s700
    %s715 = sphi 0, %s701
    %s719 = sphi 0, %s719
    %s721 = sphi 0, %s719
    %s722 = sphi 0, %s721
    %s736 = sphi 0, %s722
    %s740 = sphi 0, %s740
    %s742 = sphi 0, %s740
    %s743 = sphi 0, %s742
    %s757 = sphi 0, %s743
    %s761 = sphi 0, %s761
    %s763 = sphi 0, %s761
    %s764 = sphi 0, %s763
    %s778 = sphi 0, %s764
    %s782 = sphi 0, %s782
    %s784 = sphi 0, %s782
    %s785 = sphi 0, %s784
    %s799 = sphi 0, %s785
    %s803 = sphi 0, %s803
    %s805 = sphi 0, %s803
    %s806 = sphi 0, %s805
    %s820 = sphi 0, %s806
    %s824 = sphi 0, %s824
    %s826 = sphi 0, %s824
    %s827 = sphi 0, %s826
    %s841 = sphi 0, %s827
    %s847 = sphi 0, %s849
    %s850 = sphi 0, %s847
    %s851 = sphi 0, %s850
    %s867 = sphi 0, %s851
  $region4: #{_device_forward.1} parent=0 // loop_header_branch
    %80 = sbr.rel (%p78) target = $region8
  $region5: #{_device_forward.1} parent=0 // loop_body
    %s82 = ssub.s32 %s77, 1
    %s83 = ssub.s32 %s77, 2
    %s84 = sadd.s32 %s77, 1
    %s85 = ssub.s32 %s77, %s84
    %p86 = scmp.eq.s32.totalorder %s85, 0
    %s88 = sadd.s32 %s87, 1
    %s89 = scalar_select %p86, %s87, %s88
    %p92 = pneg %p86
    %p93 = scmp.eq.s32.totalorder %s77, 1
    %p94 = por %p92, %p93
    %p95 = scmp.ne.s32.totalorder %s87, %s90
    %p96 = scmp.eq.s32.totalorder %s77, 0
    %p97 = por %p95, %p96
    %p98 = scmp.ne.s32.totalorder %s87, %s90
    %p99 = scmp.eq.s32.totalorder %s82, 1
    %p100 = por %p98, %p99
    %p101 = scmp.ne.s32.totalorder %s90, %s91
    %p102 = scmp.eq.s32.totalorder %s82, 0
    %p103 = por %p101, %p102
    %p104 = scmp.ne.s32.totalorder %s90, %s91
    %p105 = scmp.eq.s32.totalorder %s83, 1
    %p106 = por %p104, %p105
    %p108 = scmp.ne.s32.totalorder %s91, %s107
    %p109 = scmp.eq.s32.totalorder %s83, 0
    %p110 = por %p108, %p109
    %s111 = ssub.s32 %s77, %s84
    %p112 = scmp.eq.s32.totalorder %s111, 0
    %s114 = sadd.s32 %s113, 1
    %s115 = scalar_select %p112, %s113, %s114
    %p118 = pneg %p112
    %p119 = scmp.eq.s32.totalorder %s77, 1
    %p120 = por %p118, %p119
    %p121 = scmp.ne.s32.totalorder %s113, %s116
    %p122 = scmp.eq.s32.totalorder %s77, 0
    %p123 = por %p121, %p122
    %p124 = scmp.ne.s32.totalorder %s113, %s116
    %p125 = scmp.eq.s32.totalorder %s82, 1
    %p126 = por %p124, %p125
    %p127 = scmp.ne.s32.totalorder %s116, %s117
    %p128 = scmp.eq.s32.totalorder %s82, 0
    %p129 = por %p127, %p128
    %p130 = scmp.ne.s32.totalorder %s116, %s117
    %p131 = scmp.eq.s32.totalorder %s83, 1
    %p132 = por %p130, %p131
    %p134 = scmp.ne.s32.totalorder %s117, %s133
    %p135 = scmp.eq.s32.totalorder %s83, 0
    %p136 = por %p134, %p135
    %s138 = sadd.s32 %s137, 1
    %p141 = scmp.eq.s32.totalorder %s77, 1
    %p142 = scmp.ne.s32.totalorder %s137, %s139
    %p143 = scmp.eq.s32.totalorder %s77, 0
    %p144 = por %p142, %p143
    %p145 = scmp.ne.s32.totalorder %s137, %s139
    %p146 = scmp.eq.s32.totalorder %s82, 1
    %p147 = por %p145, %p146
    %p148 = scmp.ne.s32.totalorder %s139, %s140
    %p149 = scmp.eq.s32.totalorder %s82, 0
    %p150 = por %p148, %p149
    %p151 = scmp.ne.s32.totalorder %s139, %s140
    %p152 = scmp.eq.s32.totalorder %s83, 1
    %p153 = por %p151, %p152
    %p155 = scmp.ne.s32.totalorder %s140, %s154
    %p156 = scmp.eq.s32.totalorder %s83, 0
    %p157 = por %p155, %p156
    %s159 = sadd.s32 %s158, 1
    %p162 = scmp.eq.s32.totalorder %s77, 1
    %p163 = scmp.ne.s32.totalorder %s158, %s160
    %p164 = scmp.eq.s32.totalorder %s77, 0
    %p165 = por %p163, %p164
    %p166 = scmp.ne.s32.totalorder %s158, %s160
    %p167 = scmp.eq.s32.totalorder %s82, 1
    %p168 = por %p166, %p167
    %p169 = scmp.ne.s32.totalorder %s160, %s161
    %p170 = scmp.eq.s32.totalorder %s82, 0
    %p171 = por %p169, %p170
    %p172 = scmp.ne.s32.totalorder %s160, %s161
    %p173 = scmp.eq.s32.totalorder %s83, 1
    %p174 = por %p172, %p173
    %p176 = scmp.ne.s32.totalorder %s161, %s175
    %p177 = scmp.eq.s32.totalorder %s83, 0
    %p178 = por %p176, %p177
    %s180 = sadd.s32 %s179, 1
    %p183 = scmp.eq.s32.totalorder %s77, 1
    %p184 = scmp.ne.s32.totalorder %s179, %s181
    %p185 = scmp.eq.s32.totalorder %s77, 0
    %p186 = por %p184, %p185
    %p187 = scmp.ne.s32.totalorder %s179, %s181
    %p188 = scmp.eq.s32.totalorder %s82, 1
    %p189 = por %p187, %p188
    %p190 = scmp.ne.s32.totalorder %s181, %s182
    %p191 = scmp.eq.s32.totalorder %s82, 0
    %p192 = por %p190, %p191
    %p193 = scmp.ne.s32.totalorder %s181, %s182
    %p194 = scmp.eq.s32.totalorder %s83, 1
    %p195 = por %p193, %p194
    %p197 = scmp.ne.s32.totalorder %s182, %s196
    %p198 = scmp.eq.s32.totalorder %s83, 0
    %p199 = por %p197, %p198
    %s201 = sadd.s32 %s200, 1
    %p204 = scmp.eq.s32.totalorder %s77, 1
    %p205 = scmp.ne.s32.totalorder %s200, %s202
    %p206 = scmp.eq.s32.totalorder %s77, 0
    %p207 = por %p205, %p206
    %p208 = scmp.ne.s32.totalorder %s200, %s202
    %p209 = scmp.eq.s32.totalorder %s82, 1
    %p210 = por %p208, %p209
    %p211 = scmp.ne.s32.totalorder %s202, %s203
    %p212 = scmp.eq.s32.totalorder %s82, 0
    %p213 = por %p211, %p212
    %p214 = scmp.ne.s32.totalorder %s202, %s203
    %p215 = scmp.eq.s32.totalorder %s83, 1
    %p216 = por %p214, %p215
    %p218 = scmp.ne.s32.totalorder %s203, %s217
    %p219 = scmp.eq.s32.totalorder %s83, 0
    %p220 = por %p218, %p219
    %s221 = ssub.s32 %s77, %s84
    %p222 = scmp.eq.s32.totalorder %s221, 0
    %s224 = sadd.s32 %s223, 1
    %s225 = scalar_select %p222, %s223, %s224
    %p228 = pneg %p222
    %p229 = scmp.eq.s32.totalorder %s77, 1
    %p230 = por %p228, %p229
    %p231 = scmp.ne.s32.totalorder %s223, %s226
    %p232 = scmp.eq.s32.totalorder %s77, 0
    %p233 = por %p231, %p232
    %p234 = scmp.ne.s32.totalorder %s223, %s226
    %p235 = scmp.eq.s32.totalorder %s82, 1
    %p236 = por %p234, %p235
    %p237 = scmp.ne.s32.totalorder %s226, %s227
    %p238 = scmp.eq.s32.totalorder %s82, 0
    %p239 = por %p237, %p238
    %p240 = scmp.ne.s32.totalorder %s226, %s227
    %p241 = scmp.eq.s32.totalorder %s83, 1
    %p242 = por %p240, %p241
    %p244 = scmp.ne.s32.totalorder %s227, %s243
    %p245 = scmp.eq.s32.totalorder %s83, 0
    %p246 = por %p244, %p245
    %s248 = sadd.s32 %s247, 1
    %p251 = scmp.eq.s32.totalorder %s77, 1
    %p252 = scmp.ne.s32.totalorder %s247, %s249
    %p253 = scmp.eq.s32.totalorder %s77, 0
    %p254 = por %p252, %p253
    %p255 = scmp.ne.s32.totalorder %s247, %s249
    %p256 = scmp.eq.s32.totalorder %s82, 1
    %p257 = por %p255, %p256
    %p258 = scmp.ne.s32.totalorder %s249, %s250
    %p259 = scmp.eq.s32.totalorder %s82, 0
    %p260 = por %p258, %p259
    %p261 = scmp.ne.s32.totalorder %s249, %s250
    %p262 = scmp.eq.s32.totalorder %s83, 1
    %p263 = por %p261, %p262
    %p265 = scmp.ne.s32.totalorder %s250, %s264
    %p266 = scmp.eq.s32.totalorder %s83, 0
    %p267 = por %p265, %p266
    %s269 = sadd.s32 %s268, 1
    %p272 = scmp.eq.s32.totalorder %s77, 1
    %p273 = scmp.ne.s32.totalorder %s268, %s270
    %p274 = scmp.eq.s32.totalorder %s77, 0
    %p275 = por %p273, %p274
    %p276 = scmp.ne.s32.totalorder %s268, %s270
    %p277 = scmp.eq.s32.totalorder %s82, 1
    %p278 = por %p276, %p277
    %p279 = scmp.ne.s32.totalorder %s270, %s271
    %p280 = scmp.eq.s32.totalorder %s82, 0
    %p281 = por %p279, %p280
    %p282 = scmp.ne.s32.totalorder %s270, %s271
    %p283 = scmp.eq.s32.totalorder %s83, 1
    %p284 = por %p282, %p283
    %p286 = scmp.ne.s32.totalorder %s271, %s285
    %p287 = scmp.eq.s32.totalorder %s83, 0
    %p288 = por %p286, %p287
    %s290 = sadd.s32 %s289, 1
    %p293 = scmp.eq.s32.totalorder %s77, 1
    %p294 = scmp.ne.s32.totalorder %s289, %s291
    %p295 = scmp.eq.s32.totalorder %s77, 0
    %p296 = por %p294, %p295
    %p297 = scmp.ne.s32.totalorder %s289, %s291
    %p298 = scmp.eq.s32.totalorder %s82, 1
    %p299 = por %p297, %p298
    %p300 = scmp.ne.s32.totalorder %s291, %s292
    %p301 = scmp.eq.s32.totalorder %s82, 0
    %p302 = por %p300, %p301
    %p303 = scmp.ne.s32.totalorder %s291, %s292
    %p304 = scmp.eq.s32.totalorder %s83, 1
    %p305 = por %p303, %p304
    %p307 = scmp.ne.s32.totalorder %s292, %s306
    %p308 = scmp.eq.s32.totalorder %s83, 0
    %p309 = por %p307, %p308
    %s311 = sadd.s32 %s310, 1
    %p314 = scmp.eq.s32.totalorder %s77, 1
    %p315 = scmp.ne.s32.totalorder %s310, %s312
    %p316 = scmp.eq.s32.totalorder %s77, 0
    %p317 = por %p315, %p316
    %p318 = scmp.ne.s32.totalorder %s310, %s312
    %p319 = scmp.eq.s32.totalorder %s82, 1
    %p320 = por %p318, %p319
    %p321 = scmp.ne.s32.totalorder %s312, %s313
    %p322 = scmp.eq.s32.totalorder %s82, 0
    %p323 = por %p321, %p322
    %p324 = scmp.ne.s32.totalorder %s312, %s313
    %p325 = scmp.eq.s32.totalorder %s83, 1
    %p326 = por %p324, %p325
    %p328 = scmp.ne.s32.totalorder %s313, %s327
    %p329 = scmp.eq.s32.totalorder %s83, 0
    %p330 = por %p328, %p329
    %s332 = sadd.s32 %s331, 1
    %p335 = scmp.eq.s32.totalorder %s77, 1
    %p336 = scmp.ne.s32.totalorder %s331, %s333
    %p337 = scmp.eq.s32.totalorder %s77, 0
    %p338 = por %p336, %p337
    %p339 = scmp.ne.s32.totalorder %s331, %s333
    %p340 = scmp.eq.s32.totalorder %s82, 1
    %p341 = por %p339, %p340
    %p342 = scmp.ne.s32.totalorder %s333, %s334
    %p343 = scmp.eq.s32.totalorder %s82, 0
    %p344 = por %p342, %p343
    %p345 = scmp.ne.s32.totalorder %s333, %s334
    %p346 = scmp.eq.s32.totalorder %s83, 1
    %p347 = por %p345, %p346
    %p349 = scmp.ne.s32.totalorder %s334, %s348
    %p350 = scmp.eq.s32.totalorder %s83, 0
    %p351 = por %p349, %p350
    %s353 = sadd.s32 %s352, 1
    %p356 = scmp.eq.s32.totalorder %s77, 1
    %p357 = scmp.ne.s32.totalorder %s352, %s354
    %p358 = scmp.eq.s32.totalorder %s77, 0
    %p359 = por %p357, %p358
    %p360 = scmp.ne.s32.totalorder %s352, %s354
    %p361 = scmp.eq.s32.totalorder %s82, 1
    %p362 = por %p360, %p361
    %p363 = scmp.ne.s32.totalorder %s354, %s355
    %p364 = scmp.eq.s32.totalorder %s82, 0
    %p365 = por %p363, %p364
    %p366 = scmp.ne.s32.totalorder %s354, %s355
    %p367 = scmp.eq.s32.totalorder %s83, 1
    %p368 = por %p366, %p367
    %p370 = scmp.ne.s32.totalorder %s355, %s369
    %p371 = scmp.eq.s32.totalorder %s83, 0
    %p372 = por %p370, %p371
    %s373 = ssub.s32 %s77, %s84
    %p374 = scmp.eq.s32.totalorder %s373, 0
    %s376 = sadd.s32 %s375, 1
    %s377 = scalar_select %p374, %s375, %s376
    %p380 = pneg %p374
    %p381 = scmp.eq.s32.totalorder %s77, 1
    %p382 = por %p380, %p381
    %p383 = scmp.ne.s32.totalorder %s375, %s378
    %p384 = scmp.eq.s32.totalorder %s77, 0
    %p385 = por %p383, %p384
    %p386 = scmp.ne.s32.totalorder %s375, %s378
    %p387 = scmp.eq.s32.totalorder %s82, 1
    %p388 = por %p386, %p387
    %p389 = scmp.ne.s32.totalorder %s378, %s379
    %p390 = scmp.eq.s32.totalorder %s82, 0
    %p391 = por %p389, %p390
    %p392 = scmp.ne.s32.totalorder %s378, %s379
    %p393 = scmp.eq.s32.totalorder %s83, 1
    %p394 = por %p392, %p393
    %p396 = scmp.ne.s32.totalorder %s379, %s395
    %p397 = scmp.eq.s32.totalorder %s83, 0
    %p398 = por %p396, %p397
    %s399 = ssub.s32 %s77, %s84
    %p400 = scmp.eq.s32.totalorder %s399, 0
    %s402 = sadd.s32 %s401, 1
    %s403 = scalar_select %p400, %s401, %s402
    %p406 = pneg %p400
    %p407 = scmp.eq.s32.totalorder %s77, 1
    %p408 = por %p406, %p407
    %p409 = scmp.ne.s32.totalorder %s401, %s404
    %p410 = scmp.eq.s32.totalorder %s77, 0
    %p411 = por %p409, %p410
    %p412 = scmp.ne.s32.totalorder %s401, %s404
    %p413 = scmp.eq.s32.totalorder %s82, 1
    %p414 = por %p412, %p413
    %p415 = scmp.ne.s32.totalorder %s404, %s405
    %p416 = scmp.eq.s32.totalorder %s82, 0
    %p417 = por %p415, %p416
    %p418 = scmp.ne.s32.totalorder %s404, %s405
    %p419 = scmp.eq.s32.totalorder %s83, 1
    %p420 = por %p418, %p419
    %p422 = scmp.ne.s32.totalorder %s405, %s421
    %p423 = scmp.eq.s32.totalorder %s83, 0
    %p424 = por %p422, %p423
    %s426 = sadd.s32 %s425, 1
    %p429 = scmp.eq.s32.totalorder %s77, 1
    %p430 = scmp.ne.s32.totalorder %s425, %s427
    %p431 = scmp.eq.s32.totalorder %s77, 0
    %p432 = por %p430, %p431
    %p433 = scmp.ne.s32.totalorder %s425, %s427
    %p434 = scmp.eq.s32.totalorder %s82, 1
    %p435 = por %p433, %p434
    %p436 = scmp.ne.s32.totalorder %s427, %s428
    %p437 = scmp.eq.s32.totalorder %s82, 0
    %p438 = por %p436, %p437
    %p439 = scmp.ne.s32.totalorder %s427, %s428
    %p440 = scmp.eq.s32.totalorder %s83, 1
    %p441 = por %p439, %p440
    %p443 = scmp.ne.s32.totalorder %s428, %s442
    %p444 = scmp.eq.s32.totalorder %s83, 0
    %p445 = por %p443, %p444
    %s447 = sadd.s32 %s446, 1
    %p450 = scmp.eq.s32.totalorder %s77, 1
    %p451 = scmp.ne.s32.totalorder %s446, %s448
    %p452 = scmp.eq.s32.totalorder %s77, 0
    %p453 = por %p451, %p452
    %p454 = scmp.ne.s32.totalorder %s446, %s448
    %p455 = scmp.eq.s32.totalorder %s82, 1
    %p456 = por %p454, %p455
    %p457 = scmp.ne.s32.totalorder %s448, %s449
    %p458 = scmp.eq.s32.totalorder %s82, 0
    %p459 = por %p457, %p458
    %p460 = scmp.ne.s32.totalorder %s448, %s449
    %p461 = scmp.eq.s32.totalorder %s83, 1
    %p462 = por %p460, %p461
    %p464 = scmp.ne.s32.totalorder %s449, %s463
    %p465 = scmp.eq.s32.totalorder %s83, 0
    %p466 = por %p464, %p465
    %s468 = sadd.s32 %s467, 1
    %p471 = scmp.eq.s32.totalorder %s77, 1
    %p472 = scmp.ne.s32.totalorder %s467, %s469
    %p473 = scmp.eq.s32.totalorder %s77, 0
    %p474 = por %p472, %p473
    %p475 = scmp.ne.s32.totalorder %s467, %s469
    %p476 = scmp.eq.s32.totalorder %s82, 1
    %p477 = por %p475, %p476
    %p478 = scmp.ne.s32.totalorder %s469, %s470
    %p479 = scmp.eq.s32.totalorder %s82, 0
    %p480 = por %p478, %p479
    %p481 = scmp.ne.s32.totalorder %s469, %s470
    %p482 = scmp.eq.s32.totalorder %s83, 1
    %p483 = por %p481, %p482
    %p485 = scmp.ne.s32.totalorder %s470, %s484
    %p486 = scmp.eq.s32.totalorder %s83, 0
    %p487 = por %p485, %p486
    %s489 = sadd.s32 %s488, 1
    %p492 = scmp.eq.s32.totalorder %s77, 1
    %p493 = scmp.ne.s32.totalorder %s488, %s490
    %p494 = scmp.eq.s32.totalorder %s77, 0
    %p495 = por %p493, %p494
    %p496 = scmp.ne.s32.totalorder %s488, %s490
    %p497 = scmp.eq.s32.totalorder %s82, 1
    %p498 = por %p496, %p497
    %p499 = scmp.ne.s32.totalorder %s490, %s491
    %p500 = scmp.eq.s32.totalorder %s82, 0
    %p501 = por %p499, %p500
    %p502 = scmp.ne.s32.totalorder %s490, %s491
    %p503 = scmp.eq.s32.totalorder %s83, 1
    %p504 = por %p502, %p503
    %p506 = scmp.ne.s32.totalorder %s491, %s505
    %p507 = scmp.eq.s32.totalorder %s83, 0
    %p508 = por %p506, %p507
    %s510 = sadd.s32 %s509, 1
    %p513 = scmp.eq.s32.totalorder %s77, 1
    %p514 = scmp.ne.s32.totalorder %s509, %s511
    %p515 = scmp.eq.s32.totalorder %s77, 0
    %p516 = por %p514, %p515
    %p517 = scmp.ne.s32.totalorder %s509, %s511
    %p518 = scmp.eq.s32.totalorder %s82, 1
    %p519 = por %p517, %p518
    %p520 = scmp.ne.s32.totalorder %s511, %s512
    %p521 = scmp.eq.s32.totalorder %s82, 0
    %p522 = por %p520, %p521
    %p523 = scmp.ne.s32.totalorder %s511, %s512
    %p524 = scmp.eq.s32.totalorder %s83, 1
    %p525 = por %p523, %p524
    %p527 = scmp.ne.s32.totalorder %s512, %s526
    %p528 = scmp.eq.s32.totalorder %s83, 0
    %p529 = por %p527, %p528
    %s531 = sadd.s32 %s530, 1
    %p534 = scmp.eq.s32.totalorder %s77, 1
    %p535 = scmp.ne.s32.totalorder %s530, %s532
    %p536 = scmp.eq.s32.totalorder %s77, 0
    %p537 = por %p535, %p536
    %p538 = scmp.ne.s32.totalorder %s530, %s532
    %p539 = scmp.eq.s32.totalorder %s82, 1
    %p540 = por %p538, %p539
    %p541 = scmp.ne.s32.totalorder %s532, %s533
    %p542 = scmp.eq.s32.totalorder %s82, 0
    %p543 = por %p541, %p542
    %p544 = scmp.ne.s32.totalorder %s532, %s533
    %p545 = scmp.eq.s32.totalorder %s83, 1
    %p546 = por %p544, %p545
    %p548 = scmp.ne.s32.totalorder %s533, %s547
    %p549 = scmp.eq.s32.totalorder %s83, 0
    %p550 = por %p548, %p549
    %s552 = sadd.s32 %s551, 1
    %p555 = scmp.eq.s32.totalorder %s77, 1
    %p556 = scmp.ne.s32.totalorder %s551, %s553
    %p557 = scmp.eq.s32.totalorder %s77, 0
    %p558 = por %p556, %p557
    %p559 = scmp.ne.s32.totalorder %s551, %s553
    %p560 = scmp.eq.s32.totalorder %s82, 1
    %p561 = por %p559, %p560
    %p562 = scmp.ne.s32.totalorder %s553, %s554
    %p563 = scmp.eq.s32.totalorder %s82, 0
    %p564 = por %p562, %p563
    %p565 = scmp.ne.s32.totalorder %s553, %s554
    %p566 = scmp.eq.s32.totalorder %s83, 1
    %p567 = por %p565, %p566
    %p569 = scmp.ne.s32.totalorder %s554, %s568
    %p570 = scmp.eq.s32.totalorder %s83, 0
    %p571 = por %p569, %p570
    %s573 = sadd.s32 %s572, 1
    %p576 = scmp.eq.s32.totalorder %s77, 1
    %p577 = scmp.ne.s32.totalorder %s572, %s574
    %p578 = scmp.eq.s32.totalorder %s77, 0
    %p579 = por %p577, %p578
    %p580 = scmp.ne.s32.totalorder %s572, %s574
    %p581 = scmp.eq.s32.totalorder %s82, 1
    %p582 = por %p580, %p581
    %p583 = scmp.ne.s32.totalorder %s574, %s575
    %p584 = scmp.eq.s32.totalorder %s82, 0
    %p585 = por %p583, %p584
    %p586 = scmp.ne.s32.totalorder %s574, %s575
    %p587 = scmp.eq.s32.totalorder %s83, 1
    %p588 = por %p586, %p587
    %p590 = scmp.ne.s32.totalorder %s575, %s589
    %p591 = scmp.eq.s32.totalorder %s83, 0
    %p592 = por %p590, %p591
    %s594 = sadd.s32 %s593, 1
    %p597 = scmp.eq.s32.totalorder %s77, 1
    %p598 = scmp.ne.s32.totalorder %s593, %s595
    %p599 = scmp.eq.s32.totalorder %s77, 0
    %p600 = por %p598, %p599
    %p601 = scmp.ne.s32.totalorder %s593, %s595
    %p602 = scmp.eq.s32.totalorder %s82, 1
    %p603 = por %p601, %p602
    %p604 = scmp.ne.s32.totalorder %s595, %s596
    %p605 = scmp.eq.s32.totalorder %s82, 0
    %p606 = por %p604, %p605
    %p607 = scmp.ne.s32.totalorder %s595, %s596
    %p608 = scmp.eq.s32.totalorder %s83, 1
    %p609 = por %p607, %p608
    %p611 = scmp.ne.s32.totalorder %s596, %s610
    %p612 = scmp.eq.s32.totalorder %s83, 0
    %p613 = por %p611, %p612
    %s615 = sadd.s32 %s614, 1
    %p618 = scmp.eq.s32.totalorder %s77, 1
    %p619 = scmp.ne.s32.totalorder %s614, %s616
    %p620 = scmp.eq.s32.totalorder %s77, 0
    %p621 = por %p619, %p620
    %p622 = scmp.ne.s32.totalorder %s614, %s616
    %p623 = scmp.eq.s32.totalorder %s82, 1
    %p624 = por %p622, %p623
    %p625 = scmp.ne.s32.totalorder %s616, %s617
    %p626 = scmp.eq.s32.totalorder %s82, 0
    %p627 = por %p625, %p626
    %p628 = scmp.ne.s32.totalorder %s616, %s617
    %p629 = scmp.eq.s32.totalorder %s83, 1
    %p630 = por %p628, %p629
    %p632 = scmp.ne.s32.totalorder %s617, %s631
    %p633 = scmp.eq.s32.totalorder %s83, 0
    %p634 = por %p632, %p633
    %s636 = sadd.s32 %s635, 1
    %p639 = scmp.eq.s32.totalorder %s77, 1
    %p640 = scmp.ne.s32.totalorder %s635, %s637
    %p641 = scmp.eq.s32.totalorder %s77, 0
    %p642 = por %p640, %p641
    %p643 = scmp.ne.s32.totalorder %s635, %s637
    %p644 = scmp.eq.s32.totalorder %s82, 1
    %p645 = por %p643, %p644
    %p646 = scmp.ne.s32.totalorder %s637, %s638
    %p647 = scmp.eq.s32.totalorder %s82, 0
    %p648 = por %p646, %p647
    %p649 = scmp.ne.s32.totalorder %s637, %s638
    %p650 = scmp.eq.s32.totalorder %s83, 1
    %p651 = por %p649, %p650
    %p653 = scmp.ne.s32.totalorder %s638, %s652
    %p654 = scmp.eq.s32.totalorder %s83, 0
    %p655 = por %p653, %p654
    %s657 = sadd.s32 %s656, 1
    %p660 = scmp.eq.s32.totalorder %s77, 1
    %p661 = scmp.ne.s32.totalorder %s656, %s658
    %p662 = scmp.eq.s32.totalorder %s77, 0
    %p663 = por %p661, %p662
    %p664 = scmp.ne.s32.totalorder %s656, %s658
    %p665 = scmp.eq.s32.totalorder %s82, 1
    %p666 = por %p664, %p665
    %p667 = scmp.ne.s32.totalorder %s658, %s659
    %p668 = scmp.eq.s32.totalorder %s82, 0
    %p669 = por %p667, %p668
    %p670 = scmp.ne.s32.totalorder %s658, %s659
    %p671 = scmp.eq.s32.totalorder %s83, 1
    %p672 = por %p670, %p671
    %p674 = scmp.ne.s32.totalorder %s659, %s673
    %p675 = scmp.eq.s32.totalorder %s83, 0
    %p676 = por %p674, %p675
    %s678 = sadd.s32 %s677, 1
    %p681 = scmp.eq.s32.totalorder %s77, 1
    %p682 = scmp.ne.s32.totalorder %s677, %s679
    %p683 = scmp.eq.s32.totalorder %s77, 0
    %p684 = por %p682, %p683
    %p685 = scmp.ne.s32.totalorder %s677, %s679
    %p686 = scmp.eq.s32.totalorder %s82, 1
    %p687 = por %p685, %p686
    %p688 = scmp.ne.s32.totalorder %s679, %s680
    %p689 = scmp.eq.s32.totalorder %s82, 0
    %p690 = por %p688, %p689
    %p691 = scmp.ne.s32.totalorder %s679, %s680
    %p692 = scmp.eq.s32.totalorder %s83, 1
    %p693 = por %p691, %p692
    %p695 = scmp.ne.s32.totalorder %s680, %s694
    %p696 = scmp.eq.s32.totalorder %s83, 0
    %p697 = por %p695, %p696
    %s699 = sadd.s32 %s698, 1
    %p702 = scmp.eq.s32.totalorder %s77, 1
    %p703 = scmp.ne.s32.totalorder %s698, %s700
    %p704 = scmp.eq.s32.totalorder %s77, 0
    %p705 = por %p703, %p704
    %p706 = scmp.ne.s32.totalorder %s698, %s700
    %p707 = scmp.eq.s32.totalorder %s82, 1
    %p708 = por %p706, %p707
    %p709 = scmp.ne.s32.totalorder %s700, %s701
    %p710 = scmp.eq.s32.totalorder %s82, 0
    %p711 = por %p709, %p710
    %p712 = scmp.ne.s32.totalorder %s700, %s701
    %p713 = scmp.eq.s32.totalorder %s83, 1
    %p714 = por %p712, %p713
    %p716 = scmp.ne.s32.totalorder %s701, %s715
    %p717 = scmp.eq.s32.totalorder %s83, 0
    %p718 = por %p716, %p717
    %s720 = sadd.s32 %s719, 1
    %p723 = scmp.eq.s32.totalorder %s77, 1
    %p724 = scmp.ne.s32.totalorder %s719, %s721
    %p725 = scmp.eq.s32.totalorder %s77, 0
    %p726 = por %p724, %p725
    %p727 = scmp.ne.s32.totalorder %s719, %s721
    %p728 = scmp.eq.s32.totalorder %s82, 1
    %p729 = por %p727, %p728
    %p730 = scmp.ne.s32.totalorder %s721, %s722
    %p731 = scmp.eq.s32.totalorder %s82, 0
    %p732 = por %p730, %p731
    %p733 = scmp.ne.s32.totalorder %s721, %s722
    %p734 = scmp.eq.s32.totalorder %s83, 1
    %p735 = por %p733, %p734
    %p737 = scmp.ne.s32.totalorder %s722, %s736
    %p738 = scmp.eq.s32.totalorder %s83, 0
    %p739 = por %p737, %p738
    %s741 = sadd.s32 %s740, 1
    %p744 = scmp.eq.s32.totalorder %s77, 1
    %p745 = scmp.ne.s32.totalorder %s740, %s742
    %p746 = scmp.eq.s32.totalorder %s77, 0
    %p747 = por %p745, %p746
    %p748 = scmp.ne.s32.totalorder %s740, %s742
    %p749 = scmp.eq.s32.totalorder %s82, 1
    %p750 = por %p748, %p749
    %p751 = scmp.ne.s32.totalorder %s742, %s743
    %p752 = scmp.eq.s32.totalorder %s82, 0
    %p753 = por %p751, %p752
    %p754 = scmp.ne.s32.totalorder %s742, %s743
    %p755 = scmp.eq.s32.totalorder %s83, 1
    %p756 = por %p754, %p755
    %p758 = scmp.ne.s32.totalorder %s743, %s757
    %p759 = scmp.eq.s32.totalorder %s83, 0
    %p760 = por %p758, %p759
    %s762 = sadd.s32 %s761, 1
    %p765 = scmp.eq.s32.totalorder %s77, 1
    %p766 = scmp.ne.s32.totalorder %s761, %s763
    %p767 = scmp.eq.s32.totalorder %s77, 0
    %p768 = por %p766, %p767
    %p769 = scmp.ne.s32.totalorder %s761, %s763
    %p770 = scmp.eq.s32.totalorder %s82, 1
    %p771 = por %p769, %p770
    %p772 = scmp.ne.s32.totalorder %s763, %s764
    %p773 = scmp.eq.s32.totalorder %s82, 0
    %p774 = por %p772, %p773
    %p775 = scmp.ne.s32.totalorder %s763, %s764
    %p776 = scmp.eq.s32.totalorder %s83, 1
    %p777 = por %p775, %p776
    %p779 = scmp.ne.s32.totalorder %s764, %s778
    %p780 = scmp.eq.s32.totalorder %s83, 0
    %p781 = por %p779, %p780
    %s783 = sadd.s32 %s782, 1
    %p786 = scmp.eq.s32.totalorder %s77, 1
    %p787 = scmp.ne.s32.totalorder %s782, %s784
    %p788 = scmp.eq.s32.totalorder %s77, 0
    %p789 = por %p787, %p788
    %p790 = scmp.ne.s32.totalorder %s782, %s784
    %p791 = scmp.eq.s32.totalorder %s82, 1
    %p792 = por %p790, %p791
    %p793 = scmp.ne.s32.totalorder %s784, %s785
    %p794 = scmp.eq.s32.totalorder %s82, 0
    %p795 = por %p793, %p794
    %p796 = scmp.ne.s32.totalorder %s784, %s785
    %p797 = scmp.eq.s32.totalorder %s83, 1
    %p798 = por %p796, %p797
    %p800 = scmp.ne.s32.totalorder %s785, %s799
    %p801 = scmp.eq.s32.totalorder %s83, 0
    %p802 = por %p800, %p801
    %s804 = sadd.s32 %s803, 1
    %p807 = scmp.eq.s32.totalorder %s77, 1
    %p808 = scmp.ne.s32.totalorder %s803, %s805
    %p809 = scmp.eq.s32.totalorder %s77, 0
    %p810 = por %p808, %p809
    %p811 = scmp.ne.s32.totalorder %s803, %s805
    %p812 = scmp.eq.s32.totalorder %s82, 1
    %p813 = por %p811, %p812
    %p814 = scmp.ne.s32.totalorder %s805, %s806
    %p815 = scmp.eq.s32.totalorder %s82, 0
    %p816 = por %p814, %p815
    %p817 = scmp.ne.s32.totalorder %s805, %s806
    %p818 = scmp.eq.s32.totalorder %s83, 1
    %p819 = por %p817, %p818
    %p821 = scmp.ne.s32.totalorder %s806, %s820
    %p822 = scmp.eq.s32.totalorder %s83, 0
    %p823 = por %p821, %p822
    %s825 = sadd.s32 %s824, 1
    %p828 = scmp.eq.s32.totalorder %s77, 1
    %p829 = scmp.ne.s32.totalorder %s824, %s826
    %p830 = scmp.eq.s32.totalorder %s77, 0
    %p831 = por %p829, %p830
    %p832 = scmp.ne.s32.totalorder %s824, %s826
    %p833 = scmp.eq.s32.totalorder %s82, 1
    %p834 = por %p832, %p833
    %p835 = scmp.ne.s32.totalorder %s826, %s827
    %p836 = scmp.eq.s32.totalorder %s82, 0
    %p837 = por %p835, %p836
    %p838 = scmp.ne.s32.totalorder %s826, %s827
    %p839 = scmp.eq.s32.totalorder %s83, 1
    %p840 = por %p838, %p839
    %p842 = scmp.ne.s32.totalorder %s827, %s841
    %p843 = scmp.eq.s32.totalorder %s83, 0
    %p844 = por %p842, %p843
    %s845 = ssub.s32 %s77, %s84
    %p846 = scmp.eq.s32.totalorder %s845, 0
    %s848 = sadd.s32 %s847, 1
    %s849 = scalar_select %p846, %s847, %s848
    %p852 = pneg %p846
    %p853 = scmp.eq.s32.totalorder %s77, 1
    %p854 = por %p852, %p853
    %p855 = scmp.ne.s32.totalorder %s847, %s850
    %p856 = scmp.eq.s32.totalorder %s77, 0
    %p857 = por %p855, %p856
    %p858 = scmp.ne.s32.totalorder %s847, %s850
    %p859 = scmp.eq.s32.totalorder %s82, 1
    %p860 = por %p858, %p859
    %p861 = scmp.ne.s32.totalorder %s850, %s851
    %p862 = scmp.eq.s32.totalorder %s82, 0
    %p863 = por %p861, %p862
    %p864 = scmp.ne.s32.totalorder %s850, %s851
    %p865 = scmp.eq.s32.totalorder %s83, 1
    %p866 = por %p864, %p865
    %p868 = scmp.ne.s32.totalorder %s851, %s867
    %p869 = scmp.eq.s32.totalorder %s83, 0
    %p870 = por %p868, %p869
    %p871 = scmp.le.s32.totalorder 1, %s77
    %p872 = scmp.lt.s32.totalorder %s77, 3
    %p873 = pnand %p871, %p872
    %p874 = pneg %p873
    // Predicated region
    $region9: #{_device_forward.1} parent=5 // pred_check
      _
    $region10: #{_device_forward.1} parent=5 // pred_check_branch
      %876 = sbr.rel (%p873) target = $region12
    $region11: #{_device_forward.1} parent=5 // pred_region
      %s877 = ssub.s32 %s77, 1
      // Predicated region
      $region13: #{_device_forward.1} parent=11 // pred_check
        %p878 = pneg %p150
      $region14: #{_device_forward.1} parent=11 // pred_check_branch
        %880 = sbr.rel (%p878) target = $region16
      $region15: #{_device_forward.1} parent=11 // pred_region
        _
      $region16: #{_device_forward.1} parent=11 // pred_fallthru
        _
      // Predicated region
      $region17: #{_device_forward.1} parent=11 // pred_check
        %p881 = pneg %p171
      $region18: #{_device_forward.1} parent=11 // pred_check_branch
        %883 = sbr.rel (%p881) target = $region20
      $region19: #{_device_forward.1} parent=11 // pred_region
        _
      $region20: #{_device_forward.1} parent=11 // pred_fallthru
        _
      // Predicated region
      $region21: #{_device_forward.1} parent=11 // pred_check
        %p884 = pneg %p192
      $region22: #{_device_forward.1} parent=11 // pred_check_branch
        %886 = sbr.rel (%p884) target = $region24
      $region23: #{_device_forward.1} parent=11 // pred_region
        _
      $region24: #{_device_forward.1} parent=11 // pred_fallthru
        _
      // Predicated region
      $region25: #{_device_forward.1} parent=11 // pred_check
        %p887 = pneg %p213
      $region26: #{_device_forward.1} parent=11 // pred_check_branch
        %889 = sbr.rel (%p887) target = $region28
      $region27: #{_device_forward.1} parent=11 // pred_region
        _
      $region28: #{_device_forward.1} parent=11 // pred_fallthru
        _
      // Predicated region
      $region29: #{_device_forward.1} parent=11 // pred_check
        %p890 = pneg %p260
      $region30: #{_device_forward.1} parent=11 // pred_check_branch
        %892 = sbr.rel (%p890) target = $region32
      $region31: #{_device_forward.1} parent=11 // pred_region
        _
      $region32: #{_device_forward.1} parent=11 // pred_fallthru
        _
      // Predicated region
      $region33: #{_device_forward.1} parent=11 // pred_check
        %p893 = pneg %p281
      $region34: #{_device_forward.1} parent=11 // pred_check_branch
        %895 = sbr.rel (%p893) target = $region36
      $region35: #{_device_forward.1} parent=11 // pred_region
        _
      $region36: #{_device_forward.1} parent=11 // pred_fallthru
        _
      // Predicated region
      $region37: #{_device_forward.1} parent=11 // pred_check
        %p896 = pneg %p302
      $region38: #{_device_forward.1} parent=11 // pred_check_branch
        %898 = sbr.rel (%p896) target = $region40
      $region39: #{_device_forward.1} parent=11 // pred_region
        _
      $region40: #{_device_forward.1} parent=11 // pred_fallthru
        _
      // Predicated region
      $region41: #{_device_forward.1} parent=11 // pred_check
        %p899 = pneg %p323
      $region42: #{_device_forward.1} parent=11 // pred_check_branch
        %901 = sbr.rel (%p899) target = $region44
      $region43: #{_device_forward.1} parent=11 // pred_region
        _
      $region44: #{_device_forward.1} parent=11 // pred_fallthru
        _
      // Predicated region
      $region45: #{_device_forward.1} parent=11 // pred_check
        %p902 = pneg %p344
      $region46: #{_device_forward.1} parent=11 // pred_check_branch
        %904 = sbr.rel (%p902) target = $region48
      $region47: #{_device_forward.1} parent=11 // pred_region
        _
      $region48: #{_device_forward.1} parent=11 // pred_fallthru
        _
      // Predicated region
      $region49: #{_device_forward.1} parent=11 // pred_check
        %p905 = pneg %p365
      $region50: #{_device_forward.1} parent=11 // pred_check_branch
        %907 = sbr.rel (%p905) target = $region52
      $region51: #{_device_forward.1} parent=11 // pred_region
        _
      $region52: #{_device_forward.1} parent=11 // pred_fallthru
        _
      // Predicated region
      $region53: #{_device_forward.1} parent=11 // pred_check
        %p908 = pneg %p438
      $region54: #{_device_forward.1} parent=11 // pred_check_branch
        %910 = sbr.rel (%p908) target = $region56
      $region55: #{_device_forward.1} parent=11 // pred_region
        _
      $region56: #{_device_forward.1} parent=11 // pred_fallthru
        _
      // Predicated region
      $region57: #{_device_forward.1} parent=11 // pred_check
        %p911 = pneg %p459
      $region58: #{_device_forward.1} parent=11 // pred_check_branch
        %913 = sbr.rel (%p911) target = $region60
      $region59: #{_device_forward.1} parent=11 // pred_region
        _
      $region60: #{_device_forward.1} parent=11 // pred_fallthru
        _
      // Predicated region
      $region61: #{_device_forward.1} parent=11 // pred_check
        %p914 = pneg %p480
      $region62: #{_device_forward.1} parent=11 // pred_check_branch
        %916 = sbr.rel (%p914) target = $region64
      $region63: #{_device_forward.1} parent=11 // pred_region
        _
      $region64: #{_device_forward.1} parent=11 // pred_fallthru
        _
      // Predicated region
      $region65: #{_device_forward.1} parent=11 // pred_check
        %p917 = pneg %p501
      $region66: #{_device_forward.1} parent=11 // pred_check_branch
        %919 = sbr.rel (%p917) target = $region68
      $region67: #{_device_forward.1} parent=11 // pred_region
        _
      $region68: #{_device_forward.1} parent=11 // pred_fallthru
        _
      // Predicated region
      $region69: #{_device_forward.1} parent=11 // pred_check
        %p920 = pneg %p522
      $region70: #{_device_forward.1} parent=11 // pred_check_branch
        %922 = sbr.rel (%p920) target = $region72
      $region71: #{_device_forward.1} parent=11 // pred_region
        _
      $region72: #{_device_forward.1} parent=11 // pred_fallthru
        _
      // Predicated region
      $region73: #{_device_forward.1} parent=11 // pred_check
        %p923 = pneg %p543
      $region74: #{_device_forward.1} parent=11 // pred_check_branch
        %925 = sbr.rel (%p923) target = $region76
      $region75: #{_device_forward.1} parent=11 // pred_region
        _
      $region76: #{_device_forward.1} parent=11 // pred_fallthru
        _
      // Predicated region
      $region77: #{_device_forward.1} parent=11 // pred_check
        %p926 = pneg %p564
      $region78: #{_device_forward.1} parent=11 // pred_check_branch
        %928 = sbr.rel (%p926) target = $region80
      $region79: #{_device_forward.1} parent=11 // pred_region
        _
      $region80: #{_device_forward.1} parent=11 // pred_fallthru
        _
      // Predicated region
      $region81: #{_device_forward.1} parent=11 // pred_check
        %p929 = pneg %p585
      $region82: #{_device_forward.1} parent=11 // pred_check_branch
        %931 = sbr.rel (%p929) target = $region84
      $region83: #{_device_forward.1} parent=11 // pred_region
        _
      $region84: #{_device_forward.1} parent=11 // pred_fallthru
        _
      // Predicated region
      $region85: #{_device_forward.1} parent=11 // pred_check
        %p932 = pneg %p606
      $region86: #{_device_forward.1} parent=11 // pred_check_branch
        %934 = sbr.rel (%p932) target = $region88
      $region87: #{_device_forward.1} parent=11 // pred_region
        _
      $region88: #{_device_forward.1} parent=11 // pred_fallthru
        _
      // Predicated region
      $region89: #{_device_forward.1} parent=11 // pred_check
        %p935 = pneg %p627
      $region90: #{_device_forward.1} parent=11 // pred_check_branch
        %937 = sbr.rel (%p935) target = $region92
      $region91: #{_device_forward.1} parent=11 // pred_region
        _
      $region92: #{_device_forward.1} parent=11 // pred_fallthru
        _
      // Predicated region
      $region93: #{_device_forward.1} parent=11 // pred_check
        %p938 = pneg %p648
      $region94: #{_device_forward.1} parent=11 // pred_check_branch
        %940 = sbr.rel (%p938) target = $region96
      $region95: #{_device_forward.1} parent=11 // pred_region
        _
      $region96: #{_device_forward.1} parent=11 // pred_fallthru
        _
      // Predicated region
      $region97: #{_device_forward.1} parent=11 // pred_check
        %p941 = pneg %p669
      $region98: #{_device_forward.1} parent=11 // pred_check_branch
        %943 = sbr.rel (%p941) target = $region100
      $region99: #{_device_forward.1} parent=11 // pred_region
        _
      $region100: #{_device_forward.1} parent=11 // pred_fallthru
        _
      // Predicated region
      $region101: #{_device_forward.1} parent=11 // pred_check
        %p944 = pneg %p690
      $region102: #{_device_forward.1} parent=11 // pred_check_branch
        %946 = sbr.rel (%p944) target = $region104
      $region103: #{_device_forward.1} parent=11 // pred_region
        _
      $region104: #{_device_forward.1} parent=11 // pred_fallthru
        _
      // Predicated region
      $region105: #{_device_forward.1} parent=11 // pred_check
        %p947 = pneg %p711
      $region106: #{_device_forward.1} parent=11 // pred_check_branch
        %949 = sbr.rel (%p947) target = $region108
      $region107: #{_device_forward.1} parent=11 // pred_region
        _
      $region108: #{_device_forward.1} parent=11 // pred_fallthru
        _
      // Predicated region
      $region109: #{_device_forward.1} parent=11 // pred_check
        %p950 = pneg %p732
      $region110: #{_device_forward.1} parent=11 // pred_check_branch
        %952 = sbr.rel (%p950) target = $region112
      $region111: #{_device_forward.1} parent=11 // pred_region
        _
      $region112: #{_device_forward.1} parent=11 // pred_fallthru
        _
      // Predicated region
      $region113: #{_device_forward.1} parent=11 // pred_check
        %p953 = pneg %p753
      $region114: #{_device_forward.1} parent=11 // pred_check_branch
        %955 = sbr.rel (%p953) target = $region116
      $region115: #{_device_forward.1} parent=11 // pred_region
        _
      $region116: #{_device_forward.1} parent=11 // pred_fallthru
        _
      // Predicated region
      $region117: #{_device_forward.1} parent=11 // pred_check
        %p956 = pneg %p774
      $region118: #{_device_forward.1} parent=11 // pred_check_branch
        %958 = sbr.rel (%p956) target = $region120
      $region119: #{_device_forward.1} parent=11 // pred_region
        _
      $region120: #{_device_forward.1} parent=11 // pred_fallthru
        _
      // Predicated region
      $region121: #{_device_forward.1} parent=11 // pred_check
        %p959 = pneg %p795
      $region122: #{_device_forward.1} parent=11 // pred_check_branch
        %961 = sbr.rel (%p959) target = $region124
      $region123: #{_device_forward.1} parent=11 // pred_region
        _
      $region124: #{_device_forward.1} parent=11 // pred_fallthru
        _
      // Predicated region
      $region125: #{_device_forward.1} parent=11 // pred_check
        %p962 = pneg %p816
      $region126: #{_device_forward.1} parent=11 // pred_check_branch
        %964 = sbr.rel (%p962) target = $region128
      $region127: #{_device_forward.1} parent=11 // pred_region
        _
      $region128: #{_device_forward.1} parent=11 // pred_fallthru
        _
      // Predicated region
      $region129: #{_device_forward.1} parent=11 // pred_check
        %p965 = pneg %p837
      $region130: #{_device_forward.1} parent=11 // pred_check_branch
        %967 = sbr.rel (%p965) target = $region132
      $region131: #{_device_forward.1} parent=11 // pred_region
        _
      $region132: #{_device_forward.1} parent=11 // pred_fallthru
        _
    $region12: #{_device_forward.1} parent=5 // pred_fallthru
      _
    %p968 = scmp.lt.s32.totalorder %s77, 2
    // Predicated region
    $region133: #{_device_forward.1} parent=5 // pred_check
      %p969 = pneg %p968
    $region134: #{_device_forward.1} parent=5 // pred_check_branch
      %971 = sbr.rel (%p969) target = $region136
    $region135: #{_device_forward.1} parent=5 // pred_region
      // Predicated region
      $region137: #{_device_forward.1} parent=135 // pred_check
        %p972 = pneg %p97
      $region138: #{_device_forward.1} parent=135 // pred_check_branch
        %974 = sbr.rel (%p972) target = $region140
      $region139: #{_device_forward.1} parent=135 // pred_region
        %p975 = scmp.lt.s32.totalorder %s77, 1
        %s976 = scalar_select %p975, %s77, 1
        %s977 = smul.addr %s976, 20
        %s978 = smul.addr %s977, 8
        %s979 = scalar_lea.vmem %s1, %s978
      $region140: #{_device_forward.1} parent=135 // pred_fallthru
        _
      // Predicated region
      $region141: #{_device_forward.1} parent=135 // pred_check
        %p980 = pneg %p123
      $region142: #{_device_forward.1} parent=135 // pred_check_branch
        %982 = sbr.rel (%p980) target = $region144
      $region143: #{_device_forward.1} parent=135 // pred_region
        %p983 = scmp.lt.s32.totalorder %s77, 1
        %s984 = scalar_select %p983, %s77, 1
        %s985 = smul.addr %s984, 20
        %s986 = smul.addr %s985, 8
        %s987 = scalar_lea.vmem %s3, %s986
      $region144: #{_device_forward.1} parent=135 // pred_fallthru
        _
      // Predicated region
      $region145: #{_device_forward.1} parent=135 // pred_check
        %p988 = pneg %p233
      $region146: #{_device_forward.1} parent=135 // pred_check_branch
        %990 = sbr.rel (%p988) target = $region148
      $region147: #{_device_forward.1} parent=135 // pred_region
        %p991 = scmp.lt.s32.totalorder %s77, 1
        %s992 = scalar_select %p991, %s77, 1
        %s993 = smul.addr %s992, 2
        %s994 = smul.addr %s993, 8
        %s995 = scalar_lea.vmem %s13, %s994
      $region148: #{_device_forward.1} parent=135 // pred_fallthru
        _
      // Predicated region
      $region149: #{_device_forward.1} parent=135 // pred_check
        %p996 = pneg %p385
      $region150: #{_device_forward.1} parent=135 // pred_check_branch
        %998 = sbr.rel (%p996) target = $region152
      $region151: #{_device_forward.1} parent=135 // pred_region
        %p999 = scmp.lt.s32.totalorder %s77, 1
        %s1000 = scalar_select %p999, %s77, 1
        %s1001 = smul.addr %s1000, 8
        %s1002 = scalar_lea.vmem %s27, %s1001
      $region152: #{_device_forward.1} parent=135 // pred_fallthru
        _
      // Predicated region
      $region153: #{_device_forward.1} parent=135 // pred_check
        %p1003 = pneg %p411
      $region154: #{_device_forward.1} parent=135 // pred_check_branch
        %1005 = sbr.rel (%p1003) target = $region156
      $region155: #{_device_forward.1} parent=135 // pred_region
        %p1006 = scmp.lt.s32.totalorder %s77, 1
        %s1007 = scalar_select %p1006, %s77, 1
        %s1008 = scalar_lea.vmem %s29, %s1007
      $region156: #{_device_forward.1} parent=135 // pred_fallthru
        _
    $region136: #{_device_forward.1} parent=5 // pred_fallthru
      _
    %p1009 = scmp.le.s32.totalorder 1, %s77
    %p1010 = scmp.lt.s32.totalorder %s77, 3
    %p1011 = pnand %p1009, %p1010
    %p1012 = pneg %p1011
    // Predicated region
    $region157: #{_device_forward.1} parent=5 // pred_check
      _
    $region158: #{_device_forward.1} parent=5 // pred_check_branch
      %1014 = sbr.rel (%p1011) target = $region160
    $region159: #{_device_forward.1} parent=5 // pred_region
      %s1015 = ssub.s32 %s77, 1
      %p1016 = scmp.lt.s32.totalorder %s82, 1
      %s1017 = scalar_select %p1016, %s82, 1
      %s1018 = smul.addr %s1017, 20
      %s1019 = smul.addr %s1018, 8
      %s1020 = scalar_lea.vmem %s1, %s1019
      %p1021 = pneg %p103
      %p1022 = pneg %p100
      %p1023 = scmp.lt.s32.totalorder %s82, 1
      %s1024 = scalar_select %p1023, %s82, 1
      %s1025 = smul.addr %s1024, 20
      %s1026 = smul.addr %s1025, 8
      %s1027 = scalar_lea.vmem %s3, %s1026
      %p1028 = pneg %p129
      %p1029 = pneg %p126
      %p1030 = pneg %p150
      %p1031 = pneg %p147
      %p1032 = pneg %p171
      %p1033 = pneg %p168
      %p1034 = pneg %p192
      %p1035 = pneg %p189
      %p1036 = pneg %p213
      %p1037 = pneg %p210
      %p1038 = scmp.lt.s32.totalorder %s82, 1
      %s1039 = scalar_select %p1038, %s82, 1
      %s1040 = smul.addr %s1039, 2
      %s1041 = smul.addr %s1040, 8
      %s1042 = scalar_lea.vmem %s13, %s1041
      %p1043 = pneg %p239
      %p1044 = pneg %p236
      %p1045 = pneg %p260
      %p1046 = pneg %p257
      %p1047 = pneg %p281
      %p1048 = pneg %p278
      %p1049 = pneg %p302
      %p1050 = pneg %p299
      %p1051 = pneg %p323
      %p1052 = pneg %p320
      %p1053 = pneg %p344
      %p1054 = pneg %p341
      %p1055 = pneg %p365
      %p1056 = pneg %p362
      %p1057 = scmp.lt.s32.totalorder %s82, 1
      %s1058 = scalar_select %p1057, %s82, 1
      %s1059 = smul.addr %s1058, 8
      %s1060 = scalar_lea.vmem %s27, %s1059
      %p1061 = pneg %p391
      %p1062 = pneg %p388
      %p1063 = scmp.lt.s32.totalorder %s82, 1
      %s1064 = scalar_select %p1063, %s82, 1
      %s1065 = scalar_lea.vmem %s29, %s1064
      %p1066 = pneg %p417
      %p1067 = pneg %p414
      %p1068 = pneg %p438
      %p1069 = pneg %p435
      %p1070 = pneg %p459
      %p1071 = pneg %p456
      %p1072 = pneg %p480
      %p1073 = pneg %p477
      %p1074 = pneg %p501
      %p1075 = pneg %p498
      %p1076 = pneg %p522
      %p1077 = pneg %p519
      %p1078 = pneg %p543
      %p1079 = pneg %p540
      %p1080 = pneg %p564
      %p1081 = pneg %p561
      %p1082 = pneg %p585
      %p1083 = pneg %p582
      %p1084 = pneg %p606
      %p1085 = pneg %p603
      %p1086 = pneg %p627
      %p1087 = pneg %p624
      %p1088 = pneg %p648
      %p1089 = pneg %p645
      %p1090 = pneg %p669
      %p1091 = pneg %p666
      %p1092 = pneg %p690
      %p1093 = pneg %p687
      %p1094 = pneg %p711
      %p1095 = pneg %p708
      %p1096 = pneg %p732
      %p1097 = pneg %p729
      %p1098 = pneg %p753
      %p1099 = pneg %p750
      %p1100 = pneg %p774
      %p1101 = pneg %p771
      %p1102 = pneg %p795
      %p1103 = pneg %p792
      %p1104 = pneg %p816
      %p1105 = pneg %p813
      %p1106 = pneg %p837
      %p1107 = pneg %p834
      %p1108 = pneg %p863
      %p1109 = pneg %p860
      %p1110 = scmp.lt.s32.totalorder %s82, 1
      %s1111 = scalar_select %p1110, %s82, 1
      %s1112 = smul.addr %s1111, 8
      %s1113 = scalar_lea.vmem %s71, %s1112
      %p1114 = scmp.lt.s32.totalorder %s82, 1
      %s1115 = scalar_select %p1114, %s82, 1
      %s1116 = smul.addr %s1115, 20
      %s1117 = smul.addr %s1116, 8
      %s1118 = scalar_lea.vmem %s1, %s1117
      %p1119 = scmp.lt.s32.totalorder %s82, 1
      %s1120 = scalar_select %p1119, %s82, 1
      %s1121 = smul.addr %s1120, 20
      %s1122 = smul.addr %s1121, 8
      %s1123 = scalar_lea.vmem %s3, %s1122
      %p1124 = scmp.lt.s32.totalorder %s82, 1
      %s1125 = scalar_select %p1124, %s82, 1
      %s1126 = smul.addr %s1125, 2
      %s1127 = smul.addr %s1126, 8
      %s1128 = scalar_lea.vmem %s13, %s1127
      %p1129 = scmp.lt.s32.totalorder %s82, 1
      %s1130 = scalar_select %p1129, %s82, 1
      %s1131 = smul.addr %s1130, 8
      %s1132 = scalar_lea.vmem %s27, %s1131
      %p1133 = scmp.lt.s32.totalorder %s82, 1
      %s1134 = scalar_select %p1133, %s82, 1
      %s1135 = scalar_lea.vmem %s29, %s1134
      %p1136 = scmp.lt.s32.totalorder %s82, 1
      %s1137 = scalar_select %p1136, %s82, 1
      %s1138 = smul.addr %s1137, 8
      %s1139 = scalar_lea.vmem %s71, %s1138
      %v1140 = vld [vmem:[%s1118] sm:$0xff]
      %v1141 = vld [vmem:[%s1118 + $0x8] sm:$0xff]
      %v1142 = vld [vmem:[%s1118 + $0x10] sm:$0xff]
      %v1143 = vld [vmem:[%s1118 + $0x18] sm:$0xff]
      %v1144 = vld [vmem:[%s1118 + $0x20] sm:$0xff]
      %v1145 = vld [vmem:[%s1118 + $0x28] sm:$0xff]
      %v1146 = vld [vmem:[%s1118 + $0x30] sm:$0xff]
      %v1147 = vld [vmem:[%s1118 + $0x38] sm:$0xff]
      %v1148 = vld [vmem:[%s1118 + $0x40] sm:$0xff]
      %v1149 = vld [vmem:[%s1118 + $0x48] sm:$0xff]
      %v1150 = vld [vmem:[%s1118 + $0x50] sm:$0xff]
      %v1151 = vld [vmem:[%s1118 + $0x58] sm:$0xff]
      %v1152 = vld [vmem:[%s1118 + $0x60] sm:$0xff]
      %v1153 = vld [vmem:[%s1118 + $0x68] sm:$0xff]
      %v1154 = vld [vmem:[%s1118 + $0x70] sm:$0xff]
      %v1155 = vld [vmem:[%s1118 + $0x78] sm:$0xff]
      %v1156 = vld [vmem:[%s1118 + $0x80] sm:$0xff]
      %v1157 = vld [vmem:[%s1118 + $0x88] sm:$0xff]
      %v1158 = vld [vmem:[%s1118 + $0x90] sm:$0xff]
      %v1159 = vld [vmem:[%s1118 + $0x98] sm:$0xff]
      %v1160 = vld [vmem:[%s5] sm:$0xff]
      %v1161 = vld [vmem:[%s5 + $0x8] sm:$0x3]
      %vm1162 = vcmask 80896
      %v1164 = vsel %vm1162, %v1140, 0
      %v1167 = vsel %vm1162, %v1141, 0
      %v1170 = vsel %vm1162, %v1142, 0
      %v1173 = vsel %vm1162, %v1143, 0
      %v1176 = vsel %vm1162, %v1144, 0
      %v1179 = vsel %vm1162, %v1145, 0
      %v1182 = vsel %vm1162, %v1146, 0
      %v1185 = vsel %vm1162, %v1147, 0
      %v1188 = vsel %vm1162, %v1148, 0
      %v1191 = vsel %vm1162, %v1149, 0
      %v1194 = vsel %vm1162, %v1150, 0
      %v1197 = vsel %vm1162, %v1151, 0
      %v1200 = vsel %vm1162, %v1152, 0
      %v1203 = vsel %vm1162, %v1153, 0
      %v1206 = vsel %vm1162, %v1154, 0
      %v1209 = vsel %vm1162, %v1155, 0
      %v1212 = vsel %vm1162, %v1156, 0
      %v1215 = vsel %vm1162, %v1157, 0
      %v1218 = vsel %vm1162, %v1158, 0
      %v1221 = vsel %vm1162, %v1159, 0
      %vm1223 = vcmask 1041408
      %v1225 = vsel %vm1223, %v1161, 0
      %1227 = vmatprep.subr.mxu0 0.0
      %1228 = vmatpush1.msra.mxu0 %v1160
      %1229 = vmatprep.subr.mxu0 0.0
      %1230 = vmatpush1.msra.mxu0 %v1225
      %1231 = vmatprep.subr.mxu0 0.0
      %1232 = vmatpush1.msra.mxu0 0.0
      %1233 = vmatprep.subr.mxu0 0.0
      %1234 = vmatpush1.msra.mxu0 0.0
      %1235 = vmatprep.subr.mxu0 0.0
      %1236 = vmatpush1.msra.mxu0 0.0
      %1237 = vmatprep.subr.mxu0 0.0
      %1238 = vmatpush1.msra.mxu0 0.0
      %1239 = vmatprep.subr.mxu0 0.0
      %1240 = vmatpush1.msra.mxu0 0.0
      %1241 = vmatprep.subr.mxu0 0.0
      %1242 = vmatpush1.msra.mxu0 0.0
      %1243 = vmatprep.subr.mxu0 0.0
      %1244 = vmatpush1.msra.mxu0 0.0
      %1245 = vmatprep.subr.mxu0 0.0
      %1246 = vmatpush1.msra.mxu0 0.0
      %1247 = vmatprep.subr.mxu0 0.0
      %1248 = vmatpush1.msra.mxu0 0.0
      %1249 = vmatprep.subr.mxu0 0.0
      %1250 = vmatpush1.msra.mxu0 0.0
      %1251 = vmatprep.subr.mxu0 0.0
      %1252 = vmatpush1.msra.mxu0 0.0
      %1253 = vmatprep.subr.mxu0 0.0
      %1254 = vmatpush1.msra.mxu0 0.0
      %1255 = vmatprep.subr.mxu0 0.0
      %1256 = vmatpush1.msra.mxu0 0.0
      %1257 = vmatprep.subr.mxu0 0.0
      %1258 = vmatpush1.msra.mxu0 0.0
      %1259 = vmatprep.subr.mxu0 0.0
      %1260 = vmatpush1.msra.mxu0 0.0
      %1261 = vmatprep.subr.mxu0 0.0
      %1262 = vmatpush1.msra.mxu0 0.0
      %1263 = vmatprep.subr.mxu0 0.0
      %1264 = vmatpush1.msra.mxu0 0.0
      %1265 = vmatprep.subr.mxu0 0.0
      %1266 = vmatpush1.msra.mxu0 0.0
      %1267 = vmatprep.subr.mxu0 0.0
      %1268 = vmatpush1.msra.mxu0 0.0
      %1269 = vmatprep.subr.mxu0 0.0
      %1270 = vmatpush1.msra.mxu0 0.0
      %1271 = vmatprep.subr.mxu0 0.0
      %1272 = vmatpush1.msra.mxu0 0.0
      %1273 = vmatprep.subr.mxu0 0.0
      %1274 = vmatpush1.msra.mxu0 0.0
      %1275 = vmatprep.subr.mxu0 0.0
      %1276 = vmatpush1.msra.mxu0 0.0
      %1277 = vmatprep.subr.mxu0 0.0
      %1278 = vmatpush1.msra.mxu0 0.0
      %1279 = vmatprep.subr.mxu0 0.0
      %1280 = vmatpush1.msra.mxu0 0.0
      %1281 = vmatprep.subr.mxu0 0.0
      %1282 = vmatpush1.msra.mxu0 0.0
      %1283 = vmatprep.subr.mxu0 0.0
      %1284 = vmatpush1.msra.mxu0 0.0
      %1285 = vmatprep.subr.mxu0 0.0
      %1286 = vmatpush1.msra.mxu0 0.0
      %1287 = vmatprep.subr.mxu0 0.0
      %1288 = vmatpush1.msra.mxu0 0.0
      %1289 = vmatprep.subr.mxu0 0.0
      %1290 = vmatpush1.msra.mxu0 0.0
      %1291 = vmatprep.mubr.f32.mxu0 0.0
      %1292 = vmatmul.mubr.f32.gmra.mrb[0].mxu0 %v1164
      %v1293 = vpop.f32.mrb[0].mxu0
      %v1294 = vadd.f32 0.0, %v1293
      %v1295 = vpop.f32.mrb[0].mxu0
      %1296 = vmatprep.mubr.f32.mxu0 0.0
      %1297 = vmatmul.mubr.f32.gmra.mrb[0].mxu0 %v1167
      %v1298 = vpop.f32.mrb[0].mxu0
      %v1299 = vadd.f32 0.0, %v1298
      %v1300 = vpop.f32.mrb[0].mxu0
      %1301 = vmatprep.mubr.f32.mxu0 0.0
      %1302 = vmatmul.mubr.f32.gmra.mrb[0].mxu0 %v1170
      %v1303 = vpop.f32.mrb[0].mxu0
      %v1304 = vadd.f32 0.0, %v1303
      %v1305 = vpop.f32.mrb[0].mxu0
      %1306 = vmatprep.mubr.f32.mxu0 0.0
      %1307 = vmatmul.mubr.f32.gmra.mrb[0].mxu0 %v1173
      %v1308 = vpop.f32.mrb[0].mxu0
      %v1309 = vadd.f32 0.0, %v1308
      %v1310 = vpop.f32.mrb[0].mxu0
      %1311 = vmatprep.mubr.f32.mxu0 0.0
      %1312 = vmatmul.mubr.f32.gmra.mrb[0].mxu0 %v1176
      %v1313 = vpop.f32.mrb[0].mxu0
      %v1314 = vadd.f32 0.0, %v1313
      %v1315 = vpop.f32.mrb[0].mxu0
      %1316 = vmatprep.mubr.f32.mxu0 0.0
      %1317 = vmatmul.mubr.f32.gmra.mrb[0].mxu0 %v1179
      %v1318 = vpop.f32.mrb[0].mxu0
      %v1319 = vadd.f32 0.0, %v1318
      %v1320 = vpop.f32.mrb[0].mxu0
      %1321 = vmatprep.mubr.f32.mxu0 0.0
      %1322 = vmatmul.mubr.f32.gmra.mrb[0].mxu0 %v1182
      %v1323 = vpop.f32.mrb[0].mxu0
      %v1324 = vadd.f32 0.0, %v1323
      %v1325 = vpop.f32.mrb[0].mxu0
      %1326 = vmatprep.mubr.f32.mxu0 0.0
      %1327 = vmatmul.mubr.f32.gmra.mrb[0].mxu0 %v1185
      %v1328 = vpop.f32.mrb[0].mxu0
      %v1329 = vadd.f32 0.0, %v1328
      %v1330 = vpop.f32.mrb[0].mxu0
      %1331 = vmatprep.mubr.f32.mxu0 0.0
      %1332 = vmatmul.mubr.f32.gmra.mrb[0].mxu0 %v1188
      %v1333 = vpop.f32.mrb[0].mxu0
      %v1334 = vadd.f32 0.0, %v1333
      %v1335 = vpop.f32.mrb[0].mxu0
      %1336 = vmatprep.mubr.f32.mxu0 0.0
      %1337 = vmatmul.mubr.f32.gmra.mrb[0].mxu0 %v1191
      %v1338 = vpop.f32.mrb[0].mxu0
      %v1339 = vadd.f32 0.0, %v1338
      %v1340 = vpop.f32.mrb[0].mxu0
      %1341 = vmatprep.mubr.f32.mxu0 0.0
      %1342 = vmatmul.mubr.f32.gmra.mrb[0].mxu0 %v1194
      %v1343 = vpop.f32.mrb[0].mxu0
      %v1344 = vadd.f32 0.0, %v1343
      %v1345 = vpop.f32.mrb[0].mxu0
      %1346 = vmatprep.mubr.f32.mxu0 0.0
      %1347 = vmatmul.mubr.f32.gmra.mrb[0].mxu0 %v1197
      %v1348 = vpop.f32.mrb[0].mxu0
      %v1349 = vadd.f32 0.0, %v1348
      %v1350 = vpop.f32.mrb[0].mxu0
      %1351 = vmatprep.mubr.f32.mxu0 0.0
      %1352 = vmatmul.mubr.f32.gmra.mrb[0].mxu0 %v1200
      %v1353 = vpop.f32.mrb[0].mxu0
      %v1354 = vadd.f32 0.0, %v1353
      %v1355 = vpop.f32.mrb[0].mxu0
      %1356 = vmatprep.mubr.f32.mxu0 0.0
      %1357 = vmatmul.mubr.f32.gmra.mrb[0].mxu0 %v1203
      %v1358 = vpop.f32.mrb[0].mxu0
      %v1359 = vadd.f32 0.0, %v1358
      %v1360 = vpop.f32.mrb[0].mxu0
      %1361 = vmatprep.mubr.f32.mxu0 0.0
      %1362 = vmatmul.mubr.f32.gmra.mrb[0].mxu0 %v1206
      %v1363 = vpop.f32.mrb[0].mxu0
      %v1364 = vadd.f32 0.0, %v1363
      %v1365 = vpop.f32.mrb[0].mxu0
      %1366 = vmatprep.mubr.f32.mxu0 0.0
      %1367 = vmatmul.mubr.f32.gmra.mrb[0].mxu0 %v1209
      %v1368 = vpop.f32.mrb[0].mxu0
      %v1369 = vadd.f32 0.0, %v1368
      %v1370 = vpop.f32.mrb[0].mxu0
      %1371 = vmatprep.mubr.f32.mxu0 0.0
      %1372 = vmatmul.mubr.f32.gmra.mrb[0].mxu0 %v1212
      %v1373 = vpop.f32.mrb[0].mxu0
      %v1374 = vadd.f32 0.0, %v1373
      %v1375 = vpop.f32.mrb[0].mxu0
      %1376 = vmatprep.mubr.f32.mxu0 0.0
      %1377 = vmatmul.mubr.f32.gmra.mrb[0].mxu0 %v1215
      %v1378 = vpop.f32.mrb[0].mxu0
      %v1379 = vadd.f32 0.0, %v1378
      %v1380 = vpop.f32.mrb[0].mxu0
      %1381 = vmatprep.mubr.f32.mxu0 0.0
      %1382 = vmatmul.mubr.f32.gmra.mrb[0].mxu0 %v1218
      %v1383 = vpop.f32.mrb[0].mxu0
      %v1384 = vadd.f32 0.0, %v1383
      %v1385 = vpop.f32.mrb[0].mxu0
      %1386 = vmatprep.mubr.f32.mxu0 0.0
      %1387 = vmatmul.mubr.f32.gmra.mrb[0].mxu0 %v1221
      %v1388 = vpop.f32.mrb[0].mxu0
      %v1389 = vadd.f32 0.0, %v1388
      %v1390 = vpop.f32.mrb[0].mxu0
      %1391 = vdwg.mxu0
      %v1392 = vld [vmem:[%s1123] sm:$0xff]
      %v1393 = vld [vmem:[%s1123 + $0x8] sm:$0xff]
      %v1394 = vld [vmem:[%s1123 + $0x10] sm:$0xff]
      %v1395 = vld [vmem:[%s1123 + $0x18] sm:$0xff]
      %v1396 = vld [vmem:[%s1123 + $0x20] sm:$0xff]
      %v1397 = vld [vmem:[%s1123 + $0x28] sm:$0xff]
      %v1398 = vld [vmem:[%s1123 + $0x30] sm:$0xff]
      %v1399 = vld [vmem:[%s1123 + $0x38] sm:$0xff]
      %v1400 = vld [vmem:[%s1123 + $0x40] sm:$0xff]
      %v1401 = vld [vmem:[%s1123 + $0x48] sm:$0xff]
      %v1402 = vld [vmem:[%s1123 + $0x50] sm:$0xff]
      %v1403 = vld [vmem:[%s1123 + $0x58] sm:$0xff]
      %v1404 = vld [vmem:[%s1123 + $0x60] sm:$0xff]
      %v1405 = vld [vmem:[%s1123 + $0x68] sm:$0xff]
      %v1406 = vld [vmem:[%s1123 + $0x70] sm:$0xff]
      %v1407 = vld [vmem:[%s1123 + $0x78] sm:$0xff]
      %v1408 = vld [vmem:[%s1123 + $0x80] sm:$0xff]
      %v1409 = vld [vmem:[%s1123 + $0x88] sm:$0xff]
      %v1410 = vld [vmem:[%s1123 + $0x90] sm:$0xff]
      %v1411 = vld [vmem:[%s1123 + $0x98] sm:$0x7f]
      %v1413 = vsel %vm1162, %v1392, 0
      %v1416 = vsel %vm1162, %v1393, 0
      %v1419 = vsel %vm1162, %v1394, 0
      %v1422 = vsel %vm1162, %v1395, 0
      %v1425 = vsel %vm1162, %v1396, 0
      %v1428 = vsel %vm1162, %v1397, 0
      %v1431 = vsel %vm1162, %v1398, 0
      %v1434 = vsel %vm1162, %v1399, 0
      %v1437 = vsel %vm1162, %v1400, 0
      %v1440 = vsel %vm1162, %v1401, 0
      %v1443 = vsel %vm1162, %v1402, 0
      %v1446 = vsel %vm1162, %v1403, 0
      %v1449 = vsel %vm1162, %v1404, 0
      %v1452 = vsel %vm1162, %v1405, 0
      %v1455 = vsel %vm1162, %v1406, 0
      %v1458 = vsel %vm1162, %v1407, 0
      %v1461 = vsel %vm1162, %v1408, 0
      %v1464 = vsel %vm1162, %v1409, 0
      %v1467 = vsel %vm1162, %v1410, 0
      %v1470 = vsel %vm1162, %v1411, 0
      %1472 = vmatprep.subr.mxu0 0.0
      %1473 = vmatpush1.msra.mxu0 %v1160
      %1474 = vmatprep.subr.mxu0 0.0
      %1475 = vmatpush1.msra.mxu0 %v1225
      %1476 = vmatprep.subr.mxu0 0.0
      %1477 = vmatpush1.msra.mxu0 0.0
      %1478 = vmatprep.subr.mxu0 0.0
      %1479 = vmatpush1.msra.mxu0 0.0
      %1480 = vmatprep.subr.mxu0 0.0
      %1481 = vmatpush1.msra.mxu0 0.0
      %1482 = vmatprep.subr.mxu0 0.0
      %1483 = vmatpush1.msra.mxu0 0.0
      %1484 = vmatprep.subr.mxu0 0.0
      %1485 = vmatpush1.msra.mxu0 0.0
      %1486 = vmatprep.subr.mxu0 0.0
      %1487 = vmatpush1.msra.mxu0 0.0
      %1488 = vmatprep.subr.mxu0 0.0
      %1489 = vmatpush1.msra.mxu0 0.0
      %1490 = vmatprep.subr.mxu0 0.0
      %1491 = vmatpush1.msra.mxu0 0.0
      %1492 = vmatprep.subr.mxu0 0.0
      %1493 = vmatpush1.msra.mxu0 0.0
      %1494 = vmatprep.subr.mxu0 0.0
      %1495 = vmatpush1.msra.mxu0 0.0
      %1496 = vmatprep.subr.mxu0 0.0
      %1497 = vmatpush1.msra.mxu0 0.0
      %1498 = vmatprep.subr.mxu0 0.0
      %1499 = vmatpush1.msra.mxu0 0.0
      %1500 = vmatprep.subr.mxu0 0.0
      %1501 = vmatpush1.msra.mxu0 0.0
      %1502 = vmatprep.subr.mxu0 0.0
      %1503 = vmatpush1.msra.mxu0 0.0
      %1504 = vmatprep.subr.mxu0 0.0
      %1505 = vmatpush1.msra.mxu0 0.0
      %1506 = vmatprep.subr.mxu0 0.0
      %1507 = vmatpush1.msra.mxu0 0.0
      %1508 = vmatprep.subr.mxu0 0.0
      %1509 = vmatpush1.msra.mxu0 0.0
      %1510 = vmatprep.subr.mxu0 0.0
      %1511 = vmatpush1.msra.mxu0 0.0
      %1512 = vmatprep.subr.mxu0 0.0
      %1513 = vmatpush1.msra.mxu0 0.0
      %1514 = vmatprep.subr.mxu0 0.0
      %1515 = vmatpush1.msra.mxu0 0.0
      %1516 = vmatprep.subr.mxu0 0.0
      %1517 = vmatpush1.msra.mxu0 0.0
      %1518 = vmatprep.subr.mxu0 0.0
      %1519 = vmatpush1.msra.mxu0 0.0
      %1520 = vmatprep.subr.mxu0 0.0
      %1521 = vmatpush1.msra.mxu0 0.0
      %1522 = vmatprep.subr.mxu0 0.0
      %1523 = vmatpush1.msra.mxu0 0.0
      %1524 = vmatprep.subr.mxu0 0.0
      %1525 = vmatpush1.msra.mxu0 0.0
      %1526 = vmatprep.subr.mxu0 0.0
      %1527 = vmatpush1.msra.mxu0 0.0
      %1528 = vmatprep.subr.mxu0 0.0
      %1529 = vmatpush1.msra.mxu0 0.0
      %1530 = vmatprep.subr.mxu0 0.0
      %1531 = vmatpush1.msra.mxu0 0.0
      %1532 = vmatprep.subr.mxu0 0.0
      %1533 = vmatpush1.msra.mxu0 0.0
      %1534 = vmatprep.subr.mxu0 0.0
      %1535 = vmatpush1.msra.mxu0 0.0
      %1536 = vmatprep.mubr.f32.mxu0 0.0
      %1537 = vmatmul.mubr.f32.gmra.mrb[0].mxu0 %v1413
      %v1538 = vpop.f32.mrb[0].mxu0
      %v1539 = vadd.f32 0.0, %v1538
      %v1540 = vpop.f32.mrb[0].mxu0
      %1541 = vmatprep.mubr.f32.mxu0 0.0
      %1542 = vmatmul.mubr.f32.gmra.mrb[0].mxu0 %v1416
      %v1543 = vpop.f32.mrb[0].mxu0
      %v1544 = vadd.f32 0.0, %v1543
      %v1545 = vpop.f32.mrb[0].mxu0
      %1546 = vmatprep.mubr.f32.mxu0 0.0
      %1547 = vmatmul.mubr.f32.gmra.mrb[0].mxu0 %v1419
      %v1548 = vpop.f32.mrb[0].mxu0
      %v1549 = vadd.f32 0.0, %v1548
      %v1550 = vpop.f32.mrb[0].mxu0
      %1551 = vmatprep.mubr.f32.mxu0 0.0
      %1552 = vmatmul.mubr.f32.gmra.mrb[0].mxu0 %v1422
      %v1553 = vpop.f32.mrb[0].mxu0
      %v1554 = vadd.f32 0.0, %v1553
      %v1555 = vpop.f32.mrb[0].mxu0
      %1556 = vmatprep.mubr.f32.mxu0 0.0
      %1557 = vmatmul.mubr.f32.gmra.mrb[0].mxu0 %v1425
      %v1558 = vpop.f32.mrb[0].mxu0
      %v1559 = vadd.f32 0.0, %v1558
      %v1560 = vpop.f32.mrb[0].mxu0
      %1561 = vmatprep.mubr.f32.mxu0 0.0
      %1562 = vmatmul.mubr.f32.gmra.mrb[0].mxu0 %v1428
      %v1563 = vpop.f32.mrb[0].mxu0
      %v1564 = vadd.f32 0.0, %v1563
      %v1565 = vpop.f32.mrb[0].mxu0
      %1566 = vmatprep.mubr.f32.mxu0 0.0
      %1567 = vmatmul.mubr.f32.gmra.mrb[0].mxu0 %v1431
      %v1568 = vpop.f32.mrb[0].mxu0
      %v1569 = vadd.f32 0.0, %v1568
      %v1570 = vpop.f32.mrb[0].mxu0
      %1571 = vmatprep.mubr.f32.mxu0 0.0
      %1572 = vmatmul.mubr.f32.gmra.mrb[0].mxu0 %v1434
      %v1573 = vpop.f32.mrb[0].mxu0
      %v1574 = vadd.f32 0.0, %v1573
      %v1575 = vpop.f32.mrb[0].mxu0
      %1576 = vmatprep.mubr.f32.mxu0 0.0
      %1577 = vmatmul.mubr.f32.gmra.mrb[0].mxu0 %v1437
      %v1578 = vpop.f32.mrb[0].mxu0
      %v1579 = vadd.f32 0.0, %v1578
      %v1580 = vpop.f32.mrb[0].mxu0
      %1581 = vmatprep.mubr.f32.mxu0 0.0
      %1582 = vmatmul.mubr.f32.gmra.mrb[0].mxu0 %v1440
      %v1583 = vpop.f32.mrb[0].mxu0
      %v1584 = vadd.f32 0.0, %v1583
      %v1585 = vpop.f32.mrb[0].mxu0
      %1586 = vmatprep.mubr.f32.mxu0 0.0
      %1587 = vmatmul.mubr.f32.gmra.mrb[0].mxu0 %v1443
      %v1588 = vpop.f32.mrb[0].mxu0
      %v1589 = vadd.f32 0.0, %v1588
      %v1590 = vpop.f32.mrb[0].mxu0
      %1591 = vmatprep.mubr.f32.mxu0 0.0
      %1592 = vmatmul.mubr.f32.gmra.mrb[0].mxu0 %v1446
      %v1593 = vpop.f32.mrb[0].mxu0
      %v1594 = vadd.f32 0.0, %v1593
      %v1595 = vpop.f32.mrb[0].mxu0
      %1596 = vmatprep.mubr.f32.mxu0 0.0
      %1597 = vmatmul.mubr.f32.gmra.mrb[0].mxu0 %v1449
      %v1598 = vpop.f32.mrb[0].mxu0
      %v1599 = vadd.f32 0.0, %v1598
      %v1600 = vpop.f32.mrb[0].mxu0
      %1601 = vmatprep.mubr.f32.mxu0 0.0
      %1602 = vmatmul.mubr.f32.gmra.mrb[0].mxu0 %v1452
      %v1603 = vpop.f32.mrb[0].mxu0
      %v1604 = vadd.f32 0.0, %v1603
      %v1605 = vpop.f32.mrb[0].mxu0
      %1606 = vmatprep.mubr.f32.mxu0 0.0
      %1607 = vmatmul.mubr.f32.gmra.mrb[0].mxu0 %v1455
      %v1608 = vpop.f32.mrb[0].mxu0
      %v1609 = vadd.f32 0.0, %v1608
      %v1610 = vpop.f32.mrb[0].mxu0
      %1611 = vmatprep.mubr.f32.mxu0 0.0
      %1612 = vmatmul.mubr.f32.gmra.mrb[0].mxu0 %v1458
      %v1613 = vpop.f32.mrb[0].mxu0
      %v1614 = vadd.f32 0.0, %v1613
      %v1615 = vpop.f32.mrb[0].mxu0
      %1616 = vmatprep.mubr.f32.mxu0 0.0
      %1617 = vmatmul.mubr.f32.gmra.mrb[0].mxu0 %v1461
      %v1618 = vpop.f32.mrb[0].mxu0
      %v1619 = vadd.f32 0.0, %v1618
      %v1620 = vpop.f32.mrb[0].mxu0
      %1621 = vmatprep.mubr.f32.mxu0 0.0
      %1622 = vmatmul.mubr.f32.gmra.mrb[0].mxu0 %v1464
      %v1623 = vpop.f32.mrb[0].mxu0
      %v1624 = vadd.f32 0.0, %v1623
      %v1625 = vpop.f32.mrb[0].mxu0
      %1626 = vmatprep.mubr.f32.mxu0 0.0
      %1627 = vmatmul.mubr.f32.gmra.mrb[0].mxu0 %v1467
      %v1628 = vpop.f32.mrb[0].mxu0
      %v1629 = vadd.f32 0.0, %v1628
      %v1630 = vpop.f32.mrb[0].mxu0
      %1631 = vmatprep.mubr.f32.mxu0 0.0
      %1632 = vmatmul.mubr.f32.gmra.mrb[0].mxu0 %v1470
      %v1633 = vpop.f32.mrb[0].mxu0
      %v1634 = vadd.f32 0.0, %v1633
      %v1635 = vpop.f32.mrb[0].mxu0
      %1636 = vdwg.mxu0
      %vm1637 = vcmask 195584
      %v1638 = vsel %vm1637, %v1294, 0.0
      %v1639 = vsel %vm1637, %v1299, 0.0
      %v1640 = vadd.f32 %v1638, %v1639
      %v1641 = vsel %vm1637, %v1304, 0.0
      %v1642 = vadd.f32 %v1640, %v1641
      %v1643 = vsel %vm1637, %v1309, 0.0
      %v1644 = vadd.f32 %v1642, %v1643
      %v1645 = vsel %vm1637, %v1314, 0.0
      %v1646 = vadd.f32 %v1644, %v1645
      %v1647 = vsel %vm1637, %v1319, 0.0
      %v1648 = vadd.f32 %v1646, %v1647
      %v1649 = vsel %vm1637, %v1324, 0.0
      %v1650 = vadd.f32 %v1648, %v1649
      %v1651 = vsel %vm1637, %v1329, 0.0
      %v1652 = vadd.f32 %v1650, %v1651
      %v1653 = vsel %vm1637, %v1334, 0.0
      %v1654 = vadd.f32 %v1652, %v1653
      %v1655 = vsel %vm1637, %v1339, 0.0
      %v1656 = vadd.f32 %v1654, %v1655
      %v1657 = vsel %vm1637, %v1344, 0.0
      %v1658 = vadd.f32 %v1656, %v1657
      %v1659 = vsel %vm1637, %v1349, 0.0
      %v1660 = vadd.f32 %v1658, %v1659
      %v1661 = vsel %vm1637, %v1354, 0.0
      %v1662 = vadd.f32 %v1660, %v1661
      %v1663 = vsel %vm1637, %v1359, 0.0
      %v1664 = vadd.f32 %v1662, %v1663
      %v1665 = vsel %vm1637, %v1364, 0.0
      %v1666 = vadd.f32 %v1664, %v1665
      %v1667 = vsel %vm1637, %v1369, 0.0
      %v1668 = vadd.f32 %v1666, %v1667
      %v1669 = vsel %vm1637, %v1374, 0.0
      %v1670 = vadd.f32 %v1668, %v1669
      %v1671 = vsel %vm1637, %v1379, 0.0
      %v1672 = vadd.f32 %v1670, %v1671
      %v1673 = vsel %vm1637, %v1384, 0.0
      %v1674 = vadd.f32 %v1672, %v1673
      %v1675 = vsel %vm1637, %v1389, 0.0
      %v1676 = vadd.f32 %v1674, %v1675
      %v1677 = vrot.slane %v1676, 4
      %v1678 = vadd.f32 %v1676, %v1677
      %v1679 = vrot.slane %v1678, 2
      %v1680 = vadd.f32 %v1678, %v1679
      %v1681 = vrot.slane %v1680, 1
      %v1682 = vadd.f32 %v1680, %v1681
      %v1683 = vsel %vm1637, %v1539, 0.0
      %v1684 = vsel %vm1637, %v1544, 0.0
      %v1685 = vadd.f32 %v1683, %v1684
      %v1686 = vsel %vm1637, %v1549, 0.0
      %v1687 = vadd.f32 %v1685, %v1686
      %v1688 = vsel %vm1637, %v1554, 0.0
      %v1689 = vadd.f32 %v1687, %v1688
      %v1690 = vsel %vm1637, %v1559, 0.0
      %v1691 = vadd.f32 %v1689, %v1690
      %v1692 = vsel %vm1637, %v1564, 0.0
      %v1693 = vadd.f32 %v1691, %v1692
      %v1694 = vsel %vm1637, %v1569, 0.0
      %v1695 = vadd.f32 %v1693, %v1694
      %v1696 = vsel %vm1637, %v1574, 0.0
      %v1697 = vadd.f32 %v1695, %v1696
      %v1698 = vsel %vm1637, %v1579, 0.0
      %v1699 = vadd.f32 %v1697, %v1698
      %v1700 = vsel %vm1637, %v1584, 0.0
      %v1701 = vadd.f32 %v1699, %v1700
      %v1702 = vsel %vm1637, %v1589, 0.0
      %v1703 = vadd.f32 %v1701, %v1702
      %v1704 = vsel %vm1637, %v1594, 0.0
      %v1705 = vadd.f32 %v1703, %v1704
      %v1706 = vsel %vm1637, %v1599, 0.0
      %v1707 = vadd.f32 %v1705, %v1706
      %v1708 = vsel %vm1637, %v1604, 0.0
      %v1709 = vadd.f32 %v1707, %v1708
      %v1710 = vsel %vm1637, %v1609, 0.0
      %v1711 = vadd.f32 %v1709, %v1710
      %v1712 = vsel %vm1637, %v1614, 0.0
      %v1713 = vadd.f32 %v1711, %v1712
      %v1714 = vsel %vm1637, %v1619, 0.0
      %v1715 = vadd.f32 %v1713, %v1714
      %v1716 = vsel %vm1637, %v1624, 0.0
      %v1717 = vadd.f32 %v1715, %v1716
      %v1718 = vsel %vm1637, %v1629, 0.0
      %v1719 = vadd.f32 %v1717, %v1718
      %vm1720 = vcmask 194560
      %v1721 = vsel %vm1720, %v1634, 0.0
      %v1722 = vadd.f32 %v1719, %v1721
      %v1723 = vrot.slane %v1722, 4
      %v1724 = vadd.f32 %v1722, %v1723
      %v1725 = vrot.slane %v1724, 2
      %v1726 = vadd.f32 %v1724, %v1725
      %v1727 = vrot.slane %v1726, 1
      %v1728 = vadd.f32 %v1726, %v1727
      %v1729 = vadd.f32 %v1682, %v1728
      %v1730 = vrcp.pop 319.0
      %v1731 = vmul.f32 %v1729, %v1730
      %v1732 = vsub.f32 %v1294, %v1731
      %v1733 = vsub.f32 %v1299, %v1731
      %v1734 = vsub.f32 %v1304, %v1731
      %v1735 = vsub.f32 %v1309, %v1731
      %v1736 = vsub.f32 %v1314, %v1731
      %v1737 = vsub.f32 %v1319, %v1731
      %v1738 = vsub.f32 %v1324, %v1731
      %v1739 = vsub.f32 %v1329, %v1731
      %v1740 = vsub.f32 %v1334, %v1731
      %v1741 = vsub.f32 %v1339, %v1731
      %v1742 = vsub.f32 %v1344, %v1731
      %v1743 = vsub.f32 %v1349, %v1731
      %v1744 = vsub.f32 %v1354, %v1731
      %v1745 = vsub.f32 %v1359, %v1731
      %v1746 = vsub.f32 %v1364, %v1731
      %v1747 = vsub.f32 %v1369, %v1731
      %v1748 = vsub.f32 %v1374, %v1731
      %v1749 = vsub.f32 %v1379, %v1731
      %v1750 = vsub.f32 %v1384, %v1731
      %v1751 = vsub.f32 %v1389, %v1731
      %v1752 = vmul.f32 %v1732, %v1732
      %v1753 = vmul.f32 %v1733, %v1733
      %v1754 = vmul.f32 %v1734, %v1734
      %v1755 = vmul.f32 %v1735, %v1735
      %v1756 = vmul.f32 %v1736, %v1736
      %v1757 = vmul.f32 %v1737, %v1737
      %v1758 = vmul.f32 %v1738, %v1738
      %v1759 = vmul.f32 %v1739, %v1739
      %v1760 = vmul.f32 %v1740, %v1740
      %v1761 = vmul.f32 %v1741, %v1741
      %v1762 = vmul.f32 %v1742, %v1742
      %v1763 = vmul.f32 %v1743, %v1743
      %v1764 = vmul.f32 %v1744, %v1744
      %v1765 = vmul.f32 %v1745, %v1745
      %v1766 = vmul.f32 %v1746, %v1746
      %v1767 = vmul.f32 %v1747, %v1747
      %v1768 = vmul.f32 %v1748, %v1748
      %v1769 = vmul.f32 %v1749, %v1749
      %v1770 = vmul.f32 %v1750, %v1750
      %v1771 = vmul.f32 %v1751, %v1751
      %v1772 = vsel %vm1637, %v1752, 0.0
      %v1773 = vsel %vm1637, %v1753, 0.0
      %v1774 = vadd.f32 %v1772, %v1773
      %v1775 = vsel %vm1637, %v1754, 0.0
      %v1776 = vadd.f32 %v1774, %v1775
      %v1777 = vsel %vm1637, %v1755, 0.0
      %v1778 = vadd.f32 %v1776, %v1777
      %v1779 = vsel %vm1637, %v1756, 0.0
      %v1780 = vadd.f32 %v1778, %v1779
      %v1781 = vsel %vm1637, %v1757, 0.0
      %v1782 = vadd.f32 %v1780, %v1781
      %v1783 = vsel %vm1637, %v1758, 0.0
      %v1784 = vadd.f32 %v1782, %v1783
      %v1785 = vsel %vm1637, %v1759, 0.0
      %v1786 = vadd.f32 %v1784, %v1785
      %v1787 = vsel %vm1637, %v1760, 0.0
      %v1788 = vadd.f32 %v1786, %v1787
      %v1789 = vsel %vm1637, %v1761, 0.0
      %v1790 = vadd.f32 %v1788, %v1789
      %v1791 = vsel %vm1637, %v1762, 0.0
      %v1792 = vadd.f32 %v1790, %v1791
      %v1793 = vsel %vm1637, %v1763, 0.0
      %v1794 = vadd.f32 %v1792, %v1793
      %v1795 = vsel %vm1637, %v1764, 0.0
      %v1796 = vadd.f32 %v1794, %v1795
      %v1797 = vsel %vm1637, %v1765, 0.0
      %v1798 = vadd.f32 %v1796, %v1797
      %v1799 = vsel %vm1637, %v1766, 0.0
      %v1800 = vadd.f32 %v1798, %v1799
      %v1801 = vsel %vm1637, %v1767, 0.0
      %v1802 = vadd.f32 %v1800, %v1801
      %v1803 = vsel %vm1637, %v1768, 0.0
      %v1804 = vadd.f32 %v1802, %v1803
      %v1805 = vsel %vm1637, %v1769, 0.0
      %v1806 = vadd.f32 %v1804, %v1805
      %v1807 = vsel %vm1637, %v1770, 0.0
      %v1808 = vadd.f32 %v1806, %v1807
      %v1809 = vsel %vm1637, %v1771, 0.0
      %v1810 = vadd.f32 %v1808, %v1809
      %v1811 = vrot.slane %v1810, 4
      %v1812 = vadd.f32 %v1810, %v1811
      %v1813 = vrot.slane %v1812, 2
      %v1814 = vadd.f32 %v1812, %v1813
      %v1815 = vrot.slane %v1814, 1
      %v1816 = vadd.f32 %v1814, %v1815
      %v1817 = vsub.f32 %v1539, %v1731
      %v1818 = vsub.f32 %v1544, %v1731
      %v1819 = vsub.f32 %v1549, %v1731
      %v1820 = vsub.f32 %v1554, %v1731
      %v1821 = vsub.f32 %v1559, %v1731
      %v1822 = vsub.f32 %v1564, %v1731
      %v1823 = vsub.f32 %v1569, %v1731
      %v1824 = vsub.f32 %v1574, %v1731
      %v1825 = vsub.f32 %v1579, %v1731
      %v1826 = vsub.f32 %v1584, %v1731
      %v1827 = vsub.f32 %v1589, %v1731
      %v1828 = vsub.f32 %v1594, %v1731
      %v1829 = vsub.f32 %v1599, %v1731
      %v1830 = vsub.f32 %v1604, %v1731
      %v1831 = vsub.f32 %v1609, %v1731
      %v1832 = vsub.f32 %v1614, %v1731
      %v1833 = vsub.f32 %v1619, %v1731
      %v1834 = vsub.f32 %v1624, %v1731
      %v1835 = vsub.f32 %v1629, %v1731
      %v1836 = vsub.f32 %v1634, %v1731
      %v1837 = vmul.f32 %v1817, %v1817
      %v1838 = vmul.f32 %v1818, %v1818
      %v1839 = vmul.f32 %v1819, %v1819
      %v1840 = vmul.f32 %v1820, %v1820
      %v1841 = vmul.f32 %v1821, %v1821
      %v1842 = vmul.f32 %v1822, %v1822
      %v1843 = vmul.f32 %v1823, %v1823
      %v1844 = vmul.f32 %v1824, %v1824
      %v1845 = vmul.f32 %v1825, %v1825
      %v1846 = vmul.f32 %v1826, %v1826
      %v1847 = vmul.f32 %v1827, %v1827
      %v1848 = vmul.f32 %v1828, %v1828
      %v1849 = vmul.f32 %v1829, %v1829
      %v1850 = vmul.f32 %v1830, %v1830
      %v1851 = vmul.f32 %v1831, %v1831
      %v1852 = vmul.f32 %v1832, %v1832
      %v1853 = vmul.f32 %v1833, %v1833
      %v1854 = vmul.f32 %v1834, %v1834
      %v1855 = vmul.f32 %v1835, %v1835
      %v1856 = vmul.f32 %v1836, %v1836
      %v1857 = vsel %vm1637, %v1837, 0.0
      %v1858 = vsel %vm1637, %v1838, 0.0
      %v1859 = vadd.f32 %v1857, %v1858
      %v1860 = vsel %vm1637, %v1839, 0.0
      %v1861 = vadd.f32 %v1859, %v1860
      %v1862 = vsel %vm1637, %v1840, 0.0
      %v1863 = vadd.f32 %v1861, %v1862
      %v1864 = vsel %vm1637, %v1841, 0.0
      %v1865 = vadd.f32 %v1863, %v1864
      %v1866 = vsel %vm1637, %v1842, 0.0
      %v1867 = vadd.f32 %v1865, %v1866
      %v1868 = vsel %vm1637, %v1843, 0.0
      %v1869 = vadd.f32 %v1867, %v1868
      %v1870 = vsel %vm1637, %v1844, 0.0
      %v1871 = vadd.f32 %v1869, %v1870
      %v1872 = vsel %vm1637, %v1845, 0.0
      %v1873 = vadd.f32 %v1871, %v1872
      %v1874 = vsel %vm1637, %v1846, 0.0
      %v1875 = vadd.f32 %v1873, %v1874
      %v1876 = vsel %vm1637, %v1847, 0.0
      %v1877 = vadd.f32 %v1875, %v1876
      %v1878 = vsel %vm1637, %v1848, 0.0
      %v1879 = vadd.f32 %v1877, %v1878
      %v1880 = vsel %vm1637, %v1849, 0.0
      %v1881 = vadd.f32 %v1879, %v1880
      %v1882 = vsel %vm1637, %v1850, 0.0
      %v1883 = vadd.f32 %v1881, %v1882
      %v1884 = vsel %vm1637, %v1851, 0.0
      %v1885 = vadd.f32 %v1883, %v1884
      %v1886 = vsel %vm1637, %v1852, 0.0
      %v1887 = vadd.f32 %v1885, %v1886
      %v1888 = vsel %vm1637, %v1853, 0.0
      %v1889 = vadd.f32 %v1887, %v1888
      %v1890 = vsel %vm1637, %v1854, 0.0
      %v1891 = vadd.f32 %v1889, %v1890
      %v1892 = vsel %vm1637, %v1855, 0.0
      %v1893 = vadd.f32 %v1891, %v1892
      %v1894 = vsel %vm1720, %v1856, 0.0
      %v1895 = vadd.f32 %v1893, %v1894
      %v1896 = vrot.slane %v1895, 4
      %v1897 = vadd.f32 %v1895, %v1896
      %v1898 = vrot.slane %v1897, 2
      %v1899 = vadd.f32 %v1897, %v1898
      %v1900 = vrot.slane %v1899, 1
      %v1901 = vadd.f32 %v1899, %v1900
      %v1902 = vadd.f32 %v1816, %v1901
      %v1903 = vmul.f32 %v1902, %v1730
      %v1904 = vadd.f32 %v1903, 1e-05
      %v1905 = vrsqrt.pop %v1904
      %v1906 = vmul.f32 %v1732, %v1905
      %v1907 = vmul.f32 %v1733, %v1905
      %v1908 = vmul.f32 %v1734, %v1905
      %v1909 = vmul.f32 %v1735, %v1905
      %v1910 = vmul.f32 %v1736, %v1905
      %v1911 = vmul.f32 %v1737, %v1905
      %v1912 = vmul.f32 %v1738, %v1905
      %v1913 = vmul.f32 %v1739, %v1905
      %v1914 = vmul.f32 %v1740, %v1905
      %v1915 = vmul.f32 %v1741, %v1905
      %v1916 = vmul.f32 %v1742, %v1905
      %v1917 = vmul.f32 %v1743, %v1905
      %v1918 = vmul.f32 %v1744, %v1905
      %v1919 = vmul.f32 %v1745, %v1905
      %v1920 = vmul.f32 %v1746, %v1905
      %v1921 = vmul.f32 %v1747, %v1905
      %v1922 = vmul.f32 %v1748, %v1905
      %v1923 = vmul.f32 %v1749, %v1905
      %v1924 = vmul.f32 %v1750, %v1905
      %v1925 = vmul.f32 %v1751, %v1905
      %v1926 = vld [vmem:[%s7] sm:$0x1]
      %v1928 = vlaneseq
      %v1929 = vshrl.u32 %v1928, 7
      %v1930 = vsub.s32 0, %v1929
      %v1931 = vrot.slane %v1926, %v1930
      %v1933 = vmul.f32 %v1906, %v1931
      %v1934 = vmul.f32 %v1907, %v1931
      %v1935 = vmul.f32 %v1908, %v1931
      %v1936 = vmul.f32 %v1909, %v1931
      %v1937 = vmul.f32 %v1910, %v1931
      %v1938 = vmul.f32 %v1911, %v1931
      %v1939 = vmul.f32 %v1912, %v1931
      %v1940 = vmul.f32 %v1913, %v1931
      %v1941 = vmul.f32 %v1914, %v1931
      %v1942 = vmul.f32 %v1915, %v1931
      %v1943 = vmul.f32 %v1916, %v1931
      %v1944 = vmul.f32 %v1917, %v1931
      %v1945 = vmul.f32 %v1918, %v1931
      %v1946 = vmul.f32 %v1919, %v1931
      %v1947 = vmul.f32 %v1920, %v1931
      %v1948 = vmul.f32 %v1921, %v1931
      %v1949 = vmul.f32 %v1922, %v1931
      %v1950 = vmul.f32 %v1923, %v1931
      %v1951 = vmul.f32 %v1924, %v1931
      %v1952 = vmul.f32 %v1925, %v1931
      %v1953 = vld [vmem:[%s9] sm:$0x1]
      %v1955 = vlaneseq
      %v1956 = vshrl.u32 %v1955, 7
      %v1957 = vsub.s32 0, %v1956
      %v1958 = vrot.slane %v1953, %v1957
      %v1960 = vadd.f32 %v1933, %v1958
      %v1961 = vadd.f32 %v1934, %v1958
      %v1962 = vadd.f32 %v1935, %v1958
      %v1963 = vadd.f32 %v1936, %v1958
      %v1964 = vadd.f32 %v1937, %v1958
      %v1965 = vadd.f32 %v1938, %v1958
      %v1966 = vadd.f32 %v1939, %v1958
      %v1967 = vadd.f32 %v1940, %v1958
      %v1968 = vadd.f32 %v1941, %v1958
      %v1969 = vadd.f32 %v1942, %v1958
      %v1970 = vadd.f32 %v1943, %v1958
      %v1971 = vadd.f32 %v1944, %v1958
      %v1972 = vadd.f32 %v1945, %v1958
      %v1973 = vadd.f32 %v1946, %v1958
      %v1974 = vadd.f32 %v1947, %v1958
      %v1975 = vadd.f32 %v1948, %v1958
      %v1976 = vadd.f32 %v1949, %v1958
      %v1977 = vadd.f32 %v1950, %v1958
      %v1978 = vadd.f32 %v1951, %v1958
      %v1979 = vadd.f32 %v1952, %v1958
      %v1980 = vmul.f32 %v1960, %v1960
      %v1981 = vmul.f32 %v1961, %v1961
      %v1982 = vmul.f32 %v1962, %v1962
      %v1983 = vmul.f32 %v1963, %v1963
      %v1984 = vmul.f32 %v1964, %v1964
      %v1985 = vmul.f32 %v1965, %v1965
      %v1986 = vmul.f32 %v1966, %v1966
      %v1987 = vmul.f32 %v1967, %v1967
      %v1988 = vmul.f32 %v1968, %v1968
      %v1989 = vmul.f32 %v1969, %v1969
      %v1990 = vmul.f32 %v1970, %v1970
      %v1991 = vmul.f32 %v1971, %v1971
      %v1992 = vmul.f32 %v1972, %v1972
      %v1993 = vmul.f32 %v1973, %v1973
      %v1994 = vmul.f32 %v1974, %v1974
      %v1995 = vmul.f32 %v1975, %v1975
      %v1996 = vmul.f32 %v1976, %v1976
      %v1997 = vmul.f32 %v1977, %v1977
      %v1998 = vmul.f32 %v1978, %v1978
      %v1999 = vmul.f32 %v1979, %v1979
      %v2000 = vmul.f32 %v1960, %v1980
      %v2001 = vmul.f32 %v1961, %v1981
      %v2002 = vmul.f32 %v1962, %v1982
      %v2003 = vmul.f32 %v1963, %v1983
      %v2004 = vmul.f32 %v1964, %v1984
      %v2005 = vmul.f32 %v1965, %v1985
      %v2006 = vmul.f32 %v1966, %v1986
      %v2007 = vmul.f32 %v1967, %v1987
      %v2008 = vmul.f32 %v1968, %v1988
      %v2009 = vmul.f32 %v1969, %v1989
      %v2010 = vmul.f32 %v1970, %v1990
      %v2011 = vmul.f32 %v1971, %v1991
      %v2012 = vmul.f32 %v1972, %v1992
      %v2013 = vmul.f32 %v1973, %v1993
      %v2014 = vmul.f32 %v1974, %v1994
      %v2015 = vmul.f32 %v1975, %v1995
      %v2016 = vmul.f32 %v1976, %v1996
      %v2017 = vmul.f32 %v1977, %v1997
      %v2018 = vmul.f32 %v1978, %v1998
      %v2019 = vmul.f32 %v1979, %v1999
      %v2020 = vmul.f32 %v2000, 0.044715
      %v2021 = vmul.f32 %v2001, 0.044715
      %v2022 = vmul.f32 %v2002, 0.044715
      %v2023 = vmul.f32 %v2003, 0.044715
      %v2024 = vmul.f32 %v2004, 0.044715
      %v2025 = vmul.f32 %v2005, 0.044715
      %v2026 = vmul.f32 %v2006, 0.044715
      %v2027 = vmul.f32 %v2007, 0.044715
      %v2028 = vmul.f32 %v2008, 0.044715
      %v2029 = vmul.f32 %v2009, 0.044715
      %v2030 = vmul.f32 %v2010, 0.044715
      %v2031 = vmul.f32 %v2011, 0.044715
      %v2032 = vmul.f32 %v2012, 0.044715
      %v2033 = vmul.f32 %v2013, 0.044715
      %v2034 = vmul.f32 %v2014, 0.044715
      %v2035 = vmul.f32 %v2015, 0.044715
      %v2036 = vmul.f32 %v2016, 0.044715
      %v2037 = vmul.f32 %v2017, 0.044715
      %v2038 = vmul.f32 %v2018, 0.044715
      %v2039 = vmul.f32 %v2019, 0.044715
      %v2040 = vadd.f32 %v1960, %v2020
      %v2041 = vadd.f32 %v1961, %v2021
      %v2042 = vadd.f32 %v1962, %v2022
      %v2043 = vadd.f32 %v1963, %v2023
      %v2044 = vadd.f32 %v1964, %v2024
      %v2045 = vadd.f32 %v1965, %v2025
      %v2046 = vadd.f32 %v1966, %v2026
      %v2047 = vadd.f32 %v1967, %v2027
      %v2048 = vadd.f32 %v1968, %v2028
      %v2049 = vadd.f32 %v1969, %v2029
      %v2050 = vadd.f32 %v1970, %v2030
      %v2051 = vadd.f32 %v1971, %v2031
      %v2052 = vadd.f32 %v1972, %v2032
      %v2053 = vadd.f32 %v1973, %v2033
      %v2054 = vadd.f32 %v1974, %v2034
      %v2055 = vadd.f32 %v1975, %v2035
      %v2056 = vadd.f32 %v1976, %v2036
      %v2057 = vadd.f32 %v1977, %v2037
      %v2058 = vadd.f32 %v1978, %v2038
      %v2059 = vadd.f32 %v1979, %v2039
      %v2060 = vmul.f32 %v2040, 0.7978846
      %v2061 = vmul.f32 %v2041, 0.7978846
      %v2062 = vmul.f32 %v2042, 0.7978846
      %v2063 = vmul.f32 %v2043, 0.7978846
      %v2064 = vmul.f32 %v2044, 0.7978846
      %v2065 = vmul.f32 %v2045, 0.7978846
      %v2066 = vmul.f32 %v2046, 0.7978846
      %v2067 = vmul.f32 %v2047, 0.7978846
      %v2068 = vmul.f32 %v2048, 0.7978846
      %v2069 = vmul.f32 %v2049, 0.7978846
      %v2070 = vmul.f32 %v2050, 0.7978846
      %v2071 = vmul.f32 %v2051, 0.7978846
      %v2072 = vmul.f32 %v2052, 0.7978846
      %v2073 = vmul.f32 %v2053, 0.7978846
      %v2074 = vmul.f32 %v2054, 0.7978846
      %v2075 = vmul.f32 %v2055, 0.7978846
      %v2076 = vmul.f32 %v2056, 0.7978846
      %v2077 = vmul.f32 %v2057, 0.7978846
      %v2078 = vmul.f32 %v2058, 0.7978846
      %v2079 = vmul.f32 %v2059, 0.7978846
      %v2080 = vtanh.pop %v2060
      %v2081 = vtanh.pop %v2061
      %v2082 = vtanh.pop %v2062
      %v2083 = vtanh.pop %v2063
      %v2084 = vtanh.pop %v2064
      %v2085 = vtanh.pop %v2065
      %v2086 = vtanh.pop %v2066
      %v2087 = vtanh.pop %v2067
      %v2088 = vtanh.pop %v2068
      %v2089 = vtanh.pop %v2069
      %v2090 = vtanh.pop %v2070
      %v2091 = vtanh.pop %v2071
      %v2092 = vtanh.pop %v2072
      %v2093 = vtanh.pop %v2073
      %v2094 = vtanh.pop %v2074
      %v2095 = vtanh.pop %v2075
      %v2096 = vtanh.pop %v2076
      %v2097 = vtanh.pop %v2077
      %v2098 = vtanh.pop %v2078
      %v2099 = vtanh.pop %v2079
      %v2100 = vadd.f32 %v2080, 1.0
      %v2101 = vadd.f32 %v2081, 1.0
      %v2102 = vadd.f32 %v2082, 1.0
      %v2103 = vadd.f32 %v2083, 1.0
      %v2104 = vadd.f32 %v2084, 1.0
      %v2105 = vadd.f32 %v2085, 1.0
      %v2106 = vadd.f32 %v2086, 1.0
      %v2107 = vadd.f32 %v2087, 1.0
      %v2108 = vadd.f32 %v2088, 1.0
      %v2109 = vadd.f32 %v2089, 1.0
      %v2110 = vadd.f32 %v2090, 1.0
      %v2111 = vadd.f32 %v2091, 1.0
      %v2112 = vadd.f32 %v2092, 1.0
      %v2113 = vadd.f32 %v2093, 1.0
      %v2114 = vadd.f32 %v2094, 1.0
      %v2115 = vadd.f32 %v2095, 1.0
      %v2116 = vadd.f32 %v2096, 1.0
      %v2117 = vadd.f32 %v2097, 1.0
      %v2118 = vadd.f32 %v2098, 1.0
      %v2119 = vadd.f32 %v2099, 1.0
      %v2120 = vmul.f32 %v2100, 0.5
      %v2121 = vmul.f32 %v2101, 0.5
      %v2122 = vmul.f32 %v2102, 0.5
      %v2123 = vmul.f32 %v2103, 0.5
      %v2124 = vmul.f32 %v2104, 0.5
      %v2125 = vmul.f32 %v2105, 0.5
      %v2126 = vmul.f32 %v2106, 0.5
      %v2127 = vmul.f32 %v2107, 0.5
      %v2128 = vmul.f32 %v2108, 0.5
      %v2129 = vmul.f32 %v2109, 0.5
      %v2130 = vmul.f32 %v2110, 0.5
      %v2131 = vmul.f32 %v2111, 0.5
      %v2132 = vmul.f32 %v2112, 0.5
      %v2133 = vmul.f32 %v2113, 0.5
      %v2134 = vmul.f32 %v2114, 0.5
      %v2135 = vmul.f32 %v2115, 0.5
      %v2136 = vmul.f32 %v2116, 0.5
      %v2137 = vmul.f32 %v2117, 0.5
      %v2138 = vmul.f32 %v2118, 0.5
      %v2139 = vmul.f32 %v2119, 0.5
      %v2140 = vmul.f32 %v1960, %v2120
      %v2141 = vmul.f32 %v1961, %v2121
      %v2142 = vmul.f32 %v1962, %v2122
      %v2143 = vmul.f32 %v1963, %v2123
      %v2144 = vmul.f32 %v1964, %v2124
      %v2145 = vmul.f32 %v1965, %v2125
      %v2146 = vmul.f32 %v1966, %v2126
      %v2147 = vmul.f32 %v1967, %v2127
      %v2148 = vmul.f32 %v1968, %v2128
      %v2149 = vmul.f32 %v1969, %v2129
      %v2150 = vmul.f32 %v1970, %v2130
      %v2151 = vmul.f32 %v1971, %v2131
      %v2152 = vmul.f32 %v1972, %v2132
      %v2153 = vmul.f32 %v1973, %v2133
      %v2154 = vmul.f32 %v1974, %v2134
      %v2155 = vmul.f32 %v1975, %v2135
      %v2156 = vmul.f32 %v1976, %v2136
      %v2157 = vmul.f32 %v1977, %v2137
      %v2158 = vmul.f32 %v1978, %v2138
      %v2159 = vmul.f32 %v1979, %v2139
      %v2160 = vmul.f32 %v1817, %v1905
      %v2161 = vmul.f32 %v1818, %v1905
      %v2162 = vmul.f32 %v1819, %v1905
      %v2163 = vmul.f32 %v1820, %v1905
      %v2164 = vmul.f32 %v1821, %v1905
      %v2165 = vmul.f32 %v1822, %v1905
      %v2166 = vmul.f32 %v1823, %v1905
      %v2167 = vmul.f32 %v1824, %v1905
      %v2168 = vmul.f32 %v1825, %v1905
      %v2169 = vmul.f32 %v1826, %v1905
      %v2170 = vmul.f32 %v1827, %v1905
      %v2171 = vmul.f32 %v1828, %v1905
      %v2172 = vmul.f32 %v1829, %v1905
      %v2173 = vmul.f32 %v1830, %v1905
      %v2174 = vmul.f32 %v1831, %v1905
      %v2175 = vmul.f32 %v1832, %v1905
      %v2176 = vmul.f32 %v1833, %v1905
      %v2177 = vmul.f32 %v1834, %v1905
      %v2178 = vmul.f32 %v1835, %v1905
      %v2179 = vmul.f32 %v1836, %v1905
      %v2180 = vmul.f32 %v2160, %v1931
      %v2181 = vmul.f32 %v2161, %v1931
      %v2182 = vmul.f32 %v2162, %v1931
      %v2183 = vmul.f32 %v2163, %v1931
      %v2184 = vmul.f32 %v2164, %v1931
      %v2185 = vmul.f32 %v2165, %v1931
      %v2186 = vmul.f32 %v2166, %v1931
      %v2187 = vmul.f32 %v2167, %v1931
      %v2188 = vmul.f32 %v2168, %v1931
      %v2189 = vmul.f32 %v2169, %v1931
      %v2190 = vmul.f32 %v2170, %v1931
      %v2191 = vmul.f32 %v2171, %v1931
      %v2192 = vmul.f32 %v2172, %v1931
      %v2193 = vmul.f32 %v2173, %v1931
      %v2194 = vmul.f32 %v2174, %v1931
      %v2195 = vmul.f32 %v2175, %v1931
      %v2196 = vmul.f32 %v2176, %v1931
      %v2197 = vmul.f32 %v2177, %v1931
      %v2198 = vmul.f32 %v2178, %v1931
      %v2199 = vmul.f32 %v2179, %v1931
      %v2200 = vadd.f32 %v2180, %v1958
      %v2201 = vadd.f32 %v2181, %v1958
      %v2202 = vadd.f32 %v2182, %v1958
      %v2203 = vadd.f32 %v2183, %v1958
      %v2204 = vadd.f32 %v2184, %v1958
      %v2205 = vadd.f32 %v2185, %v1958
      %v2206 = vadd.f32 %v2186, %v1958
      %v2207 = vadd.f32 %v2187, %v1958
      %v2208 = vadd.f32 %v2188, %v1958
      %v2209 = vadd.f32 %v2189, %v1958
      %v2210 = vadd.f32 %v2190, %v1958
      %v2211 = vadd.f32 %v2191, %v1958
      %v2212 = vadd.f32 %v2192, %v1958
      %v2213 = vadd.f32 %v2193, %v1958
      %v2214 = vadd.f32 %v2194, %v1958
      %v2215 = vadd.f32 %v2195, %v1958
      %v2216 = vadd.f32 %v2196, %v1958
      %v2217 = vadd.f32 %v2197, %v1958
      %v2218 = vadd.f32 %v2198, %v1958
      %v2219 = vadd.f32 %v2199, %v1958
      %v2220 = vmul.f32 %v2200, %v2200
      %v2221 = vmul.f32 %v2201, %v2201
      %v2222 = vmul.f32 %v2202, %v2202
      %v2223 = vmul.f32 %v2203, %v2203
      %v2224 = vmul.f32 %v2204, %v2204
      %v2225 = vmul.f32 %v2205, %v2205
      %v2226 = vmul.f32 %v2206, %v2206
      %v2227 = vmul.f32 %v2207, %v2207
      %v2228 = vmul.f32 %v2208, %v2208
      %v2229 = vmul.f32 %v2209, %v2209
      %v2230 = vmul.f32 %v2210, %v2210
      %v2231 = vmul.f32 %v2211, %v2211
      %v2232 = vmul.f32 %v2212, %v2212
      %v2233 = vmul.f32 %v2213, %v2213
      %v2234 = vmul.f32 %v2214, %v2214
      %v2235 = vmul.f32 %v2215, %v2215
      %v2236 = vmul.f32 %v2216, %v2216
      %v2237 = vmul.f32 %v2217, %v2217
      %v2238 = vmul.f32 %v2218, %v2218
      %v2239 = vmul.f32 %v2219, %v2219
      %v2240 = vmul.f32 %v2200, %v2220
      %v2241 = vmul.f32 %v2201, %v2221
      %v2242 = vmul.f32 %v2202, %v2222
      %v2243 = vmul.f32 %v2203, %v2223
      %v2244 = vmul.f32 %v2204, %v2224
      %v2245 = vmul.f32 %v2205, %v2225
      %v2246 = vmul.f32 %v2206, %v2226
      %v2247 = vmul.f32 %v2207, %v2227
      %v2248 = vmul.f32 %v2208, %v2228
      %v2249 = vmul.f32 %v2209, %v2229
      %v2250 = vmul.f32 %v2210, %v2230
      %v2251 = vmul.f32 %v2211, %v2231
      %v2252 = vmul.f32 %v2212, %v2232
      %v2253 = vmul.f32 %v2213, %v2233
      %v2254 = vmul.f32 %v2214, %v2234
      %v2255 = vmul.f32 %v2215, %v2235
      %v2256 = vmul.f32 %v2216, %v2236
      %v2257 = vmul.f32 %v2217, %v2237
      %v2258 = vmul.f32 %v2218, %v2238
      %v2259 = vmul.f32 %v2219, %v2239
      %v2260 = vmul.f32 %v2240, 0.044715
      %v2261 = vmul.f32 %v2241, 0.044715
      %v2262 = vmul.f32 %v2242, 0.044715
      %v2263 = vmul.f32 %v2243, 0.044715
      %v2264 = vmul.f32 %v2244, 0.044715
      %v2265 = vmul.f32 %v2245, 0.044715
      %v2266 = vmul.f32 %v2246, 0.044715
      %v2267 = vmul.f32 %v2247, 0.044715
      %v2268 = vmul.f32 %v2248, 0.044715
      %v2269 = vmul.f32 %v2249, 0.044715
      %v2270 = vmul.f32 %v2250, 0.044715
      %v2271 = vmul.f32 %v2251, 0.044715
      %v2272 = vmul.f32 %v2252, 0.044715
      %v2273 = vmul.f32 %v2253, 0.044715
      %v2274 = vmul.f32 %v2254, 0.044715
      %v2275 = vmul.f32 %v2255, 0.044715
      %v2276 = vmul.f32 %v2256, 0.044715
      %v2277 = vmul.f32 %v2257, 0.044715
      %v2278 = vmul.f32 %v2258, 0.044715
      %v2279 = vmul.f32 %v2259, 0.044715
      %v2280 = vadd.f32 %v2200, %v2260
      %v2281 = vadd.f32 %v2201, %v2261
      %v2282 = vadd.f32 %v2202, %v2262
      %v2283 = vadd.f32 %v2203, %v2263
      %v2284 = vadd.f32 %v2204, %v2264
      %v2285 = vadd.f32 %v2205, %v2265
      %v2286 = vadd.f32 %v2206, %v2266
      %v2287 = vadd.f32 %v2207, %v2267
      %v2288 = vadd.f32 %v2208, %v2268
      %v2289 = vadd.f32 %v2209, %v2269
      %v2290 = vadd.f32 %v2210, %v2270
      %v2291 = vadd.f32 %v2211, %v2271
      %v2292 = vadd.f32 %v2212, %v2272
      %v2293 = vadd.f32 %v2213, %v2273
      %v2294 = vadd.f32 %v2214, %v2274
      %v2295 = vadd.f32 %v2215, %v2275
      %v2296 = vadd.f32 %v2216, %v2276
      %v2297 = vadd.f32 %v2217, %v2277
      %v2298 = vadd.f32 %v2218, %v2278
      %v2299 = vadd.f32 %v2219, %v2279
      %v2300 = vmul.f32 %v2280, 0.7978846
      %v2301 = vmul.f32 %v2281, 0.7978846
      %v2302 = vmul.f32 %v2282, 0.7978846
      %v2303 = vmul.f32 %v2283, 0.7978846
      %v2304 = vmul.f32 %v2284, 0.7978846
      %v2305 = vmul.f32 %v2285, 0.7978846
      %v2306 = vmul.f32 %v2286, 0.7978846
      %v2307 = vmul.f32 %v2287, 0.7978846
      %v2308 = vmul.f32 %v2288, 0.7978846
      %v2309 = vmul.f32 %v2289, 0.7978846
      %v2310 = vmul.f32 %v2290, 0.7978846
      %v2311 = vmul.f32 %v2291, 0.7978846
      %v2312 = vmul.f32 %v2292, 0.7978846
      %v2313 = vmul.f32 %v2293, 0.7978846
      %v2314 = vmul.f32 %v2294, 0.7978846
      %v2315 = vmul.f32 %v2295, 0.7978846
      %v2316 = vmul.f32 %v2296, 0.7978846
      %v2317 = vmul.f32 %v2297, 0.7978846
      %v2318 = vmul.f32 %v2298, 0.7978846
      %v2319 = vmul.f32 %v2299, 0.7978846
      %v2320 = vtanh.pop %v2300
      %v2321 = vtanh.pop %v2301
      %v2322 = vtanh.pop %v2302
      %v2323 = vtanh.pop %v2303
      %v2324 = vtanh.pop %v2304
      %v2325 = vtanh.pop %v2305
      %v2326 = vtanh.pop %v2306
      %v2327 = vtanh.pop %v2307
      %v2328 = vtanh.pop %v2308
      %v2329 = vtanh.pop %v2309
      %v2330 = vtanh.pop %v2310
      %v2331 = vtanh.pop %v2311
      %v2332 = vtanh.pop %v2312
      %v2333 = vtanh.pop %v2313
      %v2334 = vtanh.pop %v2314
      %v2335 = vtanh.pop %v2315
      %v2336 = vtanh.pop %v2316
      %v2337 = vtanh.pop %v2317
      %v2338 = vtanh.pop %v2318
      %v2339 = vtanh.pop %v2319
      %v2340 = vadd.f32 %v2320, 1.0
      %v2341 = vadd.f32 %v2321, 1.0
      %v2342 = vadd.f32 %v2322, 1.0
      %v2343 = vadd.f32 %v2323, 1.0
      %v2344 = vadd.f32 %v2324, 1.0
      %v2345 = vadd.f32 %v2325, 1.0
      %v2346 = vadd.f32 %v2326, 1.0
      %v2347 = vadd.f32 %v2327, 1.0
      %v2348 = vadd.f32 %v2328, 1.0
      %v2349 = vadd.f32 %v2329, 1.0
      %v2350 = vadd.f32 %v2330, 1.0
      %v2351 = vadd.f32 %v2331, 1.0
      %v2352 = vadd.f32 %v2332, 1.0
      %v2353 = vadd.f32 %v2333, 1.0
      %v2354 = vadd.f32 %v2334, 1.0
      %v2355 = vadd.f32 %v2335, 1.0
      %v2356 = vadd.f32 %v2336, 1.0
      %v2357 = vadd.f32 %v2337, 1.0
      %v2358 = vadd.f32 %v2338, 1.0
      %v2359 = vadd.f32 %v2339, 1.0
      %v2360 = vmul.f32 %v2340, 0.5
      %v2361 = vmul.f32 %v2341, 0.5
      %v2362 = vmul.f32 %v2342, 0.5
      %v2363 = vmul.f32 %v2343, 0.5
      %v2364 = vmul.f32 %v2344, 0.5
      %v2365 = vmul.f32 %v2345, 0.5
      %v2366 = vmul.f32 %v2346, 0.5
      %v2367 = vmul.f32 %v2347, 0.5
      %v2368 = vmul.f32 %v2348, 0.5
      %v2369 = vmul.f32 %v2349, 0.5
      %v2370 = vmul.f32 %v2350, 0.5
      %v2371 = vmul.f32 %v2351, 0.5
      %v2372 = vmul.f32 %v2352, 0.5
      %v2373 = vmul.f32 %v2353, 0.5
      %v2374 = vmul.f32 %v2354, 0.5
      %v2375 = vmul.f32 %v2355, 0.5
      %v2376 = vmul.f32 %v2356, 0.5
      %v2377 = vmul.f32 %v2357, 0.5
      %v2378 = vmul.f32 %v2358, 0.5
      %v2379 = vmul.f32 %v2359, 0.5
      %v2380 = vmul.f32 %v2200, %v2360
      %v2381 = vmul.f32 %v2201, %v2361
      %v2382 = vmul.f32 %v2202, %v2362
      %v2383 = vmul.f32 %v2203, %v2363
      %v2384 = vmul.f32 %v2204, %v2364
      %v2385 = vmul.f32 %v2205, %v2365
      %v2386 = vmul.f32 %v2206, %v2366
      %v2387 = vmul.f32 %v2207, %v2367
      %v2388 = vmul.f32 %v2208, %v2368
      %v2389 = vmul.f32 %v2209, %v2369
      %v2390 = vmul.f32 %v2210, %v2370
      %v2391 = vmul.f32 %v2211, %v2371
      %v2392 = vmul.f32 %v2212, %v2372
      %v2393 = vmul.f32 %v2213, %v2373
      %v2394 = vmul.f32 %v2214, %v2374
      %v2395 = vmul.f32 %v2215, %v2375
      %v2396 = vmul.f32 %v2216, %v2376
      %v2397 = vmul.f32 %v2217, %v2377
      %v2398 = vmul.f32 %v2218, %v2378
      %v2399 = vmul.f32 %v2219, %v2379
      %v2400 = vld [vmem:[%s11] sm:$0xff]
      %v2401 = vld [vmem:[%s11 + $0x8] sm:$0xff]
      %v2402 = vld [vmem:[%s11 + $0x10] sm:$0xff]
      %s2403 = scalar_lea.vmem %s11, 24
      %v2404 = vld [vmem:[%s2403] sm:$0xff]
      %v2405 = vld [vmem:[%s2403 + $0x8] sm:$0xff]
      %v2406 = vld [vmem:[%s2403 + $0x10] sm:$0xff]
      %v2408 = vsel %vm1637, %v2380, 0
      %v2411 = vsel %vm1637, %v2381, 0
      %v2414 = vsel %vm1637, %v2382, 0
      %v2417 = vsel %vm1637, %v2383, 0
      %v2420 = vsel %vm1637, %v2384, 0
      %v2423 = vsel %vm1637, %v2385, 0
      %v2426 = vsel %vm1637, %v2386, 0
      %v2429 = vsel %vm1637, %v2387, 0
      %v2432 = vsel %vm1637, %v2388, 0
      %v2435 = vsel %vm1637, %v2389, 0
      %v2438 = vsel %vm1637, %v2390, 0
      %v2441 = vsel %vm1637, %v2391, 0
      %v2444 = vsel %vm1637, %v2392, 0
      %v2447 = vsel %vm1637, %v2393, 0
      %v2450 = vsel %vm1637, %v2394, 0
      %v2453 = vsel %vm1637, %v2395, 0
      %v2456 = vsel %vm1637, %v2396, 0
      %v2459 = vsel %vm1637, %v2397, 0
      %v2462 = vsel %vm1637, %v2398, 0
      %v2465 = vsel %vm1637, %v2399, 0
      %2467 = vmatprep.subr.mxu0 0.0
      %2468 = vmatpush1.msra.mxu0 %v2404
      %2469 = vmatprep.subr.mxu0 0.0
      %2470 = vmatpush1.msra.mxu0 %v2405
      %2471 = vmatprep.subr.mxu0 0.0
      %2472 = vmatpush1.msra.mxu0 %v2406
      %2473 = vmatprep.subr.mxu0 0.0
      %2474 = vmatpush1.msra.mxu0 0.0
      %2475 = vmatprep.subr.mxu0 0.0
      %2476 = vmatpush1.msra.mxu0 0.0
      %2477 = vmatprep.subr.mxu0 0.0
      %2478 = vmatpush1.msra.mxu0 0.0
      %2479 = vmatprep.subr.mxu0 0.0
      %2480 = vmatpush1.msra.mxu0 0.0
      %2481 = vmatprep.subr.mxu0 0.0
      %2482 = vmatpush1.msra.mxu0 0.0
      %2483 = vmatprep.subr.mxu0 0.0
      %2484 = vmatpush1.msra.mxu0 0.0
      %2485 = vmatprep.subr.mxu0 0.0
      %2486 = vmatpush1.msra.mxu0 0.0
      %2487 = vmatprep.subr.mxu0 0.0
      %2488 = vmatpush1.msra.mxu0 0.0
      %2489 = vmatprep.subr.mxu0 0.0
      %2490 = vmatpush1.msra.mxu0 0.0
      %2491 = vmatprep.subr.mxu0 0.0
      %2492 = vmatpush1.msra.mxu0 0.0
      %2493 = vmatprep.subr.mxu0 0.0
      %2494 = vmatpush1.msra.mxu0 0.0
      %2495 = vmatprep.subr.mxu0 0.0
      %2496 = vmatpush1.msra.mxu0 0.0
      %2497 = vmatprep.subr.mxu0 0.0
      %2498 = vmatpush1.msra.mxu0 0.0
      %2499 = vmatprep.subr.mxu0 0.0
      %2500 = vmatpush1.msra.mxu0 0.0
      %2501 = vmatprep.subr.mxu0 0.0
      %2502 = vmatpush1.msra.mxu0 0.0
      %2503 = vmatprep.subr.mxu0 0.0
      %2504 = vmatpush1.msra.mxu0 0.0
      %2505 = vmatprep.subr.mxu0 0.0
      %2506 = vmatpush1.msra.mxu0 0.0
      %2507 = vmatprep.subr.mxu0 0.0
      %2508 = vmatpush1.msra.mxu0 0.0
      %2509 = vmatprep.subr.mxu0 0.0
      %2510 = vmatpush1.msra.mxu0 0.0
      %2511 = vmatprep.subr.mxu0 0.0
      %2512 = vmatpush1.msra.mxu0 0.0
      %2513 = vmatprep.subr.mxu0 0.0
      %2514 = vmatpush1.msra.mxu0 0.0
      %2515 = vmatprep.subr.mxu0 0.0
      %2516 = vmatpush1.msra.mxu0 0.0
      %2517 = vmatprep.subr.mxu0 0.0
      %2518 = vmatpush1.msra.mxu0 0.0
      %2519 = vmatprep.subr.mxu0 0.0
      %2520 = vmatpush1.msra.mxu0 0.0
      %2521 = vmatprep.subr.mxu0 0.0
      %2522 = vmatpush1.msra.mxu0 0.0
      %2523 = vmatprep.subr.mxu0 0.0
      %2524 = vmatpush1.msra.mxu0 0.0
      %2525 = vmatprep.subr.mxu0 0.0
      %2526 = vmatpush1.msra.mxu0 0.0
      %2527 = vmatprep.subr.mxu0 0.0
      %2528 = vmatpush1.msra.mxu0 0.0
      %2529 = vmatprep.subr.mxu0 0.0
      %2530 = vmatpush1.msra.mxu0 0.0
      %2531 = vmatprep.mubr.f32.mxu0 0.0
      %2532 = vmatmul.mubr.f32.gmra.mrb[0].mxu0 %v2408
      %v2533 = vpop.f32.mrb[0].mxu0
      %v2534 = vadd.f32 0.0, %v2533
      %v2535 = vpop.f32.mrb[0].mxu0
      %2536 = vmatprep.mubr.f32.mxu0 0.0
      %2537 = vmatmul.mubr.f32.gmra.mrb[0].mxu0 %v2411
      %v2538 = vpop.f32.mrb[0].mxu0
      %v2539 = vadd.f32 0.0, %v2538
      %v2540 = vpop.f32.mrb[0].mxu0
      %2541 = vmatprep.mubr.f32.mxu0 0.0
      %2542 = vmatmul.mubr.f32.gmra.mrb[0].mxu0 %v2414
      %v2543 = vpop.f32.mrb[0].mxu0
      %v2544 = vadd.f32 0.0, %v2543
      %v2545 = vpop.f32.mrb[0].mxu0
      %2546 = vmatprep.mubr.f32.mxu0 0.0
      %2547 = vmatmul.mubr.f32.gmra.mrb[0].mxu0 %v2417
      %v2548 = vpop.f32.mrb[0].mxu0
      %v2549 = vadd.f32 0.0, %v2548
      %v2550 = vpop.f32.mrb[0].mxu0
      %2551 = vmatprep.mubr.f32.mxu0 0.0
      %2552 = vmatmul.mubr.f32.gmra.mrb[0].mxu0 %v2420
      %v2553 = vpop.f32.mrb[0].mxu0
      %v2554 = vadd.f32 0.0, %v2553
      %v2555 = vpop.f32.mrb[0].mxu0
      %2556 = vmatprep.mubr.f32.mxu0 0.0
      %2557 = vmatmul.mubr.f32.gmra.mrb[0].mxu0 %v2423
      %v2558 = vpop.f32.mrb[0].mxu0
      %v2559 = vadd.f32 0.0, %v2558
      %v2560 = vpop.f32.mrb[0].mxu0
      %2561 = vmatprep.mubr.f32.mxu0 0.0
      %2562 = vmatmul.mubr.f32.gmra.mrb[0].mxu0 %v2426
      %v2563 = vpop.f32.mrb[0].mxu0
      %v2564 = vadd.f32 0.0, %v2563
      %v2565 = vpop.f32.mrb[0].mxu0
      %2566 = vmatprep.mubr.f32.mxu0 0.0
      %2567 = vmatmul.mubr.f32.gmra.mrb[0].mxu0 %v2429
      %v2568 = vpop.f32.mrb[0].mxu0
      %v2569 = vadd.f32 0.0, %v2568
      %v2570 = vpop.f32.mrb[0].mxu0
      %2571 = vmatprep.mubr.f32.mxu0 0.0
      %2572 = vmatmul.mubr.f32.gmra.mrb[0].mxu0 %v2432
      %v2573 = vpop.f32.mrb[0].mxu0
      %v2574 = vadd.f32 0.0, %v2573
      %v2575 = vpop.f32.mrb[0].mxu0
      %2576 = vmatprep.mubr.f32.mxu0 0.0
      %2577 = vmatmul.mubr.f32.gmra.mrb[0].mxu0 %v2435
      %v2578 = vpop.f32.mrb[0].mxu0
      %v2579 = vadd.f32 0.0, %v2578
      %v2580 = vpop.f32.mrb[0].mxu0
      %2581 = vmatprep.mubr.f32.mxu0 0.0
      %2582 = vmatmul.mubr.f32.gmra.mrb[0].mxu0 %v2438
      %v2583 = vpop.f32.mrb[0].mxu0
      %v2584 = vadd.f32 0.0, %v2583
      %v2585 = vpop.f32.mrb[0].mxu0
      %2586 = vmatprep.mubr.f32.mxu0 0.0
      %2587 = vmatmul.mubr.f32.gmra.mrb[0].mxu0 %v2441
      %v2588 = vpop.f32.mrb[0].mxu0
      %v2589 = vadd.f32 0.0, %v2588
      %v2590 = vpop.f32.mrb[0].mxu0
      %2591 = vmatprep.mubr.f32.mxu0 0.0
      %2592 = vmatmul.mubr.f32.gmra.mrb[0].mxu0 %v2444
      %v2593 = vpop.f32.mrb[0].mxu0
      %v2594 = vadd.f32 0.0, %v2593
      %v2595 = vpop.f32.mrb[0].mxu0
      %2596 = vmatprep.mubr.f32.mxu0 0.0
      %2597 = vmatmul.mubr.f32.gmra.mrb[0].mxu0 %v2447
      %v2598 = vpop.f32.mrb[0].mxu0
      %v2599 = vadd.f32 0.0, %v2598
      %v2600 = vpop.f32.mrb[0].mxu0
      %2601 = vmatprep.mubr.f32.mxu0 0.0
      %2602 = vmatmul.mubr.f32.gmra.mrb[0].mxu0 %v2450
      %v2603 = vpop.f32.mrb[0].mxu0
      %v2604 = vadd.f32 0.0, %v2603
      %v2605 = vpop.f32.mrb[0].mxu0
      %2606 = vmatprep.mubr.f32.mxu0 0.0
      %2607 = vmatmul.mubr.f32.gmra.mrb[0].mxu0 %v2453
      %v2608 = vpop.f32.mrb[0].mxu0
      %v2609 = vadd.f32 0.0, %v2608
      %v2610 = vpop.f32.mrb[0].mxu0
      %2611 = vmatprep.mubr.f32.mxu0 0.0
      %2612 = vmatmul.mubr.f32.gmra.mrb[0].mxu0 %v2456
      %v2613 = vpop.f32.mrb[0].mxu0
      %v2614 = vadd.f32 0.0, %v2613
      %v2615 = vpop.f32.mrb[0].mxu0
      %2616 = vmatprep.mubr.f32.mxu0 0.0
      %2617 = vmatmul.mubr.f32.gmra.mrb[0].mxu0 %v2459
      %v2618 = vpop.f32.mrb[0].mxu0
      %v2619 = vadd.f32 0.0, %v2618
      %v2620 = vpop.f32.mrb[0].mxu0
      %2621 = vmatprep.mubr.f32.mxu0 0.0
      %2622 = vmatmul.mubr.f32.gmra.mrb[0].mxu0 %v2462
      %v2623 = vpop.f32.mrb[0].mxu0
      %v2624 = vadd.f32 0.0, %v2623
      %v2625 = vpop.f32.mrb[0].mxu0
      %2626 = vmatprep.mubr.f32.mxu0 0.0
      %2627 = vmatmul.mubr.f32.gmra.mrb[0].mxu0 %v2465
      %v2628 = vpop.f32.mrb[0].mxu0
      %v2629 = vadd.f32 0.0, %v2628
      %v2630 = vpop.f32.mrb[0].mxu0
      %2631 = vdwg.mxu0
      %v2633 = vsel %vm1637, %v2140, 0
      %v2636 = vsel %vm1637, %v2141, 0
      %v2639 = vsel %vm1637, %v2142, 0
      %v2642 = vsel %vm1637, %v2143, 0
      %v2645 = vsel %vm1637, %v2144, 0
      %v2648 = vsel %vm1637, %v2145, 0
      %v2651 = vsel %vm1637, %v2146, 0
      %v2654 = vsel %vm1637, %v2147, 0
      %v2657 = vsel %vm1637, %v2148, 0
      %v2660 = vsel %vm1637, %v2149, 0
      %v2663 = vsel %vm1637, %v2150, 0
      %v2666 = vsel %vm1637, %v2151, 0
      %v2669 = vsel %vm1637, %v2152, 0
      %v2672 = vsel %vm1637, %v2153, 0
      %v2675 = vsel %vm1637, %v2154, 0
      %v2678 = vsel %vm1637, %v2155, 0
      %v2681 = vsel %vm1637, %v2156, 0
      %v2684 = vsel %vm1637, %v2157, 0
      %v2687 = vsel %vm1637, %v2158, 0
      %v2690 = vsel %vm1637, %v2159, 0
      %2692 = vmatprep.subr.mxu0 0.0
      %2693 = vmatpush1.msra.mxu0 %v2400
      %2694 = vmatprep.subr.mxu0 0.0
      %2695 = vmatpush1.msra.mxu0 %v2401
      %2696 = vmatprep.subr.mxu0 0.0
      %2697 = vmatpush1.msra.mxu0 %v2402
      %2698 = vmatprep.subr.mxu0 0.0
      %2699 = vmatpush1.msra.mxu0 0.0
      %2700 = vmatprep.subr.mxu0 0.0
      %2701 = vmatpush1.msra.mxu0 0.0
      %2702 = vmatprep.subr.mxu0 0.0
      %2703 = vmatpush1.msra.mxu0 0.0
      %2704 = vmatprep.subr.mxu0 0.0
      %2705 = vmatpush1.msra.mxu0 0.0
      %2706 = vmatprep.subr.mxu0 0.0
      %2707 = vmatpush1.msra.mxu0 0.0
      %2708 = vmatprep.subr.mxu0 0.0
      %2709 = vmatpush1.msra.mxu0 0.0
      %2710 = vmatprep.subr.mxu0 0.0
      %2711 = vmatpush1.msra.mxu0 0.0
      %2712 = vmatprep.subr.mxu0 0.0
      %2713 = vmatpush1.msra.mxu0 0.0
      %2714 = vmatprep.subr.mxu0 0.0
      %2715 = vmatpush1.msra.mxu0 0.0
      %2716 = vmatprep.subr.mxu0 0.0
      %2717 = vmatpush1.msra.mxu0 0.0
      %2718 = vmatprep.subr.mxu0 0.0
      %2719 = vmatpush1.msra.mxu0 0.0
      %2720 = vmatprep.subr.mxu0 0.0
      %2721 = vmatpush1.msra.mxu0 0.0
      %2722 = vmatprep.subr.mxu0 0.0
      %2723 = vmatpush1.msra.mxu0 0.0
      %2724 = vmatprep.subr.mxu0 0.0
      %2725 = vmatpush1.msra.mxu0 0.0
      %2726 = vmatprep.subr.mxu0 0.0
      %2727 = vmatpush1.msra.mxu0 0.0
      %2728 = vmatprep.subr.mxu0 0.0
      %2729 = vmatpush1.msra.mxu0 0.0
      %2730 = vmatprep.subr.mxu0 0.0
      %2731 = vmatpush1.msra.mxu0 0.0
      %2732 = vmatprep.subr.mxu0 0.0
      %2733 = vmatpush1.msra.mxu0 0.0
      %2734 = vmatprep.subr.mxu0 0.0
      %2735 = vmatpush1.msra.mxu0 0.0
      %2736 = vmatprep.subr.mxu0 0.0
      %2737 = vmatpush1.msra.mxu0 0.0
      %2738 = vmatprep.subr.mxu0 0.0
      %2739 = vmatpush1.msra.mxu0 0.0
      %2740 = vmatprep.subr.mxu0 0.0
      %2741 = vmatpush1.msra.mxu0 0.0
      %2742 = vmatprep.subr.mxu0 0.0
      %2743 = vmatpush1.msra.mxu0 0.0
      %2744 = vmatprep.subr.mxu0 0.0
      %2745 = vmatpush1.msra.mxu0 0.0
      %2746 = vmatprep.subr.mxu0 0.0
      %2747 = vmatpush1.msra.mxu0 0.0
      %2748 = vmatprep.subr.mxu0 0.0
      %2749 = vmatpush1.msra.mxu0 0.0
      %2750 = vmatprep.subr.mxu0 0.0
      %2751 = vmatpush1.msra.mxu0 0.0
      %2752 = vmatprep.subr.mxu0 0.0
      %2753 = vmatpush1.msra.mxu0 0.0
      %2754 = vmatprep.subr.mxu0 0.0
      %2755 = vmatpush1.msra.mxu0 0.0
      %2756 = vmatprep.mubr.f32.mxu0 0.0
      %2757 = vmatmul.mubr.f32.gmra.mrb[0].mxu0 %v2633
      %v2758 = vpop.f32.mrb[0].mxu0
      %v2759 = vadd.f32 %v2534, %v2758
      %v2760 = vpop.f32.mrb[0].mxu0
      %2761 = vmatprep.mubr.f32.mxu0 0.0
      %2762 = vmatmul.mubr.f32.gmra.mrb[0].mxu0 %v2636
      %v2763 = vpop.f32.mrb[0].mxu0
      %v2764 = vadd.f32 %v2539, %v2763
      %v2765 = vpop.f32.mrb[0].mxu0
      %2766 = vmatprep.mubr.f32.mxu0 0.0
      %2767 = vmatmul.mubr.f32.gmra.mrb[0].mxu0 %v2639
      %v2768 = vpop.f32.mrb[0].mxu0
      %v2769 = vadd.f32 %v2544, %v2768
      %v2770 = vpop.f32.mrb[0].mxu0
      %2771 = vmatprep.mubr.f32.mxu0 0.0
      %2772 = vmatmul.mubr.f32.gmra.mrb[0].mxu0 %v2642
      %v2773 = vpop.f32.mrb[0].mxu0
      %v2774 = vadd.f32 %v2549, %v2773
      %v2775 = vpop.f32.mrb[0].mxu0
      %2776 = vmatprep.mubr.f32.mxu0 0.0
      %2777 = vmatmul.mubr.f32.gmra.mrb[0].mxu0 %v2645
      %v2778 = vpop.f32.mrb[0].mxu0
      %v2779 = vadd.f32 %v2554, %v2778
      %v2780 = vpop.f32.mrb[0].mxu0
      %2781 = vmatprep.mubr.f32.mxu0 0.0
      %2782 = vmatmul.mubr.f32.gmra.mrb[0].mxu0 %v2648
      %v2783 = vpop.f32.mrb[0].mxu0
      %v2784 = vadd.f32 %v2559, %v2783
      %v2785 = vpop.f32.mrb[0].mxu0
      %2786 = vmatprep.mubr.f32.mxu0 0.0
      %2787 = vmatmul.mubr.f32.gmra.mrb[0].mxu0 %v2651
      %v2788 = vpop.f32.mrb[0].mxu0
      %v2789 = vadd.f32 %v2564, %v2788
      %v2790 = vpop.f32.mrb[0].mxu0
      %2791 = vmatprep.mubr.f32.mxu0 0.0
      %2792 = vmatmul.mubr.f32.gmra.mrb[0].mxu0 %v2654
      %v2793 = vpop.f32.mrb[0].mxu0
      %v2794 = vadd.f32 %v2569, %v2793
      %v2795 = vpop.f32.mrb[0].mxu0
      %2796 = vmatprep.mubr.f32.mxu0 0.0
      %2797 = vmatmul.mubr.f32.gmra.mrb[0].mxu0 %v2657
      %v2798 = vpop.f32.mrb[0].mxu0
      %v2799 = vadd.f32 %v2574, %v2798
      %v2800 = vpop.f32.mrb[0].mxu0
      %2801 = vmatprep.mubr.f32.mxu0 0.0
      %2802 = vmatmul.mubr.f32.gmra.mrb[0].mxu0 %v2660
      %v2803 = vpop.f32.mrb[0].mxu0
      %v2804 = vadd.f32 %v2579, %v2803
      %v2805 = vpop.f32.mrb[0].mxu0
      %2806 = vmatprep.mubr.f32.mxu0 0.0
      %2807 = vmatmul.mubr.f32.gmra.mrb[0].mxu0 %v2663
      %v2808 = vpop.f32.mrb[0].mxu0
      %v2809 = vadd.f32 %v2584, %v2808
      %v2810 = vpop.f32.mrb[0].mxu0
      %2811 = vmatprep.mubr.f32.mxu0 0.0
      %2812 = vmatmul.mubr.f32.gmra.mrb[0].mxu0 %v2666
      %v2813 = vpop.f32.mrb[0].mxu0
      %v2814 = vadd.f32 %v2589, %v2813
      %v2815 = vpop.f32.mrb[0].mxu0
      %2816 = vmatprep.mubr.f32.mxu0 0.0
      %2817 = vmatmul.mubr.f32.gmra.mrb[0].mxu0 %v2669
      %v2818 = vpop.f32.mrb[0].mxu0
      %v2819 = vadd.f32 %v2594, %v2818
      %v2820 = vpop.f32.mrb[0].mxu0
      %2821 = vmatprep.mubr.f32.mxu0 0.0
      %2822 = vmatmul.mubr.f32.gmra.mrb[0].mxu0 %v2672
      %v2823 = vpop.f32.mrb[0].mxu0
      %v2824 = vadd.f32 %v2599, %v2823
      %v2825 = vpop.f32.mrb[0].mxu0
      %2826 = vmatprep.mubr.f32.mxu0 0.0
      %2827 = vmatmul.mubr.f32.gmra.mrb[0].mxu0 %v2675
      %v2828 = vpop.f32.mrb[0].mxu0
      %v2829 = vadd.f32 %v2604, %v2828
      %v2830 = vpop.f32.mrb[0].mxu0
      %2831 = vmatprep.mubr.f32.mxu0 0.0
      %2832 = vmatmul.mubr.f32.gmra.mrb[0].mxu0 %v2678
      %v2833 = vpop.f32.mrb[0].mxu0
      %v2834 = vadd.f32 %v2609, %v2833
      %v2835 = vpop.f32.mrb[0].mxu0
      %2836 = vmatprep.mubr.f32.mxu0 0.0
      %2837 = vmatmul.mubr.f32.gmra.mrb[0].mxu0 %v2681
      %v2838 = vpop.f32.mrb[0].mxu0
      %v2839 = vadd.f32 %v2614, %v2838
      %v2840 = vpop.f32.mrb[0].mxu0
      %2841 = vmatprep.mubr.f32.mxu0 0.0
      %2842 = vmatmul.mubr.f32.gmra.mrb[0].mxu0 %v2684
      %v2843 = vpop.f32.mrb[0].mxu0
      %v2844 = vadd.f32 %v2619, %v2843
      %v2845 = vpop.f32.mrb[0].mxu0
      %2846 = vmatprep.mubr.f32.mxu0 0.0
      %2847 = vmatmul.mubr.f32.gmra.mrb[0].mxu0 %v2687
      %v2848 = vpop.f32.mrb[0].mxu0
      %v2849 = vadd.f32 %v2624, %v2848
      %v2850 = vpop.f32.mrb[0].mxu0
      %2851 = vmatprep.mubr.f32.mxu0 0.0
      %2852 = vmatmul.mubr.f32.gmra.mrb[0].mxu0 %v2690
      %v2853 = vpop.f32.mrb[0].mxu0
      %v2854 = vadd.f32 %v2629, %v2853
      %v2855 = vpop.f32.mrb[0].mxu0
      %2856 = vdwg.mxu0
      %s2857 = scalar_lea.vmem %s11, 48
      %v2858 = vld [vmem:[%s2857] sm:$0xff]
      %v2859 = vld [vmem:[%s2857 + $0x8] sm:$0xff]
      %v2860 = vld [vmem:[%s2857 + $0x10] sm:$0xff]
      %vm2861 = vcmask 1046528
      %v2862 = vrot.slane %v2140, 1
      %v2863 = vrot.slane %v2141, 1
      %v2864 = vsel %vm2861, %v2862, %v2863
      %v2865 = vrot.slane %v2142, 1
      %v2866 = vsel %vm2861, %v2863, %v2865
      %v2867 = vrot.slane %v2143, 1
      %v2868 = vsel %vm2861, %v2865, %v2867
      %v2869 = vrot.slane %v2144, 1
      %v2870 = vsel %vm2861, %v2867, %v2869
      %v2871 = vrot.slane %v2145, 1
      %v2872 = vsel %vm2861, %v2869, %v2871
      %v2873 = vrot.slane %v2146, 1
      %v2874 = vsel %vm2861, %v2871, %v2873
      %v2875 = vrot.slane %v2147, 1
      %v2876 = vsel %vm2861, %v2873, %v2875
      %v2877 = vrot.slane %v2148, 1
      %v2878 = vsel %vm2861, %v2875, %v2877
      %v2879 = vrot.slane %v2149, 1
      %v2880 = vsel %vm2861, %v2877, %v2879
      %v2881 = vrot.slane %v2150, 1
      %v2882 = vsel %vm2861, %v2879, %v2881
      %v2883 = vrot.slane %v2151, 1
      %v2884 = vsel %vm2861, %v2881, %v2883
      %v2885 = vrot.slane %v2152, 1
      %v2886 = vsel %vm2861, %v2883, %v2885
      %v2887 = vrot.slane %v2153, 1
      %v2888 = vsel %vm2861, %v2885, %v2887
      %v2889 = vrot.slane %v2154, 1
      %v2890 = vsel %vm2861, %v2887, %v2889
      %v2891 = vrot.slane %v2155, 1
      %v2892 = vsel %vm2861, %v2889, %v2891
      %v2893 = vrot.slane %v2156, 1
      %v2894 = vsel %vm2861, %v2891, %v2893
      %v2895 = vrot.slane %v2157, 1
      %v2896 = vsel %vm2861, %v2893, %v2895
      %v2897 = vrot.slane %v2158, 1
      %v2898 = vsel %vm2861, %v2895, %v2897
      %v2899 = vrot.slane %v2159, 1
      %v2900 = vsel %vm2861, %v2897, %v2899
      %v2901 = vsel %vm1637, %v2864, 0
      %v2903 = vsel %vm1637, %v2866, 0
      %v2905 = vsel %vm1637, %v2868, 0
      %v2907 = vsel %vm1637, %v2870, 0
      %v2909 = vsel %vm1637, %v2872, 0
      %v2911 = vsel %vm1637, %v2874, 0
      %v2913 = vsel %vm1637, %v2876, 0
      %v2915 = vsel %vm1637, %v2878, 0
      %v2917 = vsel %vm1637, %v2880, 0
      %v2919 = vsel %vm1637, %v2882, 0
      %v2921 = vsel %vm1637, %v2884, 0
      %v2923 = vsel %vm1637, %v2886, 0
      %v2925 = vsel %vm1637, %v2888, 0
      %v2927 = vsel %vm1637, %v2890, 0
      %v2929 = vsel %vm1637, %v2892, 0
      %v2931 = vsel %vm1637, %v2894, 0
      %v2933 = vsel %vm1637, %v2896, 0
      %v2935 = vsel %vm1637, %v2898, 0
      %v2937 = vsel %vm1637, %v2900, 0
      %v2939 = vsel %vm1637, %v2899, 0
      %2941 = vmatprep.subr.mxu0 0.0
      %2942 = vmatpush1.msra.mxu0 %v2858
      %2943 = vmatprep.subr.mxu0 0.0
      %2944 = vmatpush1.msra.mxu0 %v2859
      %2945 = vmatprep.subr.mxu0 0.0
      %2946 = vmatpush1.msra.mxu0 %v2860
      %2947 = vmatprep.subr.mxu0 0.0
      %2948 = vmatpush1.msra.mxu0 0.0
      %2949 = vmatprep.subr.mxu0 0.0
      %2950 = vmatpush1.msra.mxu0 0.0
      %2951 = vmatprep.subr.mxu0 0.0
      %2952 = vmatpush1.msra.mxu0 0.0
      %2953 = vmatprep.subr.mxu0 0.0
      %2954 = vmatpush1.msra.mxu0 0.0
      %2955 = vmatprep.subr.mxu0 0.0
      %2956 = vmatpush1.msra.mxu0 0.0
      %2957 = vmatprep.subr.mxu0 0.0
      %2958 = vmatpush1.msra.mxu0 0.0
      %2959 = vmatprep.subr.mxu0 0.0
      %2960 = vmatpush1.msra.mxu0 0.0
      %2961 = vmatprep.subr.mxu0 0.0
      %2962 = vmatpush1.msra.mxu0 0.0
      %2963 = vmatprep.subr.mxu0 0.0
      %2964 = vmatpush1.msra.mxu0 0.0
      %2965 = vmatprep.subr.mxu0 0.0
      %2966 = vmatpush1.msra.mxu0 0.0
      %2967 = vmatprep.subr.mxu0 0.0
      %2968 = vmatpush1.msra.mxu0 0.0
      %2969 = vmatprep.subr.mxu0 0.0
      %2970 = vmatpush1.msra.mxu0 0.0
      %2971 = vmatprep.subr.mxu0 0.0
      %2972 = vmatpush1.msra.mxu0 0.0
      %2973 = vmatprep.subr.mxu0 0.0
      %2974 = vmatpush1.msra.mxu0 0.0
      %2975 = vmatprep.subr.mxu0 0.0
      %2976 = vmatpush1.msra.mxu0 0.0
      %2977 = vmatprep.subr.mxu0 0.0
      %2978 = vmatpush1.msra.mxu0 0.0
      %2979 = vmatprep.subr.mxu0 0.0
      %2980 = vmatpush1.msra.mxu0 0.0
      %2981 = vmatprep.subr.mxu0 0.0
      %2982 = vmatpush1.msra.mxu0 0.0
      %2983 = vmatprep.subr.mxu0 0.0
      %2984 = vmatpush1.msra.mxu0 0.0
      %2985 = vmatprep.subr.mxu0 0.0
      %2986 = vmatpush1.msra.mxu0 0.0
      %2987 = vmatprep.subr.mxu0 0.0
      %2988 = vmatpush1.msra.mxu0 0.0
      %2989 = vmatprep.subr.mxu0 0.0
      %2990 = vmatpush1.msra.mxu0 0.0
      %2991 = vmatprep.subr.mxu0 0.0
      %2992 = vmatpush1.msra.mxu0 0.0
      %2993 = vmatprep.subr.mxu0 0.0
      %2994 = vmatpush1.msra.mxu0 0.0
      %2995 = vmatprep.subr.mxu0 0.0
      %2996 = vmatpush1.msra.mxu0 0.0
      %2997 = vmatprep.subr.mxu0 0.0
      %2998 = vmatpush1.msra.mxu0 0.0
      %2999 = vmatprep.subr.mxu0 0.0
      %3000 = vmatpush1.msra.mxu0 0.0
      %3001 = vmatprep.subr.mxu0 0.0
      %3002 = vmatpush1.msra.mxu0 0.0
      %3003 = vmatprep.subr.mxu0 0.0
      %3004 = vmatpush1.msra.mxu0 0.0
      %3005 = vmatprep.mubr.f32.mxu0 0.0
      %3006 = vmatmul.mubr.f32.gmra.mrb[0].mxu0 %v2901
      %v3007 = vpop.f32.mrb[0].mxu0
      %v3008 = vadd.f32 0.0, %v3007
      %v3009 = vpop.f32.mrb[0].mxu0
      %3010 = vmatprep.mubr.f32.mxu0 0.0
      %3011 = vmatmul.mubr.f32.gmra.mrb[0].mxu0 %v2903
      %v3012 = vpop.f32.mrb[0].mxu0
      %v3013 = vadd.f32 0.0, %v3012
      %v3014 = vpop.f32.mrb[0].mxu0
      %3015 = vmatprep.mubr.f32.mxu0 0.0
      %3016 = vmatmul.mubr.f32.gmra.mrb[0].mxu0 %v2905
      %v3017 = vpop.f32.mrb[0].mxu0
      %v3018 = vadd.f32 0.0, %v3017
      %v3019 = vpop.f32.mrb[0].mxu0
      %3020 = vmatprep.mubr.f32.mxu0 0.0
      %3021 = vmatmul.mubr.f32.gmra.mrb[0].mxu0 %v2907
      %v3022 = vpop.f32.mrb[0].mxu0
      %v3023 = vadd.f32 0.0, %v3022
      %v3024 = vpop.f32.mrb[0].mxu0
      %3025 = vmatprep.mubr.f32.mxu0 0.0
      %3026 = vmatmul.mubr.f32.gmra.mrb[0].mxu0 %v2909
      %v3027 = vpop.f32.mrb[0].mxu0
      %v3028 = vadd.f32 0.0, %v3027
      %v3029 = vpop.f32.mrb[0].mxu0
      %3030 = vmatprep.mubr.f32.mxu0 0.0
      %3031 = vmatmul.mubr.f32.gmra.mrb[0].mxu0 %v2911
      %v3032 = vpop.f32.mrb[0].mxu0
      %v3033 = vadd.f32 0.0, %v3032
      %v3034 = vpop.f32.mrb[0].mxu0
      %3035 = vmatprep.mubr.f32.mxu0 0.0
      %3036 = vmatmul.mubr.f32.gmra.mrb[0].mxu0 %v2913
      %v3037 = vpop.f32.mrb[0].mxu0
      %v3038 = vadd.f32 0.0, %v3037
      %v3039 = vpop.f32.mrb[0].mxu0
      %3040 = vmatprep.mubr.f32.mxu0 0.0
      %3041 = vmatmul.mubr.f32.gmra.mrb[0].mxu0 %v2915
      %v3042 = vpop.f32.mrb[0].mxu0
      %v3043 = vadd.f32 0.0, %v3042
      %v3044 = vpop.f32.mrb[0].mxu0
      %3045 = vmatprep.mubr.f32.mxu0 0.0
      %3046 = vmatmul.mubr.f32.gmra.mrb[0].mxu0 %v2917
      %v3047 = vpop.f32.mrb[0].mxu0
      %v3048 = vadd.f32 0.0, %v3047
      %v3049 = vpop.f32.mrb[0].mxu0
      %3050 = vmatprep.mubr.f32.mxu0 0.0
      %3051 = vmatmul.mubr.f32.gmra.mrb[0].mxu0 %v2919
      %v3052 = vpop.f32.mrb[0].mxu0
      %v3053 = vadd.f32 0.0, %v3052
      %v3054 = vpop.f32.mrb[0].mxu0
      %3055 = vmatprep.mubr.f32.mxu0 0.0
      %3056 = vmatmul.mubr.f32.gmra.mrb[0].mxu0 %v2921
      %v3057 = vpop.f32.mrb[0].mxu0
      %v3058 = vadd.f32 0.0, %v3057
      %v3059 = vpop.f32.mrb[0].mxu0
      %3060 = vmatprep.mubr.f32.mxu0 0.0
      %3061 = vmatmul.mubr.f32.gmra.mrb[0].mxu0 %v2923
      %v3062 = vpop.f32.mrb[0].mxu0
      %v3063 = vadd.f32 0.0, %v3062
      %v3064 = vpop.f32.mrb[0].mxu0
      %3065 = vmatprep.mubr.f32.mxu0 0.0
      %3066 = vmatmul.mubr.f32.gmra.mrb[0].mxu0 %v2925
      %v3067 = vpop.f32.mrb[0].mxu0
      %v3068 = vadd.f32 0.0, %v3067
      %v3069 = vpop.f32.mrb[0].mxu0
      %3070 = vmatprep.mubr.f32.mxu0 0.0
      %3071 = vmatmul.mubr.f32.gmra.mrb[0].mxu0 %v2927
      %v3072 = vpop.f32.mrb[0].mxu0
      %v3073 = vadd.f32 0.0, %v3072
      %v3074 = vpop.f32.mrb[0].mxu0
      %3075 = vmatprep.mubr.f32.mxu0 0.0
      %3076 = vmatmul.mubr.f32.gmra.mrb[0].mxu0 %v2929
      %v3077 = vpop.f32.mrb[0].mxu0
      %v3078 = vadd.f32 0.0, %v3077
      %v3079 = vpop.f32.mrb[0].mxu0
      %3080 = vmatprep.mubr.f32.mxu0 0.0
      %3081 = vmatmul.mubr.f32.gmra.mrb[0].mxu0 %v2931
      %v3082 = vpop.f32.mrb[0].mxu0
      %v3083 = vadd.f32 0.0, %v3082
      %v3084 = vpop.f32.mrb[0].mxu0
      %3085 = vmatprep.mubr.f32.mxu0 0.0
      %3086 = vmatmul.mubr.f32.gmra.mrb[0].mxu0 %v2933
      %v3087 = vpop.f32.mrb[0].mxu0
      %v3088 = vadd.f32 0.0, %v3087
      %v3089 = vpop.f32.mrb[0].mxu0
      %3090 = vmatprep.mubr.f32.mxu0 0.0
      %3091 = vmatmul.mubr.f32.gmra.mrb[0].mxu0 %v2935
      %v3092 = vpop.f32.mrb[0].mxu0
      %v3093 = vadd.f32 0.0, %v3092
      %v3094 = vpop.f32.mrb[0].mxu0
      %3095 = vmatprep.mubr.f32.mxu0 0.0
      %3096 = vmatmul.mubr.f32.gmra.mrb[0].mxu0 %v2937
      %v3097 = vpop.f32.mrb[0].mxu0
      %v3098 = vadd.f32 0.0, %v3097
      %v3099 = vpop.f32.mrb[0].mxu0
      %3100 = vmatprep.mubr.f32.mxu0 0.0
      %3101 = vmatmul.mubr.f32.gmra.mrb[0].mxu0 %v2939
      %v3102 = vpop.f32.mrb[0].mxu0
      %v3103 = vadd.f32 0.0, %v3102
      %v3104 = vpop.f32.mrb[0].mxu0
      %3105 = vdwg.mxu0
      %v3106 = vadd.f32 %v2759, %v3008
      %v3107 = vadd.f32 %v2764, %v3013
      %v3108 = vadd.f32 %v2769, %v3018
      %v3109 = vadd.f32 %v2774, %v3023
      %v3110 = vadd.f32 %v2779, %v3028
      %v3111 = vadd.f32 %v2784, %v3033
      %v3112 = vadd.f32 %v2789, %v3038
      %v3113 = vadd.f32 %v2794, %v3043
      %v3114 = vadd.f32 %v2799, %v3048
      %v3115 = vadd.f32 %v2804, %v3053
      %v3116 = vadd.f32 %v2809, %v3058
      %v3117 = vadd.f32 %v2814, %v3063
      %v3118 = vadd.f32 %v2819, %v3068
      %v3119 = vadd.f32 %v2824, %v3073
      %v3120 = vadd.f32 %v2829, %v3078
      %v3121 = vadd.f32 %v2834, %v3083
      %v3122 = vadd.f32 %v2839, %v3088
      %v3123 = vadd.f32 %v2844, %v3093
      %v3124 = vadd.f32 %v2849, %v3098
      %v3125 = vadd.f32 %v2854, %v3103
      %v3126 = vmul.f32 %v3106, %v3106
      %v3127 = vmul.f32 %v3107, %v3107
      %v3128 = vmul.f32 %v3108, %v3108
      %v3129 = vmul.f32 %v3109, %v3109
      %v3130 = vmul.f32 %v3110, %v3110
      %v3131 = vmul.f32 %v3111, %v3111
      %v3132 = vmul.f32 %v3112, %v3112
      %v3133 = vmul.f32 %v3113, %v3113
      %v3134 = vmul.f32 %v3114, %v3114
      %v3135 = vmul.f32 %v3115, %v3115
      %v3136 = vmul.f32 %v3116, %v3116
      %v3137 = vmul.f32 %v3117, %v3117
      %v3138 = vmul.f32 %v3118, %v3118
      %v3139 = vmul.f32 %v3119, %v3119
      %v3140 = vmul.f32 %v3120, %v3120
      %v3141 = vmul.f32 %v3121, %v3121
      %v3142 = vmul.f32 %v3122, %v3122
      %v3143 = vmul.f32 %v3123, %v3123
      %v3144 = vmul.f32 %v3124, %v3124
      %v3145 = vmul.f32 %v3125, %v3125
      %v3146 = vmul.f32 %v3106, %v3126
      %v3147 = vmul.f32 %v3107, %v3127
      %v3148 = vmul.f32 %v3108, %v3128
      %v3149 = vmul.f32 %v3109, %v3129
      %v3150 = vmul.f32 %v3110, %v3130
      %v3151 = vmul.f32 %v3111, %v3131
      %v3152 = vmul.f32 %v3112, %v3132
      %v3153 = vmul.f32 %v3113, %v3133
      %v3154 = vmul.f32 %v3114, %v3134
      %v3155 = vmul.f32 %v3115, %v3135
      %v3156 = vmul.f32 %v3116, %v3136
      %v3157 = vmul.f32 %v3117, %v3137
      %v3158 = vmul.f32 %v3118, %v3138
      %v3159 = vmul.f32 %v3119, %v3139
      %v3160 = vmul.f32 %v3120, %v3140
      %v3161 = vmul.f32 %v3121, %v3141
      %v3162 = vmul.f32 %v3122, %v3142
      %v3163 = vmul.f32 %v3123, %v3143
      %v3164 = vmul.f32 %v3124, %v3144
      %v3165 = vmul.f32 %v3125, %v3145
      %v3166 = vmul.f32 %v3146, 0.044715
      %v3167 = vmul.f32 %v3147, 0.044715
      %v3168 = vmul.f32 %v3148, 0.044715
      %v3169 = vmul.f32 %v3149, 0.044715
      %v3170 = vmul.f32 %v3150, 0.044715
      %v3171 = vmul.f32 %v3151, 0.044715
      %v3172 = vmul.f32 %v3152, 0.044715
      %v3173 = vmul.f32 %v3153, 0.044715
      %v3174 = vmul.f32 %v3154, 0.044715
      %v3175 = vmul.f32 %v3155, 0.044715
      %v3176 = vmul.f32 %v3156, 0.044715
      %v3177 = vmul.f32 %v3157, 0.044715
      %v3178 = vmul.f32 %v3158, 0.044715
      %v3179 = vmul.f32 %v3159, 0.044715
      %v3180 = vmul.f32 %v3160, 0.044715
      %v3181 = vmul.f32 %v3161, 0.044715
      %v3182 = vmul.f32 %v3162, 0.044715
      %v3183 = vmul.f32 %v3163, 0.044715
      %v3184 = vmul.f32 %v3164, 0.044715
      %v3185 = vmul.f32 %v3165, 0.044715
      %v3186 = vadd.f32 %v3106, %v3166
      %v3187 = vadd.f32 %v3107, %v3167
      %v3188 = vadd.f32 %v3108, %v3168
      %v3189 = vadd.f32 %v3109, %v3169
      %v3190 = vadd.f32 %v3110, %v3170
      %v3191 = vadd.f32 %v3111, %v3171
      %v3192 = vadd.f32 %v3112, %v3172
      %v3193 = vadd.f32 %v3113, %v3173
      %v3194 = vadd.f32 %v3114, %v3174
      %v3195 = vadd.f32 %v3115, %v3175
      %v3196 = vadd.f32 %v3116, %v3176
      %v3197 = vadd.f32 %v3117, %v3177
      %v3198 = vadd.f32 %v3118, %v3178
      %v3199 = vadd.f32 %v3119, %v3179
      %v3200 = vadd.f32 %v3120, %v3180
      %v3201 = vadd.f32 %v3121, %v3181
      %v3202 = vadd.f32 %v3122, %v3182
      %v3203 = vadd.f32 %v3123, %v3183
      %v3204 = vadd.f32 %v3124, %v3184
      %v3205 = vadd.f32 %v3125, %v3185
      %v3206 = vmul.f32 %v3186, 0.7978846
      %v3207 = vmul.f32 %v3187, 0.7978846
      %v3208 = vmul.f32 %v3188, 0.7978846
      %v3209 = vmul.f32 %v3189, 0.7978846
      %v3210 = vmul.f32 %v3190, 0.7978846
      %v3211 = vmul.f32 %v3191, 0.7978846
      %v3212 = vmul.f32 %v3192, 0.7978846
      %v3213 = vmul.f32 %v3193, 0.7978846
      %v3214 = vmul.f32 %v3194, 0.7978846
      %v3215 = vmul.f32 %v3195, 0.7978846
      %v3216 = vmul.f32 %v3196, 0.7978846
      %v3217 = vmul.f32 %v3197, 0.7978846
      %v3218 = vmul.f32 %v3198, 0.7978846
      %v3219 = vmul.f32 %v3199, 0.7978846
      %v3220 = vmul.f32 %v3200, 0.7978846
      %v3221 = vmul.f32 %v3201, 0.7978846
      %v3222 = vmul.f32 %v3202, 0.7978846
      %v3223 = vmul.f32 %v3203, 0.7978846
      %v3224 = vmul.f32 %v3204, 0.7978846
      %v3225 = vmul.f32 %v3205, 0.7978846
      %v3226 = vtanh.pop %v3206
      %v3227 = vtanh.pop %v3207
      %v3228 = vtanh.pop %v3208
      %v3229 = vtanh.pop %v3209
      %v3230 = vtanh.pop %v3210
      %v3231 = vtanh.pop %v3211
      %v3232 = vtanh.pop %v3212
      %v3233 = vtanh.pop %v3213
      %v3234 = vtanh.pop %v3214
      %v3235 = vtanh.pop %v3215
      %v3236 = vtanh.pop %v3216
      %v3237 = vtanh.pop %v3217
      %v3238 = vtanh.pop %v3218
      %v3239 = vtanh.pop %v3219
      %v3240 = vtanh.pop %v3220
      %v3241 = vtanh.pop %v3221
      %v3242 = vtanh.pop %v3222
      %v3243 = vtanh.pop %v3223
      %v3244 = vtanh.pop %v3224
      %v3245 = vtanh.pop %v3225
      %v3246 = vadd.f32 %v3226, 1.0
      %v3247 = vadd.f32 %v3227, 1.0
      %v3248 = vadd.f32 %v3228, 1.0
      %v3249 = vadd.f32 %v3229, 1.0
      %v3250 = vadd.f32 %v3230, 1.0
      %v3251 = vadd.f32 %v3231, 1.0
      %v3252 = vadd.f32 %v3232, 1.0
      %v3253 = vadd.f32 %v3233, 1.0
      %v3254 = vadd.f32 %v3234, 1.0
      %v3255 = vadd.f32 %v3235, 1.0
      %v3256 = vadd.f32 %v3236, 1.0
      %v3257 = vadd.f32 %v3237, 1.0
      %v3258 = vadd.f32 %v3238, 1.0
      %v3259 = vadd.f32 %v3239, 1.0
      %v3260 = vadd.f32 %v3240, 1.0
      %v3261 = vadd.f32 %v3241, 1.0
      %v3262 = vadd.f32 %v3242, 1.0
      %v3263 = vadd.f32 %v3243, 1.0
      %v3264 = vadd.f32 %v3244, 1.0
      %v3265 = vadd.f32 %v3245, 1.0
      %v3266 = vmul.f32 %v3246, 0.5
      %v3267 = vmul.f32 %v3247, 0.5
      %v3268 = vmul.f32 %v3248, 0.5
      %v3269 = vmul.f32 %v3249, 0.5
      %v3270 = vmul.f32 %v3250, 0.5
      %v3271 = vmul.f32 %v3251, 0.5
      %v3272 = vmul.f32 %v3252, 0.5
      %v3273 = vmul.f32 %v3253, 0.5
      %v3274 = vmul.f32 %v3254, 0.5
      %v3275 = vmul.f32 %v3255, 0.5
      %v3276 = vmul.f32 %v3256, 0.5
      %v3277 = vmul.f32 %v3257, 0.5
      %v3278 = vmul.f32 %v3258, 0.5
      %v3279 = vmul.f32 %v3259, 0.5
      %v3280 = vmul.f32 %v3260, 0.5
      %v3281 = vmul.f32 %v3261, 0.5
      %v3282 = vmul.f32 %v3262, 0.5
      %v3283 = vmul.f32 %v3263, 0.5
      %v3284 = vmul.f32 %v3264, 0.5
      %v3285 = vmul.f32 %v3265, 0.5
      %v3286 = vmul.f32 %v3106, %v3266
      %v3287 = vmul.f32 %v3107, %v3267
      %v3288 = vmul.f32 %v3108, %v3268
      %v3289 = vmul.f32 %v3109, %v3269
      %v3290 = vmul.f32 %v3110, %v3270
      %v3291 = vmul.f32 %v3111, %v3271
      %v3292 = vmul.f32 %v3112, %v3272
      %v3293 = vmul.f32 %v3113, %v3273
      %v3294 = vmul.f32 %v3114, %v3274
      %v3295 = vmul.f32 %v3115, %v3275
      %v3296 = vmul.f32 %v3116, %v3276
      %v3297 = vmul.f32 %v3117, %v3277
      %v3298 = vmul.f32 %v3118, %v3278
      %v3299 = vmul.f32 %v3119, %v3279
      %v3300 = vmul.f32 %v3120, %v3280
      %v3301 = vmul.f32 %v3121, %v3281
      %v3302 = vmul.f32 %v3122, %v3282
      %v3303 = vmul.f32 %v3123, %v3283
      %v3304 = vmul.f32 %v3124, %v3284
      %v3305 = vmul.f32 %v3125, %v3285
      %v3306 = vld [vmem:[%s1128] sm:$0x1f]
      %v3307 = vld [vmem:[%s1128 + $0x8] sm:$0x1f]
      %vm3308 = vcmask 252928
      %v3310 = vsel %vm3308, %v3307, 0
      %v3313 = vsel %vm2861, %v3305, 0
      %3315 = vmatprep.subr.mxu0 0.0
      %3316 = vmatpush1.msra.mxu0 %v3286
      %3317 = vmatprep.subr.mxu0 0.0
      %3318 = vmatpush1.msra.mxu0 %v3287
      %3319 = vmatprep.subr.mxu0 0.0
      %3320 = vmatpush1.msra.mxu0 %v3288
      %3321 = vmatprep.subr.mxu0 0.0
      %3322 = vmatpush1.msra.mxu0 %v3289
      %3323 = vmatprep.subr.mxu0 0.0
      %3324 = vmatpush1.msra.mxu0 %v3290
      %3325 = vmatprep.subr.mxu0 0.0
      %3326 = vmatpush1.msra.mxu0 %v3291
      %3327 = vmatprep.subr.mxu0 0.0
      %3328 = vmatpush1.msra.mxu0 %v3292
      %3329 = vmatprep.subr.mxu0 0.0
      %3330 = vmatpush1.msra.mxu0 %v3293
      %3331 = vmatprep.subr.mxu0 0.0
      %3332 = vmatpush1.msra.mxu0 %v3294
      %3333 = vmatprep.subr.mxu0 0.0
      %3334 = vmatpush1.msra.mxu0 %v3295
      %3335 = vmatprep.subr.mxu0 0.0
      %3336 = vmatpush1.msra.mxu0 %v3296
      %3337 = vmatprep.subr.mxu0 0.0
      %3338 = vmatpush1.msra.mxu0 %v3297
      %3339 = vmatprep.subr.mxu0 0.0
      %3340 = vmatpush1.msra.mxu0 %v3298
      %3341 = vmatprep.subr.mxu0 0.0
      %3342 = vmatpush1.msra.mxu0 %v3299
      %3343 = vmatprep.subr.mxu0 0.0
      %3344 = vmatpush1.msra.mxu0 %v3300
      %3345 = vmatprep.subr.mxu0 0.0
      %3346 = vmatpush1.msra.mxu0 %v3301
      %3347 = vmatprep.subr.mxu0 0.0
      %3348 = vmatpush1.msra.mxu0 %v3302
      %3349 = vmatprep.subr.mxu0 0.0
      %3350 = vmatpush1.msra.mxu0 %v3303
      %3351 = vmatprep.subr.mxu0 0.0
      %3352 = vmatpush1.msra.mxu0 %v3304
      %3353 = vmatprep.subr.mxu0 0.0
      %3354 = vmatpush1.msra.mxu0 %v3313
      %3355 = vmatprep.subr.mxu0 0.0
      %3356 = vmatpush1.msra.mxu0 0.0
      %3357 = vmatprep.subr.mxu0 0.0
      %3358 = vmatpush1.msra.mxu0 0.0
      %3359 = vmatprep.subr.mxu0 0.0
      %3360 = vmatpush1.msra.mxu0 0.0
      %3361 = vmatprep.subr.mxu0 0.0
      %3362 = vmatpush1.msra.mxu0 0.0
      %3363 = vmatprep.subr.mxu0 0.0
      %3364 = vmatpush1.msra.mxu0 0.0
      %3365 = vmatprep.subr.mxu0 0.0
      %3366 = vmatpush1.msra.mxu0 0.0
      %3367 = vmatprep.subr.mxu0 0.0
      %3368 = vmatpush1.msra.mxu0 0.0
      %3369 = vmatprep.subr.mxu0 0.0
      %3370 = vmatpush1.msra.mxu0 0.0
      %3371 = vmatprep.subr.mxu0 0.0
      %3372 = vmatpush1.msra.mxu0 0.0
      %3373 = vmatprep.subr.mxu0 0.0
      %3374 = vmatpush1.msra.mxu0 0.0
      %3375 = vmatprep.subr.mxu0 0.0
      %3376 = vmatpush1.msra.mxu0 0.0
      %3377 = vmatprep.subr.mxu0 0.0
      %3378 = vmatpush1.msra.mxu0 0.0
      %3379 = vmatprep.mubr.f32.mxu0 %v3310
      %3380 = vmatmul.mubr.f32.gmra.mrb[0].mxu0 %v3306
      %v3381 = vpop.f32.mrb[0].mxu0
      %v3382 = vadd.f32 0.0, %v3381
      %v3383 = vpop.f32.mrb[0].mxu0
      %3384 = vdwg.mxu0
      %v3385 = vld [vmem:[%s15] sm:$0x1]
      %v3386 = vld [vmem:[%s17] sm:$0x1]
      %vm3387 = vcmask 192512
      %v3388 = vsel %vm3387, %v3382, 0.0
      %3389 = vadd.xlane.f32.xlu0 %v3388
      %v3390 = vpop.xlane.xlu0 %3389
      %v3391 = vrcp.pop 24.0
      %v3392 = vmul.f32 %v3390, %v3391
      %v3393 = vsub.f32 %v3382, %v3392
      %v3394 = vmul.f32 %v3393, %v3393
      %v3395 = vsel %vm3387, %v3394, 0.0
      %3396 = vadd.xlane.f32.xlu0 %v3395
      %v3397 = vpop.xlane.xlu0 %3396
      %v3398 = vmul.f32 %v3397, %v3391
      %v3399 = vadd.f32 %v3398, 1e-05
      %v3400 = vrsqrt.pop %v3399
      %v3401 = vmul.f32 %v3393, %v3400
      %v3403 = vlaneseq
      %v3404 = vshrl.u32 %v3403, 7
      %v3405 = vsub.s32 0, %v3404
      %v3406 = vrot.slane %v3385, %v3405
      %v3408 = vmul.f32 %v3401, %v3406
      %v3410 = vlaneseq
      %v3411 = vshrl.u32 %v3410, 7
      %v3412 = vsub.s32 0, %v3411
      %v3413 = vrot.slane %v3386, %v3412
      %v3415 = vadd.f32 %v3408, %v3413
      %v3416 = vld [vmem:[%s19] sm:$0xff]
      %v3417 = vld [vmem:[%s19 + $0x8] sm:$0xff]
      %v3418 = vld [vmem:[%s19 + $0x10] sm:$0xff]
      %v3419 = vld [vmem:[%s21] sm:$0x1]
      %v3421 = vlaneseq
      %v3422 = vshrl.u32 %v3421, 7
      %v3423 = vsub.s32 0, %v3422
      %v3424 = vrot.slane %v3419, %v3423
      %v3427 = vsel %vm1637, %v3415, 0
      %3429 = vmatprep.subr.mxu0 0.0
      %3430 = vmatpush1.msra.mxu0 %v3416
      %3431 = vmatprep.subr.mxu0 0.0
      %3432 = vmatpush1.msra.mxu0 %v3417
      %3433 = vmatprep.subr.mxu0 0.0
      %3434 = vmatpush1.msra.mxu0 %v3418
      %3435 = vmatprep.subr.mxu0 0.0
      %3436 = vmatpush1.msra.mxu0 0.0
      %3437 = vmatprep.subr.mxu0 0.0
      %3438 = vmatpush1.msra.mxu0 0.0
      %3439 = vmatprep.subr.mxu0 0.0
      %3440 = vmatpush1.msra.mxu0 0.0
      %3441 = vmatprep.subr.mxu0 0.0
      %3442 = vmatpush1.msra.mxu0 0.0
      %3443 = vmatprep.subr.mxu0 0.0
      %3444 = vmatpush1.msra.mxu0 0.0
      %3445 = vmatprep.subr.mxu0 0.0
      %3446 = vmatpush1.msra.mxu0 0.0
      %3447 = vmatprep.subr.mxu0 0.0
      %3448 = vmatpush1.msra.mxu0 0.0
      %3449 = vmatprep.subr.mxu0 0.0
      %3450 = vmatpush1.msra.mxu0 0.0
      %3451 = vmatprep.subr.mxu0 0.0
      %3452 = vmatpush1.msra.mxu0 0.0
      %3453 = vmatprep.subr.mxu0 0.0
      %3454 = vmatpush1.msra.mxu0 0.0
      %3455 = vmatprep.subr.mxu0 0.0
      %3456 = vmatpush1.msra.mxu0 0.0
      %3457 = vmatprep.subr.mxu0 0.0
      %3458 = vmatpush1.msra.mxu0 0.0
      %3459 = vmatprep.subr.mxu0 0.0
      %3460 = vmatpush1.msra.mxu0 0.0
      %3461 = vmatprep.subr.mxu0 0.0
      %3462 = vmatpush1.msra.mxu0 0.0
      %3463 = vmatprep.subr.mxu0 0.0
      %3464 = vmatpush1.msra.mxu0 0.0
      %3465 = vmatprep.subr.mxu0 0.0
      %3466 = vmatpush1.msra.mxu0 0.0
      %3467 = vmatprep.subr.mxu0 0.0
      %3468 = vmatpush1.msra.mxu0 0.0
      %3469 = vmatprep.subr.mxu0 0.0
      %3470 = vmatpush1.msra.mxu0 0.0
      %3471 = vmatprep.subr.mxu0 0.0
      %3472 = vmatpush1.msra.mxu0 0.0
      %3473 = vmatprep.subr.mxu0 0.0
      %3474 = vmatpush1.msra.mxu0 0.0
      %3475 = vmatprep.subr.mxu0 0.0
      %3476 = vmatpush1.msra.mxu0 0.0
      %3477 = vmatprep.subr.mxu0 0.0
      %3478 = vmatpush1.msra.mxu0 0.0
      %3479 = vmatprep.subr.mxu0 0.0
      %3480 = vmatpush1.msra.mxu0 0.0
      %3481 = vmatprep.subr.mxu0 0.0
      %3482 = vmatpush1.msra.mxu0 0.0
      %3483 = vmatprep.subr.mxu0 0.0
      %3484 = vmatpush1.msra.mxu0 0.0
      %3485 = vmatprep.subr.mxu0 0.0
      %3486 = vmatpush1.msra.mxu0 0.0
      %3487 = vmatprep.subr.mxu0 0.0
      %3488 = vmatpush1.msra.mxu0 0.0
      %3489 = vmatprep.subr.mxu0 0.0
      %3490 = vmatpush1.msra.mxu0 0.0
      %3491 = vmatprep.subr.mxu0 0.0
      %3492 = vmatpush1.msra.mxu0 0.0
      %3493 = vmatprep.mubr.f32.mxu0 0.0
      %3494 = vmatmul.mubr.f32.gmra.mrb[0].mxu0 %v3427
      %v3495 = vpop.f32.mrb[0].mxu0
      %v3496 = vadd.f32 %v3424, %v3495
      %v3497 = vpop.f32.mrb[0].mxu0
      %3498 = vdwg.mxu0
      %v3499 = vld [vmem:[%s23] sm:$0x1]
      %v3500 = vld [vmem:[%s25] sm:$0x1]
      %vm3501 = vcmask 258048
      %v3502 = vsel %vm3501, %v3496, 0.0
      %3503 = vadd.xlane.f32.xlu0 %v3502
      %v3504 = vpop.xlane.xlu0 %3503
      %v3505 = vrcp.pop 32.0
      %v3506 = vmul.f32 %v3504, %v3505
      %v3507 = vsub.f32 %v3496, %v3506
      %v3508 = vmul.f32 %v3507, %v3507
      %v3509 = vsel %vm3501, %v3508, 0.0
      %3510 = vadd.xlane.f32.xlu0 %v3509
      %v3511 = vpop.xlane.xlu0 %3510
      %v3512 = vmul.f32 %v3511, %v3505
      %v3513 = vadd.f32 %v3512, 1e-05
      %v3514 = vrsqrt.pop %v3513
      %v3515 = vmul.f32 %v3507, %v3514
      %v3517 = vlaneseq
      %v3518 = vshrl.u32 %v3517, 7
      %v3519 = vsub.s32 0, %v3518
      %v3520 = vrot.slane %v3499, %v3519
      %v3522 = vmul.f32 %v3515, %v3520
      %v3524 = vlaneseq
      %v3525 = vshrl.u32 %v3524, 7
      %v3526 = vsub.s32 0, %v3525
      %v3527 = vrot.slane %v3500, %v3526
      %v3529 = vadd.f32 %v3522, %v3527
      %v3530 = vld [vmem:[%s1132] sm:$0x1f]
      %3532 = vset.pattern.permute.xlu0 0
      %3533 = vperm.xlu0 %3532, %v3530
      %v3534 = vpop.permute.xlu0 %3533
      %v3536 = vmul.f32 %v3529, %v3534
      %vm3537 = vcmask 261120
      %3538 = vst.msk [vmem:[#allocation2] sm:$0xff] %vm3537, 0.0
      %vm3539 = vcmask 253952
      %3540 = vst.msk [vmem:[#allocation2 + $0x8] sm:$0x1] %vm3539, 0.0
      %3541 = vst.msk [vmem:[#allocation2 + $0x2] sm:$0x1f] %vm3501, %v3536
      %v3542 = vld [vmem:[%s33] sm:$0x1]
      %v3543 = vld [vmem:[#allocation2] sm:$0x3f]
      %v3544 = vld [vmem:[%s31] sm:$0xff]
      %v3545 = vld [vmem:[%s31 + $0x8] sm:$0xff]
      %v3546 = vld [vmem:[%s31 + $0x10] sm:$0xff]
      %v3547 = vld [vmem:[%s31 + $0x18] sm:$0xff]
      %v3549 = vsel %vm3537, %v3543, 0
      %3551 = vmatprep.subr.mxu0 0.0
      %3552 = vmatpush1.msra.mxu0 %v3544
      %3553 = vmatprep.subr.mxu0 0.0
      %3554 = vmatpush1.msra.mxu0 %v3545
      %3555 = vmatprep.subr.mxu0 0.0
      %3556 = vmatpush1.msra.mxu0 %v3546
      %3557 = vmatprep.subr.mxu0 0.0
      %3558 = vmatpush1.msra.mxu0 %v3547
      %3559 = vmatprep.subr.mxu0 0.0
      %3560 = vmatpush1.msra.mxu0 0.0
      %3561 = vmatprep.subr.mxu0 0.0
      %3562 = vmatpush1.msra.mxu0 0.0
      %3563 = vmatprep.subr.mxu0 0.0
      %3564 = vmatpush1.msra.mxu0 0.0
      %3565 = vmatprep.subr.mxu0 0.0
      %3566 = vmatpush1.msra.mxu0 0.0
      %3567 = vmatprep.subr.mxu0 0.0
      %3568 = vmatpush1.msra.mxu0 0.0
      %3569 = vmatprep.subr.mxu0 0.0
      %3570 = vmatpush1.msra.mxu0 0.0
      %3571 = vmatprep.subr.mxu0 0.0
      %3572 = vmatpush1.msra.mxu0 0.0
      %3573 = vmatprep.subr.mxu0 0.0
      %3574 = vmatpush1.msra.mxu0 0.0
      %3575 = vmatprep.subr.mxu0 0.0
      %3576 = vmatpush1.msra.mxu0 0.0
      %3577 = vmatprep.subr.mxu0 0.0
      %3578 = vmatpush1.msra.mxu0 0.0
      %3579 = vmatprep.subr.mxu0 0.0
      %3580 = vmatpush1.msra.mxu0 0.0
      %3581 = vmatprep.subr.mxu0 0.0
      %3582 = vmatpush1.msra.mxu0 0.0
      %3583 = vmatprep.subr.mxu0 0.0
      %3584 = vmatpush1.msra.mxu0 0.0
      %3585 = vmatprep.subr.mxu0 0.0
      %3586 = vmatpush1.msra.mxu0 0.0
      %3587 = vmatprep.subr.mxu0 0.0
      %3588 = vmatpush1.msra.mxu0 0.0
      %3589 = vmatprep.subr.mxu0 0.0
      %3590 = vmatpush1.msra.mxu0 0.0
      %3591 = vmatprep.subr.mxu0 0.0
      %3592 = vmatpush1.msra.mxu0 0.0
      %3593 = vmatprep.subr.mxu0 0.0
      %3594 = vmatpush1.msra.mxu0 0.0
      %3595 = vmatprep.subr.mxu0 0.0
      %3596 = vmatpush1.msra.mxu0 0.0
      %3597 = vmatprep.subr.mxu0 0.0
      %3598 = vmatpush1.msra.mxu0 0.0
      %3599 = vmatprep.subr.mxu0 0.0
      %3600 = vmatpush1.msra.mxu0 0.0
      %3601 = vmatprep.subr.mxu0 0.0
      %3602 = vmatpush1.msra.mxu0 0.0
      %3603 = vmatprep.subr.mxu0 0.0
      %3604 = vmatpush1.msra.mxu0 0.0
      %3605 = vmatprep.subr.mxu0 0.0
      %3606 = vmatpush1.msra.mxu0 0.0
      %3607 = vmatprep.subr.mxu0 0.0
      %3608 = vmatpush1.msra.mxu0 0.0
      %3609 = vmatprep.subr.mxu0 0.0
      %3610 = vmatpush1.msra.mxu0 0.0
      %3611 = vmatprep.subr.mxu0 0.0
      %3612 = vmatpush1.msra.mxu0 0.0
      %3613 = vmatprep.subr.mxu0 0.0
      %3614 = vmatpush1.msra.mxu0 0.0
      %3615 = vmatprep.mubr.f32.mxu0 0.0
      %3616 = vmatmul.mubr.f32.gmra.mrb[0].mxu0 %v3549
      %v3617 = vpop.f32.mrb[0].mxu0
      %v3618 = vadd.f32 0.0, %v3617
      %v3619 = vpop.f32.mrb[0].mxu0
      %3620 = vdwg.mxu0
      %v3622 = vlaneseq
      %v3623 = vshrl.u32 %v3622, 7
      %v3624 = vsub.s32 0, %v3623
      %v3625 = vrot.slane %v3542, %v3624
      %v3627 = vadd.f32 %v3625, %v3618
      %v3628 = vld [vmem:[#allocation2 + $0x1] sm:$0x3f]
      %s3629 = scalar_lea.vmem %s31, 32
      %v3630 = vld [vmem:[%s3629] sm:$0xff]
      %v3631 = vld [vmem:[%s3629 + $0x8] sm:$0xff]
      %v3632 = vld [vmem:[%s3629 + $0x10] sm:$0xff]
      %v3633 = vld [vmem:[%s3629 + $0x18] sm:$0xff]
      %v3635 = vsel %vm3537, %v3628, 0
      %3637 = vmatprep.subr.mxu0 0.0
      %3638 = vmatpush1.msra.mxu0 %v3630
      %3639 = vmatprep.subr.mxu0 0.0
      %3640 = vmatpush1.msra.mxu0 %v3631
      %3641 = vmatprep.subr.mxu0 0.0
      %3642 = vmatpush1.msra.mxu0 %v3632
      %3643 = vmatprep.subr.mxu0 0.0
      %3644 = vmatpush1.msra.mxu0 %v3633
      %3645 = vmatprep.subr.mxu0 0.0
      %3646 = vmatpush1.msra.mxu0 0.0
      %3647 = vmatprep.subr.mxu0 0.0
      %3648 = vmatpush1.msra.mxu0 0.0
      %3649 = vmatprep.subr.mxu0 0.0
      %3650 = vmatpush1.msra.mxu0 0.0
      %3651 = vmatprep.subr.mxu0 0.0
      %3652 = vmatpush1.msra.mxu0 0.0
      %3653 = vmatprep.subr.mxu0 0.0
      %3654 = vmatpush1.msra.mxu0 0.0
      %3655 = vmatprep.subr.mxu0 0.0
      %3656 = vmatpush1.msra.mxu0 0.0
      %3657 = vmatprep.subr.mxu0 0.0
      %3658 = vmatpush1.msra.mxu0 0.0
      %3659 = vmatprep.subr.mxu0 0.0
      %3660 = vmatpush1.msra.mxu0 0.0
      %3661 = vmatprep.subr.mxu0 0.0
      %3662 = vmatpush1.msra.mxu0 0.0
      %3663 = vmatprep.subr.mxu0 0.0
      %3664 = vmatpush1.msra.mxu0 0.0
      %3665 = vmatprep.subr.mxu0 0.0
      %3666 = vmatpush1.msra.mxu0 0.0
      %3667 = vmatprep.subr.mxu0 0.0
      %3668 = vmatpush1.msra.mxu0 0.0
      %3669 = vmatprep.subr.mxu0 0.0
      %3670 = vmatpush1.msra.mxu0 0.0
      %3671 = vmatprep.subr.mxu0 0.0
      %3672 = vmatpush1.msra.mxu0 0.0
      %3673 = vmatprep.subr.mxu0 0.0
      %3674 = vmatpush1.msra.mxu0 0.0
      %3675 = vmatprep.subr.mxu0 0.0
      %3676 = vmatpush1.msra.mxu0 0.0
      %3677 = vmatprep.subr.mxu0 0.0
      %3678 = vmatpush1.msra.mxu0 0.0
      %3679 = vmatprep.subr.mxu0 0.0
      %3680 = vmatpush1.msra.mxu0 0.0
      %3681 = vmatprep.subr.mxu0 0.0
      %3682 = vmatpush1.msra.mxu0 0.0
      %3683 = vmatprep.subr.mxu0 0.0
      %3684 = vmatpush1.msra.mxu0 0.0
      %3685 = vmatprep.subr.mxu0 0.0
      %3686 = vmatpush1.msra.mxu0 0.0
      %3687 = vmatprep.subr.mxu0 0.0
      %3688 = vmatpush1.msra.mxu0 0.0
      %3689 = vmatprep.subr.mxu0 0.0
      %3690 = vmatpush1.msra.mxu0 0.0
      %3691 = vmatprep.subr.mxu0 0.0
      %3692 = vmatpush1.msra.mxu0 0.0
      %3693 = vmatprep.subr.mxu0 0.0
      %3694 = vmatpush1.msra.mxu0 0.0
      %3695 = vmatprep.subr.mxu0 0.0
      %3696 = vmatpush1.msra.mxu0 0.0
      %3697 = vmatprep.subr.mxu0 0.0
      %3698 = vmatpush1.msra.mxu0 0.0
      %3699 = vmatprep.subr.mxu0 0.0
      %3700 = vmatpush1.msra.mxu0 0.0
      %3701 = vmatprep.mubr.f32.mxu0 0.0
      %3702 = vmatmul.mubr.f32.gmra.mrb[0].mxu0 %v3635
      %v3703 = vpop.f32.mrb[0].mxu0
      %v3704 = vadd.f32 0.0, %v3703
      %v3705 = vpop.f32.mrb[0].mxu0
      %3706 = vdwg.mxu0
      %v3707 = vadd.f32 %v3627, %v3704
      %v3708 = vld [vmem:[#allocation2 + $0x2] sm:$0x3f]
      %s3709 = scalar_lea.vmem %s31, 64
      %v3710 = vld [vmem:[%s3709] sm:$0xff]
      %v3711 = vld [vmem:[%s3709 + $0x8] sm:$0xff]
      %v3712 = vld [vmem:[%s3709 + $0x10] sm:$0xff]
      %v3713 = vld [vmem:[%s3709 + $0x18] sm:$0xff]
      %v3715 = vsel %vm3537, %v3708, 0
      %3717 = vmatprep.subr.mxu0 0.0
      %3718 = vmatpush1.msra.mxu0 %v3710
      %3719 = vmatprep.subr.mxu0 0.0
      %3720 = vmatpush1.msra.mxu0 %v3711
      %3721 = vmatprep.subr.mxu0 0.0
      %3722 = vmatpush1.msra.mxu0 %v3712
      %3723 = vmatprep.subr.mxu0 0.0
      %3724 = vmatpush1.msra.mxu0 %v3713
      %3725 = vmatprep.subr.mxu0 0.0
      %3726 = vmatpush1.msra.mxu0 0.0
      %3727 = vmatprep.subr.mxu0 0.0
      %3728 = vmatpush1.msra.mxu0 0.0
      %3729 = vmatprep.subr.mxu0 0.0
      %3730 = vmatpush1.msra.mxu0 0.0
      %3731 = vmatprep.subr.mxu0 0.0
      %3732 = vmatpush1.msra.mxu0 0.0
      %3733 = vmatprep.subr.mxu0 0.0
      %3734 = vmatpush1.msra.mxu0 0.0
      %3735 = vmatprep.subr.mxu0 0.0
      %3736 = vmatpush1.msra.mxu0 0.0
      %3737 = vmatprep.subr.mxu0 0.0
      %3738 = vmatpush1.msra.mxu0 0.0
      %3739 = vmatprep.subr.mxu0 0.0
      %3740 = vmatpush1.msra.mxu0 0.0
      %3741 = vmatprep.subr.mxu0 0.0
      %3742 = vmatpush1.msra.mxu0 0.0
      %3743 = vmatprep.subr.mxu0 0.0
      %3744 = vmatpush1.msra.mxu0 0.0
      %3745 = vmatprep.subr.mxu0 0.0
      %3746 = vmatpush1.msra.mxu0 0.0
      %3747 = vmatprep.subr.mxu0 0.0
      %3748 = vmatpush1.msra.mxu0 0.0
      %3749 = vmatprep.subr.mxu0 0.0
      %3750 = vmatpush1.msra.mxu0 0.0
      %3751 = vmatprep.subr.mxu0 0.0
      %3752 = vmatpush1.msra.mxu0 0.0
      %3753 = vmatprep.subr.mxu0 0.0
      %3754 = vmatpush1.msra.mxu0 0.0
      %3755 = vmatprep.subr.mxu0 0.0
      %3756 = vmatpush1.msra.mxu0 0.0
      %3757 = vmatprep.subr.mxu0 0.0
      %3758 = vmatpush1.msra.mxu0 0.0
      %3759 = vmatprep.subr.mxu0 0.0
      %3760 = vmatpush1.msra.mxu0 0.0
      %3761 = vmatprep.subr.mxu0 0.0
      %3762 = vmatpush1.msra.mxu0 0.0
      %3763 = vmatprep.subr.mxu0 0.0
      %3764 = vmatpush1.msra.mxu0 0.0
      %3765 = vmatprep.subr.mxu0 0.0
      %3766 = vmatpush1.msra.mxu0 0.0
      %3767 = vmatprep.subr.mxu0 0.0
      %3768 = vmatpush1.msra.mxu0 0.0
      %3769 = vmatprep.subr.mxu0 0.0
      %3770 = vmatpush1.msra.mxu0 0.0
      %3771 = vmatprep.subr.mxu0 0.0
      %3772 = vmatpush1.msra.mxu0 0.0
      %3773 = vmatprep.subr.mxu0 0.0
      %3774 = vmatpush1.msra.mxu0 0.0
      %3775 = vmatprep.subr.mxu0 0.0
      %3776 = vmatpush1.msra.mxu0 0.0
      %3777 = vmatprep.subr.mxu0 0.0
      %3778 = vmatpush1.msra.mxu0 0.0
      %3779 = vmatprep.subr.mxu0 0.0
      %3780 = vmatpush1.msra.mxu0 0.0
      %3781 = vmatprep.mubr.f32.mxu0 0.0
      %3782 = vmatmul.mubr.f32.gmra.mrb[0].mxu0 %v3715
      %v3783 = vpop.f32.mrb[0].mxu0
      %v3784 = vadd.f32 0.0, %v3783
      %v3785 = vpop.f32.mrb[0].mxu0
      %3786 = vdwg.mxu0
      %v3787 = vadd.f32 %v3707, %v3784
      %v3788 = vld [vmem:[#allocation2 + $0x3] sm:$0x3f]
      %s3789 = scalar_lea.vmem %s31, 96
      %v3790 = vld [vmem:[%s3789] sm:$0xff]
      %v3791 = vld [vmem:[%s3789 + $0x8] sm:$0xff]
      %v3792 = vld [vmem:[%s3789 + $0x10] sm:$0xff]
      %v3793 = vld [vmem:[%s3789 + $0x18] sm:$0xff]
      %v3795 = vsel %vm3537, %v3788, 0
      %3797 = vmatprep.subr.mxu0 0.0
      %3798 = vmatpush1.msra.mxu0 %v3790
      %3799 = vmatprep.subr.mxu0 0.0
      %3800 = vmatpush1.msra.mxu0 %v3791
      %3801 = vmatprep.subr.mxu0 0.0
      %3802 = vmatpush1.msra.mxu0 %v3792
      %3803 = vmatprep.subr.mxu0 0.0
      %3804 = vmatpush1.msra.mxu0 %v3793
      %3805 = vmatprep.subr.mxu0 0.0
      %3806 = vmatpush1.msra.mxu0 0.0
      %3807 = vmatprep.subr.mxu0 0.0
      %3808 = vmatpush1.msra.mxu0 0.0
      %3809 = vmatprep.subr.mxu0 0.0
      %3810 = vmatpush1.msra.mxu0 0.0
      %3811 = vmatprep.subr.mxu0 0.0
      %3812 = vmatpush1.msra.mxu0 0.0
      %3813 = vmatprep.subr.mxu0 0.0
      %3814 = vmatpush1.msra.mxu0 0.0
      %3815 = vmatprep.subr.mxu0 0.0
      %3816 = vmatpush1.msra.mxu0 0.0
      %3817 = vmatprep.subr.mxu0 0.0
      %3818 = vmatpush1.msra.mxu0 0.0
      %3819 = vmatprep.subr.mxu0 0.0
      %3820 = vmatpush1.msra.mxu0 0.0
      %3821 = vmatprep.subr.mxu0 0.0
      %3822 = vmatpush1.msra.mxu0 0.0
      %3823 = vmatprep.subr.mxu0 0.0
      %3824 = vmatpush1.msra.mxu0 0.0
      %3825 = vmatprep.subr.mxu0 0.0
      %3826 = vmatpush1.msra.mxu0 0.0
      %3827 = vmatprep.subr.mxu0 0.0
      %3828 = vmatpush1.msra.mxu0 0.0
      %3829 = vmatprep.subr.mxu0 0.0
      %3830 = vmatpush1.msra.mxu0 0.0
      %3831 = vmatprep.subr.mxu0 0.0
      %3832 = vmatpush1.msra.mxu0 0.0
      %3833 = vmatprep.subr.mxu0 0.0
      %3834 = vmatpush1.msra.mxu0 0.0
      %3835 = vmatprep.subr.mxu0 0.0
      %3836 = vmatpush1.msra.mxu0 0.0
      %3837 = vmatprep.subr.mxu0 0.0
      %3838 = vmatpush1.msra.mxu0 0.0
      %3839 = vmatprep.subr.mxu0 0.0
      %3840 = vmatpush1.msra.mxu0 0.0
      %3841 = vmatprep.subr.mxu0 0.0
      %3842 = vmatpush1.msra.mxu0 0.0
      %3843 = vmatprep.subr.mxu0 0.0
      %3844 = vmatpush1.msra.mxu0 0.0
      %3845 = vmatprep.subr.mxu0 0.0
      %3846 = vmatpush1.msra.mxu0 0.0
      %3847 = vmatprep.subr.mxu0 0.0
      %3848 = vmatpush1.msra.mxu0 0.0
      %3849 = vmatprep.subr.mxu0 0.0
      %3850 = vmatpush1.msra.mxu0 0.0
      %3851 = vmatprep.subr.mxu0 0.0
      %3852 = vmatpush1.msra.mxu0 0.0
      %3853 = vmatprep.subr.mxu0 0.0
      %3854 = vmatpush1.msra.mxu0 0.0
      %3855 = vmatprep.subr.mxu0 0.0
      %3856 = vmatpush1.msra.mxu0 0.0
      %3857 = vmatprep.subr.mxu0 0.0
      %3858 = vmatpush1.msra.mxu0 0.0
      %3859 = vmatprep.subr.mxu0 0.0
      %3860 = vmatpush1.msra.mxu0 0.0
      %3861 = vmatprep.mubr.f32.mxu0 0.0
      %3862 = vmatmul.mubr.f32.gmra.mrb[0].mxu0 %v3795
      %v3863 = vpop.f32.mrb[0].mxu0
      %v3864 = vadd.f32 0.0, %v3863
      %v3865 = vpop.f32.mrb[0].mxu0
      %3866 = vdwg.mxu0
      %v3867 = vadd.f32 %v3787, %v3864
      %v3868 = vmul.f32 %v3867, %v3867
      %v3869 = vmul.f32 %v3867, %v3868
      %v3870 = vmul.f32 %v3869, 0.044715
      %v3871 = vadd.f32 %v3867, %v3870
      %v3872 = vmul.f32 %v3871, 0.7978846
      %v3873 = vtanh.pop %v3872
      %v3874 = vadd.f32 %v3873, 1.0
      %v3875 = vmul.f32 %v3874, 0.5
      %v3876 = vmul.f32 %v3867, %v3875
      %v3877 = vadd.f32 %v3536, %v3876
      %v3878 = vld [vmem:[%s1135] sm:$0x1]
      %v3879 = vld [vmem:[%s35] sm:$0x1]
      %v3880 = vld [vmem:[%s37] sm:$0x1]
      %v3881 = vsel %vm3501, %v3877, 0.0
      %3882 = vadd.xlane.f32.xlu0 %v3881
      %v3883 = vpop.xlane.xlu0 %3882
      %v3884 = vmul.f32 %v3883, %v3505
      %v3885 = vsub.f32 %v3877, %v3884
      %v3886 = vmul.f32 %v3885, %v3885
      %v3887 = vsel %vm3501, %v3886, 0.0
      %3888 = vadd.xlane.f32.xlu0 %v3887
      %v3889 = vpop.xlane.xlu0 %3888
      %v3890 = vmul.f32 %v3889, %v3505
      %v3891 = vadd.f32 %v3890, 1e-05
      %v3892 = vrsqrt.pop %v3891
      %v3893 = vmul.f32 %v3885, %v3892
      %v3895 = vlaneseq
      %v3896 = vshrl.u32 %v3895, 7
      %v3897 = vsub.s32 0, %v3896
      %v3898 = vrot.slane %v3879, %v3897
      %v3900 = vmul.f32 %v3893, %v3898
      %v3902 = vlaneseq
      %v3903 = vshrl.u32 %v3902, 7
      %v3904 = vsub.s32 0, %v3903
      %v3905 = vrot.slane %v3880, %v3904
      %v3907 = vadd.f32 %v3900, %v3905
      %v3908 = vld [vmem:[%s39] sm:$0xff]
      %v3909 = vld [vmem:[%s39 + $0x8] sm:$0xff]
      %v3910 = vld [vmem:[%s39 + $0x10] sm:$0xff]
      %v3911 = vld [vmem:[%s39 + $0x18] sm:$0xff]
      %v3912 = vld [vmem:[%s41] sm:$0x1]
      %v3914 = vlaneseq
      %v3915 = vshrl.u32 %v3914, 7
      %v3916 = vsub.s32 0, %v3915
      %v3917 = vrot.slane %v3912, %v3916
      %v3920 = vsel %vm3537, %v3907, 0
      %3922 = vmatprep.subr.mxu0 0.0
      %3923 = vmatpush1.msra.mxu0 %v3908
      %3924 = vmatprep.subr.mxu0 0.0
      %3925 = vmatpush1.msra.mxu0 %v3909
      %3926 = vmatprep.subr.mxu0 0.0
      %3927 = vmatpush1.msra.mxu0 %v3910
      %3928 = vmatprep.subr.mxu0 0.0
      %3929 = vmatpush1.msra.mxu0 %v3911
      %3930 = vmatprep.subr.mxu0 0.0
      %3931 = vmatpush1.msra.mxu0 0.0
      %3932 = vmatprep.subr.mxu0 0.0
      %3933 = vmatpush1.msra.mxu0 0.0
      %3934 = vmatprep.subr.mxu0 0.0
      %3935 = vmatpush1.msra.mxu0 0.0
      %3936 = vmatprep.subr.mxu0 0.0
      %3937 = vmatpush1.msra.mxu0 0.0
      %3938 = vmatprep.subr.mxu0 0.0
      %3939 = vmatpush1.msra.mxu0 0.0
      %3940 = vmatprep.subr.mxu0 0.0
      %3941 = vmatpush1.msra.mxu0 0.0
      %3942 = vmatprep.subr.mxu0 0.0
      %3943 = vmatpush1.msra.mxu0 0.0
      %3944 = vmatprep.subr.mxu0 0.0
      %3945 = vmatpush1.msra.mxu0 0.0
      %3946 = vmatprep.subr.mxu0 0.0
      %3947 = vmatpush1.msra.mxu0 0.0
      %3948 = vmatprep.subr.mxu0 0.0
      %3949 = vmatpush1.msra.mxu0 0.0
      %3950 = vmatprep.subr.mxu0 0.0
      %3951 = vmatpush1.msra.mxu0 0.0
      %3952 = vmatprep.subr.mxu0 0.0
      %3953 = vmatpush1.msra.mxu0 0.0
      %3954 = vmatprep.subr.mxu0 0.0
      %3955 = vmatpush1.msra.mxu0 0.0
      %3956 = vmatprep.subr.mxu0 0.0
      %3957 = vmatpush1.msra.mxu0 0.0
      %3958 = vmatprep.subr.mxu0 0.0
      %3959 = vmatpush1.msra.mxu0 0.0
      %3960 = vmatprep.subr.mxu0 0.0
      %3961 = vmatpush1.msra.mxu0 0.0
      %3962 = vmatprep.subr.mxu0 0.0
      %3963 = vmatpush1.msra.mxu0 0.0
      %3964 = vmatprep.subr.mxu0 0.0
      %3965 = vmatpush1.msra.mxu0 0.0
      %3966 = vmatprep.subr.mxu0 0.0
      %3967 = vmatpush1.msra.mxu0 0.0
      %3968 = vmatprep.subr.mxu0 0.0
      %3969 = vmatpush1.msra.mxu0 0.0
      %3970 = vmatprep.subr.mxu0 0.0
      %3971 = vmatpush1.msra.mxu0 0.0
      %3972 = vmatprep.subr.mxu0 0.0
      %3973 = vmatpush1.msra.mxu0 0.0
      %3974 = vmatprep.subr.mxu0 0.0
      %3975 = vmatpush1.msra.mxu0 0.0
      %3976 = vmatprep.subr.mxu0 0.0
      %3977 = vmatpush1.msra.mxu0 0.0
      %3978 = vmatprep.subr.mxu0 0.0
      %3979 = vmatpush1.msra.mxu0 0.0
      %3980 = vmatprep.subr.mxu0 0.0
      %3981 = vmatpush1.msra.mxu0 0.0
      %3982 = vmatprep.subr.mxu0 0.0
      %3983 = vmatpush1.msra.mxu0 0.0
      %3984 = vmatprep.subr.mxu0 0.0
      %3985 = vmatpush1.msra.mxu0 0.0
      %3986 = vmatprep.mubr.f32.mxu0 0.0
      %3987 = vmatmul.mubr.f32.gmra.mrb[0].mxu0 %v3920
      %v3988 = vpop.f32.mrb[0].mxu0
      %v3989 = vadd.f32 %v3917, %v3988
      %v3990 = vpop.f32.mrb[0].mxu0
      %3991 = vdwg.mxu0
      %v3992 = vld [vmem:[%s43] sm:$0xff]
      %v3993 = vld [vmem:[%s43 + $0x8] sm:$0xff]
      %v3994 = vld [vmem:[%s43 + $0x10] sm:$0xff]
      %v3995 = vld [vmem:[%s43 + $0x18] sm:$0xff]
      %v3996 = vld [vmem:[%s45] sm:$0x1]
      %v3998 = vlaneseq
      %v3999 = vshrl.u32 %v3998, 7
      %v4000 = vsub.s32 0, %v3999
      %v4001 = vrot.slane %v3996, %v4000
      %4003 = vmatprep.subr.mxu0 0.0
      %4004 = vmatpush1.msra.mxu0 %v3992
      %4005 = vmatprep.subr.mxu0 0.0
      %4006 = vmatpush1.msra.mxu0 %v3993
      %4007 = vmatprep.subr.mxu0 0.0
      %4008 = vmatpush1.msra.mxu0 %v3994
      %4009 = vmatprep.subr.mxu0 0.0
      %4010 = vmatpush1.msra.mxu0 %v3995
      %4011 = vmatprep.subr.mxu0 0.0
      %4012 = vmatpush1.msra.mxu0 0.0
      %4013 = vmatprep.subr.mxu0 0.0
      %4014 = vmatpush1.msra.mxu0 0.0
      %4015 = vmatprep.subr.mxu0 0.0
      %4016 = vmatpush1.msra.mxu0 0.0
      %4017 = vmatprep.subr.mxu0 0.0
      %4018 = vmatpush1.msra.mxu0 0.0
      %4019 = vmatprep.subr.mxu0 0.0
      %4020 = vmatpush1.msra.mxu0 0.0
      %4021 = vmatprep.subr.mxu0 0.0
      %4022 = vmatpush1.msra.mxu0 0.0
      %4023 = vmatprep.subr.mxu0 0.0
      %4024 = vmatpush1.msra.mxu0 0.0
      %4025 = vmatprep.subr.mxu0 0.0
      %4026 = vmatpush1.msra.mxu0 0.0
      %4027 = vmatprep.subr.mxu0 0.0
      %4028 = vmatpush1.msra.mxu0 0.0
      %4029 = vmatprep.subr.mxu0 0.0
      %4030 = vmatpush1.msra.mxu0 0.0
      %4031 = vmatprep.subr.mxu0 0.0
      %4032 = vmatpush1.msra.mxu0 0.0
      %4033 = vmatprep.subr.mxu0 0.0
      %4034 = vmatpush1.msra.mxu0 0.0
      %4035 = vmatprep.subr.mxu0 0.0
      %4036 = vmatpush1.msra.mxu0 0.0
      %4037 = vmatprep.subr.mxu0 0.0
      %4038 = vmatpush1.msra.mxu0 0.0
      %4039 = vmatprep.subr.mxu0 0.0
      %4040 = vmatpush1.msra.mxu0 0.0
      %4041 = vmatprep.subr.mxu0 0.0
      %4042 = vmatpush1.msra.mxu0 0.0
      %4043 = vmatprep.subr.mxu0 0.0
      %4044 = vmatpush1.msra.mxu0 0.0
      %4045 = vmatprep.subr.mxu0 0.0
      %4046 = vmatpush1.msra.mxu0 0.0
      %4047 = vmatprep.subr.mxu0 0.0
      %4048 = vmatpush1.msra.mxu0 0.0
      %4049 = vmatprep.subr.mxu0 0.0
      %4050 = vmatpush1.msra.mxu0 0.0
      %4051 = vmatprep.subr.mxu0 0.0
      %4052 = vmatpush1.msra.mxu0 0.0
      %4053 = vmatprep.subr.mxu0 0.0
      %4054 = vmatpush1.msra.mxu0 0.0
      %4055 = vmatprep.subr.mxu0 0.0
      %4056 = vmatpush1.msra.mxu0 0.0
      %4057 = vmatprep.subr.mxu0 0.0
      %4058 = vmatpush1.msra.mxu0 0.0
      %4059 = vmatprep.subr.mxu0 0.0
      %4060 = vmatpush1.msra.mxu0 0.0
      %4061 = vmatprep.subr.mxu0 0.0
      %4062 = vmatpush1.msra.mxu0 0.0
      %4063 = vmatprep.subr.mxu0 0.0
      %4064 = vmatpush1.msra.mxu0 0.0
      %4065 = vmatprep.subr.mxu0 0.0
      %4066 = vmatpush1.msra.mxu0 0.0
      %4067 = vmatprep.mubr.f32.mxu0 0.0
      %4068 = vmatmul.mubr.f32.gmra.mrb[0].mxu0 %v3920
      %v4069 = vpop.f32.mrb[0].mxu0
      %v4070 = vadd.f32 %v4001, %v4069
      %v4071 = vpop.f32.mrb[0].mxu0
      %4072 = vdwg.mxu0
      %v4073 = vld [vmem:[%s47] sm:$0xff]
      %v4074 = vld [vmem:[%s47 + $0x8] sm:$0xff]
      %v4075 = vld [vmem:[%s47 + $0x10] sm:$0xff]
      %v4076 = vld [vmem:[%s47 + $0x18] sm:$0xff]
      %v4077 = vld [vmem:[%s49] sm:$0x1]
      %v4079 = vlaneseq
      %v4080 = vshrl.u32 %v4079, 7
      %v4081 = vsub.s32 0, %v4080
      %v4082 = vrot.slane %v4077, %v4081
      %4084 = vmatprep.subr.mxu0 0.0
      %4085 = vmatpush1.msra.mxu0 %v4073
      %4086 = vmatprep.subr.mxu0 0.0
      %4087 = vmatpush1.msra.mxu0 %v4074
      %4088 = vmatprep.subr.mxu0 0.0
      %4089 = vmatpush1.msra.mxu0 %v4075
      %4090 = vmatprep.subr.mxu0 0.0
      %4091 = vmatpush1.msra.mxu0 %v4076
      %4092 = vmatprep.subr.mxu0 0.0
      %4093 = vmatpush1.msra.mxu0 0.0
      %4094 = vmatprep.subr.mxu0 0.0
      %4095 = vmatpush1.msra.mxu0 0.0
      %4096 = vmatprep.subr.mxu0 0.0
      %4097 = vmatpush1.msra.mxu0 0.0
      %4098 = vmatprep.subr.mxu0 0.0
      %4099 = vmatpush1.msra.mxu0 0.0
      %4100 = vmatprep.subr.mxu0 0.0
      %4101 = vmatpush1.msra.mxu0 0.0
      %4102 = vmatprep.subr.mxu0 0.0
      %4103 = vmatpush1.msra.mxu0 0.0
      %4104 = vmatprep.subr.mxu0 0.0
      %4105 = vmatpush1.msra.mxu0 0.0
      %4106 = vmatprep.subr.mxu0 0.0
      %4107 = vmatpush1.msra.mxu0 0.0
      %4108 = vmatprep.subr.mxu0 0.0
      %4109 = vmatpush1.msra.mxu0 0.0
      %4110 = vmatprep.subr.mxu0 0.0
      %4111 = vmatpush1.msra.mxu0 0.0
      %4112 = vmatprep.subr.mxu0 0.0
      %4113 = vmatpush1.msra.mxu0 0.0
      %4114 = vmatprep.subr.mxu0 0.0
      %4115 = vmatpush1.msra.mxu0 0.0
      %4116 = vmatprep.subr.mxu0 0.0
      %4117 = vmatpush1.msra.mxu0 0.0
      %4118 = vmatprep.subr.mxu0 0.0
      %4119 = vmatpush1.msra.mxu0 0.0
      %4120 = vmatprep.subr.mxu0 0.0
      %4121 = vmatpush1.msra.mxu0 0.0
      %4122 = vmatprep.subr.mxu0 0.0
      %4123 = vmatpush1.msra.mxu0 0.0
      %4124 = vmatprep.subr.mxu0 0.0
      %4125 = vmatpush1.msra.mxu0 0.0
      %4126 = vmatprep.subr.mxu0 0.0
      %4127 = vmatpush1.msra.mxu0 0.0
      %4128 = vmatprep.subr.mxu0 0.0
      %4129 = vmatpush1.msra.mxu0 0.0
      %4130 = vmatprep.subr.mxu0 0.0
      %4131 = vmatpush1.msra.mxu0 0.0
      %4132 = vmatprep.subr.mxu0 0.0
      %4133 = vmatpush1.msra.mxu0 0.0
      %4134 = vmatprep.subr.mxu0 0.0
      %4135 = vmatpush1.msra.mxu0 0.0
      %4136 = vmatprep.subr.mxu0 0.0
      %4137 = vmatpush1.msra.mxu0 0.0
      %4138 = vmatprep.subr.mxu0 0.0
      %4139 = vmatpush1.msra.mxu0 0.0
      %4140 = vmatprep.subr.mxu0 0.0
      %4141 = vmatpush1.msra.mxu0 0.0
      %4142 = vmatprep.subr.mxu0 0.0
      %4143 = vmatpush1.msra.mxu0 0.0
      %4144 = vmatprep.subr.mxu0 0.0
      %4145 = vmatpush1.msra.mxu0 0.0
      %4146 = vmatprep.subr.mxu0 0.0
      %4147 = vmatpush1.msra.mxu0 0.0
      %4148 = vmatprep.mubr.f32.mxu0 0.0
      %4149 = vmatmul.mubr.f32.gmra.mrb[0].mxu0 %v3920
      %v4150 = vpop.f32.mrb[0].mxu0
      %v4151 = vadd.f32 %v4082, %v4150
      %v4152 = vpop.f32.mrb[0].mxu0
      %4153 = vdwg.mxu0
      %v4154 = vmul.f32 %v3989, 0.35355338
      %v4156 = vlaneseq
      %v4157 = vshrl.u32 %v4156, 7
      %v4158 = vsub.s32 0, %v4157
      %v4159 = vrot.slane %v3878, %v4158
      %vm4161 = vcmask 64512
      %v4163 = vsel %vm4161, %v4154, 0
      %v4166 = vsel %vm4161, %v4070, 0
      %4168 = vmatprep.subr.mxu0 0.0
      %4169 = vmatpush1.xpose.msra.mxu0 %v4166
      %4170 = vmatprep.subr.mxu0 0.0
      %4171 = vmatpush1.xpose.msra.mxu0 0.0
      %4172 = vmatprep.subr.mxu0 0.0
      %4173 = vmatpush1.xpose.msra.mxu0 0.0
      %4174 = vmatprep.subr.mxu0 0.0
      %4175 = vmatpush1.xpose.msra.mxu0 0.0
      %4176 = vmatprep.subr.mxu0 0.0
      %4177 = vmatpush1.xpose.msra.mxu0 0.0
      %4178 = vmatprep.subr.mxu0 0.0
      %4179 = vmatpush1.xpose.msra.mxu0 0.0
      %4180 = vmatprep.subr.mxu0 0.0
      %4181 = vmatpush1.xpose.msra.mxu0 0.0
      %4182 = vmatprep.subr.mxu0 0.0
      %4183 = vmatpush1.xpose.msra.mxu0 0.0
      %4184 = vmatprep.subr.mxu0 0.0
      %4185 = vmatpush1.xpose.msra.mxu0 0.0
      %4186 = vmatprep.subr.mxu0 0.0
      %4187 = vmatpush1.xpose.msra.mxu0 0.0
      %4188 = vmatprep.subr.mxu0 0.0
      %4189 = vmatpush1.xpose.msra.mxu0 0.0
      %4190 = vmatprep.subr.mxu0 0.0
      %4191 = vmatpush1.xpose.msra.mxu0 0.0
      %4192 = vmatprep.subr.mxu0 0.0
      %4193 = vmatpush1.xpose.msra.mxu0 0.0
      %4194 = vmatprep.subr.mxu0 0.0
      %4195 = vmatpush1.xpose.msra.mxu0 0.0
      %4196 = vmatprep.subr.mxu0 0.0
      %4197 = vmatpush1.xpose.msra.mxu0 0.0
      %4198 = vmatprep.subr.mxu0 0.0
      %4199 = vmatpush1.xpose.msra.mxu0 0.0
      %4200 = vmatprep.subr.mxu0 0.0
      %4201 = vmatpush1.xpose.msra.mxu0 0.0
      %4202 = vmatprep.subr.mxu0 0.0
      %4203 = vmatpush1.xpose.msra.mxu0 0.0
      %4204 = vmatprep.subr.mxu0 0.0
      %4205 = vmatpush1.xpose.msra.mxu0 0.0
      %4206 = vmatprep.subr.mxu0 0.0
      %4207 = vmatpush1.xpose.msra.mxu0 0.0
      %4208 = vmatprep.subr.mxu0 0.0
      %4209 = vmatpush1.xpose.msra.mxu0 0.0
      %4210 = vmatprep.subr.mxu0 0.0
      %4211 = vmatpush1.xpose.msra.mxu0 0.0
      %4212 = vmatprep.subr.mxu0 0.0
      %4213 = vmatpush1.xpose.msra.mxu0 0.0
      %4214 = vmatprep.subr.mxu0 0.0
      %4215 = vmatpush1.xpose.msra.mxu0 0.0
      %4216 = vmatprep.subr.mxu0 0.0
      %4217 = vmatpush1.xpose.msra.mxu0 0.0
      %4218 = vmatprep.subr.mxu0 0.0
      %4219 = vmatpush1.xpose.msra.mxu0 0.0
      %4220 = vmatprep.subr.mxu0 0.0
      %4221 = vmatpush1.xpose.msra.mxu0 0.0
      %4222 = vmatprep.subr.mxu0 0.0
      %4223 = vmatpush1.xpose.msra.mxu0 0.0
      %4224 = vmatprep.subr.mxu0 0.0
      %4225 = vmatpush1.xpose.msra.mxu0 0.0
      %4226 = vmatprep.subr.mxu0 0.0
      %4227 = vmatpush1.xpose.msra.mxu0 0.0
      %4228 = vmatprep.subr.mxu0 0.0
      %4229 = vmatpush1.xpose.msra.mxu0 0.0
      %4230 = vmatprep.subr.mxu0 0.0
      %4231 = vmatpush1.xpose.msra.mxu0 0.0
      %4232 = vmatprep.mubr.f32.mxu0 0.0
      %4233 = vmatmul.mubr.f32.gmra.mrb[0].mxu0 %v4163
      %v4234 = vpop.f32.mrb[0].mxu0
      %v4235 = vadd.f32 %v4159, %v4234
      %v4236 = vpop.f32.mrb[0].mxu0
      %4237 = vdwg.mxu0
      %vm4238 = vcmask 36864
      %v4239 = vsel %vm4238, %v4235, -inf
      %4240 = vmax.xlane.f32.xlu0 %v4239
      %v4241 = vpop.xlane.xlu0 %4240
      %v4242 = vsub.f32 %v4235, %v4241
      %v4243 = vmul.f32 %v4242, 1.442695
      %v4244 = vpow.pop %v4243
      %v4245 = vsel %vm4238, %v4244, 0.0
      %4246 = vadd.xlane.f32.xlu0 %v4245
      %v4247 = vpop.xlane.xlu0 %4246
      %v4248 = vrcp.pop %v4247
      %v4249 = vmul.f32 %v4244, %v4248
      %vm4250 = vcmask 39936
      %v4252 = vsel %vm4250, %v4249, 0
      %vm4254 = vcmask 1044480
      %v4256 = vsel %vm4254, %v4151, 0
      %4258 = vmatprep.subr.mxu0 0.0
      %4259 = vmatpush1.msra.mxu0 %v4256
      %4260 = vmatprep.subr.mxu0 0.0
      %4261 = vmatpush1.msra.mxu0 0.0
      %4262 = vmatprep.subr.mxu0 0.0
      %4263 = vmatpush1.msra.mxu0 0.0
      %4264 = vmatprep.subr.mxu0 0.0
      %4265 = vmatpush1.msra.mxu0 0.0
      %4266 = vmatprep.subr.mxu0 0.0
      %4267 = vmatpush1.msra.mxu0 0.0
      %4268 = vmatprep.subr.mxu0 0.0
      %4269 = vmatpush1.msra.mxu0 0.0
      %4270 = vmatprep.subr.mxu0 0.0
      %4271 = vmatpush1.msra.mxu0 0.0
      %4272 = vmatprep.subr.mxu0 0.0
      %4273 = vmatpush1.msra.mxu0 0.0
      %4274 = vmatprep.subr.mxu0 0.0
      %4275 = vmatpush1.msra.mxu0 0.0
      %4276 = vmatprep.subr.mxu0 0.0
      %4277 = vmatpush1.msra.mxu0 0.0
      %4278 = vmatprep.subr.mxu0 0.0
      %4279 = vmatpush1.msra.mxu0 0.0
      %4280 = vmatprep.subr.mxu0 0.0
      %4281 = vmatpush1.msra.mxu0 0.0
      %4282 = vmatprep.subr.mxu0 0.0
      %4283 = vmatpush1.msra.mxu0 0.0
      %4284 = vmatprep.subr.mxu0 0.0
      %4285 = vmatpush1.msra.mxu0 0.0
      %4286 = vmatprep.subr.mxu0 0.0
      %4287 = vmatpush1.msra.mxu0 0.0
      %4288 = vmatprep.subr.mxu0 0.0
      %4289 = vmatpush1.msra.mxu0 0.0
      %4290 = vmatprep.subr.mxu0 0.0
      %4291 = vmatpush1.msra.mxu0 0.0
      %4292 = vmatprep.subr.mxu0 0.0
      %4293 = vmatpush1.msra.mxu0 0.0
      %4294 = vmatprep.subr.mxu0 0.0
      %4295 = vmatpush1.msra.mxu0 0.0
      %4296 = vmatprep.subr.mxu0 0.0
      %4297 = vmatpush1.msra.mxu0 0.0
      %4298 = vmatprep.subr.mxu0 0.0
      %4299 = vmatpush1.msra.mxu0 0.0
      %4300 = vmatprep.subr.mxu0 0.0
      %4301 = vmatpush1.msra.mxu0 0.0
      %4302 = vmatprep.subr.mxu0 0.0
      %4303 = vmatpush1.msra.mxu0 0.0
      %4304 = vmatprep.subr.mxu0 0.0
      %4305 = vmatpush1.msra.mxu0 0.0
      %4306 = vmatprep.subr.mxu0 0.0
      %4307 = vmatpush1.msra.mxu0 0.0
      %4308 = vmatprep.subr.mxu0 0.0
      %4309 = vmatpush1.msra.mxu0 0.0
      %4310 = vmatprep.subr.mxu0 0.0
      %4311 = vmatpush1.msra.mxu0 0.0
      %4312 = vmatprep.subr.mxu0 0.0
      %4313 = vmatpush1.msra.mxu0 0.0
      %4314 = vmatprep.subr.mxu0 0.0
      %4315 = vmatpush1.msra.mxu0 0.0
      %4316 = vmatprep.subr.mxu0 0.0
      %4317 = vmatpush1.msra.mxu0 0.0
      %4318 = vmatprep.subr.mxu0 0.0
      %4319 = vmatpush1.msra.mxu0 0.0
      %4320 = vmatprep.subr.mxu0 0.0
      %4321 = vmatpush1.msra.mxu0 0.0
      %4322 = vmatprep.mubr.f32.mxu0 0.0
      %4323 = vmatmul.mubr.f32.gmra.mrb[0].mxu0 %v4252
      %v4324 = vpop.f32.mrb[0].mxu0
      %v4325 = vadd.f32 0.0, %v4324
      %v4326 = vpop.f32.mrb[0].mxu0
      %4327 = vdwg.mxu0
      %v4328 = vld [vmem:[%s51] sm:$0xff]
      %s4329 = scalar_lea.vmem %s39, 32
      %v4330 = vld [vmem:[%s4329] sm:$0xff]
      %v4331 = vld [vmem:[%s4329 + $0x8] sm:$0xff]
      %v4332 = vld [vmem:[%s4329 + $0x10] sm:$0xff]
      %v4333 = vld [vmem:[%s4329 + $0x18] sm:$0xff]
      %s4334 = scalar_lea.vmem %s41, 1
      %v4335 = vld [vmem:[%s4334] sm:$0x1]
      %v4337 = vlaneseq
      %v4338 = vshrl.u32 %v4337, 7
      %v4339 = vsub.s32 0, %v4338
      %v4340 = vrot.slane %v4335, %v4339
      %4342 = vmatprep.subr.mxu0 0.0
      %4343 = vmatpush1.msra.mxu0 %v4330
      %4344 = vmatprep.subr.mxu0 0.0
      %4345 = vmatpush1.msra.mxu0 %v4331
      %4346 = vmatprep.subr.mxu0 0.0
      %4347 = vmatpush1.msra.mxu0 %v4332
      %4348 = vmatprep.subr.mxu0 0.0
      %4349 = vmatpush1.msra.mxu0 %v4333
      %4350 = vmatprep.subr.mxu0 0.0
      %4351 = vmatpush1.msra.mxu0 0.0
      %4352 = vmatprep.subr.mxu0 0.0
      %4353 = vmatpush1.msra.mxu0 0.0
      %4354 = vmatprep.subr.mxu0 0.0
      %4355 = vmatpush1.msra.mxu0 0.0
      %4356 = vmatprep.subr.mxu0 0.0
      %4357 = vmatpush1.msra.mxu0 0.0
      %4358 = vmatprep.subr.mxu0 0.0
      %4359 = vmatpush1.msra.mxu0 0.0
      %4360 = vmatprep.subr.mxu0 0.0
      %4361 = vmatpush1.msra.mxu0 0.0
      %4362 = vmatprep.subr.mxu0 0.0
      %4363 = vmatpush1.msra.mxu0 0.0
      %4364 = vmatprep.subr.mxu0 0.0
      %4365 = vmatpush1.msra.mxu0 0.0
      %4366 = vmatprep.subr.mxu0 0.0
      %4367 = vmatpush1.msra.mxu0 0.0
      %4368 = vmatprep.subr.mxu0 0.0
      %4369 = vmatpush1.msra.mxu0 0.0
      %4370 = vmatprep.subr.mxu0 0.0
      %4371 = vmatpush1.msra.mxu0 0.0
      %4372 = vmatprep.subr.mxu0 0.0
      %4373 = vmatpush1.msra.mxu0 0.0
      %4374 = vmatprep.subr.mxu0 0.0
      %4375 = vmatpush1.msra.mxu0 0.0
      %4376 = vmatprep.subr.mxu0 0.0
      %4377 = vmatpush1.msra.mxu0 0.0
      %4378 = vmatprep.subr.mxu0 0.0
      %4379 = vmatpush1.msra.mxu0 0.0
      %4380 = vmatprep.subr.mxu0 0.0
      %4381 = vmatpush1.msra.mxu0 0.0
      %4382 = vmatprep.subr.mxu0 0.0
      %4383 = vmatpush1.msra.mxu0 0.0
      %4384 = vmatprep.subr.mxu0 0.0
      %4385 = vmatpush1.msra.mxu0 0.0
      %4386 = vmatprep.subr.mxu0 0.0
      %4387 = vmatpush1.msra.mxu0 0.0
      %4388 = vmatprep.subr.mxu0 0.0
      %4389 = vmatpush1.msra.mxu0 0.0
      %4390 = vmatprep.subr.mxu0 0.0
      %4391 = vmatpush1.msra.mxu0 0.0
      %4392 = vmatprep.subr.mxu0 0.0
      %4393 = vmatpush1.msra.mxu0 0.0
      %4394 = vmatprep.subr.mxu0 0.0
      %4395 = vmatpush1.msra.mxu0 0.0
      %4396 = vmatprep.subr.mxu0 0.0
      %4397 = vmatpush1.msra.mxu0 0.0
      %4398 = vmatprep.subr.mxu0 0.0
      %4399 = vmatpush1.msra.mxu0 0.0
      %4400 = vmatprep.subr.mxu0 0.0
      %4401 = vmatpush1.msra.mxu0 0.0
      %4402 = vmatprep.subr.mxu0 0.0
      %4403 = vmatpush1.msra.mxu0 0.0
      %4404 = vmatprep.subr.mxu0 0.0
      %4405 = vmatpush1.msra.mxu0 0.0
      %4406 = vmatprep.mubr.f32.mxu0 0.0
      %4407 = vmatmul.mubr.f32.gmra.mrb[0].mxu0 %v3920
      %v4408 = vpop.f32.mrb[0].mxu0
      %v4409 = vadd.f32 %v4340, %v4408
      %v4410 = vpop.f32.mrb[0].mxu0
      %4411 = vdwg.mxu0
      %s4412 = scalar_lea.vmem %s43, 32
      %v4413 = vld [vmem:[%s4412] sm:$0xff]
      %v4414 = vld [vmem:[%s4412 + $0x8] sm:$0xff]
      %v4415 = vld [vmem:[%s4412 + $0x10] sm:$0xff]
      %v4416 = vld [vmem:[%s4412 + $0x18] sm:$0xff]
      %s4417 = scalar_lea.vmem %s45, 1
      %v4418 = vld [vmem:[%s4417] sm:$0x1]
      %v4420 = vlaneseq
      %v4421 = vshrl.u32 %v4420, 7
      %v4422 = vsub.s32 0, %v4421
      %v4423 = vrot.slane %v4418, %v4422
      %4425 = vmatprep.subr.mxu0 0.0
      %4426 = vmatpush1.msra.mxu0 %v4413
      %4427 = vmatprep.subr.mxu0 0.0
      %4428 = vmatpush1.msra.mxu0 %v4414
      %4429 = vmatprep.subr.mxu0 0.0
      %4430 = vmatpush1.msra.mxu0 %v4415
      %4431 = vmatprep.subr.mxu0 0.0
      %4432 = vmatpush1.msra.mxu0 %v4416
      %4433 = vmatprep.subr.mxu0 0.0
      %4434 = vmatpush1.msra.mxu0 0.0
      %4435 = vmatprep.subr.mxu0 0.0
      %4436 = vmatpush1.msra.mxu0 0.0
      %4437 = vmatprep.subr.mxu0 0.0
      %4438 = vmatpush1.msra.mxu0 0.0
      %4439 = vmatprep.subr.mxu0 0.0
      %4440 = vmatpush1.msra.mxu0 0.0
      %4441 = vmatprep.subr.mxu0 0.0
      %4442 = vmatpush1.msra.mxu0 0.0
      %4443 = vmatprep.subr.mxu0 0.0
      %4444 = vmatpush1.msra.mxu0 0.0
      %4445 = vmatprep.subr.mxu0 0.0
      %4446 = vmatpush1.msra.mxu0 0.0
      %4447 = vmatprep.subr.mxu0 0.0
      %4448 = vmatpush1.msra.mxu0 0.0
      %4449 = vmatprep.subr.mxu0 0.0
      %4450 = vmatpush1.msra.mxu0 0.0
      %4451 = vmatprep.subr.mxu0 0.0
      %4452 = vmatpush1.msra.mxu0 0.0
      %4453 = vmatprep.subr.mxu0 0.0
      %4454 = vmatpush1.msra.mxu0 0.0
      %4455 = vmatprep.subr.mxu0 0.0
      %4456 = vmatpush1.msra.mxu0 0.0
      %4457 = vmatprep.subr.mxu0 0.0
      %4458 = vmatpush1.msra.mxu0 0.0
      %4459 = vmatprep.subr.mxu0 0.0
      %4460 = vmatpush1.msra.mxu0 0.0
      %4461 = vmatprep.subr.mxu0 0.0
      %4462 = vmatpush1.msra.mxu0 0.0
      %4463 = vmatprep.subr.mxu0 0.0
      %4464 = vmatpush1.msra.mxu0 0.0
      %4465 = vmatprep.subr.mxu0 0.0
      %4466 = vmatpush1.msra.mxu0 0.0
      %4467 = vmatprep.subr.mxu0 0.0
      %4468 = vmatpush1.msra.mxu0 0.0
      %4469 = vmatprep.subr.mxu0 0.0
      %4470 = vmatpush1.msra.mxu0 0.0
      %4471 = vmatprep.subr.mxu0 0.0
      %4472 = vmatpush1.msra.mxu0 0.0
      %4473 = vmatprep.subr.mxu0 0.0
      %4474 = vmatpush1.msra.mxu0 0.0
      %4475 = vmatprep.subr.mxu0 0.0
      %4476 = vmatpush1.msra.mxu0 0.0
      %4477 = vmatprep.subr.mxu0 0.0
      %4478 = vmatpush1.msra.mxu0 0.0
      %4479 = vmatprep.subr.mxu0 0.0
      %4480 = vmatpush1.msra.mxu0 0.0
      %4481 = vmatprep.subr.mxu0 0.0
      %4482 = vmatpush1.msra.mxu0 0.0
      %4483 = vmatprep.subr.mxu0 0.0
      %4484 = vmatpush1.msra.mxu0 0.0
      %4485 = vmatprep.subr.mxu0 0.0
      %4486 = vmatpush1.msra.mxu0 0.0
      %4487 = vmatprep.subr.mxu0 0.0
      %4488 = vmatpush1.msra.mxu0 0.0
      %4489 = vmatprep.mubr.f32.mxu0 0.0
      %4490 = vmatmul.mubr.f32.gmra.mrb[0].mxu0 %v3920
      %v4491 = vpop.f32.mrb[0].mxu0
      %v4492 = vadd.f32 %v4423, %v4491
      %v4493 = vpop.f32.mrb[0].mxu0
      %4494 = vdwg.mxu0
      %s4495 = scalar_lea.vmem %s47, 32
      %v4496 = vld [vmem:[%s4495] sm:$0xff]
      %v4497 = vld [vmem:[%s4495 + $0x8] sm:$0xff]
      %v4498 = vld [vmem:[%s4495 + $0x10] sm:$0xff]
      %v4499 = vld [vmem:[%s4495 + $0x18] sm:$0xff]
      %s4500 = scalar_lea.vmem %s49, 1
      %v4501 = vld [vmem:[%s4500] sm:$0x1]
      %v4503 = vlaneseq
      %v4504 = vshrl.u32 %v4503, 7
      %v4505 = vsub.s32 0, %v4504
      %v4506 = vrot.slane %v4501, %v4505
      %4508 = vmatprep.subr.mxu0 0.0
      %4509 = vmatpush1.msra.mxu0 %v4496
      %4510 = vmatprep.subr.mxu0 0.0
      %4511 = vmatpush1.msra.mxu0 %v4497
      %4512 = vmatprep.subr.mxu0 0.0
      %4513 = vmatpush1.msra.mxu0 %v4498
      %4514 = vmatprep.subr.mxu0 0.0
      %4515 = vmatpush1.msra.mxu0 %v4499
      %4516 = vmatprep.subr.mxu0 0.0
      %4517 = vmatpush1.msra.mxu0 0.0
      %4518 = vmatprep.subr.mxu0 0.0
      %4519 = vmatpush1.msra.mxu0 0.0
      %4520 = vmatprep.subr.mxu0 0.0
      %4521 = vmatpush1.msra.mxu0 0.0
      %4522 = vmatprep.subr.mxu0 0.0
      %4523 = vmatpush1.msra.mxu0 0.0
      %4524 = vmatprep.subr.mxu0 0.0
      %4525 = vmatpush1.msra.mxu0 0.0
      %4526 = vmatprep.subr.mxu0 0.0
      %4527 = vmatpush1.msra.mxu0 0.0
      %4528 = vmatprep.subr.mxu0 0.0
      %4529 = vmatpush1.msra.mxu0 0.0
      %4530 = vmatprep.subr.mxu0 0.0
      %4531 = vmatpush1.msra.mxu0 0.0
      %4532 = vmatprep.subr.mxu0 0.0
      %4533 = vmatpush1.msra.mxu0 0.0
      %4534 = vmatprep.subr.mxu0 0.0
      %4535 = vmatpush1.msra.mxu0 0.0
      %4536 = vmatprep.subr.mxu0 0.0
      %4537 = vmatpush1.msra.mxu0 0.0
      %4538 = vmatprep.subr.mxu0 0.0
      %4539 = vmatpush1.msra.mxu0 0.0
      %4540 = vmatprep.subr.mxu0 0.0
      %4541 = vmatpush1.msra.mxu0 0.0
      %4542 = vmatprep.subr.mxu0 0.0
      %4543 = vmatpush1.msra.mxu0 0.0
      %4544 = vmatprep.subr.mxu0 0.0
      %4545 = vmatpush1.msra.mxu0 0.0
      %4546 = vmatprep.subr.mxu0 0.0
      %4547 = vmatpush1.msra.mxu0 0.0
      %4548 = vmatprep.subr.mxu0 0.0
      %4549 = vmatpush1.msra.mxu0 0.0
      %4550 = vmatprep.subr.mxu0 0.0
      %4551 = vmatpush1.msra.mxu0 0.0
      %4552 = vmatprep.subr.mxu0 0.0
      %4553 = vmatpush1.msra.mxu0 0.0
      %4554 = vmatprep.subr.mxu0 0.0
      %4555 = vmatpush1.msra.mxu0 0.0
      %4556 = vmatprep.subr.mxu0 0.0
      %4557 = vmatpush1.msra.mxu0 0.0
      %4558 = vmatprep.subr.mxu0 0.0
      %4559 = vmatpush1.msra.mxu0 0.0
      %4560 = vmatprep.subr.mxu0 0.0
      %4561 = vmatpush1.msra.mxu0 0.0
      %4562 = vmatprep.subr.mxu0 0.0
      %4563 = vmatpush1.msra.mxu0 0.0
      %4564 = vmatprep.subr.mxu0 0.0
      %4565 = vmatpush1.msra.mxu0 0.0
      %4566 = vmatprep.subr.mxu0 0.0
      %4567 = vmatpush1.msra.mxu0 0.0
      %4568 = vmatprep.subr.mxu0 0.0
      %4569 = vmatpush1.msra.mxu0 0.0
      %4570 = vmatprep.subr.mxu0 0.0
      %4571 = vmatpush1.msra.mxu0 0.0
      %4572 = vmatprep.mubr.f32.mxu0 0.0
      %4573 = vmatmul.mubr.f32.gmra.mrb[0].mxu0 %v3920
      %v4574 = vpop.f32.mrb[0].mxu0
      %v4575 = vadd.f32 %v4506, %v4574
      %v4576 = vpop.f32.mrb[0].mxu0
      %4577 = vdwg.mxu0
      %v4578 = vmul.f32 %v4409, 0.35355338
      %v4580 = vsel %vm4161, %v4578, 0
      %v4583 = vsel %vm4161, %v4492, 0
      %4585 = vmatprep.subr.mxu0 0.0
      %4586 = vmatpush1.xpose.msra.mxu0 %v4583
      %4587 = vmatprep.subr.mxu0 0.0
      %4588 = vmatpush1.xpose.msra.mxu0 0.0
      %4589 = vmatprep.subr.mxu0 0.0
      %4590 = vmatpush1.xpose.msra.mxu0 0.0
      %4591 = vmatprep.subr.mxu0 0.0
      %4592 = vmatpush1.xpose.msra.mxu0 0.0
      %4593 = vmatprep.subr.mxu0 0.0
      %4594 = vmatpush1.xpose.msra.mxu0 0.0
      %4595 = vmatprep.subr.mxu0 0.0
      %4596 = vmatpush1.xpose.msra.mxu0 0.0
      %4597 = vmatprep.subr.mxu0 0.0
      %4598 = vmatpush1.xpose.msra.mxu0 0.0
      %4599 = vmatprep.subr.mxu0 0.0
      %4600 = vmatpush1.xpose.msra.mxu0 0.0
      %4601 = vmatprep.subr.mxu0 0.0
      %4602 = vmatpush1.xpose.msra.mxu0 0.0
      %4603 = vmatprep.subr.mxu0 0.0
      %4604 = vmatpush1.xpose.msra.mxu0 0.0
      %4605 = vmatprep.subr.mxu0 0.0
      %4606 = vmatpush1.xpose.msra.mxu0 0.0
      %4607 = vmatprep.subr.mxu0 0.0
      %4608 = vmatpush1.xpose.msra.mxu0 0.0
      %4609 = vmatprep.subr.mxu0 0.0
      %4610 = vmatpush1.xpose.msra.mxu0 0.0
      %4611 = vmatprep.subr.mxu0 0.0
      %4612 = vmatpush1.xpose.msra.mxu0 0.0
      %4613 = vmatprep.subr.mxu0 0.0
      %4614 = vmatpush1.xpose.msra.mxu0 0.0
      %4615 = vmatprep.subr.mxu0 0.0
      %4616 = vmatpush1.xpose.msra.mxu0 0.0
      %4617 = vmatprep.subr.mxu0 0.0
      %4618 = vmatpush1.xpose.msra.mxu0 0.0
      %4619 = vmatprep.subr.mxu0 0.0
      %4620 = vmatpush1.xpose.msra.mxu0 0.0
      %4621 = vmatprep.subr.mxu0 0.0
      %4622 = vmatpush1.xpose.msra.mxu0 0.0
      %4623 = vmatprep.subr.mxu0 0.0
      %4624 = vmatpush1.xpose.msra.mxu0 0.0
      %4625 = vmatprep.subr.mxu0 0.0
      %4626 = vmatpush1.xpose.msra.mxu0 0.0
      %4627 = vmatprep.subr.mxu0 0.0
      %4628 = vmatpush1.xpose.msra.mxu0 0.0
      %4629 = vmatprep.subr.mxu0 0.0
      %4630 = vmatpush1.xpose.msra.mxu0 0.0
      %4631 = vmatprep.subr.mxu0 0.0
      %4632 = vmatpush1.xpose.msra.mxu0 0.0
      %4633 = vmatprep.subr.mxu0 0.0
      %4634 = vmatpush1.xpose.msra.mxu0 0.0
      %4635 = vmatprep.subr.mxu0 0.0
      %4636 = vmatpush1.xpose.msra.mxu0 0.0
      %4637 = vmatprep.subr.mxu0 0.0
      %4638 = vmatpush1.xpose.msra.mxu0 0.0
      %4639 = vmatprep.subr.mxu0 0.0
      %4640 = vmatpush1.xpose.msra.mxu0 0.0
      %4641 = vmatprep.subr.mxu0 0.0
      %4642 = vmatpush1.xpose.msra.mxu0 0.0
      %4643 = vmatprep.subr.mxu0 0.0
      %4644 = vmatpush1.xpose.msra.mxu0 0.0
      %4645 = vmatprep.subr.mxu0 0.0
      %4646 = vmatpush1.xpose.msra.mxu0 0.0
      %4647 = vmatprep.subr.mxu0 0.0
      %4648 = vmatpush1.xpose.msra.mxu0 0.0
      %4649 = vmatprep.mubr.f32.mxu0 0.0
      %4650 = vmatmul.mubr.f32.gmra.mrb[0].mxu0 %v4580
      %v4651 = vpop.f32.mrb[0].mxu0
      %v4652 = vadd.f32 %v4159, %v4651
      %v4653 = vpop.f32.mrb[0].mxu0
      %4654 = vdwg.mxu0
      %v4655 = vsel %vm4238, %v4652, -inf
      %4656 = vmax.xlane.f32.xlu0 %v4655
      %v4657 = vpop.xlane.xlu0 %4656
      %v4658 = vsub.f32 %v4652, %v4657
      %v4659 = vmul.f32 %v4658, 1.442695
      %v4660 = vpow.pop %v4659
      %v4661 = vsel %vm4238, %v4660, 0.0
      %4662 = vadd.xlane.f32.xlu0 %v4661
      %v4663 = vpop.xlane.xlu0 %4662
      %v4664 = vrcp.pop %v4663
      %v4665 = vmul.f32 %v4660, %v4664
      %v4667 = vsel %vm4250, %v4665, 0
      %v4670 = vsel %vm4254, %v4575, 0
      %4672 = vmatprep.subr.mxu0 0.0
      %4673 = vmatpush1.msra.mxu0 %v4670
      %4674 = vmatprep.subr.mxu0 0.0
      %4675 = vmatpush1.msra.mxu0 0.0
      %4676 = vmatprep.subr.mxu0 0.0
      %4677 = vmatpush1.msra.mxu0 0.0
      %4678 = vmatprep.subr.mxu0 0.0
      %4679 = vmatpush1.msra.mxu0 0.0
      %4680 = vmatprep.subr.mxu0 0.0
      %4681 = vmatpush1.msra.mxu0 0.0
      %4682 = vmatprep.subr.mxu0 0.0
      %4683 = vmatpush1.msra.mxu0 0.0
      %4684 = vmatprep.subr.mxu0 0.0
      %4685 = vmatpush1.msra.mxu0 0.0
      %4686 = vmatprep.subr.mxu0 0.0
      %4687 = vmatpush1.msra.mxu0 0.0
      %4688 = vmatprep.subr.mxu0 0.0
      %4689 = vmatpush1.msra.mxu0 0.0
      %4690 = vmatprep.subr.mxu0 0.0
      %4691 = vmatpush1.msra.mxu0 0.0
      %4692 = vmatprep.subr.mxu0 0.0
      %4693 = vmatpush1.msra.mxu0 0.0
      %4694 = vmatprep.subr.mxu0 0.0
      %4695 = vmatpush1.msra.mxu0 0.0
      %4696 = vmatprep.subr.mxu0 0.0
      %4697 = vmatpush1.msra.mxu0 0.0
      %4698 = vmatprep.subr.mxu0 0.0
      %4699 = vmatpush1.msra.mxu0 0.0
      %4700 = vmatprep.subr.mxu0 0.0
      %4701 = vmatpush1.msra.mxu0 0.0
      %4702 = vmatprep.subr.mxu0 0.0
      %4703 = vmatpush1.msra.mxu0 0.0
      %4704 = vmatprep.subr.mxu0 0.0
      %4705 = vmatpush1.msra.mxu0 0.0
      %4706 = vmatprep.subr.mxu0 0.0
      %4707 = vmatpush1.msra.mxu0 0.0
      %4708 = vmatprep.subr.mxu0 0.0
      %4709 = vmatpush1.msra.mxu0 0.0
      %4710 = vmatprep.subr.mxu0 0.0
      %4711 = vmatpush1.msra.mxu0 0.0
      %4712 = vmatprep.subr.mxu0 0.0
      %4713 = vmatpush1.msra.mxu0 0.0
      %4714 = vmatprep.subr.mxu0 0.0
      %4715 = vmatpush1.msra.mxu0 0.0
      %4716 = vmatprep.subr.mxu0 0.0
      %4717 = vmatpush1.msra.mxu0 0.0
      %4718 = vmatprep.subr.mxu0 0.0
      %4719 = vmatpush1.msra.mxu0 0.0
      %4720 = vmatprep.subr.mxu0 0.0
      %4721 = vmatpush1.msra.mxu0 0.0
      %4722 = vmatprep.subr.mxu0 0.0
      %4723 = vmatpush1.msra.mxu0 0.0
      %4724 = vmatprep.subr.mxu0 0.0
      %4725 = vmatpush1.msra.mxu0 0.0
      %4726 = vmatprep.subr.mxu0 0.0
      %4727 = vmatpush1.msra.mxu0 0.0
      %4728 = vmatprep.subr.mxu0 0.0
      %4729 = vmatpush1.msra.mxu0 0.0
      %4730 = vmatprep.subr.mxu0 0.0
      %4731 = vmatpush1.msra.mxu0 0.0
      %4732 = vmatprep.subr.mxu0 0.0
      %4733 = vmatpush1.msra.mxu0 0.0
      %4734 = vmatprep.subr.mxu0 0.0
      %4735 = vmatpush1.msra.mxu0 0.0
      %4736 = vmatprep.mubr.f32.mxu0 0.0
      %4737 = vmatmul.mubr.f32.gmra.mrb[0].mxu0 %v4667
      %v4738 = vpop.f32.mrb[0].mxu0
      %v4739 = vadd.f32 0.0, %v4738
      %v4740 = vpop.f32.mrb[0].mxu0
      %4741 = vdwg.mxu0
      %s4742 = scalar_lea.vmem %s51, 8
      %v4743 = vld [vmem:[%s4742] sm:$0xff]
      %v4745 = vsel %vm4161, %v4739, 0
      %4747 = vmatprep.subr.mxu0 0.0
      %4748 = vmatpush1.msra.mxu0 %v4743
      %4749 = vmatprep.subr.mxu0 0.0
      %4750 = vmatpush1.msra.mxu0 0.0
      %4751 = vmatprep.subr.mxu0 0.0
      %4752 = vmatpush1.msra.mxu0 0.0
      %4753 = vmatprep.subr.mxu0 0.0
      %4754 = vmatpush1.msra.mxu0 0.0
      %4755 = vmatprep.subr.mxu0 0.0
      %4756 = vmatpush1.msra.mxu0 0.0
      %4757 = vmatprep.subr.mxu0 0.0
      %4758 = vmatpush1.msra.mxu0 0.0
      %4759 = vmatprep.subr.mxu0 0.0
      %4760 = vmatpush1.msra.mxu0 0.0
      %4761 = vmatprep.subr.mxu0 0.0
      %4762 = vmatpush1.msra.mxu0 0.0
      %4763 = vmatprep.subr.mxu0 0.0
      %4764 = vmatpush1.msra.mxu0 0.0
      %4765 = vmatprep.subr.mxu0 0.0
      %4766 = vmatpush1.msra.mxu0 0.0
      %4767 = vmatprep.subr.mxu0 0.0
      %4768 = vmatpush1.msra.mxu0 0.0
      %4769 = vmatprep.subr.mxu0 0.0
      %4770 = vmatpush1.msra.mxu0 0.0
      %4771 = vmatprep.subr.mxu0 0.0
      %4772 = vmatpush1.msra.mxu0 0.0
      %4773 = vmatprep.subr.mxu0 0.0
      %4774 = vmatpush1.msra.mxu0 0.0
      %4775 = vmatprep.subr.mxu0 0.0
      %4776 = vmatpush1.msra.mxu0 0.0
      %4777 = vmatprep.subr.mxu0 0.0
      %4778 = vmatpush1.msra.mxu0 0.0
      %4779 = vmatprep.subr.mxu0 0.0
      %4780 = vmatpush1.msra.mxu0 0.0
      %4781 = vmatprep.subr.mxu0 0.0
      %4782 = vmatpush1.msra.mxu0 0.0
      %4783 = vmatprep.subr.mxu0 0.0
      %4784 = vmatpush1.msra.mxu0 0.0
      %4785 = vmatprep.subr.mxu0 0.0
      %4786 = vmatpush1.msra.mxu0 0.0
      %4787 = vmatprep.subr.mxu0 0.0
      %4788 = vmatpush1.msra.mxu0 0.0
      %4789 = vmatprep.subr.mxu0 0.0
      %4790 = vmatpush1.msra.mxu0 0.0
      %4791 = vmatprep.subr.mxu0 0.0
      %4792 = vmatpush1.msra.mxu0 0.0
      %4793 = vmatprep.subr.mxu0 0.0
      %4794 = vmatpush1.msra.mxu0 0.0
      %4795 = vmatprep.subr.mxu0 0.0
      %4796 = vmatpush1.msra.mxu0 0.0
      %4797 = vmatprep.subr.mxu0 0.0
      %4798 = vmatpush1.msra.mxu0 0.0
      %4799 = vmatprep.subr.mxu0 0.0
      %4800 = vmatpush1.msra.mxu0 0.0
      %4801 = vmatprep.subr.mxu0 0.0
      %4802 = vmatpush1.msra.mxu0 0.0
      %4803 = vmatprep.subr.mxu0 0.0
      %4804 = vmatpush1.msra.mxu0 0.0
      %4805 = vmatprep.subr.mxu0 0.0
      %4806 = vmatpush1.msra.mxu0 0.0
      %4807 = vmatprep.subr.mxu0 0.0
      %4808 = vmatpush1.msra.mxu0 0.0
      %4809 = vmatprep.subr.mxu0 0.0
      %4810 = vmatpush1.msra.mxu0 0.0
      %4811 = vmatprep.mubr.f32.mxu0 0.0
      %4812 = vmatmul.mubr.f32.gmra.mrb[0].mxu0 %v4745
      %v4813 = vpop.f32.mrb[0].mxu0
      %v4814 = vadd.f32 0.0, %v4813
      %v4815 = vpop.f32.mrb[0].mxu0
      %4816 = vdwg.mxu0
      %v4818 = vsel %vm4161, %v4325, 0
      %4820 = vmatprep.subr.mxu0 0.0
      %4821 = vmatpush1.msra.mxu0 %v4328
      %4822 = vmatprep.subr.mxu0 0.0
      %4823 = vmatpush1.msra.mxu0 0.0
      %4824 = vmatprep.subr.mxu0 0.0
      %4825 = vmatpush1.msra.mxu0 0.0
      %4826 = vmatprep.subr.mxu0 0.0
      %4827 = vmatpush1.msra.mxu0 0.0
      %4828 = vmatprep.subr.mxu0 0.0
      %4829 = vmatpush1.msra.mxu0 0.0
      %4830 = vmatprep.subr.mxu0 0.0
      %4831 = vmatpush1.msra.mxu0 0.0
      %4832 = vmatprep.subr.mxu0 0.0
      %4833 = vmatpush1.msra.mxu0 0.0
      %4834 = vmatprep.subr.mxu0 0.0
      %4835 = vmatpush1.msra.mxu0 0.0
      %4836 = vmatprep.subr.mxu0 0.0
      %4837 = vmatpush1.msra.mxu0 0.0
      %4838 = vmatprep.subr.mxu0 0.0
      %4839 = vmatpush1.msra.mxu0 0.0
      %4840 = vmatprep.subr.mxu0 0.0
      %4841 = vmatpush1.msra.mxu0 0.0
      %4842 = vmatprep.subr.mxu0 0.0
      %4843 = vmatpush1.msra.mxu0 0.0
      %4844 = vmatprep.subr.mxu0 0.0
      %4845 = vmatpush1.msra.mxu0 0.0
      %4846 = vmatprep.subr.mxu0 0.0
      %4847 = vmatpush1.msra.mxu0 0.0
      %4848 = vmatprep.subr.mxu0 0.0
      %4849 = vmatpush1.msra.mxu0 0.0
      %4850 = vmatprep.subr.mxu0 0.0
      %4851 = vmatpush1.msra.mxu0 0.0
      %4852 = vmatprep.subr.mxu0 0.0
      %4853 = vmatpush1.msra.mxu0 0.0
      %4854 = vmatprep.subr.mxu0 0.0
      %4855 = vmatpush1.msra.mxu0 0.0
      %4856 = vmatprep.subr.mxu0 0.0
      %4857 = vmatpush1.msra.mxu0 0.0
      %4858 = vmatprep.subr.mxu0 0.0
      %4859 = vmatpush1.msra.mxu0 0.0
      %4860 = vmatprep.subr.mxu0 0.0
      %4861 = vmatpush1.msra.mxu0 0.0
      %4862 = vmatprep.subr.mxu0 0.0
      %4863 = vmatpush1.msra.mxu0 0.0
      %4864 = vmatprep.subr.mxu0 0.0
      %4865 = vmatpush1.msra.mxu0 0.0
      %4866 = vmatprep.subr.mxu0 0.0
      %4867 = vmatpush1.msra.mxu0 0.0
      %4868 = vmatprep.subr.mxu0 0.0
      %4869 = vmatpush1.msra.mxu0 0.0
      %4870 = vmatprep.subr.mxu0 0.0
      %4871 = vmatpush1.msra.mxu0 0.0
      %4872 = vmatprep.subr.mxu0 0.0
      %4873 = vmatpush1.msra.mxu0 0.0
      %4874 = vmatprep.subr.mxu0 0.0
      %4875 = vmatpush1.msra.mxu0 0.0
      %4876 = vmatprep.subr.mxu0 0.0
      %4877 = vmatpush1.msra.mxu0 0.0
      %4878 = vmatprep.subr.mxu0 0.0
      %4879 = vmatpush1.msra.mxu0 0.0
      %4880 = vmatprep.subr.mxu0 0.0
      %4881 = vmatpush1.msra.mxu0 0.0
      %4882 = vmatprep.subr.mxu0 0.0
      %4883 = vmatpush1.msra.mxu0 0.0
      %4884 = vmatprep.mubr.f32.mxu0 0.0
      %4885 = vmatmul.mubr.f32.gmra.mrb[0].mxu0 %v4818
      %v4886 = vpop.f32.mrb[0].mxu0
      %v4887 = vadd.f32 %v4814, %v4886
      %v4888 = vpop.f32.mrb[0].mxu0
      %4889 = vdwg.mxu0
      %s4890 = scalar_lea.vmem %s39, 64
      %v4891 = vld [vmem:[%s4890] sm:$0xff]
      %v4892 = vld [vmem:[%s4890 + $0x8] sm:$0xff]
      %v4893 = vld [vmem:[%s4890 + $0x10] sm:$0xff]
      %v4894 = vld [vmem:[%s4890 + $0x18] sm:$0xff]
      %s4895 = scalar_lea.vmem %s41, 2
      %v4896 = vld [vmem:[%s4895] sm:$0x1]
      %v4898 = vlaneseq
      %v4899 = vshrl.u32 %v4898, 7
      %v4900 = vsub.s32 0, %v4899
      %v4901 = vrot.slane %v4896, %v4900
      %4903 = vmatprep.subr.mxu0 0.0
      %4904 = vmatpush1.msra.mxu0 %v4891
      %4905 = vmatprep.subr.mxu0 0.0
      %4906 = vmatpush1.msra.mxu0 %v4892
      %4907 = vmatprep.subr.mxu0 0.0
      %4908 = vmatpush1.msra.mxu0 %v4893
      %4909 = vmatprep.subr.mxu0 0.0
      %4910 = vmatpush1.msra.mxu0 %v4894
      %4911 = vmatprep.subr.mxu0 0.0
      %4912 = vmatpush1.msra.mxu0 0.0
      %4913 = vmatprep.subr.mxu0 0.0
      %4914 = vmatpush1.msra.mxu0 0.0
      %4915 = vmatprep.subr.mxu0 0.0
      %4916 = vmatpush1.msra.mxu0 0.0
      %4917 = vmatprep.subr.mxu0 0.0
      %4918 = vmatpush1.msra.mxu0 0.0
      %4919 = vmatprep.subr.mxu0 0.0
      %4920 = vmatpush1.msra.mxu0 0.0
      %4921 = vmatprep.subr.mxu0 0.0
      %4922 = vmatpush1.msra.mxu0 0.0
      %4923 = vmatprep.subr.mxu0 0.0
      %4924 = vmatpush1.msra.mxu0 0.0
      %4925 = vmatprep.subr.mxu0 0.0
      %4926 = vmatpush1.msra.mxu0 0.0
      %4927 = vmatprep.subr.mxu0 0.0
      %4928 = vmatpush1.msra.mxu0 0.0
      %4929 = vmatprep.subr.mxu0 0.0
      %4930 = vmatpush1.msra.mxu0 0.0
      %4931 = vmatprep.subr.mxu0 0.0
      %4932 = vmatpush1.msra.mxu0 0.0
      %4933 = vmatprep.subr.mxu0 0.0
      %4934 = vmatpush1.msra.mxu0 0.0
      %4935 = vmatprep.subr.mxu0 0.0
      %4936 = vmatpush1.msra.mxu0 0.0
      %4937 = vmatprep.subr.mxu0 0.0
      %4938 = vmatpush1.msra.mxu0 0.0
      %4939 = vmatprep.subr.mxu0 0.0
      %4940 = vmatpush1.msra.mxu0 0.0
      %4941 = vmatprep.subr.mxu0 0.0
      %4942 = vmatpush1.msra.mxu0 0.0
      %4943 = vmatprep.subr.mxu0 0.0
      %4944 = vmatpush1.msra.mxu0 0.0
      %4945 = vmatprep.subr.mxu0 0.0
      %4946 = vmatpush1.msra.mxu0 0.0
      %4947 = vmatprep.subr.mxu0 0.0
      %4948 = vmatpush1.msra.mxu0 0.0
      %4949 = vmatprep.subr.mxu0 0.0
      %4950 = vmatpush1.msra.mxu0 0.0
      %4951 = vmatprep.subr.mxu0 0.0
      %4952 = vmatpush1.msra.mxu0 0.0
      %4953 = vmatprep.subr.mxu0 0.0
      %4954 = vmatpush1.msra.mxu0 0.0
      %4955 = vmatprep.subr.mxu0 0.0
      %4956 = vmatpush1.msra.mxu0 0.0
      %4957 = vmatprep.subr.mxu0 0.0
      %4958 = vmatpush1.msra.mxu0 0.0
      %4959 = vmatprep.subr.mxu0 0.0
      %4960 = vmatpush1.msra.mxu0 0.0
      %4961 = vmatprep.subr.mxu0 0.0
      %4962 = vmatpush1.msra.mxu0 0.0
      %4963 = vmatprep.subr.mxu0 0.0
      %4964 = vmatpush1.msra.mxu0 0.0
      %4965 = vmatprep.subr.mxu0 0.0
      %4966 = vmatpush1.msra.mxu0 0.0
      %4967 = vmatprep.mubr.f32.mxu0 0.0
      %4968 = vmatmul.mubr.f32.gmra.mrb[0].mxu0 %v3920
      %v4969 = vpop.f32.mrb[0].mxu0
      %v4970 = vadd.f32 %v4901, %v4969
      %v4971 = vpop.f32.mrb[0].mxu0
      %4972 = vdwg.mxu0
      %s4973 = scalar_lea.vmem %s43, 64
      %v4974 = vld [vmem:[%s4973] sm:$0xff]
      %v4975 = vld [vmem:[%s4973 + $0x8] sm:$0xff]
      %v4976 = vld [vmem:[%s4973 + $0x10] sm:$0xff]
      %v4977 = vld [vmem:[%s4973 + $0x18] sm:$0xff]
      %s4978 = scalar_lea.vmem %s45, 2
      %v4979 = vld [vmem:[%s4978] sm:$0x1]
      %v4981 = vlaneseq
      %v4982 = vshrl.u32 %v4981, 7
      %v4983 = vsub.s32 0, %v4982
      %v4984 = vrot.slane %v4979, %v4983
      %4986 = vmatprep.subr.mxu0 0.0
      %4987 = vmatpush1.msra.mxu0 %v4974
      %4988 = vmatprep.subr.mxu0 0.0
      %4989 = vmatpush1.msra.mxu0 %v4975
      %4990 = vmatprep.subr.mxu0 0.0
      %4991 = vmatpush1.msra.mxu0 %v4976
      %4992 = vmatprep.subr.mxu0 0.0
      %4993 = vmatpush1.msra.mxu0 %v4977
      %4994 = vmatprep.subr.mxu0 0.0
      %4995 = vmatpush1.msra.mxu0 0.0
      %4996 = vmatprep.subr.mxu0 0.0
      %4997 = vmatpush1.msra.mxu0 0.0
      %4998 = vmatprep.subr.mxu0 0.0
      %4999 = vmatpush1.msra.mxu0 0.0
      %5000 = vmatprep.subr.mxu0 0.0
      %5001 = vmatpush1.msra.mxu0 0.0
      %5002 = vmatprep.subr.mxu0 0.0
      %5003 = vmatpush1.msra.mxu0 0.0
      %5004 = vmatprep.subr.mxu0 0.0
      %5005 = vmatpush1.msra.mxu0 0.0
      %5006 = vmatprep.subr.mxu0 0.0
      %5007 = vmatpush1.msra.mxu0 0.0
      %5008 = vmatprep.subr.mxu0 0.0
      %5009 = vmatpush1.msra.mxu0 0.0
      %5010 = vmatprep.subr.mxu0 0.0
      %5011 = vmatpush1.msra.mxu0 0.0
      %5012 = vmatprep.subr.mxu0 0.0
      %5013 = vmatpush1.msra.mxu0 0.0
      %5014 = vmatprep.subr.mxu0 0.0
      %5015 = vmatpush1.msra.mxu0 0.0
      %5016 = vmatprep.subr.mxu0 0.0
      %5017 = vmatpush1.msra.mxu0 0.0
      %5018 = vmatprep.subr.mxu0 0.0
      %5019 = vmatpush1.msra.mxu0 0.0
      %5020 = vmatprep.subr.mxu0 0.0
      %5021 = vmatpush1.msra.mxu0 0.0
      %5022 = vmatprep.subr.mxu0 0.0
      %5023 = vmatpush1.msra.mxu0 0.0
      %5024 = vmatprep.subr.mxu0 0.0
      %5025 = vmatpush1.msra.mxu0 0.0
      %5026 = vmatprep.subr.mxu0 0.0
      %5027 = vmatpush1.msra.mxu0 0.0
      %5028 = vmatprep.subr.mxu0 0.0
      %5029 = vmatpush1.msra.mxu0 0.0
      %5030 = vmatprep.subr.mxu0 0.0
      %5031 = vmatpush1.msra.mxu0 0.0
      %5032 = vmatprep.subr.mxu0 0.0
      %5033 = vmatpush1.msra.mxu0 0.0
      %5034 = vmatprep.subr.mxu0 0.0
      %5035 = vmatpush1.msra.mxu0 0.0
      %5036 = vmatprep.subr.mxu0 0.0
      %5037 = vmatpush1.msra.mxu0 0.0
      %5038 = vmatprep.subr.mxu0 0.0
      %5039 = vmatpush1.msra.mxu0 0.0
      %5040 = vmatprep.subr.mxu0 0.0
      %5041 = vmatpush1.msra.mxu0 0.0
      %5042 = vmatprep.subr.mxu0 0.0
      %5043 = vmatpush1.msra.mxu0 0.0
      %5044 = vmatprep.subr.mxu0 0.0
      %5045 = vmatpush1.msra.mxu0 0.0
      %5046 = vmatprep.subr.mxu0 0.0
      %5047 = vmatpush1.msra.mxu0 0.0
      %5048 = vmatprep.subr.mxu0 0.0
      %5049 = vmatpush1.msra.mxu0 0.0
      %5050 = vmatprep.mubr.f32.mxu0 0.0
      %5051 = vmatmul.mubr.f32.gmra.mrb[0].mxu0 %v3920
      %v5052 = vpop.f32.mrb[0].mxu0
      %v5053 = vadd.f32 %v4984, %v5052
      %v5054 = vpop.f32.mrb[0].mxu0
      %5055 = vdwg.mxu0
      %s5056 = scalar_lea.vmem %s47, 64
      %v5057 = vld [vmem:[%s5056] sm:$0xff]
      %v5058 = vld [vmem:[%s5056 + $0x8] sm:$0xff]
      %v5059 = vld [vmem:[%s5056 + $0x10] sm:$0xff]
      %v5060 = vld [vmem:[%s5056 + $0x18] sm:$0xff]
      %s5061 = scalar_lea.vmem %s49, 2
      %v5062 = vld [vmem:[%s5061] sm:$0x1]
      %v5064 = vlaneseq
      %v5065 = vshrl.u32 %v5064, 7
      %v5066 = vsub.s32 0, %v5065
      %v5067 = vrot.slane %v5062, %v5066
      %5069 = vmatprep.subr.mxu0 0.0
      %5070 = vmatpush1.msra.mxu0 %v5057
      %5071 = vmatprep.subr.mxu0 0.0
      %5072 = vmatpush1.msra.mxu0 %v5058
      %5073 = vmatprep.subr.mxu0 0.0
      %5074 = vmatpush1.msra.mxu0 %v5059
      %5075 = vmatprep.subr.mxu0 0.0
      %5076 = vmatpush1.msra.mxu0 %v5060
      %5077 = vmatprep.subr.mxu0 0.0
      %5078 = vmatpush1.msra.mxu0 0.0
      %5079 = vmatprep.subr.mxu0 0.0
      %5080 = vmatpush1.msra.mxu0 0.0
      %5081 = vmatprep.subr.mxu0 0.0
      %5082 = vmatpush1.msra.mxu0 0.0
      %5083 = vmatprep.subr.mxu0 0.0
      %5084 = vmatpush1.msra.mxu0 0.0
      %5085 = vmatprep.subr.mxu0 0.0
      %5086 = vmatpush1.msra.mxu0 0.0
      %5087 = vmatprep.subr.mxu0 0.0
      %5088 = vmatpush1.msra.mxu0 0.0
      %5089 = vmatprep.subr.mxu0 0.0
      %5090 = vmatpush1.msra.mxu0 0.0
      %5091 = vmatprep.subr.mxu0 0.0
      %5092 = vmatpush1.msra.mxu0 0.0
      %5093 = vmatprep.subr.mxu0 0.0
      %5094 = vmatpush1.msra.mxu0 0.0
      %5095 = vmatprep.subr.mxu0 0.0
      %5096 = vmatpush1.msra.mxu0 0.0
      %5097 = vmatprep.subr.mxu0 0.0
      %5098 = vmatpush1.msra.mxu0 0.0
      %5099 = vmatprep.subr.mxu0 0.0
      %5100 = vmatpush1.msra.mxu0 0.0
      %5101 = vmatprep.subr.mxu0 0.0
      %5102 = vmatpush1.msra.mxu0 0.0
      %5103 = vmatprep.subr.mxu0 0.0
      %5104 = vmatpush1.msra.mxu0 0.0
      %5105 = vmatprep.subr.mxu0 0.0
      %5106 = vmatpush1.msra.mxu0 0.0
      %5107 = vmatprep.subr.mxu0 0.0
      %5108 = vmatpush1.msra.mxu0 0.0
      %5109 = vmatprep.subr.mxu0 0.0
      %5110 = vmatpush1.msra.mxu0 0.0
      %5111 = vmatprep.subr.mxu0 0.0
      %5112 = vmatpush1.msra.mxu0 0.0
      %5113 = vmatprep.subr.mxu0 0.0
      %5114 = vmatpush1.msra.mxu0 0.0
      %5115 = vmatprep.subr.mxu0 0.0
      %5116 = vmatpush1.msra.mxu0 0.0
      %5117 = vmatprep.subr.mxu0 0.0
      %5118 = vmatpush1.msra.mxu0 0.0
      %5119 = vmatprep.subr.mxu0 0.0
      %5120 = vmatpush1.msra.mxu0 0.0
      %5121 = vmatprep.subr.mxu0 0.0
      %5122 = vmatpush1.msra.mxu0 0.0
      %5123 = vmatprep.subr.mxu0 0.0
      %5124 = vmatpush1.msra.mxu0 0.0
      %5125 = vmatprep.subr.mxu0 0.0
      %5126 = vmatpush1.msra.mxu0 0.0
      %5127 = vmatprep.subr.mxu0 0.0
      %5128 = vmatpush1.msra.mxu0 0.0
      %5129 = vmatprep.subr.mxu0 0.0
      %5130 = vmatpush1.msra.mxu0 0.0
      %5131 = vmatprep.subr.mxu0 0.0
      %5132 = vmatpush1.msra.mxu0 0.0
      %5133 = vmatprep.mubr.f32.mxu0 0.0
      %5134 = vmatmul.mubr.f32.gmra.mrb[0].mxu0 %v3920
      %v5135 = vpop.f32.mrb[0].mxu0
      %v5136 = vadd.f32 %v5067, %v5135
      %v5137 = vpop.f32.mrb[0].mxu0
      %5138 = vdwg.mxu0
      %v5139 = vmul.f32 %v4970, 0.35355338
      %v5141 = vsel %vm4161, %v5139, 0
      %v5144 = vsel %vm4161, %v5053, 0
      %5146 = vmatprep.subr.mxu0 0.0
      %5147 = vmatpush1.xpose.msra.mxu0 %v5144
      %5148 = vmatprep.subr.mxu0 0.0
      %5149 = vmatpush1.xpose.msra.mxu0 0.0
      %5150 = vmatprep.subr.mxu0 0.0
      %5151 = vmatpush1.xpose.msra.mxu0 0.0
      %5152 = vmatprep.subr.mxu0 0.0
      %5153 = vmatpush1.xpose.msra.mxu0 0.0
      %5154 = vmatprep.subr.mxu0 0.0
      %5155 = vmatpush1.xpose.msra.mxu0 0.0
      %5156 = vmatprep.subr.mxu0 0.0
      %5157 = vmatpush1.xpose.msra.mxu0 0.0
      %5158 = vmatprep.subr.mxu0 0.0
      %5159 = vmatpush1.xpose.msra.mxu0 0.0
      %5160 = vmatprep.subr.mxu0 0.0
      %5161 = vmatpush1.xpose.msra.mxu0 0.0
      %5162 = vmatprep.subr.mxu0 0.0
      %5163 = vmatpush1.xpose.msra.mxu0 0.0
      %5164 = vmatprep.subr.mxu0 0.0
      %5165 = vmatpush1.xpose.msra.mxu0 0.0
      %5166 = vmatprep.subr.mxu0 0.0
      %5167 = vmatpush1.xpose.msra.mxu0 0.0
      %5168 = vmatprep.subr.mxu0 0.0
      %5169 = vmatpush1.xpose.msra.mxu0 0.0
      %5170 = vmatprep.subr.mxu0 0.0
      %5171 = vmatpush1.xpose.msra.mxu0 0.0
      %5172 = vmatprep.subr.mxu0 0.0
      %5173 = vmatpush1.xpose.msra.mxu0 0.0
      %5174 = vmatprep.subr.mxu0 0.0
      %5175 = vmatpush1.xpose.msra.mxu0 0.0
      %5176 = vmatprep.subr.mxu0 0.0
      %5177 = vmatpush1.xpose.msra.mxu0 0.0
      %5178 = vmatprep.subr.mxu0 0.0
      %5179 = vmatpush1.xpose.msra.mxu0 0.0
      %5180 = vmatprep.subr.mxu0 0.0
      %5181 = vmatpush1.xpose.msra.mxu0 0.0
      %5182 = vmatprep.subr.mxu0 0.0
      %5183 = vmatpush1.xpose.msra.mxu0 0.0
      %5184 = vmatprep.subr.mxu0 0.0
      %5185 = vmatpush1.xpose.msra.mxu0 0.0
      %5186 = vmatprep.subr.mxu0 0.0
      %5187 = vmatpush1.xpose.msra.mxu0 0.0
      %5188 = vmatprep.subr.mxu0 0.0
      %5189 = vmatpush1.xpose.msra.mxu0 0.0
      %5190 = vmatprep.subr.mxu0 0.0
      %5191 = vmatpush1.xpose.msra.mxu0 0.0
      %5192 = vmatprep.subr.mxu0 0.0
      %5193 = vmatpush1.xpose.msra.mxu0 0.0
      %5194 = vmatprep.subr.mxu0 0.0
      %5195 = vmatpush1.xpose.msra.mxu0 0.0
      %5196 = vmatprep.subr.mxu0 0.0
      %5197 = vmatpush1.xpose.msra.mxu0 0.0
      %5198 = vmatprep.subr.mxu0 0.0
      %5199 = vmatpush1.xpose.msra.mxu0 0.0
      %5200 = vmatprep.subr.mxu0 0.0
      %5201 = vmatpush1.xpose.msra.mxu0 0.0
      %5202 = vmatprep.subr.mxu0 0.0
      %5203 = vmatpush1.xpose.msra.mxu0 0.0
      %5204 = vmatprep.subr.mxu0 0.0
      %5205 = vmatpush1.xpose.msra.mxu0 0.0
      %5206 = vmatprep.subr.mxu0 0.0
      %5207 = vmatpush1.xpose.msra.mxu0 0.0
      %5208 = vmatprep.subr.mxu0 0.0
      %5209 = vmatpush1.xpose.msra.mxu0 0.0
      %5210 = vmatprep.mubr.f32.mxu0 0.0
      %5211 = vmatmul.mubr.f32.gmra.mrb[0].mxu0 %v5141
      %v5212 = vpop.f32.mrb[0].mxu0
      %v5213 = vadd.f32 %v4159, %v5212
      %v5214 = vpop.f32.mrb[0].mxu0
      %5215 = vdwg.mxu0
      %v5216 = vsel %vm4238, %v5213, -inf
      %5217 = vmax.xlane.f32.xlu0 %v5216
      %v5218 = vpop.xlane.xlu0 %5217
      %v5219 = vsub.f32 %v5213, %v5218
      %v5220 = vmul.f32 %v5219, 1.442695
      %v5221 = vpow.pop %v5220
      %v5222 = vsel %vm4238, %v5221, 0.0
      %5223 = vadd.xlane.f32.xlu0 %v5222
      %v5224 = vpop.xlane.xlu0 %5223
      %v5225 = vrcp.pop %v5224
      %v5226 = vmul.f32 %v5221, %v5225
      %v5228 = vsel %vm4250, %v5226, 0
      %v5231 = vsel %vm4254, %v5136, 0
      %5233 = vmatprep.subr.mxu0 0.0
      %5234 = vmatpush1.msra.mxu0 %v5231
      %5235 = vmatprep.subr.mxu0 0.0
      %5236 = vmatpush1.msra.mxu0 0.0
      %5237 = vmatprep.subr.mxu0 0.0
      %5238 = vmatpush1.msra.mxu0 0.0
      %5239 = vmatprep.subr.mxu0 0.0
      %5240 = vmatpush1.msra.mxu0 0.0
      %5241 = vmatprep.subr.mxu0 0.0
      %5242 = vmatpush1.msra.mxu0 0.0
      %5243 = vmatprep.subr.mxu0 0.0
      %5244 = vmatpush1.msra.mxu0 0.0
      %5245 = vmatprep.subr.mxu0 0.0
      %5246 = vmatpush1.msra.mxu0 0.0
      %5247 = vmatprep.subr.mxu0 0.0
      %5248 = vmatpush1.msra.mxu0 0.0
      %5249 = vmatprep.subr.mxu0 0.0
      %5250 = vmatpush1.msra.mxu0 0.0
      %5251 = vmatprep.subr.mxu0 0.0
      %5252 = vmatpush1.msra.mxu0 0.0
      %5253 = vmatprep.subr.mxu0 0.0
      %5254 = vmatpush1.msra.mxu0 0.0
      %5255 = vmatprep.subr.mxu0 0.0
      %5256 = vmatpush1.msra.mxu0 0.0
      %5257 = vmatprep.subr.mxu0 0.0
      %5258 = vmatpush1.msra.mxu0 0.0
      %5259 = vmatprep.subr.mxu0 0.0
      %5260 = vmatpush1.msra.mxu0 0.0
      %5261 = vmatprep.subr.mxu0 0.0
      %5262 = vmatpush1.msra.mxu0 0.0
      %5263 = vmatprep.subr.mxu0 0.0
      %5264 = vmatpush1.msra.mxu0 0.0
      %5265 = vmatprep.subr.mxu0 0.0
      %5266 = vmatpush1.msra.mxu0 0.0
      %5267 = vmatprep.subr.mxu0 0.0
      %5268 = vmatpush1.msra.mxu0 0.0
      %5269 = vmatprep.subr.mxu0 0.0
      %5270 = vmatpush1.msra.mxu0 0.0
      %5271 = vmatprep.subr.mxu0 0.0
      %5272 = vmatpush1.msra.mxu0 0.0
      %5273 = vmatprep.subr.mxu0 0.0
      %5274 = vmatpush1.msra.mxu0 0.0
      %5275 = vmatprep.subr.mxu0 0.0
      %5276 = vmatpush1.msra.mxu0 0.0
      %5277 = vmatprep.subr.mxu0 0.0
      %5278 = vmatpush1.msra.mxu0 0.0
      %5279 = vmatprep.subr.mxu0 0.0
      %5280 = vmatpush1.msra.mxu0 0.0
      %5281 = vmatprep.subr.mxu0 0.0
      %5282 = vmatpush1.msra.mxu0 0.0
      %5283 = vmatprep.subr.mxu0 0.0
      %5284 = vmatpush1.msra.mxu0 0.0
      %5285 = vmatprep.subr.mxu0 0.0
      %5286 = vmatpush1.msra.mxu0 0.0
      %5287 = vmatprep.subr.mxu0 0.0
      %5288 = vmatpush1.msra.mxu0 0.0
      %5289 = vmatprep.subr.mxu0 0.0
      %5290 = vmatpush1.msra.mxu0 0.0
      %5291 = vmatprep.subr.mxu0 0.0
      %5292 = vmatpush1.msra.mxu0 0.0
      %5293 = vmatprep.subr.mxu0 0.0
      %5294 = vmatpush1.msra.mxu0 0.0
      %5295 = vmatprep.subr.mxu0 0.0
      %5296 = vmatpush1.msra.mxu0 0.0
      %5297 = vmatprep.mubr.f32.mxu0 0.0
      %5298 = vmatmul.mubr.f32.gmra.mrb[0].mxu0 %v5228
      %v5299 = vpop.f32.mrb[0].mxu0
      %v5300 = vadd.f32 0.0, %v5299
      %v5301 = vpop.f32.mrb[0].mxu0
      %5302 = vdwg.mxu0
      %s5303 = scalar_lea.vmem %s51, 16
      %v5304 = vld [vmem:[%s5303] sm:$0xff]
      %v5306 = vsel %vm4161, %v5300, 0
      %5308 = vmatprep.subr.mxu0 0.0
      %5309 = vmatpush1.msra.mxu0 %v5304
      %5310 = vmatprep.subr.mxu0 0.0
      %5311 = vmatpush1.msra.mxu0 0.0
      %5312 = vmatprep.subr.mxu0 0.0
      %5313 = vmatpush1.msra.mxu0 0.0
      %5314 = vmatprep.subr.mxu0 0.0
      %5315 = vmatpush1.msra.mxu0 0.0
      %5316 = vmatprep.subr.mxu0 0.0
      %5317 = vmatpush1.msra.mxu0 0.0
      %5318 = vmatprep.subr.mxu0 0.0
      %5319 = vmatpush1.msra.mxu0 0.0
      %5320 = vmatprep.subr.mxu0 0.0
      %5321 = vmatpush1.msra.mxu0 0.0
      %5322 = vmatprep.subr.mxu0 0.0
      %5323 = vmatpush1.msra.mxu0 0.0
      %5324 = vmatprep.subr.mxu0 0.0
      %5325 = vmatpush1.msra.mxu0 0.0
      %5326 = vmatprep.subr.mxu0 0.0
      %5327 = vmatpush1.msra.mxu0 0.0
      %5328 = vmatprep.subr.mxu0 0.0
      %5329 = vmatpush1.msra.mxu0 0.0
      %5330 = vmatprep.subr.mxu0 0.0
      %5331 = vmatpush1.msra.mxu0 0.0
      %5332 = vmatprep.subr.mxu0 0.0
      %5333 = vmatpush1.msra.mxu0 0.0
      %5334 = vmatprep.subr.mxu0 0.0
      %5335 = vmatpush1.msra.mxu0 0.0
      %5336 = vmatprep.subr.mxu0 0.0
      %5337 = vmatpush1.msra.mxu0 0.0
      %5338 = vmatprep.subr.mxu0 0.0
      %5339 = vmatpush1.msra.mxu0 0.0
      %5340 = vmatprep.subr.mxu0 0.0
      %5341 = vmatpush1.msra.mxu0 0.0
      %5342 = vmatprep.subr.mxu0 0.0
      %5343 = vmatpush1.msra.mxu0 0.0
      %5344 = vmatprep.subr.mxu0 0.0
      %5345 = vmatpush1.msra.mxu0 0.0
      %5346 = vmatprep.subr.mxu0 0.0
      %5347 = vmatpush1.msra.mxu0 0.0
      %5348 = vmatprep.subr.mxu0 0.0
      %5349 = vmatpush1.msra.mxu0 0.0
      %5350 = vmatprep.subr.mxu0 0.0
      %5351 = vmatpush1.msra.mxu0 0.0
      %5352 = vmatprep.subr.mxu0 0.0
      %5353 = vmatpush1.msra.mxu0 0.0
      %5354 = vmatprep.subr.mxu0 0.0
      %5355 = vmatpush1.msra.mxu0 0.0
      %5356 = vmatprep.subr.mxu0 0.0
      %5357 = vmatpush1.msra.mxu0 0.0
      %5358 = vmatprep.subr.mxu0 0.0
      %5359 = vmatpush1.msra.mxu0 0.0
      %5360 = vmatprep.subr.mxu0 0.0
      %5361 = vmatpush1.msra.mxu0 0.0
      %5362 = vmatprep.subr.mxu0 0.0
      %5363 = vmatpush1.msra.mxu0 0.0
      %5364 = vmatprep.subr.mxu0 0.0
      %5365 = vmatpush1.msra.mxu0 0.0
      %5366 = vmatprep.subr.mxu0 0.0
      %5367 = vmatpush1.msra.mxu0 0.0
      %5368 = vmatprep.subr.mxu0 0.0
      %5369 = vmatpush1.msra.mxu0 0.0
      %5370 = vmatprep.subr.mxu0 0.0
      %5371 = vmatpush1.msra.mxu0 0.0
      %5372 = vmatprep.mubr.f32.mxu0 0.0
      %5373 = vmatmul.mubr.f32.gmra.mrb[0].mxu0 %v5306
      %v5374 = vpop.f32.mrb[0].mxu0
      %v5375 = vadd.f32 0.0, %v5374
      %v5376 = vpop.f32.mrb[0].mxu0
      %5377 = vdwg.mxu0
      %v5378 = vadd.f32 %v4887, %v5375
      %s5379 = scalar_lea.vmem %s39, 96
      %v5380 = vld [vmem:[%s5379] sm:$0xff]
      %v5381 = vld [vmem:[%s5379 + $0x8] sm:$0xff]
      %v5382 = vld [vmem:[%s5379 + $0x10] sm:$0xff]
      %v5383 = vld [vmem:[%s5379 + $0x18] sm:$0xff]
      %s5384 = scalar_lea.vmem %s41, 3
      %v5385 = vld [vmem:[%s5384] sm:$0x1]
      %v5387 = vlaneseq
      %v5388 = vshrl.u32 %v5387, 7
      %v5389 = vsub.s32 0, %v5388
      %v5390 = vrot.slane %v5385, %v5389
      %5392 = vmatprep.subr.mxu0 0.0
      %5393 = vmatpush1.msra.mxu0 %v5380
      %5394 = vmatprep.subr.mxu0 0.0
      %5395 = vmatpush1.msra.mxu0 %v5381
      %5396 = vmatprep.subr.mxu0 0.0
      %5397 = vmatpush1.msra.mxu0 %v5382
      %5398 = vmatprep.subr.mxu0 0.0
      %5399 = vmatpush1.msra.mxu0 %v5383
      %5400 = vmatprep.subr.mxu0 0.0
      %5401 = vmatpush1.msra.mxu0 0.0
      %5402 = vmatprep.subr.mxu0 0.0
      %5403 = vmatpush1.msra.mxu0 0.0
      %5404 = vmatprep.subr.mxu0 0.0
      %5405 = vmatpush1.msra.mxu0 0.0
      %5406 = vmatprep.subr.mxu0 0.0
      %5407 = vmatpush1.msra.mxu0 0.0
      %5408 = vmatprep.subr.mxu0 0.0
      %5409 = vmatpush1.msra.mxu0 0.0
      %5410 = vmatprep.subr.mxu0 0.0
      %5411 = vmatpush1.msra.mxu0 0.0
      %5412 = vmatprep.subr.mxu0 0.0
      %5413 = vmatpush1.msra.mxu0 0.0
      %5414 = vmatprep.subr.mxu0 0.0
      %5415 = vmatpush1.msra.mxu0 0.0
      %5416 = vmatprep.subr.mxu0 0.0
      %5417 = vmatpush1.msra.mxu0 0.0
      %5418 = vmatprep.subr.mxu0 0.0
      %5419 = vmatpush1.msra.mxu0 0.0
      %5420 = vmatprep.subr.mxu0 0.0
      %5421 = vmatpush1.msra.mxu0 0.0
      %5422 = vmatprep.subr.mxu0 0.0
      %5423 = vmatpush1.msra.mxu0 0.0
      %5424 = vmatprep.subr.mxu0 0.0
      %5425 = vmatpush1.msra.mxu0 0.0
      %5426 = vmatprep.subr.mxu0 0.0
      %5427 = vmatpush1.msra.mxu0 0.0
      %5428 = vmatprep.subr.mxu0 0.0
      %5429 = vmatpush1.msra.mxu0 0.0
      %5430 = vmatprep.subr.mxu0 0.0
      %5431 = vmatpush1.msra.mxu0 0.0
      %5432 = vmatprep.subr.mxu0 0.0
      %5433 = vmatpush1.msra.mxu0 0.0
      %5434 = vmatprep.subr.mxu0 0.0
      %5435 = vmatpush1.msra.mxu0 0.0
      %5436 = vmatprep.subr.mxu0 0.0
      %5437 = vmatpush1.msra.mxu0 0.0
      %5438 = vmatprep.subr.mxu0 0.0
      %5439 = vmatpush1.msra.mxu0 0.0
      %5440 = vmatprep.subr.mxu0 0.0
      %5441 = vmatpush1.msra.mxu0 0.0
      %5442 = vmatprep.subr.mxu0 0.0
      %5443 = vmatpush1.msra.mxu0 0.0
      %5444 = vmatprep.subr.mxu0 0.0
      %5445 = vmatpush1.msra.mxu0 0.0
      %5446 = vmatprep.subr.mxu0 0.0
      %5447 = vmatpush1.msra.mxu0 0.0
      %5448 = vmatprep.subr.mxu0 0.0
      %5449 = vmatpush1.msra.mxu0 0.0
      %5450 = vmatprep.subr.mxu0 0.0
      %5451 = vmatpush1.msra.mxu0 0.0
      %5452 = vmatprep.subr.mxu0 0.0
      %5453 = vmatpush1.msra.mxu0 0.0
      %5454 = vmatprep.subr.mxu0 0.0
      %5455 = vmatpush1.msra.mxu0 0.0
      %5456 = vmatprep.mubr.f32.mxu0 0.0
      %5457 = vmatmul.mubr.f32.gmra.mrb[0].mxu0 %v3920
      %v5458 = vpop.f32.mrb[0].mxu0
      %v5459 = vadd.f32 %v5390, %v5458
      %v5460 = vpop.f32.mrb[0].mxu0
      %5461 = vdwg.mxu0
      %s5462 = scalar_lea.vmem %s43, 96
      %v5463 = vld [vmem:[%s5462] sm:$0xff]
      %v5464 = vld [vmem:[%s5462 + $0x8] sm:$0xff]
      %v5465 = vld [vmem:[%s5462 + $0x10] sm:$0xff]
      %v5466 = vld [vmem:[%s5462 + $0x18] sm:$0xff]
      %s5467 = scalar_lea.vmem %s45, 3
      %v5468 = vld [vmem:[%s5467] sm:$0x1]
      %v5470 = vlaneseq
      %v5471 = vshrl.u32 %v5470, 7
      %v5472 = vsub.s32 0, %v5471
      %v5473 = vrot.slane %v5468, %v5472
      %5475 = vmatprep.subr.mxu0 0.0
      %5476 = vmatpush1.msra.mxu0 %v5463
      %5477 = vmatprep.subr.mxu0 0.0
      %5478 = vmatpush1.msra.mxu0 %v5464
      %5479 = vmatprep.subr.mxu0 0.0
      %5480 = vmatpush1.msra.mxu0 %v5465
      %5481 = vmatprep.subr.mxu0 0.0
      %5482 = vmatpush1.msra.mxu0 %v5466
      %5483 = vmatprep.subr.mxu0 0.0
      %5484 = vmatpush1.msra.mxu0 0.0
      %5485 = vmatprep.subr.mxu0 0.0
      %5486 = vmatpush1.msra.mxu0 0.0
      %5487 = vmatprep.subr.mxu0 0.0
      %5488 = vmatpush1.msra.mxu0 0.0
      %5489 = vmatprep.subr.mxu0 0.0
      %5490 = vmatpush1.msra.mxu0 0.0
      %5491 = vmatprep.subr.mxu0 0.0
      %5492 = vmatpush1.msra.mxu0 0.0
      %5493 = vmatprep.subr.mxu0 0.0
      %5494 = vmatpush1.msra.mxu0 0.0
      %5495 = vmatprep.subr.mxu0 0.0
      %5496 = vmatpush1.msra.mxu0 0.0
      %5497 = vmatprep.subr.mxu0 0.0
      %5498 = vmatpush1.msra.mxu0 0.0
      %5499 = vmatprep.subr.mxu0 0.0
      %5500 = vmatpush1.msra.mxu0 0.0
      %5501 = vmatprep.subr.mxu0 0.0
      %5502 = vmatpush1.msra.mxu0 0.0
      %5503 = vmatprep.subr.mxu0 0.0
      %5504 = vmatpush1.msra.mxu0 0.0
      %5505 = vmatprep.subr.mxu0 0.0
      %5506 = vmatpush1.msra.mxu0 0.0
      %5507 = vmatprep.subr.mxu0 0.0
      %5508 = vmatpush1.msra.mxu0 0.0
      %5509 = vmatprep.subr.mxu0 0.0
      %5510 = vmatpush1.msra.mxu0 0.0
      %5511 = vmatprep.subr.mxu0 0.0
      %5512 = vmatpush1.msra.mxu0 0.0
      %5513 = vmatprep.subr.mxu0 0.0
      %5514 = vmatpush1.msra.mxu0 0.0
      %5515 = vmatprep.subr.mxu0 0.0
      %5516 = vmatpush1.msra.mxu0 0.0
      %5517 = vmatprep.subr.mxu0 0.0
      %5518 = vmatpush1.msra.mxu0 0.0
      %5519 = vmatprep.subr.mxu0 0.0
      %5520 = vmatpush1.msra.mxu0 0.0
      %5521 = vmatprep.subr.mxu0 0.0
      %5522 = vmatpush1.msra.mxu0 0.0
      %5523 = vmatprep.subr.mxu0 0.0
      %5524 = vmatpush1.msra.mxu0 0.0
      %5525 = vmatprep.subr.mxu0 0.0
      %5526 = vmatpush1.msra.mxu0 0.0
      %5527 = vmatprep.subr.mxu0 0.0
      %5528 = vmatpush1.msra.mxu0 0.0
      %5529 = vmatprep.subr.mxu0 0.0
      %5530 = vmatpush1.msra.mxu0 0.0
      %5531 = vmatprep.subr.mxu0 0.0
      %5532 = vmatpush1.msra.mxu0 0.0
      %5533 = vmatprep.subr.mxu0 0.0
      %5534 = vmatpush1.msra.mxu0 0.0
      %5535 = vmatprep.subr.mxu0 0.0
      %5536 = vmatpush1.msra.mxu0 0.0
      %5537 = vmatprep.subr.mxu0 0.0
      %5538 = vmatpush1.msra.mxu0 0.0
      %5539 = vmatprep.mubr.f32.mxu0 0.0
      %5540 = vmatmul.mubr.f32.gmra.mrb[0].mxu0 %v3920
      %v5541 = vpop.f32.mrb[0].mxu0
      %v5542 = vadd.f32 %v5473, %v5541
      %v5543 = vpop.f32.mrb[0].mxu0
      %5544 = vdwg.mxu0
      %s5545 = scalar_lea.vmem %s47, 96
      %v5546 = vld [vmem:[%s5545] sm:$0xff]
      %v5547 = vld [vmem:[%s5545 + $0x8] sm:$0xff]
      %v5548 = vld [vmem:[%s5545 + $0x10] sm:$0xff]
      %v5549 = vld [vmem:[%s5545 + $0x18] sm:$0xff]
      %s5550 = scalar_lea.vmem %s49, 3
      %v5551 = vld [vmem:[%s5550] sm:$0x1]
      %v5553 = vlaneseq
      %v5554 = vshrl.u32 %v5553, 7
      %v5555 = vsub.s32 0, %v5554
      %v5556 = vrot.slane %v5551, %v5555
      %5558 = vmatprep.subr.mxu0 0.0
      %5559 = vmatpush1.msra.mxu0 %v5546
      %5560 = vmatprep.subr.mxu0 0.0
      %5561 = vmatpush1.msra.mxu0 %v5547
      %5562 = vmatprep.subr.mxu0 0.0
      %5563 = vmatpush1.msra.mxu0 %v5548
      %5564 = vmatprep.subr.mxu0 0.0
      %5565 = vmatpush1.msra.mxu0 %v5549
      %5566 = vmatprep.subr.mxu0 0.0
      %5567 = vmatpush1.msra.mxu0 0.0
      %5568 = vmatprep.subr.mxu0 0.0
      %5569 = vmatpush1.msra.mxu0 0.0
      %5570 = vmatprep.subr.mxu0 0.0
      %5571 = vmatpush1.msra.mxu0 0.0
      %5572 = vmatprep.subr.mxu0 0.0
      %5573 = vmatpush1.msra.mxu0 0.0
      %5574 = vmatprep.subr.mxu0 0.0
      %5575 = vmatpush1.msra.mxu0 0.0
      %5576 = vmatprep.subr.mxu0 0.0
      %5577 = vmatpush1.msra.mxu0 0.0
      %5578 = vmatprep.subr.mxu0 0.0
      %5579 = vmatpush1.msra.mxu0 0.0
      %5580 = vmatprep.subr.mxu0 0.0
      %5581 = vmatpush1.msra.mxu0 0.0
      %5582 = vmatprep.subr.mxu0 0.0
      %5583 = vmatpush1.msra.mxu0 0.0
      %5584 = vmatprep.subr.mxu0 0.0
      %5585 = vmatpush1.msra.mxu0 0.0
      %5586 = vmatprep.subr.mxu0 0.0
      %5587 = vmatpush1.msra.mxu0 0.0
      %5588 = vmatprep.subr.mxu0 0.0
      %5589 = vmatpush1.msra.mxu0 0.0
      %5590 = vmatprep.subr.mxu0 0.0
      %5591 = vmatpush1.msra.mxu0 0.0
      %5592 = vmatprep.subr.mxu0 0.0
      %5593 = vmatpush1.msra.mxu0 0.0
      %5594 = vmatprep.subr.mxu0 0.0
      %5595 = vmatpush1.msra.mxu0 0.0
      %5596 = vmatprep.subr.mxu0 0.0
      %5597 = vmatpush1.msra.mxu0 0.0
      %5598 = vmatprep.subr.mxu0 0.0
      %5599 = vmatpush1.msra.mxu0 0.0
      %5600 = vmatprep.subr.mxu0 0.0
      %5601 = vmatpush1.msra.mxu0 0.0
      %5602 = vmatprep.subr.mxu0 0.0
      %5603 = vmatpush1.msra.mxu0 0.0
      %5604 = vmatprep.subr.mxu0 0.0
      %5605 = vmatpush1.msra.mxu0 0.0
      %5606 = vmatprep.subr.mxu0 0.0
      %5607 = vmatpush1.msra.mxu0 0.0
      %5608 = vmatprep.subr.mxu0 0.0
      %5609 = vmatpush1.msra.mxu0 0.0
      %5610 = vmatprep.subr.mxu0 0.0
      %5611 = vmatpush1.msra.mxu0 0.0
      %5612 = vmatprep.subr.mxu0 0.0
      %5613 = vmatpush1.msra.mxu0 0.0
      %5614 = vmatprep.subr.mxu0 0.0
      %5615 = vmatpush1.msra.mxu0 0.0
      %5616 = vmatprep.subr.mxu0 0.0
      %5617 = vmatpush1.msra.mxu0 0.0
      %5618 = vmatprep.subr.mxu0 0.0
      %5619 = vmatpush1.msra.mxu0 0.0
      %5620 = vmatprep.subr.mxu0 0.0
      %5621 = vmatpush1.msra.mxu0 0.0
      %5622 = vmatprep.mubr.f32.mxu0 0.0
      %5623 = vmatmul.mubr.f32.gmra.mrb[0].mxu0 %v3920
      %v5624 = vpop.f32.mrb[0].mxu0
      %v5625 = vadd.f32 %v5556, %v5624
      %v5626 = vpop.f32.mrb[0].mxu0
      %5627 = vdwg.mxu0
      %v5628 = vmul.f32 %v5459, 0.35355338
      %v5630 = vsel %vm4161, %v5628, 0
      %v5633 = vsel %vm4161, %v5542, 0
      %5635 = vmatprep.subr.mxu0 0.0
      %5636 = vmatpush1.xpose.msra.mxu0 %v5633
      %5637 = vmatprep.subr.mxu0 0.0
      %5638 = vmatpush1.xpose.msra.mxu0 0.0
      %5639 = vmatprep.subr.mxu0 0.0
      %5640 = vmatpush1.xpose.msra.mxu0 0.0
      %5641 = vmatprep.subr.mxu0 0.0
      %5642 = vmatpush1.xpose.msra.mxu0 0.0
      %5643 = vmatprep.subr.mxu0 0.0
      %5644 = vmatpush1.xpose.msra.mxu0 0.0
      %5645 = vmatprep.subr.mxu0 0.0
      %5646 = vmatpush1.xpose.msra.mxu0 0.0
      %5647 = vmatprep.subr.mxu0 0.0
      %5648 = vmatpush1.xpose.msra.mxu0 0.0
      %5649 = vmatprep.subr.mxu0 0.0
      %5650 = vmatpush1.xpose.msra.mxu0 0.0
      %5651 = vmatprep.subr.mxu0 0.0
      %5652 = vmatpush1.xpose.msra.mxu0 0.0
      %5653 = vmatprep.subr.mxu0 0.0
      %5654 = vmatpush1.xpose.msra.mxu0 0.0
      %5655 = vmatprep.subr.mxu0 0.0
      %5656 = vmatpush1.xpose.msra.mxu0 0.0
      %5657 = vmatprep.subr.mxu0 0.0
      %5658 = vmatpush1.xpose.msra.mxu0 0.0
      %5659 = vmatprep.subr.mxu0 0.0
      %5660 = vmatpush1.xpose.msra.mxu0 0.0
      %5661 = vmatprep.subr.mxu0 0.0
      %5662 = vmatpush1.xpose.msra.mxu0 0.0
      %5663 = vmatprep.subr.mxu0 0.0
      %5664 = vmatpush1.xpose.msra.mxu0 0.0
      %5665 = vmatprep.subr.mxu0 0.0
      %5666 = vmatpush1.xpose.msra.mxu0 0.0
      %5667 = vmatprep.subr.mxu0 0.0
      %5668 = vmatpush1.xpose.msra.mxu0 0.0
      %5669 = vmatprep.subr.mxu0 0.0
      %5670 = vmatpush1.xpose.msra.mxu0 0.0
      %5671 = vmatprep.subr.mxu0 0.0
      %5672 = vmatpush1.xpose.msra.mxu0 0.0
      %5673 = vmatprep.subr.mxu0 0.0
      %5674 = vmatpush1.xpose.msra.mxu0 0.0
      %5675 = vmatprep.subr.mxu0 0.0
      %5676 = vmatpush1.xpose.msra.mxu0 0.0
      %5677 = vmatprep.subr.mxu0 0.0
      %5678 = vmatpush1.xpose.msra.mxu0 0.0
      %5679 = vmatprep.subr.mxu0 0.0
      %5680 = vmatpush1.xpose.msra.mxu0 0.0
      %5681 = vmatprep.subr.mxu0 0.0
      %5682 = vmatpush1.xpose.msra.mxu0 0.0
      %5683 = vmatprep.subr.mxu0 0.0
      %5684 = vmatpush1.xpose.msra.mxu0 0.0
      %5685 = vmatprep.subr.mxu0 0.0
      %5686 = vmatpush1.xpose.msra.mxu0 0.0
      %5687 = vmatprep.subr.mxu0 0.0
      %5688 = vmatpush1.xpose.msra.mxu0 0.0
      %5689 = vmatprep.subr.mxu0 0.0
      %5690 = vmatpush1.xpose.msra.mxu0 0.0
      %5691 = vmatprep.subr.mxu0 0.0
      %5692 = vmatpush1.xpose.msra.mxu0 0.0
      %5693 = vmatprep.subr.mxu0 0.0
      %5694 = vmatpush1.xpose.msra.mxu0 0.0
      %5695 = vmatprep.subr.mxu0 0.0
      %5696 = vmatpush1.xpose.msra.mxu0 0.0
      %5697 = vmatprep.subr.mxu0 0.0
      %5698 = vmatpush1.xpose.msra.mxu0 0.0
      %5699 = vmatprep.mubr.f32.mxu0 0.0
      %5700 = vmatmul.mubr.f32.gmra.mrb[0].mxu0 %v5630
      %v5701 = vpop.f32.mrb[0].mxu0
      %v5702 = vadd.f32 %v4159, %v5701
      %v5703 = vpop.f32.mrb[0].mxu0
      %5704 = vdwg.mxu0
      %v5705 = vsel %vm4238, %v5702, -inf
      %5706 = vmax.xlane.f32.xlu0 %v5705
      %v5707 = vpop.xlane.xlu0 %5706
      %v5708 = vsub.f32 %v5702, %v5707
      %v5709 = vmul.f32 %v5708, 1.442695
      %v5710 = vpow.pop %v5709
      %v5711 = vsel %vm4238, %v5710, 0.0
      %5712 = vadd.xlane.f32.xlu0 %v5711
      %v5713 = vpop.xlane.xlu0 %5712
      %v5714 = vrcp.pop %v5713
      %v5715 = vmul.f32 %v5710, %v5714
      %v5717 = vsel %vm4250, %v5715, 0
      %v5720 = vsel %vm4254, %v5625, 0
      %5722 = vmatprep.subr.mxu0 0.0
      %5723 = vmatpush1.msra.mxu0 %v5720
      %5724 = vmatprep.subr.mxu0 0.0
      %5725 = vmatpush1.msra.mxu0 0.0
      %5726 = vmatprep.subr.mxu0 0.0
      %5727 = vmatpush1.msra.mxu0 0.0
      %5728 = vmatprep.subr.mxu0 0.0
      %5729 = vmatpush1.msra.mxu0 0.0
      %5730 = vmatprep.subr.mxu0 0.0
      %5731 = vmatpush1.msra.mxu0 0.0
      %5732 = vmatprep.subr.mxu0 0.0
      %5733 = vmatpush1.msra.mxu0 0.0
      %5734 = vmatprep.subr.mxu0 0.0
      %5735 = vmatpush1.msra.mxu0 0.0
      %5736 = vmatprep.subr.mxu0 0.0
      %5737 = vmatpush1.msra.mxu0 0.0
      %5738 = vmatprep.subr.mxu0 0.0
      %5739 = vmatpush1.msra.mxu0 0.0
      %5740 = vmatprep.subr.mxu0 0.0
      %5741 = vmatpush1.msra.mxu0 0.0
      %5742 = vmatprep.subr.mxu0 0.0
      %5743 = vmatpush1.msra.mxu0 0.0
      %5744 = vmatprep.subr.mxu0 0.0
      %5745 = vmatpush1.msra.mxu0 0.0
      %5746 = vmatprep.subr.mxu0 0.0
      %5747 = vmatpush1.msra.mxu0 0.0
      %5748 = vmatprep.subr.mxu0 0.0
      %5749 = vmatpush1.msra.mxu0 0.0
      %5750 = vmatprep.subr.mxu0 0.0
      %5751 = vmatpush1.msra.mxu0 0.0
      %5752 = vmatprep.subr.mxu0 0.0
      %5753 = vmatpush1.msra.mxu0 0.0
      %5754 = vmatprep.subr.mxu0 0.0
      %5755 = vmatpush1.msra.mxu0 0.0
      %5756 = vmatprep.subr.mxu0 0.0
      %5757 = vmatpush1.msra.mxu0 0.0
      %5758 = vmatprep.subr.mxu0 0.0
      %5759 = vmatpush1.msra.mxu0 0.0
      %5760 = vmatprep.subr.mxu0 0.0
      %5761 = vmatpush1.msra.mxu0 0.0
      %5762 = vmatprep.subr.mxu0 0.0
      %5763 = vmatpush1.msra.mxu0 0.0
      %5764 = vmatprep.subr.mxu0 0.0
      %5765 = vmatpush1.msra.mxu0 0.0
      %5766 = vmatprep.subr.mxu0 0.0
      %5767 = vmatpush1.msra.mxu0 0.0
      %5768 = vmatprep.subr.mxu0 0.0
      %5769 = vmatpush1.msra.mxu0 0.0
      %5770 = vmatprep.subr.mxu0 0.0
      %5771 = vmatpush1.msra.mxu0 0.0
      %5772 = vmatprep.subr.mxu0 0.0
      %5773 = vmatpush1.msra.mxu0 0.0
      %5774 = vmatprep.subr.mxu0 0.0
      %5775 = vmatpush1.msra.mxu0 0.0
      %5776 = vmatprep.subr.mxu0 0.0
      %5777 = vmatpush1.msra.mxu0 0.0
      %5778 = vmatprep.subr.mxu0 0.0
      %5779 = vmatpush1.msra.mxu0 0.0
      %5780 = vmatprep.subr.mxu0 0.0
      %5781 = vmatpush1.msra.mxu0 0.0
      %5782 = vmatprep.subr.mxu0 0.0
      %5783 = vmatpush1.msra.mxu0 0.0
      %5784 = vmatprep.subr.mxu0 0.0
      %5785 = vmatpush1.msra.mxu0 0.0
      %5786 = vmatprep.mubr.f32.mxu0 0.0
      %5787 = vmatmul.mubr.f32.gmra.mrb[0].mxu0 %v5717
      %v5788 = vpop.f32.mrb[0].mxu0
      %v5789 = vadd.f32 0.0, %v5788
      %v5790 = vpop.f32.mrb[0].mxu0
      %5791 = vdwg.mxu0
      %s5792 = scalar_lea.vmem %s51, 24
      %v5793 = vld [vmem:[%s5792] sm:$0xff]
      %v5795 = vsel %vm4161, %v5789, 0
      %5797 = vmatprep.subr.mxu0 0.0
      %5798 = vmatpush1.msra.mxu0 %v5793
      %5799 = vmatprep.subr.mxu0 0.0
      %5800 = vmatpush1.msra.mxu0 0.0
      %5801 = vmatprep.subr.mxu0 0.0
      %5802 = vmatpush1.msra.mxu0 0.0
      %5803 = vmatprep.subr.mxu0 0.0
      %5804 = vmatpush1.msra.mxu0 0.0
      %5805 = vmatprep.subr.mxu0 0.0
      %5806 = vmatpush1.msra.mxu0 0.0
      %5807 = vmatprep.subr.mxu0 0.0
      %5808 = vmatpush1.msra.mxu0 0.0
      %5809 = vmatprep.subr.mxu0 0.0
      %5810 = vmatpush1.msra.mxu0 0.0
      %5811 = vmatprep.subr.mxu0 0.0
      %5812 = vmatpush1.msra.mxu0 0.0
      %5813 = vmatprep.subr.mxu0 0.0
      %5814 = vmatpush1.msra.mxu0 0.0
      %5815 = vmatprep.subr.mxu0 0.0
      %5816 = vmatpush1.msra.mxu0 0.0
      %5817 = vmatprep.subr.mxu0 0.0
      %5818 = vmatpush1.msra.mxu0 0.0
      %5819 = vmatprep.subr.mxu0 0.0
      %5820 = vmatpush1.msra.mxu0 0.0
      %5821 = vmatprep.subr.mxu0 0.0
      %5822 = vmatpush1.msra.mxu0 0.0
      %5823 = vmatprep.subr.mxu0 0.0
      %5824 = vmatpush1.msra.mxu0 0.0
      %5825 = vmatprep.subr.mxu0 0.0
      %5826 = vmatpush1.msra.mxu0 0.0
      %5827 = vmatprep.subr.mxu0 0.0
      %5828 = vmatpush1.msra.mxu0 0.0
      %5829 = vmatprep.subr.mxu0 0.0
      %5830 = vmatpush1.msra.mxu0 0.0
      %5831 = vmatprep.subr.mxu0 0.0
      %5832 = vmatpush1.msra.mxu0 0.0
      %5833 = vmatprep.subr.mxu0 0.0
      %5834 = vmatpush1.msra.mxu0 0.0
      %5835 = vmatprep.subr.mxu0 0.0
      %5836 = vmatpush1.msra.mxu0 0.0
      %5837 = vmatprep.subr.mxu0 0.0
      %5838 = vmatpush1.msra.mxu0 0.0
      %5839 = vmatprep.subr.mxu0 0.0
      %5840 = vmatpush1.msra.mxu0 0.0
      %5841 = vmatprep.subr.mxu0 0.0
      %5842 = vmatpush1.msra.mxu0 0.0
      %5843 = vmatprep.subr.mxu0 0.0
      %5844 = vmatpush1.msra.mxu0 0.0
      %5845 = vmatprep.subr.mxu0 0.0
      %5846 = vmatpush1.msra.mxu0 0.0
      %5847 = vmatprep.subr.mxu0 0.0
      %5848 = vmatpush1.msra.mxu0 0.0
      %5849 = vmatprep.subr.mxu0 0.0
      %5850 = vmatpush1.msra.mxu0 0.0
      %5851 = vmatprep.subr.mxu0 0.0
      %5852 = vmatpush1.msra.mxu0 0.0
      %5853 = vmatprep.subr.mxu0 0.0
      %5854 = vmatpush1.msra.mxu0 0.0
      %5855 = vmatprep.subr.mxu0 0.0
      %5856 = vmatpush1.msra.mxu0 0.0
      %5857 = vmatprep.subr.mxu0 0.0
      %5858 = vmatpush1.msra.mxu0 0.0
      %5859 = vmatprep.subr.mxu0 0.0
      %5860 = vmatpush1.msra.mxu0 0.0
      %5861 = vmatprep.mubr.f32.mxu0 0.0
      %5862 = vmatmul.mubr.f32.gmra.mrb[0].mxu0 %v5795
      %v5863 = vpop.f32.mrb[0].mxu0
      %v5864 = vadd.f32 0.0, %v5863
      %v5865 = vpop.f32.mrb[0].mxu0
      %5866 = vdwg.mxu0
      %v5867 = vadd.f32 %v5378, %v5864
      %v5868 = vadd.f32 %v3877, %v5867
      %v5869 = vld [vmem:[%s53] sm:$0x1]
      %v5871 = vlaneseq
      %v5872 = vshrl.u32 %v5871, 7
      %v5873 = vsub.s32 0, %v5872
      %v5874 = vrot.slane %v5869, %v5873
      %v5876 = vadd.f32 %v5868, %v5874
      %v5877 = vld [vmem:[%s55] sm:$0x1]
      %v5878 = vld [vmem:[%s57] sm:$0x1]
      %v5879 = vsel %vm3501, %v5876, 0.0
      %5880 = vadd.xlane.f32.xlu0 %v5879
      %v5881 = vpop.xlane.xlu0 %5880
      %v5882 = vmul.f32 %v5881, %v3505
      %v5883 = vsub.f32 %v5876, %v5882
      %v5884 = vmul.f32 %v5883, %v5883
      %v5885 = vsel %vm3501, %v5884, 0.0
      %5886 = vadd.xlane.f32.xlu0 %v5885
      %v5887 = vpop.xlane.xlu0 %5886
      %v5888 = vmul.f32 %v5887, %v3505
      %v5889 = vadd.f32 %v5888, 1e-05
      %v5890 = vrsqrt.pop %v5889
      %v5891 = vmul.f32 %v5883, %v5890
      %v5893 = vlaneseq
      %v5894 = vshrl.u32 %v5893, 7
      %v5895 = vsub.s32 0, %v5894
      %v5896 = vrot.slane %v5877, %v5895
      %v5898 = vmul.f32 %v5891, %v5896
      %v5900 = vlaneseq
      %v5901 = vshrl.u32 %v5900, 7
      %v5902 = vsub.s32 0, %v5901
      %v5903 = vrot.slane %v5878, %v5902
      %v5905 = vadd.f32 %v5898, %v5903
      %v5906 = vld [vmem:[%s59] sm:$0xff]
      %v5907 = vld [vmem:[%s59 + $0x8] sm:$0xff]
      %v5908 = vld [vmem:[%s59 + $0x10] sm:$0xff]
      %v5909 = vld [vmem:[%s59 + $0x18] sm:$0xff]
      %v5910 = vld [vmem:[%s61] sm:$0x1]
      %v5912 = vlaneseq
      %v5913 = vshrl.u32 %v5912, 7
      %v5914 = vsub.s32 0, %v5913
      %v5915 = vrot.slane %v5910, %v5914
      %v5918 = vsel %vm3537, %v5905, 0
      %5920 = vmatprep.subr.mxu0 0.0
      %5921 = vmatpush1.msra.mxu0 %v5906
      %5922 = vmatprep.subr.mxu0 0.0
      %5923 = vmatpush1.msra.mxu0 %v5907
      %5924 = vmatprep.subr.mxu0 0.0
      %5925 = vmatpush1.msra.mxu0 %v5908
      %5926 = vmatprep.subr.mxu0 0.0
      %5927 = vmatpush1.msra.mxu0 %v5909
      %5928 = vmatprep.subr.mxu0 0.0
      %5929 = vmatpush1.msra.mxu0 0.0
      %5930 = vmatprep.subr.mxu0 0.0
      %5931 = vmatpush1.msra.mxu0 0.0
      %5932 = vmatprep.subr.mxu0 0.0
      %5933 = vmatpush1.msra.mxu0 0.0
      %5934 = vmatprep.subr.mxu0 0.0
      %5935 = vmatpush1.msra.mxu0 0.0
      %5936 = vmatprep.subr.mxu0 0.0
      %5937 = vmatpush1.msra.mxu0 0.0
      %5938 = vmatprep.subr.mxu0 0.0
      %5939 = vmatpush1.msra.mxu0 0.0
      %5940 = vmatprep.subr.mxu0 0.0
      %5941 = vmatpush1.msra.mxu0 0.0
      %5942 = vmatprep.subr.mxu0 0.0
      %5943 = vmatpush1.msra.mxu0 0.0
      %5944 = vmatprep.subr.mxu0 0.0
      %5945 = vmatpush1.msra.mxu0 0.0
      %5946 = vmatprep.subr.mxu0 0.0
      %5947 = vmatpush1.msra.mxu0 0.0
      %5948 = vmatprep.subr.mxu0 0.0
      %5949 = vmatpush1.msra.mxu0 0.0
      %5950 = vmatprep.subr.mxu0 0.0
      %5951 = vmatpush1.msra.mxu0 0.0
      %5952 = vmatprep.subr.mxu0 0.0
      %5953 = vmatpush1.msra.mxu0 0.0
      %5954 = vmatprep.subr.mxu0 0.0
      %5955 = vmatpush1.msra.mxu0 0.0
      %5956 = vmatprep.subr.mxu0 0.0
      %5957 = vmatpush1.msra.mxu0 0.0
      %5958 = vmatprep.subr.mxu0 0.0
      %5959 = vmatpush1.msra.mxu0 0.0
      %5960 = vmatprep.subr.mxu0 0.0
      %5961 = vmatpush1.msra.mxu0 0.0
      %5962 = vmatprep.subr.mxu0 0.0
      %5963 = vmatpush1.msra.mxu0 0.0
      %5964 = vmatprep.subr.mxu0 0.0
      %5965 = vmatpush1.msra.mxu0 0.0
      %5966 = vmatprep.subr.mxu0 0.0
      %5967 = vmatpush1.msra.mxu0 0.0
      %5968 = vmatprep.subr.mxu0 0.0
      %5969 = vmatpush1.msra.mxu0 0.0
      %5970 = vmatprep.subr.mxu0 0.0
      %5971 = vmatpush1.msra.mxu0 0.0
      %5972 = vmatprep.subr.mxu0 0.0
      %5973 = vmatpush1.msra.mxu0 0.0
      %5974 = vmatprep.subr.mxu0 0.0
      %5975 = vmatpush1.msra.mxu0 0.0
      %5976 = vmatprep.subr.mxu0 0.0
      %5977 = vmatpush1.msra.mxu0 0.0
      %5978 = vmatprep.subr.mxu0 0.0
      %5979 = vmatpush1.msra.mxu0 0.0
      %5980 = vmatprep.subr.mxu0 0.0
      %5981 = vmatpush1.msra.mxu0 0.0
      %5982 = vmatprep.subr.mxu0 0.0
      %5983 = vmatpush1.msra.mxu0 0.0
      %5984 = vmatprep.mubr.f32.mxu0 0.0
      %5985 = vmatmul.mubr.f32.gmra.mrb[0].mxu0 %v5918
      %v5986 = vpop.f32.mrb[0].mxu0
      %v5987 = vadd.f32 %v5915, %v5986
      %v5988 = vpop.f32.mrb[0].mxu0
      %5989 = vdwg.mxu0
      %v5990 = vmul.f32 %v5987, %v5987
      %v5991 = vmul.f32 %v5987, %v5990
      %v5992 = vmul.f32 %v5991, 0.044715
      %v5993 = vadd.f32 %v5987, %v5992
      %v5994 = vmul.f32 %v5993, 0.7978846
      %v5995 = vtanh.pop %v5994
      %v5996 = vadd.f32 %v5995, 1.0
      %v5997 = vmul.f32 %v5996, 0.5
      %v5998 = vmul.f32 %v5987, %v5997
      %v5999 = vld [vmem:[%s63] sm:$0xff]
      %v6000 = vld [vmem:[%s63 + $0x8] sm:$0xff]
      %v6001 = vld [vmem:[%s63 + $0x10] sm:$0xff]
      %v6002 = vld [vmem:[%s63 + $0x18] sm:$0xff]
      %v6003 = vld [vmem:[%s63 + $0x20] sm:$0xff]
      %v6004 = vld [vmem:[%s63 + $0x28] sm:$0xff]
      %v6005 = vld [vmem:[%s63 + $0x30] sm:$0xff]
      %v6006 = vld [vmem:[%s63 + $0x38] sm:$0xff]
      %v6007 = vld [vmem:[%s65] sm:$0x1]
      %v6009 = vlaneseq
      %v6010 = vshrl.u32 %v6009, 7
      %v6011 = vsub.s32 0, %v6010
      %v6012 = vrot.slane %v6007, %v6011
      %vm6014 = vcmask 523264
      %v6016 = vsel %vm6014, %v5998, 0
      %6018 = vmatprep.subr.mxu0 0.0
      %6019 = vmatpush1.msra.mxu0 %v5999
      %6020 = vmatprep.subr.mxu0 0.0
      %6021 = vmatpush1.msra.mxu0 %v6000
      %6022 = vmatprep.subr.mxu0 0.0
      %6023 = vmatpush1.msra.mxu0 %v6001
      %6024 = vmatprep.subr.mxu0 0.0
      %6025 = vmatpush1.msra.mxu0 %v6002
      %6026 = vmatprep.subr.mxu0 0.0
      %6027 = vmatpush1.msra.mxu0 %v6003
      %6028 = vmatprep.subr.mxu0 0.0
      %6029 = vmatpush1.msra.mxu0 %v6004
      %6030 = vmatprep.subr.mxu0 0.0
      %6031 = vmatpush1.msra.mxu0 %v6005
      %6032 = vmatprep.subr.mxu0 0.0
      %6033 = vmatpush1.msra.mxu0 %v6006
      %6034 = vmatprep.subr.mxu0 0.0
      %6035 = vmatpush1.msra.mxu0 0.0
      %6036 = vmatprep.subr.mxu0 0.0
      %6037 = vmatpush1.msra.mxu0 0.0
      %6038 = vmatprep.subr.mxu0 0.0
      %6039 = vmatpush1.msra.mxu0 0.0
      %6040 = vmatprep.subr.mxu0 0.0
      %6041 = vmatpush1.msra.mxu0 0.0
      %6042 = vmatprep.subr.mxu0 0.0
      %6043 = vmatpush1.msra.mxu0 0.0
      %6044 = vmatprep.subr.mxu0 0.0
      %6045 = vmatpush1.msra.mxu0 0.0
      %6046 = vmatprep.subr.mxu0 0.0
      %6047 = vmatpush1.msra.mxu0 0.0
      %6048 = vmatprep.subr.mxu0 0.0
      %6049 = vmatpush1.msra.mxu0 0.0
      %6050 = vmatprep.subr.mxu0 0.0
      %6051 = vmatpush1.msra.mxu0 0.0
      %6052 = vmatprep.subr.mxu0 0.0
      %6053 = vmatpush1.msra.mxu0 0.0
      %6054 = vmatprep.subr.mxu0 0.0
      %6055 = vmatpush1.msra.mxu0 0.0
      %6056 = vmatprep.subr.mxu0 0.0
      %6057 = vmatpush1.msra.mxu0 0.0
      %6058 = vmatprep.subr.mxu0 0.0
      %6059 = vmatpush1.msra.mxu0 0.0
      %6060 = vmatprep.subr.mxu0 0.0
      %6061 = vmatpush1.msra.mxu0 0.0
      %6062 = vmatprep.subr.mxu0 0.0
      %6063 = vmatpush1.msra.mxu0 0.0
      %6064 = vmatprep.subr.mxu0 0.0
      %6065 = vmatpush1.msra.mxu0 0.0
      %6066 = vmatprep.subr.mxu0 0.0
      %6067 = vmatpush1.msra.mxu0 0.0
      %6068 = vmatprep.subr.mxu0 0.0
      %6069 = vmatpush1.msra.mxu0 0.0
      %6070 = vmatprep.subr.mxu0 0.0
      %6071 = vmatpush1.msra.mxu0 0.0
      %6072 = vmatprep.subr.mxu0 0.0
      %6073 = vmatpush1.msra.mxu0 0.0
      %6074 = vmatprep.subr.mxu0 0.0
      %6075 = vmatpush1.msra.mxu0 0.0
      %6076 = vmatprep.subr.mxu0 0.0
      %6077 = vmatpush1.msra.mxu0 0.0
      %6078 = vmatprep.subr.mxu0 0.0
      %6079 = vmatpush1.msra.mxu0 0.0
      %6080 = vmatprep.subr.mxu0 0.0
      %6081 = vmatpush1.msra.mxu0 0.0
      %6082 = vmatprep.mubr.f32.mxu0 0.0
      %6083 = vmatmul.mubr.f32.gmra.mrb[0].mxu0 %v6016
      %v6084 = vpop.f32.mrb[0].mxu0
      %v6085 = vadd.f32 %v6012, %v6084
      %v6086 = vpop.f32.mrb[0].mxu0
      %6087 = vdwg.mxu0
      %v6088 = vadd.f32 %v5876, %v6085
      %s6089 = scalar_lea.vmem %s35, 1
      %v6090 = vld [vmem:[%s6089] sm:$0x1]
      %s6091 = scalar_lea.vmem %s37, 1
      %v6092 = vld [vmem:[%s6091] sm:$0x1]
      %v6093 = vsel %vm3501, %v6088, 0.0
      %6094 = vadd.xlane.f32.xlu0 %v6093
      %v6095 = vpop.xlane.xlu0 %6094
      %v6096 = vmul.f32 %v6095, %v3505
      %v6097 = vsub.f32 %v6088, %v6096
      %v6098 = vmul.f32 %v6097, %v6097
      %v6099 = vsel %vm3501, %v6098, 0.0
      %6100 = vadd.xlane.f32.xlu0 %v6099
      %v6101 = vpop.xlane.xlu0 %6100
      %v6102 = vmul.f32 %v6101, %v3505
      %v6103 = vadd.f32 %v6102, 1e-05
      %v6104 = vrsqrt.pop %v6103
      %v6105 = vmul.f32 %v6097, %v6104
      %v6107 = vlaneseq
      %v6108 = vshrl.u32 %v6107, 7
      %v6109 = vsub.s32 0, %v6108
      %v6110 = vrot.slane %v6090, %v6109
      %v6112 = vmul.f32 %v6105, %v6110
      %v6114 = vlaneseq
      %v6115 = vshrl.u32 %v6114, 7
      %v6116 = vsub.s32 0, %v6115
      %v6117 = vrot.slane %v6092, %v6116
      %v6119 = vadd.f32 %v6112, %v6117
      %s6120 = scalar_lea.vmem %s39, 128
      %v6121 = vld [vmem:[%s6120] sm:$0xff]
      %v6122 = vld [vmem:[%s6120 + $0x8] sm:$0xff]
      %v6123 = vld [vmem:[%s6120 + $0x10] sm:$0xff]
      %v6124 = vld [vmem:[%s6120 + $0x18] sm:$0xff]
      %s6125 = scalar_lea.vmem %s41, 4
      %v6126 = vld [vmem:[%s6125] sm:$0x1]
      %v6128 = vlaneseq
      %v6129 = vshrl.u32 %v6128, 7
      %v6130 = vsub.s32 0, %v6129
      %v6131 = vrot.slane %v6126, %v6130
      %v6134 = vsel %vm3537, %v6119, 0
      %6136 = vmatprep.subr.mxu0 0.0
      %6137 = vmatpush1.msra.mxu0 %v6121
      %6138 = vmatprep.subr.mxu0 0.0
      %6139 = vmatpush1.msra.mxu0 %v6122
      %6140 = vmatprep.subr.mxu0 0.0
      %6141 = vmatpush1.msra.mxu0 %v6123
      %6142 = vmatprep.subr.mxu0 0.0
      %6143 = vmatpush1.msra.mxu0 %v6124
      %6144 = vmatprep.subr.mxu0 0.0
      %6145 = vmatpush1.msra.mxu0 0.0
      %6146 = vmatprep.subr.mxu0 0.0
      %6147 = vmatpush1.msra.mxu0 0.0
      %6148 = vmatprep.subr.mxu0 0.0
      %6149 = vmatpush1.msra.mxu0 0.0
      %6150 = vmatprep.subr.mxu0 0.0
      %6151 = vmatpush1.msra.mxu0 0.0
      %6152 = vmatprep.subr.mxu0 0.0
      %6153 = vmatpush1.msra.mxu0 0.0
      %6154 = vmatprep.subr.mxu0 0.0
      %6155 = vmatpush1.msra.mxu0 0.0
      %6156 = vmatprep.subr.mxu0 0.0
      %6157 = vmatpush1.msra.mxu0 0.0
      %6158 = vmatprep.subr.mxu0 0.0
      %6159 = vmatpush1.msra.mxu0 0.0
      %6160 = vmatprep.subr.mxu0 0.0
      %6161 = vmatpush1.msra.mxu0 0.0
      %6162 = vmatprep.subr.mxu0 0.0
      %6163 = vmatpush1.msra.mxu0 0.0
      %6164 = vmatprep.subr.mxu0 0.0
      %6165 = vmatpush1.msra.mxu0 0.0
      %6166 = vmatprep.subr.mxu0 0.0
      %6167 = vmatpush1.msra.mxu0 0.0
      %6168 = vmatprep.subr.mxu0 0.0
      %6169 = vmatpush1.msra.mxu0 0.0
      %6170 = vmatprep.subr.mxu0 0.0
      %6171 = vmatpush1.msra.mxu0 0.0
      %6172 = vmatprep.subr.mxu0 0.0
      %6173 = vmatpush1.msra.mxu0 0.0
      %6174 = vmatprep.subr.mxu0 0.0
      %6175 = vmatpush1.msra.mxu0 0.0
      %6176 = vmatprep.subr.mxu0 0.0
      %6177 = vmatpush1.msra.mxu0 0.0
      %6178 = vmatprep.subr.mxu0 0.0
      %6179 = vmatpush1.msra.mxu0 0.0
      %6180 = vmatprep.subr.mxu0 0.0
      %6181 = vmatpush1.msra.mxu0 0.0
      %6182 = vmatprep.subr.mxu0 0.0
      %6183 = vmatpush1.msra.mxu0 0.0
      %6184 = vmatprep.subr.mxu0 0.0
      %6185 = vmatpush1.msra.mxu0 0.0
      %6186 = vmatprep.subr.mxu0 0.0
      %6187 = vmatpush1.msra.mxu0 0.0
      %6188 = vmatprep.subr.mxu0 0.0
      %6189 = vmatpush1.msra.mxu0 0.0
      %6190 = vmatprep.subr.mxu0 0.0
      %6191 = vmatpush1.msra.mxu0 0.0
      %6192 = vmatprep.subr.mxu0 0.0
      %6193 = vmatpush1.msra.mxu0 0.0
      %6194 = vmatprep.subr.mxu0 0.0
      %6195 = vmatpush1.msra.mxu0 0.0
      %6196 = vmatprep.subr.mxu0 0.0
      %6197 = vmatpush1.msra.mxu0 0.0
      %6198 = vmatprep.subr.mxu0 0.0
      %6199 = vmatpush1.msra.mxu0 0.0
      %6200 = vmatprep.mubr.f32.mxu0 0.0
      %6201 = vmatmul.mubr.f32.gmra.mrb[0].mxu0 %v6134
      %v6202 = vpop.f32.mrb[0].mxu0
      %v6203 = vadd.f32 %v6131, %v6202
      %v6204 = vpop.f32.mrb[0].mxu0
      %6205 = vdwg.mxu0
      %s6206 = scalar_lea.vmem %s43, 128
      %v6207 = vld [vmem:[%s6206] sm:$0xff]
      %v6208 = vld [vmem:[%s6206 + $0x8] sm:$0xff]
      %v6209 = vld [vmem:[%s6206 + $0x10] sm:$0xff]
      %v6210 = vld [vmem:[%s6206 + $0x18] sm:$0xff]
      %s6211 = scalar_lea.vmem %s45, 4
      %v6212 = vld [vmem:[%s6211] sm:$0x1]
      %v6214 = vlaneseq
      %v6215 = vshrl.u32 %v6214, 7
      %v6216 = vsub.s32 0, %v6215
      %v6217 = vrot.slane %v6212, %v6216
      %6219 = vmatprep.subr.mxu0 0.0
      %6220 = vmatpush1.msra.mxu0 %v6207
      %6221 = vmatprep.subr.mxu0 0.0
      %6222 = vmatpush1.msra.mxu0 %v6208
      %6223 = vmatprep.subr.mxu0 0.0
      %6224 = vmatpush1.msra.mxu0 %v6209
      %6225 = vmatprep.subr.mxu0 0.0
      %6226 = vmatpush1.msra.mxu0 %v6210
      %6227 = vmatprep.subr.mxu0 0.0
      %6228 = vmatpush1.msra.mxu0 0.0
      %6229 = vmatprep.subr.mxu0 0.0
      %6230 = vmatpush1.msra.mxu0 0.0
      %6231 = vmatprep.subr.mxu0 0.0
      %6232 = vmatpush1.msra.mxu0 0.0
      %6233 = vmatprep.subr.mxu0 0.0
      %6234 = vmatpush1.msra.mxu0 0.0
      %6235 = vmatprep.subr.mxu0 0.0
      %6236 = vmatpush1.msra.mxu0 0.0
      %6237 = vmatprep.subr.mxu0 0.0
      %6238 = vmatpush1.msra.mxu0 0.0
      %6239 = vmatprep.subr.mxu0 0.0
      %6240 = vmatpush1.msra.mxu0 0.0
      %6241 = vmatprep.subr.mxu0 0.0
      %6242 = vmatpush1.msra.mxu0 0.0
      %6243 = vmatprep.subr.mxu0 0.0
      %6244 = vmatpush1.msra.mxu0 0.0
      %6245 = vmatprep.subr.mxu0 0.0
      %6246 = vmatpush1.msra.mxu0 0.0
      %6247 = vmatprep.subr.mxu0 0.0
      %6248 = vmatpush1.msra.mxu0 0.0
      %6249 = vmatprep.subr.mxu0 0.0
      %6250 = vmatpush1.msra.mxu0 0.0
      %6251 = vmatprep.subr.mxu0 0.0
      %6252 = vmatpush1.msra.mxu0 0.0
      %6253 = vmatprep.subr.mxu0 0.0
      %6254 = vmatpush1.msra.mxu0 0.0
      %6255 = vmatprep.subr.mxu0 0.0
      %6256 = vmatpush1.msra.mxu0 0.0
      %6257 = vmatprep.subr.mxu0 0.0
      %6258 = vmatpush1.msra.mxu0 0.0
      %6259 = vmatprep.subr.mxu0 0.0
      %6260 = vmatpush1.msra.mxu0 0.0
      %6261 = vmatprep.subr.mxu0 0.0
      %6262 = vmatpush1.msra.mxu0 0.0
      %6263 = vmatprep.subr.mxu0 0.0
      %6264 = vmatpush1.msra.mxu0 0.0
      %6265 = vmatprep.subr.mxu0 0.0
      %6266 = vmatpush1.msra.mxu0 0.0
      %6267 = vmatprep.subr.mxu0 0.0
      %6268 = vmatpush1.msra.mxu0 0.0
      %6269 = vmatprep.subr.mxu0 0.0
      %6270 = vmatpush1.msra.mxu0 0.0
      %6271 = vmatprep.subr.mxu0 0.0
      %6272 = vmatpush1.msra.mxu0 0.0
      %6273 = vmatprep.subr.mxu0 0.0
      %6274 = vmatpush1.msra.mxu0 0.0
      %6275 = vmatprep.subr.mxu0 0.0
      %6276 = vmatpush1.msra.mxu0 0.0
      %6277 = vmatprep.subr.mxu0 0.0
      %6278 = vmatpush1.msra.mxu0 0.0
      %6279 = vmatprep.subr.mxu0 0.0
      %6280 = vmatpush1.msra.mxu0 0.0
      %6281 = vmatprep.subr.mxu0 0.0
      %6282 = vmatpush1.msra.mxu0 0.0
      %6283 = vmatprep.mubr.f32.mxu0 0.0
      %6284 = vmatmul.mubr.f32.gmra.mrb[0].mxu0 %v6134
      %v6285 = vpop.f32.mrb[0].mxu0
      %v6286 = vadd.f32 %v6217, %v6285
      %v6287 = vpop.f32.mrb[0].mxu0
      %6288 = vdwg.mxu0
      %s6289 = scalar_lea.vmem %s47, 128
      %v6290 = vld [vmem:[%s6289] sm:$0xff]
      %v6291 = vld [vmem:[%s6289 + $0x8] sm:$0xff]
      %v6292 = vld [vmem:[%s6289 + $0x10] sm:$0xff]
      %v6293 = vld [vmem:[%s6289 + $0x18] sm:$0xff]
      %s6294 = scalar_lea.vmem %s49, 4
      %v6295 = vld [vmem:[%s6294] sm:$0x1]
      %v6297 = vlaneseq
      %v6298 = vshrl.u32 %v6297, 7
      %v6299 = vsub.s32 0, %v6298
      %v6300 = vrot.slane %v6295, %v6299
      %6302 = vmatprep.subr.mxu0 0.0
      %6303 = vmatpush1.msra.mxu0 %v6290
      %6304 = vmatprep.subr.mxu0 0.0
      %6305 = vmatpush1.msra.mxu0 %v6291
      %6306 = vmatprep.subr.mxu0 0.0
      %6307 = vmatpush1.msra.mxu0 %v6292
      %6308 = vmatprep.subr.mxu0 0.0
      %6309 = vmatpush1.msra.mxu0 %v6293
      %6310 = vmatprep.subr.mxu0 0.0
      %6311 = vmatpush1.msra.mxu0 0.0
      %6312 = vmatprep.subr.mxu0 0.0
      %6313 = vmatpush1.msra.mxu0 0.0
      %6314 = vmatprep.subr.mxu0 0.0
      %6315 = vmatpush1.msra.mxu0 0.0
      %6316 = vmatprep.subr.mxu0 0.0
      %6317 = vmatpush1.msra.mxu0 0.0
      %6318 = vmatprep.subr.mxu0 0.0
      %6319 = vmatpush1.msra.mxu0 0.0
      %6320 = vmatprep.subr.mxu0 0.0
      %6321 = vmatpush1.msra.mxu0 0.0
      %6322 = vmatprep.subr.mxu0 0.0
      %6323 = vmatpush1.msra.mxu0 0.0
      %6324 = vmatprep.subr.mxu0 0.0
      %6325 = vmatpush1.msra.mxu0 0.0
      %6326 = vmatprep.subr.mxu0 0.0
      %6327 = vmatpush1.msra.mxu0 0.0
      %6328 = vmatprep.subr.mxu0 0.0
      %6329 = vmatpush1.msra.mxu0 0.0
      %6330 = vmatprep.subr.mxu0 0.0
      %6331 = vmatpush1.msra.mxu0 0.0
      %6332 = vmatprep.subr.mxu0 0.0
      %6333 = vmatpush1.msra.mxu0 0.0
      %6334 = vmatprep.subr.mxu0 0.0
      %6335 = vmatpush1.msra.mxu0 0.0
      %6336 = vmatprep.subr.mxu0 0.0
      %6337 = vmatpush1.msra.mxu0 0.0
      %6338 = vmatprep.subr.mxu0 0.0
      %6339 = vmatpush1.msra.mxu0 0.0
      %6340 = vmatprep.subr.mxu0 0.0
      %6341 = vmatpush1.msra.mxu0 0.0
      %6342 = vmatprep.subr.mxu0 0.0
      %6343 = vmatpush1.msra.mxu0 0.0
      %6344 = vmatprep.subr.mxu0 0.0
      %6345 = vmatpush1.msra.mxu0 0.0
      %6346 = vmatprep.subr.mxu0 0.0
      %6347 = vmatpush1.msra.mxu0 0.0
      %6348 = vmatprep.subr.mxu0 0.0
      %6349 = vmatpush1.msra.mxu0 0.0
      %6350 = vmatprep.subr.mxu0 0.0
      %6351 = vmatpush1.msra.mxu0 0.0
      %6352 = vmatprep.subr.mxu0 0.0
      %6353 = vmatpush1.msra.mxu0 0.0
      %6354 = vmatprep.subr.mxu0 0.0
      %6355 = vmatpush1.msra.mxu0 0.0
      %6356 = vmatprep.subr.mxu0 0.0
      %6357 = vmatpush1.msra.mxu0 0.0
      %6358 = vmatprep.subr.mxu0 0.0
      %6359 = vmatpush1.msra.mxu0 0.0
      %6360 = vmatprep.subr.mxu0 0.0
      %6361 = vmatpush1.msra.mxu0 0.0
      %6362 = vmatprep.subr.mxu0 0.0
      %6363 = vmatpush1.msra.mxu0 0.0
      %6364 = vmatprep.subr.mxu0 0.0
      %6365 = vmatpush1.msra.mxu0 0.0
      %6366 = vmatprep.mubr.f32.mxu0 0.0
      %6367 = vmatmul.mubr.f32.gmra.mrb[0].mxu0 %v6134
      %v6368 = vpop.f32.mrb[0].mxu0
      %v6369 = vadd.f32 %v6300, %v6368
      %v6370 = vpop.f32.mrb[0].mxu0
      %6371 = vdwg.mxu0
      %v6372 = vmul.f32 %v6203, 0.35355338
      %v6374 = vsel %vm4161, %v6372, 0
      %v6377 = vsel %vm4161, %v6286, 0
      %6379 = vmatprep.subr.mxu0 0.0
      %6380 = vmatpush1.xpose.msra.mxu0 %v6377
      %6381 = vmatprep.subr.mxu0 0.0
      %6382 = vmatpush1.xpose.msra.mxu0 0.0
      %6383 = vmatprep.subr.mxu0 0.0
      %6384 = vmatpush1.xpose.msra.mxu0 0.0
      %6385 = vmatprep.subr.mxu0 0.0
      %6386 = vmatpush1.xpose.msra.mxu0 0.0
      %6387 = vmatprep.subr.mxu0 0.0
      %6388 = vmatpush1.xpose.msra.mxu0 0.0
      %6389 = vmatprep.subr.mxu0 0.0
      %6390 = vmatpush1.xpose.msra.mxu0 0.0
      %6391 = vmatprep.subr.mxu0 0.0
      %6392 = vmatpush1.xpose.msra.mxu0 0.0
      %6393 = vmatprep.subr.mxu0 0.0
      %6394 = vmatpush1.xpose.msra.mxu0 0.0
      %6395 = vmatprep.subr.mxu0 0.0
      %6396 = vmatpush1.xpose.msra.mxu0 0.0
      %6397 = vmatprep.subr.mxu0 0.0
      %6398 = vmatpush1.xpose.msra.mxu0 0.0
      %6399 = vmatprep.subr.mxu0 0.0
      %6400 = vmatpush1.xpose.msra.mxu0 0.0
      %6401 = vmatprep.subr.mxu0 0.0
      %6402 = vmatpush1.xpose.msra.mxu0 0.0
      %6403 = vmatprep.subr.mxu0 0.0
      %6404 = vmatpush1.xpose.msra.mxu0 0.0
      %6405 = vmatprep.subr.mxu0 0.0
      %6406 = vmatpush1.xpose.msra.mxu0 0.0
      %6407 = vmatprep.subr.mxu0 0.0
      %6408 = vmatpush1.xpose.msra.mxu0 0.0
      %6409 = vmatprep.subr.mxu0 0.0
      %6410 = vmatpush1.xpose.msra.mxu0 0.0
      %6411 = vmatprep.subr.mxu0 0.0
      %6412 = vmatpush1.xpose.msra.mxu0 0.0
      %6413 = vmatprep.subr.mxu0 0.0
      %6414 = vmatpush1.xpose.msra.mxu0 0.0
      %6415 = vmatprep.subr.mxu0 0.0
      %6416 = vmatpush1.xpose.msra.mxu0 0.0
      %6417 = vmatprep.subr.mxu0 0.0
      %6418 = vmatpush1.xpose.msra.mxu0 0.0
      %6419 = vmatprep.subr.mxu0 0.0
      %6420 = vmatpush1.xpose.msra.mxu0 0.0
      %6421 = vmatprep.subr.mxu0 0.0
      %6422 = vmatpush1.xpose.msra.mxu0 0.0
      %6423 = vmatprep.subr.mxu0 0.0
      %6424 = vmatpush1.xpose.msra.mxu0 0.0
      %6425 = vmatprep.subr.mxu0 0.0
      %6426 = vmatpush1.xpose.msra.mxu0 0.0
      %6427 = vmatprep.subr.mxu0 0.0
      %6428 = vmatpush1.xpose.msra.mxu0 0.0
      %6429 = vmatprep.subr.mxu0 0.0
      %6430 = vmatpush1.xpose.msra.mxu0 0.0
      %6431 = vmatprep.subr.mxu0 0.0
      %6432 = vmatpush1.xpose.msra.mxu0 0.0
      %6433 = vmatprep.subr.mxu0 0.0
      %6434 = vmatpush1.xpose.msra.mxu0 0.0
      %6435 = vmatprep.subr.mxu0 0.0
      %6436 = vmatpush1.xpose.msra.mxu0 0.0
      %6437 = vmatprep.subr.mxu0 0.0
      %6438 = vmatpush1.xpose.msra.mxu0 0.0
      %6439 = vmatprep.subr.mxu0 0.0
      %6440 = vmatpush1.xpose.msra.mxu0 0.0
      %6441 = vmatprep.subr.mxu0 0.0
      %6442 = vmatpush1.xpose.msra.mxu0 0.0
      %6443 = vmatprep.mubr.f32.mxu0 0.0
      %6444 = vmatmul.mubr.f32.gmra.mrb[0].mxu0 %v6374
      %v6445 = vpop.f32.mrb[0].mxu0
      %v6446 = vadd.f32 %v4159, %v6445
      %v6447 = vpop.f32.mrb[0].mxu0
      %6448 = vdwg.mxu0
      %v6449 = vsel %vm4238, %v6446, -inf
      %6450 = vmax.xlane.f32.xlu0 %v6449
      %v6451 = vpop.xlane.xlu0 %6450
      %v6452 = vsub.f32 %v6446, %v6451
      %v6453 = vmul.f32 %v6452, 1.442695
      %v6454 = vpow.pop %v6453
      %v6455 = vsel %vm4238, %v6454, 0.0
      %6456 = vadd.xlane.f32.xlu0 %v6455
      %v6457 = vpop.xlane.xlu0 %6456
      %v6458 = vrcp.pop %v6457
      %v6459 = vmul.f32 %v6454, %v6458
      %v6461 = vsel %vm4250, %v6459, 0
      %v6464 = vsel %vm4254, %v6369, 0
      %6466 = vmatprep.subr.mxu0 0.0
      %6467 = vmatpush1.msra.mxu0 %v6464
      %6468 = vmatprep.subr.mxu0 0.0
      %6469 = vmatpush1.msra.mxu0 0.0
      %6470 = vmatprep.subr.mxu0 0.0
      %6471 = vmatpush1.msra.mxu0 0.0
      %6472 = vmatprep.subr.mxu0 0.0
      %6473 = vmatpush1.msra.mxu0 0.0
      %6474 = vmatprep.subr.mxu0 0.0
      %6475 = vmatpush1.msra.mxu0 0.0
      %6476 = vmatprep.subr.mxu0 0.0
      %6477 = vmatpush1.msra.mxu0 0.0
      %6478 = vmatprep.subr.mxu0 0.0
      %6479 = vmatpush1.msra.mxu0 0.0
      %6480 = vmatprep.subr.mxu0 0.0
      %6481 = vmatpush1.msra.mxu0 0.0
      %6482 = vmatprep.subr.mxu0 0.0
      %6483 = vmatpush1.msra.mxu0 0.0
      %6484 = vmatprep.subr.mxu0 0.0
      %6485 = vmatpush1.msra.mxu0 0.0
      %6486 = vmatprep.subr.mxu0 0.0
      %6487 = vmatpush1.msra.mxu0 0.0
      %6488 = vmatprep.subr.mxu0 0.0
      %6489 = vmatpush1.msra.mxu0 0.0
      %6490 = vmatprep.subr.mxu0 0.0
      %6491 = vmatpush1.msra.mxu0 0.0
      %6492 = vmatprep.subr.mxu0 0.0
      %6493 = vmatpush1.msra.mxu0 0.0
      %6494 = vmatprep.subr.mxu0 0.0
      %6495 = vmatpush1.msra.mxu0 0.0
      %6496 = vmatprep.subr.mxu0 0.0
      %6497 = vmatpush1.msra.mxu0 0.0
      %6498 = vmatprep.subr.mxu0 0.0
      %6499 = vmatpush1.msra.mxu0 0.0
      %6500 = vmatprep.subr.mxu0 0.0
      %6501 = vmatpush1.msra.mxu0 0.0
      %6502 = vmatprep.subr.mxu0 0.0
      %6503 = vmatpush1.msra.mxu0 0.0
      %6504 = vmatprep.subr.mxu0 0.0
      %6505 = vmatpush1.msra.mxu0 0.0
      %6506 = vmatprep.subr.mxu0 0.0
      %6507 = vmatpush1.msra.mxu0 0.0
      %6508 = vmatprep.subr.mxu0 0.0
      %6509 = vmatpush1.msra.mxu0 0.0
      %6510 = vmatprep.subr.mxu0 0.0
      %6511 = vmatpush1.msra.mxu0 0.0
      %6512 = vmatprep.subr.mxu0 0.0
      %6513 = vmatpush1.msra.mxu0 0.0
      %6514 = vmatprep.subr.mxu0 0.0
      %6515 = vmatpush1.msra.mxu0 0.0
      %6516 = vmatprep.subr.mxu0 0.0
      %6517 = vmatpush1.msra.mxu0 0.0
      %6518 = vmatprep.subr.mxu0 0.0
      %6519 = vmatpush1.msra.mxu0 0.0
      %6520 = vmatprep.subr.mxu0 0.0
      %6521 = vmatpush1.msra.mxu0 0.0
      %6522 = vmatprep.subr.mxu0 0.0
      %6523 = vmatpush1.msra.mxu0 0.0
      %6524 = vmatprep.subr.mxu0 0.0
      %6525 = vmatpush1.msra.mxu0 0.0
      %6526 = vmatprep.subr.mxu0 0.0
      %6527 = vmatpush1.msra.mxu0 0.0
      %6528 = vmatprep.subr.mxu0 0.0
      %6529 = vmatpush1.msra.mxu0 0.0
      %6530 = vmatprep.mubr.f32.mxu0 0.0
      %6531 = vmatmul.mubr.f32.gmra.mrb[0].mxu0 %v6461
      %v6532 = vpop.f32.mrb[0].mxu0
      %v6533 = vadd.f32 0.0, %v6532
      %v6534 = vpop.f32.mrb[0].mxu0
      %6535 = vdwg.mxu0
      %s6536 = scalar_lea.vmem %s51, 32
      %v6537 = vld [vmem:[%s6536] sm:$0xff]
      %s6538 = scalar_lea.vmem %s39, 160
      %v6539 = vld [vmem:[%s6538] sm:$0xff]
      %v6540 = vld [vmem:[%s6538 + $0x8] sm:$0xff]
      %v6541 = vld [vmem:[%s6538 + $0x10] sm:$0xff]
      %v6542 = vld [vmem:[%s6538 + $0x18] sm:$0xff]
      %s6543 = scalar_lea.vmem %s41, 5
      %v6544 = vld [vmem:[%s6543] sm:$0x1]
      %v6546 = vlaneseq
      %v6547 = vshrl.u32 %v6546, 7
      %v6548 = vsub.s32 0, %v6547
      %v6549 = vrot.slane %v6544, %v6548
      %6551 = vmatprep.subr.mxu0 0.0
      %6552 = vmatpush1.msra.mxu0 %v6539
      %6553 = vmatprep.subr.mxu0 0.0
      %6554 = vmatpush1.msra.mxu0 %v6540
      %6555 = vmatprep.subr.mxu0 0.0
      %6556 = vmatpush1.msra.mxu0 %v6541
      %6557 = vmatprep.subr.mxu0 0.0
      %6558 = vmatpush1.msra.mxu0 %v6542
      %6559 = vmatprep.subr.mxu0 0.0
      %6560 = vmatpush1.msra.mxu0 0.0
      %6561 = vmatprep.subr.mxu0 0.0
      %6562 = vmatpush1.msra.mxu0 0.0
      %6563 = vmatprep.subr.mxu0 0.0
      %6564 = vmatpush1.msra.mxu0 0.0
      %6565 = vmatprep.subr.mxu0 0.0
      %6566 = vmatpush1.msra.mxu0 0.0
      %6567 = vmatprep.subr.mxu0 0.0
      %6568 = vmatpush1.msra.mxu0 0.0
      %6569 = vmatprep.subr.mxu0 0.0
      %6570 = vmatpush1.msra.mxu0 0.0
      %6571 = vmatprep.subr.mxu0 0.0
      %6572 = vmatpush1.msra.mxu0 0.0
      %6573 = vmatprep.subr.mxu0 0.0
      %6574 = vmatpush1.msra.mxu0 0.0
      %6575 = vmatprep.subr.mxu0 0.0
      %6576 = vmatpush1.msra.mxu0 0.0
      %6577 = vmatprep.subr.mxu0 0.0
      %6578 = vmatpush1.msra.mxu0 0.0
      %6579 = vmatprep.subr.mxu0 0.0
      %6580 = vmatpush1.msra.mxu0 0.0
      %6581 = vmatprep.subr.mxu0 0.0
      %6582 = vmatpush1.msra.mxu0 0.0
      %6583 = vmatprep.subr.mxu0 0.0
      %6584 = vmatpush1.msra.mxu0 0.0
      %6585 = vmatprep.subr.mxu0 0.0
      %6586 = vmatpush1.msra.mxu0 0.0
      %6587 = vmatprep.subr.mxu0 0.0
      %6588 = vmatpush1.msra.mxu0 0.0
      %6589 = vmatprep.subr.mxu0 0.0
      %6590 = vmatpush1.msra.mxu0 0.0
      %6591 = vmatprep.subr.mxu0 0.0
      %6592 = vmatpush1.msra.mxu0 0.0
      %6593 = vmatprep.subr.mxu0 0.0
      %6594 = vmatpush1.msra.mxu0 0.0
      %6595 = vmatprep.subr.mxu0 0.0
      %6596 = vmatpush1.msra.mxu0 0.0
      %6597 = vmatprep.subr.mxu0 0.0
      %6598 = vmatpush1.msra.mxu0 0.0
      %6599 = vmatprep.subr.mxu0 0.0
      %6600 = vmatpush1.msra.mxu0 0.0
      %6601 = vmatprep.subr.mxu0 0.0
      %6602 = vmatpush1.msra.mxu0 0.0
      %6603 = vmatprep.subr.mxu0 0.0
      %6604 = vmatpush1.msra.mxu0 0.0
      %6605 = vmatprep.subr.mxu0 0.0
      %6606 = vmatpush1.msra.mxu0 0.0
      %6607 = vmatprep.subr.mxu0 0.0
      %6608 = vmatpush1.msra.mxu0 0.0
      %6609 = vmatprep.subr.mxu0 0.0
      %6610 = vmatpush1.msra.mxu0 0.0
      %6611 = vmatprep.subr.mxu0 0.0
      %6612 = vmatpush1.msra.mxu0 0.0
      %6613 = vmatprep.subr.mxu0 0.0
      %6614 = vmatpush1.msra.mxu0 0.0
      %6615 = vmatprep.mubr.f32.mxu0 0.0
      %6616 = vmatmul.mubr.f32.gmra.mrb[0].mxu0 %v6134
      %v6617 = vpop.f32.mrb[0].mxu0
      %v6618 = vadd.f32 %v6549, %v6617
      %v6619 = vpop.f32.mrb[0].mxu0
      %6620 = vdwg.mxu0
      %s6621 = scalar_lea.vmem %s43, 160
      %v6622 = vld [vmem:[%s6621] sm:$0xff]
      %v6623 = vld [vmem:[%s6621 + $0x8] sm:$0xff]
      %v6624 = vld [vmem:[%s6621 + $0x10] sm:$0xff]
      %v6625 = vld [vmem:[%s6621 + $0x18] sm:$0xff]
      %s6626 = scalar_lea.vmem %s45, 5
      %v6627 = vld [vmem:[%s6626] sm:$0x1]
      %v6629 = vlaneseq
      %v6630 = vshrl.u32 %v6629, 7
      %v6631 = vsub.s32 0, %v6630
      %v6632 = vrot.slane %v6627, %v6631
      %6634 = vmatprep.subr.mxu0 0.0
      %6635 = vmatpush1.msra.mxu0 %v6622
      %6636 = vmatprep.subr.mxu0 0.0
      %6637 = vmatpush1.msra.mxu0 %v6623
      %6638 = vmatprep.subr.mxu0 0.0
      %6639 = vmatpush1.msra.mxu0 %v6624
      %6640 = vmatprep.subr.mxu0 0.0
      %6641 = vmatpush1.msra.mxu0 %v6625
      %6642 = vmatprep.subr.mxu0 0.0
      %6643 = vmatpush1.msra.mxu0 0.0
      %6644 = vmatprep.subr.mxu0 0.0
      %6645 = vmatpush1.msra.mxu0 0.0
      %6646 = vmatprep.subr.mxu0 0.0
      %6647 = vmatpush1.msra.mxu0 0.0
      %6648 = vmatprep.subr.mxu0 0.0
      %6649 = vmatpush1.msra.mxu0 0.0
      %6650 = vmatprep.subr.mxu0 0.0
      %6651 = vmatpush1.msra.mxu0 0.0
      %6652 = vmatprep.subr.mxu0 0.0
      %6653 = vmatpush1.msra.mxu0 0.0
      %6654 = vmatprep.subr.mxu0 0.0
      %6655 = vmatpush1.msra.mxu0 0.0
      %6656 = vmatprep.subr.mxu0 0.0
      %6657 = vmatpush1.msra.mxu0 0.0
      %6658 = vmatprep.subr.mxu0 0.0
      %6659 = vmatpush1.msra.mxu0 0.0
      %6660 = vmatprep.subr.mxu0 0.0
      %6661 = vmatpush1.msra.mxu0 0.0
      %6662 = vmatprep.subr.mxu0 0.0
      %6663 = vmatpush1.msra.mxu0 0.0
      %6664 = vmatprep.subr.mxu0 0.0
      %6665 = vmatpush1.msra.mxu0 0.0
      %6666 = vmatprep.subr.mxu0 0.0
      %6667 = vmatpush1.msra.mxu0 0.0
      %6668 = vmatprep.subr.mxu0 0.0
      %6669 = vmatpush1.msra.mxu0 0.0
      %6670 = vmatprep.subr.mxu0 0.0
      %6671 = vmatpush1.msra.mxu0 0.0
      %6672 = vmatprep.subr.mxu0 0.0
      %6673 = vmatpush1.msra.mxu0 0.0
      %6674 = vmatprep.subr.mxu0 0.0
      %6675 = vmatpush1.msra.mxu0 0.0
      %6676 = vmatprep.subr.mxu0 0.0
      %6677 = vmatpush1.msra.mxu0 0.0
      %6678 = vmatprep.subr.mxu0 0.0
      %6679 = vmatpush1.msra.mxu0 0.0
      %6680 = vmatprep.subr.mxu0 0.0
      %6681 = vmatpush1.msra.mxu0 0.0
      %6682 = vmatprep.subr.mxu0 0.0
      %6683 = vmatpush1.msra.mxu0 0.0
      %6684 = vmatprep.subr.mxu0 0.0
      %6685 = vmatpush1.msra.mxu0 0.0
      %6686 = vmatprep.subr.mxu0 0.0
      %6687 = vmatpush1.msra.mxu0 0.0
      %6688 = vmatprep.subr.mxu0 0.0
      %6689 = vmatpush1.msra.mxu0 0.0
      %6690 = vmatprep.subr.mxu0 0.0
      %6691 = vmatpush1.msra.mxu0 0.0
      %6692 = vmatprep.subr.mxu0 0.0
      %6693 = vmatpush1.msra.mxu0 0.0
      %6694 = vmatprep.subr.mxu0 0.0
      %6695 = vmatpush1.msra.mxu0 0.0
      %6696 = vmatprep.subr.mxu0 0.0
      %6697 = vmatpush1.msra.mxu0 0.0
      %6698 = vmatprep.mubr.f32.mxu0 0.0
      %6699 = vmatmul.mubr.f32.gmra.mrb[0].mxu0 %v6134
      %v6700 = vpop.f32.mrb[0].mxu0
      %v6701 = vadd.f32 %v6632, %v6700
      %v6702 = vpop.f32.mrb[0].mxu0
      %6703 = vdwg.mxu0
      %s6704 = scalar_lea.vmem %s47, 160
      %v6705 = vld [vmem:[%s6704] sm:$0xff]
      %v6706 = vld [vmem:[%s6704 + $0x8] sm:$0xff]
      %v6707 = vld [vmem:[%s6704 + $0x10] sm:$0xff]
      %v6708 = vld [vmem:[%s6704 + $0x18] sm:$0xff]
      %s6709 = scalar_lea.vmem %s49, 5
      %v6710 = vld [vmem:[%s6709] sm:$0x1]
      %v6712 = vlaneseq
      %v6713 = vshrl.u32 %v6712, 7
      %v6714 = vsub.s32 0, %v6713
      %v6715 = vrot.slane %v6710, %v6714
      %6717 = vmatprep.subr.mxu0 0.0
      %6718 = vmatpush1.msra.mxu0 %v6705
      %6719 = vmatprep.subr.mxu0 0.0
      %6720 = vmatpush1.msra.mxu0 %v6706
      %6721 = vmatprep.subr.mxu0 0.0
      %6722 = vmatpush1.msra.mxu0 %v6707
      %6723 = vmatprep.subr.mxu0 0.0
      %6724 = vmatpush1.msra.mxu0 %v6708
      %6725 = vmatprep.subr.mxu0 0.0
      %6726 = vmatpush1.msra.mxu0 0.0
      %6727 = vmatprep.subr.mxu0 0.0
      %6728 = vmatpush1.msra.mxu0 0.0
      %6729 = vmatprep.subr.mxu0 0.0
      %6730 = vmatpush1.msra.mxu0 0.0
      %6731 = vmatprep.subr.mxu0 0.0
      %6732 = vmatpush1.msra.mxu0 0.0
      %6733 = vmatprep.subr.mxu0 0.0
      %6734 = vmatpush1.msra.mxu0 0.0
      %6735 = vmatprep.subr.mxu0 0.0
      %6736 = vmatpush1.msra.mxu0 0.0
      %6737 = vmatprep.subr.mxu0 0.0
      %6738 = vmatpush1.msra.mxu0 0.0
      %6739 = vmatprep.subr.mxu0 0.0
      %6740 = vmatpush1.msra.mxu0 0.0
      %6741 = vmatprep.subr.mxu0 0.0
      %6742 = vmatpush1.msra.mxu0 0.0
      %6743 = vmatprep.subr.mxu0 0.0
      %6744 = vmatpush1.msra.mxu0 0.0
      %6745 = vmatprep.subr.mxu0 0.0
      %6746 = vmatpush1.msra.mxu0 0.0
      %6747 = vmatprep.subr.mxu0 0.0
      %6748 = vmatpush1.msra.mxu0 0.0
      %6749 = vmatprep.subr.mxu0 0.0
      %6750 = vmatpush1.msra.mxu0 0.0
      %6751 = vmatprep.subr.mxu0 0.0
      %6752 = vmatpush1.msra.mxu0 0.0
      %6753 = vmatprep.subr.mxu0 0.0
      %6754 = vmatpush1.msra.mxu0 0.0
      %6755 = vmatprep.subr.mxu0 0.0
      %6756 = vmatpush1.msra.mxu0 0.0
      %6757 = vmatprep.subr.mxu0 0.0
      %6758 = vmatpush1.msra.mxu0 0.0
      %6759 = vmatprep.subr.mxu0 0.0
      %6760 = vmatpush1.msra.mxu0 0.0
      %6761 = vmatprep.subr.mxu0 0.0
      %6762 = vmatpush1.msra.mxu0 0.0
      %6763 = vmatprep.subr.mxu0 0.0
      %6764 = vmatpush1.msra.mxu0 0.0
      %6765 = vmatprep.subr.mxu0 0.0
      %6766 = vmatpush1.msra.mxu0 0.0
      %6767 = vmatprep.subr.mxu0 0.0
      %6768 = vmatpush1.msra.mxu0 0.0
      %6769 = vmatprep.subr.mxu0 0.0
      %6770 = vmatpush1.msra.mxu0 0.0
      %6771 = vmatprep.subr.mxu0 0.0
      %6772 = vmatpush1.msra.mxu0 0.0
      %6773 = vmatprep.subr.mxu0 0.0
      %6774 = vmatpush1.msra.mxu0 0.0
      %6775 = vmatprep.subr.mxu0 0.0
      %6776 = vmatpush1.msra.mxu0 0.0
      %6777 = vmatprep.subr.mxu0 0.0
      %6778 = vmatpush1.msra.mxu0 0.0
      %6779 = vmatprep.subr.mxu0 0.0
      %6780 = vmatpush1.msra.mxu0 0.0
      %6781 = vmatprep.mubr.f32.mxu0 0.0
      %6782 = vmatmul.mubr.f32.gmra.mrb[0].mxu0 %v6134
      %v6783 = vpop.f32.mrb[0].mxu0
      %v6784 = vadd.f32 %v6715, %v6783
      %v6785 = vpop.f32.mrb[0].mxu0
      %6786 = vdwg.mxu0
      %v6787 = vmul.f32 %v6618, 0.35355338
      %v6789 = vsel %vm4161, %v6787, 0
      %v6792 = vsel %vm4161, %v6701, 0
      %6794 = vmatprep.subr.mxu0 0.0
      %6795 = vmatpush1.xpose.msra.mxu0 %v6792
      %6796 = vmatprep.subr.mxu0 0.0
      %6797 = vmatpush1.xpose.msra.mxu0 0.0
      %6798 = vmatprep.subr.mxu0 0.0
      %6799 = vmatpush1.xpose.msra.mxu0 0.0
      %6800 = vmatprep.subr.mxu0 0.0
      %6801 = vmatpush1.xpose.msra.mxu0 0.0
      %6802 = vmatprep.subr.mxu0 0.0
      %6803 = vmatpush1.xpose.msra.mxu0 0.0
      %6804 = vmatprep.subr.mxu0 0.0
      %6805 = vmatpush1.xpose.msra.mxu0 0.0
      %6806 = vmatprep.subr.mxu0 0.0
      %6807 = vmatpush1.xpose.msra.mxu0 0.0
      %6808 = vmatprep.subr.mxu0 0.0
      %6809 = vmatpush1.xpose.msra.mxu0 0.0
      %6810 = vmatprep.subr.mxu0 0.0
      %6811 = vmatpush1.xpose.msra.mxu0 0.0
      %6812 = vmatprep.subr.mxu0 0.0
      %6813 = vmatpush1.xpose.msra.mxu0 0.0
      %6814 = vmatprep.subr.mxu0 0.0
      %6815 = vmatpush1.xpose.msra.mxu0 0.0
      %6816 = vmatprep.subr.mxu0 0.0
      %6817 = vmatpush1.xpose.msra.mxu0 0.0
      %6818 = vmatprep.subr.mxu0 0.0
      %6819 = vmatpush1.xpose.msra.mxu0 0.0
      %6820 = vmatprep.subr.mxu0 0.0
      %6821 = vmatpush1.xpose.msra.mxu0 0.0
      %6822 = vmatprep.subr.mxu0 0.0
      %6823 = vmatpush1.xpose.msra.mxu0 0.0
      %6824 = vmatprep.subr.mxu0 0.0
      %6825 = vmatpush1.xpose.msra.mxu0 0.0
      %6826 = vmatprep.subr.mxu0 0.0
      %6827 = vmatpush1.xpose.msra.mxu0 0.0
      %6828 = vmatprep.subr.mxu0 0.0
      %6829 = vmatpush1.xpose.msra.mxu0 0.0
      %6830 = vmatprep.subr.mxu0 0.0
      %6831 = vmatpush1.xpose.msra.mxu0 0.0
      %6832 = vmatprep.subr.mxu0 0.0
      %6833 = vmatpush1.xpose.msra.mxu0 0.0
      %6834 = vmatprep.subr.mxu0 0.0
      %6835 = vmatpush1.xpose.msra.mxu0 0.0
      %6836 = vmatprep.subr.mxu0 0.0
      %6837 = vmatpush1.xpose.msra.mxu0 0.0
      %6838 = vmatprep.subr.mxu0 0.0
      %6839 = vmatpush1.xpose.msra.mxu0 0.0
      %6840 = vmatprep.subr.mxu0 0.0
      %6841 = vmatpush1.xpose.msra.mxu0 0.0
      %6842 = vmatprep.subr.mxu0 0.0
      %6843 = vmatpush1.xpose.msra.mxu0 0.0
      %6844 = vmatprep.subr.mxu0 0.0
      %6845 = vmatpush1.xpose.msra.mxu0 0.0
      %6846 = vmatprep.subr.mxu0 0.0
      %6847 = vmatpush1.xpose.msra.mxu0 0.0
      %6848 = vmatprep.subr.mxu0 0.0
      %6849 = vmatpush1.xpose.msra.mxu0 0.0
      %6850 = vmatprep.subr.mxu0 0.0
      %6851 = vmatpush1.xpose.msra.mxu0 0.0
      %6852 = vmatprep.subr.mxu0 0.0
      %6853 = vmatpush1.xpose.msra.mxu0 0.0
      %6854 = vmatprep.subr.mxu0 0.0
      %6855 = vmatpush1.xpose.msra.mxu0 0.0
      %6856 = vmatprep.subr.mxu0 0.0
      %6857 = vmatpush1.xpose.msra.mxu0 0.0
      %6858 = vmatprep.mubr.f32.mxu0 0.0
      %6859 = vmatmul.mubr.f32.gmra.mrb[0].mxu0 %v6789
      %v6860 = vpop.f32.mrb[0].mxu0
      %v6861 = vadd.f32 %v4159, %v6860
      %v6862 = vpop.f32.mrb[0].mxu0
      %6863 = vdwg.mxu0
      %v6864 = vsel %vm4238, %v6861, -inf
      %6865 = vmax.xlane.f32.xlu0 %v6864
      %v6866 = vpop.xlane.xlu0 %6865
      %v6867 = vsub.f32 %v6861, %v6866
      %v6868 = vmul.f32 %v6867, 1.442695
      %v6869 = vpow.pop %v6868
      %v6870 = vsel %vm4238, %v6869, 0.0
      %6871 = vadd.xlane.f32.xlu0 %v6870
      %v6872 = vpop.xlane.xlu0 %6871
      %v6873 = vrcp.pop %v6872
      %v6874 = vmul.f32 %v6869, %v6873
      %v6876 = vsel %vm4250, %v6874, 0
      %v6879 = vsel %vm4254, %v6784, 0
      %6881 = vmatprep.subr.mxu0 0.0
      %6882 = vmatpush1.msra.mxu0 %v6879
      %6883 = vmatprep.subr.mxu0 0.0
      %6884 = vmatpush1.msra.mxu0 0.0
      %6885 = vmatprep.subr.mxu0 0.0
      %6886 = vmatpush1.msra.mxu0 0.0
      %6887 = vmatprep.subr.mxu0 0.0
      %6888 = vmatpush1.msra.mxu0 0.0
      %6889 = vmatprep.subr.mxu0 0.0
      %6890 = vmatpush1.msra.mxu0 0.0
      %6891 = vmatprep.subr.mxu0 0.0
      %6892 = vmatpush1.msra.mxu0 0.0
      %6893 = vmatprep.subr.mxu0 0.0
      %6894 = vmatpush1.msra.mxu0 0.0
      %6895 = vmatprep.subr.mxu0 0.0
      %6896 = vmatpush1.msra.mxu0 0.0
      %6897 = vmatprep.subr.mxu0 0.0
      %6898 = vmatpush1.msra.mxu0 0.0
      %6899 = vmatprep.subr.mxu0 0.0
      %6900 = vmatpush1.msra.mxu0 0.0
      %6901 = vmatprep.subr.mxu0 0.0
      %6902 = vmatpush1.msra.mxu0 0.0
      %6903 = vmatprep.subr.mxu0 0.0
      %6904 = vmatpush1.msra.mxu0 0.0
      %6905 = vmatprep.subr.mxu0 0.0
      %6906 = vmatpush1.msra.mxu0 0.0
      %6907 = vmatprep.subr.mxu0 0.0
      %6908 = vmatpush1.msra.mxu0 0.0
      %6909 = vmatprep.subr.mxu0 0.0
      %6910 = vmatpush1.msra.mxu0 0.0
      %6911 = vmatprep.subr.mxu0 0.0
      %6912 = vmatpush1.msra.mxu0 0.0
      %6913 = vmatprep.subr.mxu0 0.0
      %6914 = vmatpush1.msra.mxu0 0.0
      %6915 = vmatprep.subr.mxu0 0.0
      %6916 = vmatpush1.msra.mxu0 0.0
      %6917 = vmatprep.subr.mxu0 0.0
      %6918 = vmatpush1.msra.mxu0 0.0
      %6919 = vmatprep.subr.mxu0 0.0
      %6920 = vmatpush1.msra.mxu0 0.0
      %6921 = vmatprep.subr.mxu0 0.0
      %6922 = vmatpush1.msra.mxu0 0.0
      %6923 = vmatprep.subr.mxu0 0.0
      %6924 = vmatpush1.msra.mxu0 0.0
      %6925 = vmatprep.subr.mxu0 0.0
      %6926 = vmatpush1.msra.mxu0 0.0
      %6927 = vmatprep.subr.mxu0 0.0
      %6928 = vmatpush1.msra.mxu0 0.0
      %6929 = vmatprep.subr.mxu0 0.0
      %6930 = vmatpush1.msra.mxu0 0.0
      %6931 = vmatprep.subr.mxu0 0.0
      %6932 = vmatpush1.msra.mxu0 0.0
      %6933 = vmatprep.subr.mxu0 0.0
      %6934 = vmatpush1.msra.mxu0 0.0
      %6935 = vmatprep.subr.mxu0 0.0
      %6936 = vmatpush1.msra.mxu0 0.0
      %6937 = vmatprep.subr.mxu0 0.0
      %6938 = vmatpush1.msra.mxu0 0.0
      %6939 = vmatprep.subr.mxu0 0.0
      %6940 = vmatpush1.msra.mxu0 0.0
      %6941 = vmatprep.subr.mxu0 0.0
      %6942 = vmatpush1.msra.mxu0 0.0
      %6943 = vmatprep.subr.mxu0 0.0
      %6944 = vmatpush1.msra.mxu0 0.0
      %6945 = vmatprep.mubr.f32.mxu0 0.0
      %6946 = vmatmul.mubr.f32.gmra.mrb[0].mxu0 %v6876
      %v6947 = vpop.f32.mrb[0].mxu0
      %v6948 = vadd.f32 0.0, %v6947
      %v6949 = vpop.f32.mrb[0].mxu0
      %6950 = vdwg.mxu0
      %s6951 = scalar_lea.vmem %s51, 40
      %v6952 = vld [vmem:[%s6951] sm:$0xff]
      %v6954 = vsel %vm4161, %v6948, 0
      %6956 = vmatprep.subr.mxu0 0.0
      %6957 = vmatpush1.msra.mxu0 %v6952
      %6958 = vmatprep.subr.mxu0 0.0
      %6959 = vmatpush1.msra.mxu0 0.0
      %6960 = vmatprep.subr.mxu0 0.0
      %6961 = vmatpush1.msra.mxu0 0.0
      %6962 = vmatprep.subr.mxu0 0.0
      %6963 = vmatpush1.msra.mxu0 0.0
      %6964 = vmatprep.subr.mxu0 0.0
      %6965 = vmatpush1.msra.mxu0 0.0
      %6966 = vmatprep.subr.mxu0 0.0
      %6967 = vmatpush1.msra.mxu0 0.0
      %6968 = vmatprep.subr.mxu0 0.0
      %6969 = vmatpush1.msra.mxu0 0.0
      %6970 = vmatprep.subr.mxu0 0.0
      %6971 = vmatpush1.msra.mxu0 0.0
      %6972 = vmatprep.subr.mxu0 0.0
      %6973 = vmatpush1.msra.mxu0 0.0
      %6974 = vmatprep.subr.mxu0 0.0
      %6975 = vmatpush1.msra.mxu0 0.0
      %6976 = vmatprep.subr.mxu0 0.0
      %6977 = vmatpush1.msra.mxu0 0.0
      %6978 = vmatprep.subr.mxu0 0.0
      %6979 = vmatpush1.msra.mxu0 0.0
      %6980 = vmatprep.subr.mxu0 0.0
      %6981 = vmatpush1.msra.mxu0 0.0
      %6982 = vmatprep.subr.mxu0 0.0
      %6983 = vmatpush1.msra.mxu0 0.0
      %6984 = vmatprep.subr.mxu0 0.0
      %6985 = vmatpush1.msra.mxu0 0.0
      %6986 = vmatprep.subr.mxu0 0.0
      %6987 = vmatpush1.msra.mxu0 0.0
      %6988 = vmatprep.subr.mxu0 0.0
      %6989 = vmatpush1.msra.mxu0 0.0
      %6990 = vmatprep.subr.mxu0 0.0
      %6991 = vmatpush1.msra.mxu0 0.0
      %6992 = vmatprep.subr.mxu0 0.0
      %6993 = vmatpush1.msra.mxu0 0.0
      %6994 = vmatprep.subr.mxu0 0.0
      %6995 = vmatpush1.msra.mxu0 0.0
      %6996 = vmatprep.subr.mxu0 0.0
      %6997 = vmatpush1.msra.mxu0 0.0
      %6998 = vmatprep.subr.mxu0 0.0
      %6999 = vmatpush1.msra.mxu0 0.0
      %7000 = vmatprep.subr.mxu0 0.0
      %7001 = vmatpush1.msra.mxu0 0.0
      %7002 = vmatprep.subr.mxu0 0.0
      %7003 = vmatpush1.msra.mxu0 0.0
      %7004 = vmatprep.subr.mxu0 0.0
      %7005 = vmatpush1.msra.mxu0 0.0
      %7006 = vmatprep.subr.mxu0 0.0
      %7007 = vmatpush1.msra.mxu0 0.0
      %7008 = vmatprep.subr.mxu0 0.0
      %7009 = vmatpush1.msra.mxu0 0.0
      %7010 = vmatprep.subr.mxu0 0.0
      %7011 = vmatpush1.msra.mxu0 0.0
      %7012 = vmatprep.subr.mxu0 0.0
      %7013 = vmatpush1.msra.mxu0 0.0
      %7014 = vmatprep.subr.mxu0 0.0
      %7015 = vmatpush1.msra.mxu0 0.0
      %7016 = vmatprep.subr.mxu0 0.0
      %7017 = vmatpush1.msra.mxu0 0.0
      %7018 = vmatprep.subr.mxu0 0.0
      %7019 = vmatpush1.msra.mxu0 0.0
      %7020 = vmatprep.mubr.f32.mxu0 0.0
      %7021 = vmatmul.mubr.f32.gmra.mrb[0].mxu0 %v6954
      %v7022 = vpop.f32.mrb[0].mxu0
      %v7023 = vadd.f32 0.0, %v7022
      %v7024 = vpop.f32.mrb[0].mxu0
      %7025 = vdwg.mxu0
      %v7027 = vsel %vm4161, %v6533, 0
      %7029 = vmatprep.subr.mxu0 0.0
      %7030 = vmatpush1.msra.mxu0 %v6537
      %7031 = vmatprep.subr.mxu0 0.0
      %7032 = vmatpush1.msra.mxu0 0.0
      %7033 = vmatprep.subr.mxu0 0.0
      %7034 = vmatpush1.msra.mxu0 0.0
      %7035 = vmatprep.subr.mxu0 0.0
      %7036 = vmatpush1.msra.mxu0 0.0
      %7037 = vmatprep.subr.mxu0 0.0
      %7038 = vmatpush1.msra.mxu0 0.0
      %7039 = vmatprep.subr.mxu0 0.0
      %7040 = vmatpush1.msra.mxu0 0.0
      %7041 = vmatprep.subr.mxu0 0.0
      %7042 = vmatpush1.msra.mxu0 0.0
      %7043 = vmatprep.subr.mxu0 0.0
      %7044 = vmatpush1.msra.mxu0 0.0
      %7045 = vmatprep.subr.mxu0 0.0
      %7046 = vmatpush1.msra.mxu0 0.0
      %7047 = vmatprep.subr.mxu0 0.0
      %7048 = vmatpush1.msra.mxu0 0.0
      %7049 = vmatprep.subr.mxu0 0.0
      %7050 = vmatpush1.msra.mxu0 0.0
      %7051 = vmatprep.subr.mxu0 0.0
      %7052 = vmatpush1.msra.mxu0 0.0
      %7053 = vmatprep.subr.mxu0 0.0
      %7054 = vmatpush1.msra.mxu0 0.0
      %7055 = vmatprep.subr.mxu0 0.0
      %7056 = vmatpush1.msra.mxu0 0.0
      %7057 = vmatprep.subr.mxu0 0.0
      %7058 = vmatpush1.msra.mxu0 0.0
      %7059 = vmatprep.subr.mxu0 0.0
      %7060 = vmatpush1.msra.mxu0 0.0
      %7061 = vmatprep.subr.mxu0 0.0
      %7062 = vmatpush1.msra.mxu0 0.0
      %7063 = vmatprep.subr.mxu0 0.0
      %7064 = vmatpush1.msra.mxu0 0.0
      %7065 = vmatprep.subr.mxu0 0.0
      %7066 = vmatpush1.msra.mxu0 0.0
      %7067 = vmatprep.subr.mxu0 0.0
      %7068 = vmatpush1.msra.mxu0 0.0
      %7069 = vmatprep.subr.mxu0 0.0
      %7070 = vmatpush1.msra.mxu0 0.0
      %7071 = vmatprep.subr.mxu0 0.0
      %7072 = vmatpush1.msra.mxu0 0.0
      %7073 = vmatprep.subr.mxu0 0.0
      %7074 = vmatpush1.msra.mxu0 0.0
      %7075 = vmatprep.subr.mxu0 0.0
      %7076 = vmatpush1.msra.mxu0 0.0
      %7077 = vmatprep.subr.mxu0 0.0
      %7078 = vmatpush1.msra.mxu0 0.0
      %7079 = vmatprep.subr.mxu0 0.0
      %7080 = vmatpush1.msra.mxu0 0.0
      %7081 = vmatprep.subr.mxu0 0.0
      %7082 = vmatpush1.msra.mxu0 0.0
      %7083 = vmatprep.subr.mxu0 0.0
      %7084 = vmatpush1.msra.mxu0 0.0
      %7085 = vmatprep.subr.mxu0 0.0
      %7086 = vmatpush1.msra.mxu0 0.0
      %7087 = vmatprep.subr.mxu0 0.0
      %7088 = vmatpush1.msra.mxu0 0.0
      %7089 = vmatprep.subr.mxu0 0.0
      %7090 = vmatpush1.msra.mxu0 0.0
      %7091 = vmatprep.subr.mxu0 0.0
      %7092 = vmatpush1.msra.mxu0 0.0
      %7093 = vmatprep.mubr.f32.mxu0 0.0
      %7094 = vmatmul.mubr.f32.gmra.mrb[0].mxu0 %v7027
      %v7095 = vpop.f32.mrb[0].mxu0
      %v7096 = vadd.f32 %v7023, %v7095
      %v7097 = vpop.f32.mrb[0].mxu0
      %7098 = vdwg.mxu0
      %s7099 = scalar_lea.vmem %s39, 192
      %v7100 = vld [vmem:[%s7099] sm:$0xff]
      %v7101 = vld [vmem:[%s7099 + $0x8] sm:$0xff]
      %v7102 = vld [vmem:[%s7099 + $0x10] sm:$0xff]
      %v7103 = vld [vmem:[%s7099 + $0x18] sm:$0xff]
      %s7104 = scalar_lea.vmem %s41, 6
      %v7105 = vld [vmem:[%s7104] sm:$0x1]
      %v7107 = vlaneseq
      %v7108 = vshrl.u32 %v7107, 7
      %v7109 = vsub.s32 0, %v7108
      %v7110 = vrot.slane %v7105, %v7109
      %7112 = vmatprep.subr.mxu0 0.0
      %7113 = vmatpush1.msra.mxu0 %v7100
      %7114 = vmatprep.subr.mxu0 0.0
      %7115 = vmatpush1.msra.mxu0 %v7101
      %7116 = vmatprep.subr.mxu0 0.0
      %7117 = vmatpush1.msra.mxu0 %v7102
      %7118 = vmatprep.subr.mxu0 0.0
      %7119 = vmatpush1.msra.mxu0 %v7103
      %7120 = vmatprep.subr.mxu0 0.0
      %7121 = vmatpush1.msra.mxu0 0.0
      %7122 = vmatprep.subr.mxu0 0.0
      %7123 = vmatpush1.msra.mxu0 0.0
      %7124 = vmatprep.subr.mxu0 0.0
      %7125 = vmatpush1.msra.mxu0 0.0
      %7126 = vmatprep.subr.mxu0 0.0
      %7127 = vmatpush1.msra.mxu0 0.0
      %7128 = vmatprep.subr.mxu0 0.0
      %7129 = vmatpush1.msra.mxu0 0.0
      %7130 = vmatprep.subr.mxu0 0.0
      %7131 = vmatpush1.msra.mxu0 0.0
      %7132 = vmatprep.subr.mxu0 0.0
      %7133 = vmatpush1.msra.mxu0 0.0
      %7134 = vmatprep.subr.mxu0 0.0
      %7135 = vmatpush1.msra.mxu0 0.0
      %7136 = vmatprep.subr.mxu0 0.0
      %7137 = vmatpush1.msra.mxu0 0.0
      %7138 = vmatprep.subr.mxu0 0.0
      %7139 = vmatpush1.msra.mxu0 0.0
      %7140 = vmatprep.subr.mxu0 0.0
      %7141 = vmatpush1.msra.mxu0 0.0
      %7142 = vmatprep.subr.mxu0 0.0
      %7143 = vmatpush1.msra.mxu0 0.0
      %7144 = vmatprep.subr.mxu0 0.0
      %7145 = vmatpush1.msra.mxu0 0.0
      %7146 = vmatprep.subr.mxu0 0.0
      %7147 = vmatpush1.msra.mxu0 0.0
      %7148 = vmatprep.subr.mxu0 0.0
      %7149 = vmatpush1.msra.mxu0 0.0
      %7150 = vmatprep.subr.mxu0 0.0
      %7151 = vmatpush1.msra.mxu0 0.0
      %7152 = vmatprep.subr.mxu0 0.0
      %7153 = vmatpush1.msra.mxu0 0.0
      %7154 = vmatprep.subr.mxu0 0.0
      %7155 = vmatpush1.msra.mxu0 0.0
      %7156 = vmatprep.subr.mxu0 0.0
      %7157 = vmatpush1.msra.mxu0 0.0
      %7158 = vmatprep.subr.mxu0 0.0
      %7159 = vmatpush1.msra.mxu0 0.0
      %7160 = vmatprep.subr.mxu0 0.0
      %7161 = vmatpush1.msra.mxu0 0.0
      %7162 = vmatprep.subr.mxu0 0.0
      %7163 = vmatpush1.msra.mxu0 0.0
      %7164 = vmatprep.subr.mxu0 0.0
      %7165 = vmatpush1.msra.mxu0 0.0
      %7166 = vmatprep.subr.mxu0 0.0
      %7167 = vmatpush1.msra.mxu0 0.0
      %7168 = vmatprep.subr.mxu0 0.0
      %7169 = vmatpush1.msra.mxu0 0.0
      %7170 = vmatprep.subr.mxu0 0.0
      %7171 = vmatpush1.msra.mxu0 0.0
      %7172 = vmatprep.subr.mxu0 0.0
      %7173 = vmatpush1.msra.mxu0 0.0
      %7174 = vmatprep.subr.mxu0 0.0
      %7175 = vmatpush1.msra.mxu0 0.0
      %7176 = vmatprep.mubr.f32.mxu0 0.0
      %7177 = vmatmul.mubr.f32.gmra.mrb[0].mxu0 %v6134
      %v7178 = vpop.f32.mrb[0].mxu0
      %v7179 = vadd.f32 %v7110, %v7178
      %v7180 = vpop.f32.mrb[0].mxu0
      %7181 = vdwg.mxu0
      %s7182 = scalar_lea.vmem %s43, 192
      %v7183 = vld [vmem:[%s7182] sm:$0xff]
      %v7184 = vld [vmem:[%s7182 + $0x8] sm:$0xff]
      %v7185 = vld [vmem:[%s7182 + $0x10] sm:$0xff]
      %v7186 = vld [vmem:[%s7182 + $0x18] sm:$0xff]
      %s7187 = scalar_lea.vmem %s45, 6
      %v7188 = vld [vmem:[%s7187] sm:$0x1]
      %v7190 = vlaneseq
      %v7191 = vshrl.u32 %v7190, 7
      %v7192 = vsub.s32 0, %v7191
      %v7193 = vrot.slane %v7188, %v7192
      %7195 = vmatprep.subr.mxu0 0.0
      %7196 = vmatpush1.msra.mxu0 %v7183
      %7197 = vmatprep.subr.mxu0 0.0
      %7198 = vmatpush1.msra.mxu0 %v7184
      %7199 = vmatprep.subr.mxu0 0.0
      %7200 = vmatpush1.msra.mxu0 %v7185
      %7201 = vmatprep.subr.mxu0 0.0
      %7202 = vmatpush1.msra.mxu0 %v7186
      %7203 = vmatprep.subr.mxu0 0.0
      %7204 = vmatpush1.msra.mxu0 0.0
      %7205 = vmatprep.subr.mxu0 0.0
      %7206 = vmatpush1.msra.mxu0 0.0
      %7207 = vmatprep.subr.mxu0 0.0
      %7208 = vmatpush1.msra.mxu0 0.0
      %7209 = vmatprep.subr.mxu0 0.0
      %7210 = vmatpush1.msra.mxu0 0.0
      %7211 = vmatprep.subr.mxu0 0.0
      %7212 = vmatpush1.msra.mxu0 0.0
      %7213 = vmatprep.subr.mxu0 0.0
      %7214 = vmatpush1.msra.mxu0 0.0
      %7215 = vmatprep.subr.mxu0 0.0
      %7216 = vmatpush1.msra.mxu0 0.0
      %7217 = vmatprep.subr.mxu0 0.0
      %7218 = vmatpush1.msra.mxu0 0.0
      %7219 = vmatprep.subr.mxu0 0.0
      %7220 = vmatpush1.msra.mxu0 0.0
      %7221 = vmatprep.subr.mxu0 0.0
      %7222 = vmatpush1.msra.mxu0 0.0
      %7223 = vmatprep.subr.mxu0 0.0
      %7224 = vmatpush1.msra.mxu0 0.0
      %7225 = vmatprep.subr.mxu0 0.0
      %7226 = vmatpush1.msra.mxu0 0.0
      %7227 = vmatprep.subr.mxu0 0.0
      %7228 = vmatpush1.msra.mxu0 0.0
      %7229 = vmatprep.subr.mxu0 0.0
      %7230 = vmatpush1.msra.mxu0 0.0
      %7231 = vmatprep.subr.mxu0 0.0
      %7232 = vmatpush1.msra.mxu0 0.0
      %7233 = vmatprep.subr.mxu0 0.0
      %7234 = vmatpush1.msra.mxu0 0.0
      %7235 = vmatprep.subr.mxu0 0.0
      %7236 = vmatpush1.msra.mxu0 0.0
      %7237 = vmatprep.subr.mxu0 0.0
      %7238 = vmatpush1.msra.mxu0 0.0
      %7239 = vmatprep.subr.mxu0 0.0
      %7240 = vmatpush1.msra.mxu0 0.0
      %7241 = vmatprep.subr.mxu0 0.0
      %7242 = vmatpush1.msra.mxu0 0.0
      %7243 = vmatprep.subr.mxu0 0.0
      %7244 = vmatpush1.msra.mxu0 0.0
      %7245 = vmatprep.subr.mxu0 0.0
      %7246 = vmatpush1.msra.mxu0 0.0
      %7247 = vmatprep.subr.mxu0 0.0
      %7248 = vmatpush1.msra.mxu0 0.0
      %7249 = vmatprep.subr.mxu0 0.0
      %7250 = vmatpush1.msra.mxu0 0.0
      %7251 = vmatprep.subr.mxu0 0.0
      %7252 = vmatpush1.msra.mxu0 0.0
      %7253 = vmatprep.subr.mxu0 0.0
      %7254 = vmatpush1.msra.mxu0 0.0
      %7255 = vmatprep.subr.mxu0 0.0
      %7256 = vmatpush1.msra.mxu0 0.0
      %7257 = vmatprep.subr.mxu0 0.0
      %7258 = vmatpush1.msra.mxu0 0.0
      %7259 = vmatprep.mubr.f32.mxu0 0.0
      %7260 = vmatmul.mubr.f32.gmra.mrb[0].mxu0 %v6134
      %v7261 = vpop.f32.mrb[0].mxu0
      %v7262 = vadd.f32 %v7193, %v7261
      %v7263 = vpop.f32.mrb[0].mxu0
      %7264 = vdwg.mxu0
      %s7265 = scalar_lea.vmem %s47, 192
      %v7266 = vld [vmem:[%s7265] sm:$0xff]
      %v7267 = vld [vmem:[%s7265 + $0x8] sm:$0xff]
      %v7268 = vld [vmem:[%s7265 + $0x10] sm:$0xff]
      %v7269 = vld [vmem:[%s7265 + $0x18] sm:$0xff]
      %s7270 = scalar_lea.vmem %s49, 6
      %v7271 = vld [vmem:[%s7270] sm:$0x1]
      %v7273 = vlaneseq
      %v7274 = vshrl.u32 %v7273, 7
      %v7275 = vsub.s32 0, %v7274
      %v7276 = vrot.slane %v7271, %v7275
      %7278 = vmatprep.subr.mxu0 0.0
      %7279 = vmatpush1.msra.mxu0 %v7266
      %7280 = vmatprep.subr.mxu0 0.0
      %7281 = vmatpush1.msra.mxu0 %v7267
      %7282 = vmatprep.subr.mxu0 0.0
      %7283 = vmatpush1.msra.mxu0 %v7268
      %7284 = vmatprep.subr.mxu0 0.0
      %7285 = vmatpush1.msra.mxu0 %v7269
      %7286 = vmatprep.subr.mxu0 0.0
      %7287 = vmatpush1.msra.mxu0 0.0
      %7288 = vmatprep.subr.mxu0 0.0
      %7289 = vmatpush1.msra.mxu0 0.0
      %7290 = vmatprep.subr.mxu0 0.0
      %7291 = vmatpush1.msra.mxu0 0.0
      %7292 = vmatprep.subr.mxu0 0.0
      %7293 = vmatpush1.msra.mxu0 0.0
      %7294 = vmatprep.subr.mxu0 0.0
      %7295 = vmatpush1.msra.mxu0 0.0
      %7296 = vmatprep.subr.mxu0 0.0
      %7297 = vmatpush1.msra.mxu0 0.0
      %7298 = vmatprep.subr.mxu0 0.0
      %7299 = vmatpush1.msra.mxu0 0.0
      %7300 = vmatprep.subr.mxu0 0.0
      %7301 = vmatpush1.msra.mxu0 0.0
      %7302 = vmatprep.subr.mxu0 0.0
      %7303 = vmatpush1.msra.mxu0 0.0
      %7304 = vmatprep.subr.mxu0 0.0
      %7305 = vmatpush1.msra.mxu0 0.0
      %7306 = vmatprep.subr.mxu0 0.0
      %7307 = vmatpush1.msra.mxu0 0.0
      %7308 = vmatprep.subr.mxu0 0.0
      %7309 = vmatpush1.msra.mxu0 0.0
      %7310 = vmatprep.subr.mxu0 0.0
      %7311 = vmatpush1.msra.mxu0 0.0
      %7312 = vmatprep.subr.mxu0 0.0
      %7313 = vmatpush1.msra.mxu0 0.0
      %7314 = vmatprep.subr.mxu0 0.0
      %7315 = vmatpush1.msra.mxu0 0.0
      %7316 = vmatprep.subr.mxu0 0.0
      %7317 = vmatpush1.msra.mxu0 0.0
      %7318 = vmatprep.subr.mxu0 0.0
      %7319 = vmatpush1.msra.mxu0 0.0
      %7320 = vmatprep.subr.mxu0 0.0
      %7321 = vmatpush1.msra.mxu0 0.0
      %7322 = vmatprep.subr.mxu0 0.0
      %7323 = vmatpush1.msra.mxu0 0.0
      %7324 = vmatprep.subr.mxu0 0.0
      %7325 = vmatpush1.msra.mxu0 0.0
      %7326 = vmatprep.subr.mxu0 0.0
      %7327 = vmatpush1.msra.mxu0 0.0
      %7328 = vmatprep.subr.mxu0 0.0
      %7329 = vmatpush1.msra.mxu0 0.0
      %7330 = vmatprep.subr.mxu0 0.0
      %7331 = vmatpush1.msra.mxu0 0.0
      %7332 = vmatprep.subr.mxu0 0.0
      %7333 = vmatpush1.msra.mxu0 0.0
      %7334 = vmatprep.subr.mxu0 0.0
      %7335 = vmatpush1.msra.mxu0 0.0
      %7336 = vmatprep.subr.mxu0 0.0
      %7337 = vmatpush1.msra.mxu0 0.0
      %7338 = vmatprep.subr.mxu0 0.0
      %7339 = vmatpush1.msra.mxu0 0.0
      %7340 = vmatprep.subr.mxu0 0.0
      %7341 = vmatpush1.msra.mxu0 0.0
      %7342 = vmatprep.mubr.f32.mxu0 0.0
      %7343 = vmatmul.mubr.f32.gmra.mrb[0].mxu0 %v6134
      %v7344 = vpop.f32.mrb[0].mxu0
      %v7345 = vadd.f32 %v7276, %v7344
      %v7346 = vpop.f32.mrb[0].mxu0
      %7347 = vdwg.mxu0
      %v7348 = vmul.f32 %v7179, 0.35355338
      %v7350 = vsel %vm4161, %v7348, 0
      %v7353 = vsel %vm4161, %v7262, 0
      %7355 = vmatprep.subr.mxu0 0.0
      %7356 = vmatpush1.xpose.msra.mxu0 %v7353
      %7357 = vmatprep.subr.mxu0 0.0
      %7358 = vmatpush1.xpose.msra.mxu0 0.0
      %7359 = vmatprep.subr.mxu0 0.0
      %7360 = vmatpush1.xpose.msra.mxu0 0.0
      %7361 = vmatprep.subr.mxu0 0.0
      %7362 = vmatpush1.xpose.msra.mxu0 0.0
      %7363 = vmatprep.subr.mxu0 0.0
      %7364 = vmatpush1.xpose.msra.mxu0 0.0
      %7365 = vmatprep.subr.mxu0 0.0
      %7366 = vmatpush1.xpose.msra.mxu0 0.0
      %7367 = vmatprep.subr.mxu0 0.0
      %7368 = vmatpush1.xpose.msra.mxu0 0.0
      %7369 = vmatprep.subr.mxu0 0.0
      %7370 = vmatpush1.xpose.msra.mxu0 0.0
      %7371 = vmatprep.subr.mxu0 0.0
      %7372 = vmatpush1.xpose.msra.mxu0 0.0
      %7373 = vmatprep.subr.mxu0 0.0
      %7374 = vmatpush1.xpose.msra.mxu0 0.0
      %7375 = vmatprep.subr.mxu0 0.0
      %7376 = vmatpush1.xpose.msra.mxu0 0.0
      %7377 = vmatprep.subr.mxu0 0.0
      %7378 = vmatpush1.xpose.msra.mxu0 0.0
      %7379 = vmatprep.subr.mxu0 0.0
      %7380 = vmatpush1.xpose.msra.mxu0 0.0
      %7381 = vmatprep.subr.mxu0 0.0
      %7382 = vmatpush1.xpose.msra.mxu0 0.0
      %7383 = vmatprep.subr.mxu0 0.0
      %7384 = vmatpush1.xpose.msra.mxu0 0.0
      %7385 = vmatprep.subr.mxu0 0.0
      %7386 = vmatpush1.xpose.msra.mxu0 0.0
      %7387 = vmatprep.subr.mxu0 0.0
      %7388 = vmatpush1.xpose.msra.mxu0 0.0
      %7389 = vmatprep.subr.mxu0 0.0
      %7390 = vmatpush1.xpose.msra.mxu0 0.0
      %7391 = vmatprep.subr.mxu0 0.0
      %7392 = vmatpush1.xpose.msra.mxu0 0.0
      %7393 = vmatprep.subr.mxu0 0.0
      %7394 = vmatpush1.xpose.msra.mxu0 0.0
      %7395 = vmatprep.subr.mxu0 0.0
      %7396 = vmatpush1.xpose.msra.mxu0 0.0
      %7397 = vmatprep.subr.mxu0 0.0
      %7398 = vmatpush1.xpose.msra.mxu0 0.0
      %7399 = vmatprep.subr.mxu0 0.0
      %7400 = vmatpush1.xpose.msra.mxu0 0.0
      %7401 = vmatprep.subr.mxu0 0.0
      %7402 = vmatpush1.xpose.msra.mxu0 0.0
      %7403 = vmatprep.subr.mxu0 0.0
      %7404 = vmatpush1.xpose.msra.mxu0 0.0
      %7405 = vmatprep.subr.mxu0 0.0
      %7406 = vmatpush1.xpose.msra.mxu0 0.0
      %7407 = vmatprep.subr.mxu0 0.0
      %7408 = vmatpush1.xpose.msra.mxu0 0.0
      %7409 = vmatprep.subr.mxu0 0.0
      %7410 = vmatpush1.xpose.msra.mxu0 0.0
      %7411 = vmatprep.subr.mxu0 0.0
      %7412 = vmatpush1.xpose.msra.mxu0 0.0
      %7413 = vmatprep.subr.mxu0 0.0
      %7414 = vmatpush1.xpose.msra.mxu0 0.0
      %7415 = vmatprep.subr.mxu0 0.0
      %7416 = vmatpush1.xpose.msra.mxu0 0.0
      %7417 = vmatprep.subr.mxu0 0.0
      %7418 = vmatpush1.xpose.msra.mxu0 0.0
      %7419 = vmatprep.mubr.f32.mxu0 0.0
      %7420 = vmatmul.mubr.f32.gmra.mrb[0].mxu0 %v7350
      %v7421 = vpop.f32.mrb[0].mxu0
      %v7422 = vadd.f32 %v4159, %v7421
      %v7423 = vpop.f32.mrb[0].mxu0
      %7424 = vdwg.mxu0
      %v7425 = vsel %vm4238, %v7422, -inf
      %7426 = vmax.xlane.f32.xlu0 %v7425
      %v7427 = vpop.xlane.xlu0 %7426
      %v7428 = vsub.f32 %v7422, %v7427
      %v7429 = vmul.f32 %v7428, 1.442695
      %v7430 = vpow.pop %v7429
      %v7431 = vsel %vm4238, %v7430, 0.0
      %7432 = vadd.xlane.f32.xlu0 %v7431
      %v7433 = vpop.xlane.xlu0 %7432
      %v7434 = vrcp.pop %v7433
      %v7435 = vmul.f32 %v7430, %v7434
      %v7437 = vsel %vm4250, %v7435, 0
      %v7440 = vsel %vm4254, %v7345, 0
      %7442 = vmatprep.subr.mxu0 0.0
      %7443 = vmatpush1.msra.mxu0 %v7440
      %7444 = vmatprep.subr.mxu0 0.0
      %7445 = vmatpush1.msra.mxu0 0.0
      %7446 = vmatprep.subr.mxu0 0.0
      %7447 = vmatpush1.msra.mxu0 0.0
      %7448 = vmatprep.subr.mxu0 0.0
      %7449 = vmatpush1.msra.mxu0 0.0
      %7450 = vmatprep.subr.mxu0 0.0
      %7451 = vmatpush1.msra.mxu0 0.0
      %7452 = vmatprep.subr.mxu0 0.0
      %7453 = vmatpush1.msra.mxu0 0.0
      %7454 = vmatprep.subr.mxu0 0.0
      %7455 = vmatpush1.msra.mxu0 0.0
      %7456 = vmatprep.subr.mxu0 0.0
      %7457 = vmatpush1.msra.mxu0 0.0
      %7458 = vmatprep.subr.mxu0 0.0
      %7459 = vmatpush1.msra.mxu0 0.0
      %7460 = vmatprep.subr.mxu0 0.0
      %7461 = vmatpush1.msra.mxu0 0.0
      %7462 = vmatprep.subr.mxu0 0.0
      %7463 = vmatpush1.msra.mxu0 0.0
      %7464 = vmatprep.subr.mxu0 0.0
      %7465 = vmatpush1.msra.mxu0 0.0
      %7466 = vmatprep.subr.mxu0 0.0
      %7467 = vmatpush1.msra.mxu0 0.0
      %7468 = vmatprep.subr.mxu0 0.0
      %7469 = vmatpush1.msra.mxu0 0.0
      %7470 = vmatprep.subr.mxu0 0.0
      %7471 = vmatpush1.msra.mxu0 0.0
      %7472 = vmatprep.subr.mxu0 0.0
      %7473 = vmatpush1.msra.mxu0 0.0
      %7474 = vmatprep.subr.mxu0 0.0
      %7475 = vmatpush1.msra.mxu0 0.0
      %7476 = vmatprep.subr.mxu0 0.0
      %7477 = vmatpush1.msra.mxu0 0.0
      %7478 = vmatprep.subr.mxu0 0.0
      %7479 = vmatpush1.msra.mxu0 0.0
      %7480 = vmatprep.subr.mxu0 0.0
      %7481 = vmatpush1.msra.mxu0 0.0
      %7482 = vmatprep.subr.mxu0 0.0
      %7483 = vmatpush1.msra.mxu0 0.0
      %7484 = vmatprep.subr.mxu0 0.0
      %7485 = vmatpush1.msra.mxu0 0.0
      %7486 = vmatprep.subr.mxu0 0.0
      %7487 = vmatpush1.msra.mxu0 0.0
      %7488 = vmatprep.subr.mxu0 0.0
      %7489 = vmatpush1.msra.mxu0 0.0
      %7490 = vmatprep.subr.mxu0 0.0
      %7491 = vmatpush1.msra.mxu0 0.0
      %7492 = vmatprep.subr.mxu0 0.0
      %7493 = vmatpush1.msra.mxu0 0.0
      %7494 = vmatprep.subr.mxu0 0.0
      %7495 = vmatpush1.msra.mxu0 0.0
      %7496 = vmatprep.subr.mxu0 0.0
      %7497 = vmatpush1.msra.mxu0 0.0
      %7498 = vmatprep.subr.mxu0 0.0
      %7499 = vmatpush1.msra.mxu0 0.0
      %7500 = vmatprep.subr.mxu0 0.0
      %7501 = vmatpush1.msra.mxu0 0.0
      %7502 = vmatprep.subr.mxu0 0.0
      %7503 = vmatpush1.msra.mxu0 0.0
      %7504 = vmatprep.subr.mxu0 0.0
      %7505 = vmatpush1.msra.mxu0 0.0
      %7506 = vmatprep.mubr.f32.mxu0 0.0
      %7507 = vmatmul.mubr.f32.gmra.mrb[0].mxu0 %v7437
      %v7508 = vpop.f32.mrb[0].mxu0
      %v7509 = vadd.f32 0.0, %v7508
      %v7510 = vpop.f32.mrb[0].mxu0
      %7511 = vdwg.mxu0
      %s7512 = scalar_lea.vmem %s51, 48
      %v7513 = vld [vmem:[%s7512] sm:$0xff]
      %v7515 = vsel %vm4161, %v7509, 0
      %7517 = vmatprep.subr.mxu0 0.0
      %7518 = vmatpush1.msra.mxu0 %v7513
      %7519 = vmatprep.subr.mxu0 0.0
      %7520 = vmatpush1.msra.mxu0 0.0
      %7521 = vmatprep.subr.mxu0 0.0
      %7522 = vmatpush1.msra.mxu0 0.0
      %7523 = vmatprep.subr.mxu0 0.0
      %7524 = vmatpush1.msra.mxu0 0.0
      %7525 = vmatprep.subr.mxu0 0.0
      %7526 = vmatpush1.msra.mxu0 0.0
      %7527 = vmatprep.subr.mxu0 0.0
      %7528 = vmatpush1.msra.mxu0 0.0
      %7529 = vmatprep.subr.mxu0 0.0
      %7530 = vmatpush1.msra.mxu0 0.0
      %7531 = vmatprep.subr.mxu0 0.0
      %7532 = vmatpush1.msra.mxu0 0.0
      %7533 = vmatprep.subr.mxu0 0.0
      %7534 = vmatpush1.msra.mxu0 0.0
      %7535 = vmatprep.subr.mxu0 0.0
      %7536 = vmatpush1.msra.mxu0 0.0
      %7537 = vmatprep.subr.mxu0 0.0
      %7538 = vmatpush1.msra.mxu0 0.0
      %7539 = vmatprep.subr.mxu0 0.0
      %7540 = vmatpush1.msra.mxu0 0.0
      %7541 = vmatprep.subr.mxu0 0.0
      %7542 = vmatpush1.msra.mxu0 0.0
      %7543 = vmatprep.subr.mxu0 0.0
      %7544 = vmatpush1.msra.mxu0 0.0
      %7545 = vmatprep.subr.mxu0 0.0
      %7546 = vmatpush1.msra.mxu0 0.0
      %7547 = vmatprep.subr.mxu0 0.0
      %7548 = vmatpush1.msra.mxu0 0.0
      %7549 = vmatprep.subr.mxu0 0.0
      %7550 = vmatpush1.msra.mxu0 0.0
      %7551 = vmatprep.subr.mxu0 0.0
      %7552 = vmatpush1.msra.mxu0 0.0
      %7553 = vmatprep.subr.mxu0 0.0
      %7554 = vmatpush1.msra.mxu0 0.0
      %7555 = vmatprep.subr.mxu0 0.0
      %7556 = vmatpush1.msra.mxu0 0.0
      %7557 = vmatprep.subr.mxu0 0.0
      %7558 = vmatpush1.msra.mxu0 0.0
      %7559 = vmatprep.subr.mxu0 0.0
      %7560 = vmatpush1.msra.mxu0 0.0
      %7561 = vmatprep.subr.mxu0 0.0
      %7562 = vmatpush1.msra.mxu0 0.0
      %7563 = vmatprep.subr.mxu0 0.0
      %7564 = vmatpush1.msra.mxu0 0.0
      %7565 = vmatprep.subr.mxu0 0.0
      %7566 = vmatpush1.msra.mxu0 0.0
      %7567 = vmatprep.subr.mxu0 0.0
      %7568 = vmatpush1.msra.mxu0 0.0
      %7569 = vmatprep.subr.mxu0 0.0
      %7570 = vmatpush1.msra.mxu0 0.0
      %7571 = vmatprep.subr.mxu0 0.0
      %7572 = vmatpush1.msra.mxu0 0.0
      %7573 = vmatprep.subr.mxu0 0.0
      %7574 = vmatpush1.msra.mxu0 0.0
      %7575 = vmatprep.subr.mxu0 0.0
      %7576 = vmatpush1.msra.mxu0 0.0
      %7577 = vmatprep.subr.mxu0 0.0
      %7578 = vmatpush1.msra.mxu0 0.0
      %7579 = vmatprep.subr.mxu0 0.0
      %7580 = vmatpush1.msra.mxu0 0.0
      %7581 = vmatprep.mubr.f32.mxu0 0.0
      %7582 = vmatmul.mubr.f32.gmra.mrb[0].mxu0 %v7515
      %v7583 = vpop.f32.mrb[0].mxu0
      %v7584 = vadd.f32 0.0, %v7583
      %v7585 = vpop.f32.mrb[0].mxu0
      %7586 = vdwg.mxu0
      %v7587 = vadd.f32 %v7096, %v7584
      %s7588 = scalar_lea.vmem %s39, 224
      %v7589 = vld [vmem:[%s7588] sm:$0xff]
      %v7590 = vld [vmem:[%s7588 + $0x8] sm:$0xff]
      %v7591 = vld [vmem:[%s7588 + $0x10] sm:$0xff]
      %v7592 = vld [vmem:[%s7588 + $0x18] sm:$0xff]
      %s7593 = scalar_lea.vmem %s41, 7
      %v7594 = vld [vmem:[%s7593] sm:$0x1]
      %v7596 = vlaneseq
      %v7597 = vshrl.u32 %v7596, 7
      %v7598 = vsub.s32 0, %v7597
      %v7599 = vrot.slane %v7594, %v7598
      %7601 = vmatprep.subr.mxu0 0.0
      %7602 = vmatpush1.msra.mxu0 %v7589
      %7603 = vmatprep.subr.mxu0 0.0
      %7604 = vmatpush1.msra.mxu0 %v7590
      %7605 = vmatprep.subr.mxu0 0.0
      %7606 = vmatpush1.msra.mxu0 %v7591
      %7607 = vmatprep.subr.mxu0 0.0
      %7608 = vmatpush1.msra.mxu0 %v7592
      %7609 = vmatprep.subr.mxu0 0.0
      %7610 = vmatpush1.msra.mxu0 0.0
      %7611 = vmatprep.subr.mxu0 0.0
      %7612 = vmatpush1.msra.mxu0 0.0
      %7613 = vmatprep.subr.mxu0 0.0
      %7614 = vmatpush1.msra.mxu0 0.0
      %7615 = vmatprep.subr.mxu0 0.0
      %7616 = vmatpush1.msra.mxu0 0.0
      %7617 = vmatprep.subr.mxu0 0.0
      %7618 = vmatpush1.msra.mxu0 0.0
      %7619 = vmatprep.subr.mxu0 0.0
      %7620 = vmatpush1.msra.mxu0 0.0
      %7621 = vmatprep.subr.mxu0 0.0
      %7622 = vmatpush1.msra.mxu0 0.0
      %7623 = vmatprep.subr.mxu0 0.0
      %7624 = vmatpush1.msra.mxu0 0.0
      %7625 = vmatprep.subr.mxu0 0.0
      %7626 = vmatpush1.msra.mxu0 0.0
      %7627 = vmatprep.subr.mxu0 0.0
      %7628 = vmatpush1.msra.mxu0 0.0
      %7629 = vmatprep.subr.mxu0 0.0
      %7630 = vmatpush1.msra.mxu0 0.0
      %7631 = vmatprep.subr.mxu0 0.0
      %7632 = vmatpush1.msra.mxu0 0.0
      %7633 = vmatprep.subr.mxu0 0.0
      %7634 = vmatpush1.msra.mxu0 0.0
      %7635 = vmatprep.subr.mxu0 0.0
      %7636 = vmatpush1.msra.mxu0 0.0
      %7637 = vmatprep.subr.mxu0 0.0
      %7638 = vmatpush1.msra.mxu0 0.0
      %7639 = vmatprep.subr.mxu0 0.0
      %7640 = vmatpush1.msra.mxu0 0.0
      %7641 = vmatprep.subr.mxu0 0.0
      %7642 = vmatpush1.msra.mxu0 0.0
      %7643 = vmatprep.subr.mxu0 0.0
      %7644 = vmatpush1.msra.mxu0 0.0
      %7645 = vmatprep.subr.mxu0 0.0
      %7646 = vmatpush1.msra.mxu0 0.0
      %7647 = vmatprep.subr.mxu0 0.0
      %7648 = vmatpush1.msra.mxu0 0.0
      %7649 = vmatprep.subr.mxu0 0.0
      %7650 = vmatpush1.msra.mxu0 0.0
      %7651 = vmatprep.subr.mxu0 0.0
      %7652 = vmatpush1.msra.mxu0 0.0
      %7653 = vmatprep.subr.mxu0 0.0
      %7654 = vmatpush1.msra.mxu0 0.0
      %7655 = vmatprep.subr.mxu0 0.0
      %7656 = vmatpush1.msra.mxu0 0.0
      %7657 = vmatprep.subr.mxu0 0.0
      %7658 = vmatpush1.msra.mxu0 0.0
      %7659 = vmatprep.subr.mxu0 0.0
      %7660 = vmatpush1.msra.mxu0 0.0
      %7661 = vmatprep.subr.mxu0 0.0
      %7662 = vmatpush1.msra.mxu0 0.0
      %7663 = vmatprep.subr.mxu0 0.0
      %7664 = vmatpush1.msra.mxu0 0.0
      %7665 = vmatprep.mubr.f32.mxu0 0.0
      %7666 = vmatmul.mubr.f32.gmra.mrb[0].mxu0 %v6134
      %v7667 = vpop.f32.mrb[0].mxu0
      %v7668 = vadd.f32 %v7599, %v7667
      %v7669 = vpop.f32.mrb[0].mxu0
      %7670 = vdwg.mxu0
      %s7671 = scalar_lea.vmem %s43, 224
      %v7672 = vld [vmem:[%s7671] sm:$0xff]
      %v7673 = vld [vmem:[%s7671 + $0x8] sm:$0xff]
      %v7674 = vld [vmem:[%s7671 + $0x10] sm:$0xff]
      %v7675 = vld [vmem:[%s7671 + $0x18] sm:$0xff]
      %s7676 = scalar_lea.vmem %s45, 7
      %v7677 = vld [vmem:[%s7676] sm:$0x1]
      %v7679 = vlaneseq
      %v7680 = vshrl.u32 %v7679, 7
      %v7681 = vsub.s32 0, %v7680
      %v7682 = vrot.slane %v7677, %v7681
      %7684 = vmatprep.subr.mxu0 0.0
      %7685 = vmatpush1.msra.mxu0 %v7672
      %7686 = vmatprep.subr.mxu0 0.0
      %7687 = vmatpush1.msra.mxu0 %v7673
      %7688 = vmatprep.subr.mxu0 0.0
      %7689 = vmatpush1.msra.mxu0 %v7674
      %7690 = vmatprep.subr.mxu0 0.0
      %7691 = vmatpush1.msra.mxu0 %v7675
      %7692 = vmatprep.subr.mxu0 0.0
      %7693 = vmatpush1.msra.mxu0 0.0
      %7694 = vmatprep.subr.mxu0 0.0
      %7695 = vmatpush1.msra.mxu0 0.0
      %7696 = vmatprep.subr.mxu0 0.0
      %7697 = vmatpush1.msra.mxu0 0.0
      %7698 = vmatprep.subr.mxu0 0.0
      %7699 = vmatpush1.msra.mxu0 0.0
      %7700 = vmatprep.subr.mxu0 0.0
      %7701 = vmatpush1.msra.mxu0 0.0
      %7702 = vmatprep.subr.mxu0 0.0
      %7703 = vmatpush1.msra.mxu0 0.0
      %7704 = vmatprep.subr.mxu0 0.0
      %7705 = vmatpush1.msra.mxu0 0.0
      %7706 = vmatprep.subr.mxu0 0.0
      %7707 = vmatpush1.msra.mxu0 0.0
      %7708 = vmatprep.subr.mxu0 0.0
      %7709 = vmatpush1.msra.mxu0 0.0
      %7710 = vmatprep.subr.mxu0 0.0
      %7711 = vmatpush1.msra.mxu0 0.0
      %7712 = vmatprep.subr.mxu0 0.0
      %7713 = vmatpush1.msra.mxu0 0.0
      %7714 = vmatprep.subr.mxu0 0.0
      %7715 = vmatpush1.msra.mxu0 0.0
      %7716 = vmatprep.subr.mxu0 0.0
      %7717 = vmatpush1.msra.mxu0 0.0
      %7718 = vmatprep.subr.mxu0 0.0
      %7719 = vmatpush1.msra.mxu0 0.0
      %7720 = vmatprep.subr.mxu0 0.0
      %7721 = vmatpush1.msra.mxu0 0.0
      %7722 = vmatprep.subr.mxu0 0.0
      %7723 = vmatpush1.msra.mxu0 0.0
      %7724 = vmatprep.subr.mxu0 0.0
      %7725 = vmatpush1.msra.mxu0 0.0
      %7726 = vmatprep.subr.mxu0 0.0
      %7727 = vmatpush1.msra.mxu0 0.0
      %7728 = vmatprep.subr.mxu0 0.0
      %7729 = vmatpush1.msra.mxu0 0.0
      %7730 = vmatprep.subr.mxu0 0.0
      %7731 = vmatpush1.msra.mxu0 0.0
      %7732 = vmatprep.subr.mxu0 0.0
      %7733 = vmatpush1.msra.mxu0 0.0
      %7734 = vmatprep.subr.mxu0 0.0
      %7735 = vmatpush1.msra.mxu0 0.0
      %7736 = vmatprep.subr.mxu0 0.0
      %7737 = vmatpush1.msra.mxu0 0.0
      %7738 = vmatprep.subr.mxu0 0.0
      %7739 = vmatpush1.msra.mxu0 0.0
      %7740 = vmatprep.subr.mxu0 0.0
      %7741 = vmatpush1.msra.mxu0 0.0
      %7742 = vmatprep.subr.mxu0 0.0
      %7743 = vmatpush1.msra.mxu0 0.0
      %7744 = vmatprep.subr.mxu0 0.0
      %7745 = vmatpush1.msra.mxu0 0.0
      %7746 = vmatprep.subr.mxu0 0.0
      %7747 = vmatpush1.msra.mxu0 0.0
      %7748 = vmatprep.mubr.f32.mxu0 0.0
      %7749 = vmatmul.mubr.f32.gmra.mrb[0].mxu0 %v6134
      %v7750 = vpop.f32.mrb[0].mxu0
      %v7751 = vadd.f32 %v7682, %v7750
      %v7752 = vpop.f32.mrb[0].mxu0
      %7753 = vdwg.mxu0
      %s7754 = scalar_lea.vmem %s47, 224
      %v7755 = vld [vmem:[%s7754] sm:$0xff]
      %v7756 = vld [vmem:[%s7754 + $0x8] sm:$0xff]
      %v7757 = vld [vmem:[%s7754 + $0x10] sm:$0xff]
      %v7758 = vld [vmem:[%s7754 + $0x18] sm:$0xff]
      %s7759 = scalar_lea.vmem %s49, 7
      %v7760 = vld [vmem:[%s7759] sm:$0x1]
      %v7762 = vlaneseq
      %v7763 = vshrl.u32 %v7762, 7
      %v7764 = vsub.s32 0, %v7763
      %v7765 = vrot.slane %v7760, %v7764
      %7767 = vmatprep.subr.mxu0 0.0
      %7768 = vmatpush1.msra.mxu0 %v7755
      %7769 = vmatprep.subr.mxu0 0.0
      %7770 = vmatpush1.msra.mxu0 %v7756
      %7771 = vmatprep.subr.mxu0 0.0
      %7772 = vmatpush1.msra.mxu0 %v7757
      %7773 = vmatprep.subr.mxu0 0.0
      %7774 = vmatpush1.msra.mxu0 %v7758
      %7775 = vmatprep.subr.mxu0 0.0
      %7776 = vmatpush1.msra.mxu0 0.0
      %7777 = vmatprep.subr.mxu0 0.0
      %7778 = vmatpush1.msra.mxu0 0.0
      %7779 = vmatprep.subr.mxu0 0.0
      %7780 = vmatpush1.msra.mxu0 0.0
      %7781 = vmatprep.subr.mxu0 0.0
      %7782 = vmatpush1.msra.mxu0 0.0
      %7783 = vmatprep.subr.mxu0 0.0
      %7784 = vmatpush1.msra.mxu0 0.0
      %7785 = vmatprep.subr.mxu0 0.0
      %7786 = vmatpush1.msra.mxu0 0.0
      %7787 = vmatprep.subr.mxu0 0.0
      %7788 = vmatpush1.msra.mxu0 0.0
      %7789 = vmatprep.subr.mxu0 0.0
      %7790 = vmatpush1.msra.mxu0 0.0
      %7791 = vmatprep.subr.mxu0 0.0
      %7792 = vmatpush1.msra.mxu0 0.0
      %7793 = vmatprep.subr.mxu0 0.0
      %7794 = vmatpush1.msra.mxu0 0.0
      %7795 = vmatprep.subr.mxu0 0.0
      %7796 = vmatpush1.msra.mxu0 0.0
      %7797 = vmatprep.subr.mxu0 0.0
      %7798 = vmatpush1.msra.mxu0 0.0
      %7799 = vmatprep.subr.mxu0 0.0
      %7800 = vmatpush1.msra.mxu0 0.0
      %7801 = vmatprep.subr.mxu0 0.0
      %7802 = vmatpush1.msra.mxu0 0.0
      %7803 = vmatprep.subr.mxu0 0.0
      %7804 = vmatpush1.msra.mxu0 0.0
      %7805 = vmatprep.subr.mxu0 0.0
      %7806 = vmatpush1.msra.mxu0 0.0
      %7807 = vmatprep.subr.mxu0 0.0
      %7808 = vmatpush1.msra.mxu0 0.0
      %7809 = vmatprep.subr.mxu0 0.0
      %7810 = vmatpush1.msra.mxu0 0.0
      %7811 = vmatprep.subr.mxu0 0.0
      %7812 = vmatpush1.msra.mxu0 0.0
      %7813 = vmatprep.subr.mxu0 0.0
      %7814 = vmatpush1.msra.mxu0 0.0
      %7815 = vmatprep.subr.mxu0 0.0
      %7816 = vmatpush1.msra.mxu0 0.0
      %7817 = vmatprep.subr.mxu0 0.0
      %7818 = vmatpush1.msra.mxu0 0.0
      %7819 = vmatprep.subr.mxu0 0.0
      %7820 = vmatpush1.msra.mxu0 0.0
      %7821 = vmatprep.subr.mxu0 0.0
      %7822 = vmatpush1.msra.mxu0 0.0
      %7823 = vmatprep.subr.mxu0 0.0
      %7824 = vmatpush1.msra.mxu0 0.0
      %7825 = vmatprep.subr.mxu0 0.0
      %7826 = vmatpush1.msra.mxu0 0.0
      %7827 = vmatprep.subr.mxu0 0.0
      %7828 = vmatpush1.msra.mxu0 0.0
      %7829 = vmatprep.subr.mxu0 0.0
      %7830 = vmatpush1.msra.mxu0 0.0
      %7831 = vmatprep.mubr.f32.mxu0 0.0
      %7832 = vmatmul.mubr.f32.gmra.mrb[0].mxu0 %v6134
      %v7833 = vpop.f32.mrb[0].mxu0
      %v7834 = vadd.f32 %v7765, %v7833
      %v7835 = vpop.f32.mrb[0].mxu0
      %7836 = vdwg.mxu0
      %v7837 = vmul.f32 %v7668, 0.35355338
      %v7839 = vsel %vm4161, %v7837, 0
      %v7842 = vsel %vm4161, %v7751, 0
      %7844 = vmatprep.subr.mxu0 0.0
      %7845 = vmatpush1.xpose.msra.mxu0 %v7842
      %7846 = vmatprep.subr.mxu0 0.0
      %7847 = vmatpush1.xpose.msra.mxu0 0.0
      %7848 = vmatprep.subr.mxu0 0.0
      %7849 = vmatpush1.xpose.msra.mxu0 0.0
      %7850 = vmatprep.subr.mxu0 0.0
      %7851 = vmatpush1.xpose.msra.mxu0 0.0
      %7852 = vmatprep.subr.mxu0 0.0
      %7853 = vmatpush1.xpose.msra.mxu0 0.0
      %7854 = vmatprep.subr.mxu0 0.0
      %7855 = vmatpush1.xpose.msra.mxu0 0.0
      %7856 = vmatprep.subr.mxu0 0.0
      %7857 = vmatpush1.xpose.msra.mxu0 0.0
      %7858 = vmatprep.subr.mxu0 0.0
      %7859 = vmatpush1.xpose.msra.mxu0 0.0
      %7860 = vmatprep.subr.mxu0 0.0
      %7861 = vmatpush1.xpose.msra.mxu0 0.0
      %7862 = vmatprep.subr.mxu0 0.0
      %7863 = vmatpush1.xpose.msra.mxu0 0.0
      %7864 = vmatprep.subr.mxu0 0.0
      %7865 = vmatpush1.xpose.msra.mxu0 0.0
      %7866 = vmatprep.subr.mxu0 0.0
      %7867 = vmatpush1.xpose.msra.mxu0 0.0
      %7868 = vmatprep.subr.mxu0 0.0
      %7869 = vmatpush1.xpose.msra.mxu0 0.0
      %7870 = vmatprep.subr.mxu0 0.0
      %7871 = vmatpush1.xpose.msra.mxu0 0.0
      %7872 = vmatprep.subr.mxu0 0.0
      %7873 = vmatpush1.xpose.msra.mxu0 0.0
      %7874 = vmatprep.subr.mxu0 0.0
      %7875 = vmatpush1.xpose.msra.mxu0 0.0
      %7876 = vmatprep.subr.mxu0 0.0
      %7877 = vmatpush1.xpose.msra.mxu0 0.0
      %7878 = vmatprep.subr.mxu0 0.0
      %7879 = vmatpush1.xpose.msra.mxu0 0.0
      %7880 = vmatprep.subr.mxu0 0.0
      %7881 = vmatpush1.xpose.msra.mxu0 0.0
      %7882 = vmatprep.subr.mxu0 0.0
      %7883 = vmatpush1.xpose.msra.mxu0 0.0
      %7884 = vmatprep.subr.mxu0 0.0
      %7885 = vmatpush1.xpose.msra.mxu0 0.0
      %7886 = vmatprep.subr.mxu0 0.0
      %7887 = vmatpush1.xpose.msra.mxu0 0.0
      %7888 = vmatprep.subr.mxu0 0.0
      %7889 = vmatpush1.xpose.msra.mxu0 0.0
      %7890 = vmatprep.subr.mxu0 0.0
      %7891 = vmatpush1.xpose.msra.mxu0 0.0
      %7892 = vmatprep.subr.mxu0 0.0
      %7893 = vmatpush1.xpose.msra.mxu0 0.0
      %7894 = vmatprep.subr.mxu0 0.0
      %7895 = vmatpush1.xpose.msra.mxu0 0.0
      %7896 = vmatprep.subr.mxu0 0.0
      %7897 = vmatpush1.xpose.msra.mxu0 0.0
      %7898 = vmatprep.subr.mxu0 0.0
      %7899 = vmatpush1.xpose.msra.mxu0 0.0
      %7900 = vmatprep.subr.mxu0 0.0
      %7901 = vmatpush1.xpose.msra.mxu0 0.0
      %7902 = vmatprep.subr.mxu0 0.0
      %7903 = vmatpush1.xpose.msra.mxu0 0.0
      %7904 = vmatprep.subr.mxu0 0.0
      %7905 = vmatpush1.xpose.msra.mxu0 0.0
      %7906 = vmatprep.subr.mxu0 0.0
      %7907 = vmatpush1.xpose.msra.mxu0 0.0
      %7908 = vmatprep.mubr.f32.mxu0 0.0
      %7909 = vmatmul.mubr.f32.gmra.mrb[0].mxu0 %v7839
      %v7910 = vpop.f32.mrb[0].mxu0
      %v7911 = vadd.f32 %v4159, %v7910
      %v7912 = vpop.f32.mrb[0].mxu0
      %7913 = vdwg.mxu0
      %v7914 = vsel %vm4238, %v7911, -inf
      %7915 = vmax.xlane.f32.xlu0 %v7914
      %v7916 = vpop.xlane.xlu0 %7915
      %v7917 = vsub.f32 %v7911, %v7916
      %v7918 = vmul.f32 %v7917, 1.442695
      %v7919 = vpow.pop %v7918
      %v7920 = vsel %vm4238, %v7919, 0.0
      %7921 = vadd.xlane.f32.xlu0 %v7920
      %v7922 = vpop.xlane.xlu0 %7921
      %v7923 = vrcp.pop %v7922
      %v7924 = vmul.f32 %v7919, %v7923
      %v7926 = vsel %vm4250, %v7924, 0
      %v7929 = vsel %vm4254, %v7834, 0
      %7931 = vmatprep.subr.mxu0 0.0
      %7932 = vmatpush1.msra.mxu0 %v7929
      %7933 = vmatprep.subr.mxu0 0.0
      %7934 = vmatpush1.msra.mxu0 0.0
      %7935 = vmatprep.subr.mxu0 0.0
      %7936 = vmatpush1.msra.mxu0 0.0
      %7937 = vmatprep.subr.mxu0 0.0
      %7938 = vmatpush1.msra.mxu0 0.0
      %7939 = vmatprep.subr.mxu0 0.0
      %7940 = vmatpush1.msra.mxu0 0.0
      %7941 = vmatprep.subr.mxu0 0.0
      %7942 = vmatpush1.msra.mxu0 0.0
      %7943 = vmatprep.subr.mxu0 0.0
      %7944 = vmatpush1.msra.mxu0 0.0
      %7945 = vmatprep.subr.mxu0 0.0
      %7946 = vmatpush1.msra.mxu0 0.0
      %7947 = vmatprep.subr.mxu0 0.0
      %7948 = vmatpush1.msra.mxu0 0.0
      %7949 = vmatprep.subr.mxu0 0.0
      %7950 = vmatpush1.msra.mxu0 0.0
      %7951 = vmatprep.subr.mxu0 0.0
      %7952 = vmatpush1.msra.mxu0 0.0
      %7953 = vmatprep.subr.mxu0 0.0
      %7954 = vmatpush1.msra.mxu0 0.0
      %7955 = vmatprep.subr.mxu0 0.0
      %7956 = vmatpush1.msra.mxu0 0.0
      %7957 = vmatprep.subr.mxu0 0.0
      %7958 = vmatpush1.msra.mxu0 0.0
      %7959 = vmatprep.subr.mxu0 0.0
      %7960 = vmatpush1.msra.mxu0 0.0
      %7961 = vmatprep.subr.mxu0 0.0
      %7962 = vmatpush1.msra.mxu0 0.0
      %7963 = vmatprep.subr.mxu0 0.0
      %7964 = vmatpush1.msra.mxu0 0.0
      %7965 = vmatprep.subr.mxu0 0.0
      %7966 = vmatpush1.msra.mxu0 0.0
      %7967 = vmatprep.subr.mxu0 0.0
      %7968 = vmatpush1.msra.mxu0 0.0
      %7969 = vmatprep.subr.mxu0 0.0
      %7970 = vmatpush1.msra.mxu0 0.0
      %7971 = vmatprep.subr.mxu0 0.0
      %7972 = vmatpush1.msra.mxu0 0.0
      %7973 = vmatprep.subr.mxu0 0.0
      %7974 = vmatpush1.msra.mxu0 0.0
      %7975 = vmatprep.subr.mxu0 0.0
      %7976 = vmatpush1.msra.mxu0 0.0
      %7977 = vmatprep.subr.mxu0 0.0
      %7978 = vmatpush1.msra.mxu0 0.0
      %7979 = vmatprep.subr.mxu0 0.0
      %7980 = vmatpush1.msra.mxu0 0.0
      %7981 = vmatprep.subr.mxu0 0.0
      %7982 = vmatpush1.msra.mxu0 0.0
      %7983 = vmatprep.subr.mxu0 0.0
      %7984 = vmatpush1.msra.mxu0 0.0
      %7985 = vmatprep.subr.mxu0 0.0
      %7986 = vmatpush1.msra.mxu0 0.0
      %7987 = vmatprep.subr.mxu0 0.0
      %7988 = vmatpush1.msra.mxu0 0.0
      %7989 = vmatprep.subr.mxu0 0.0
      %7990 = vmatpush1.msra.mxu0 0.0
      %7991 = vmatprep.subr.mxu0 0.0
      %7992 = vmatpush1.msra.mxu0 0.0
      %7993 = vmatprep.subr.mxu0 0.0
      %7994 = vmatpush1.msra.mxu0 0.0
      %7995 = vmatprep.mubr.f32.mxu0 0.0
      %7996 = vmatmul.mubr.f32.gmra.mrb[0].mxu0 %v7926
      %v7997 = vpop.f32.mrb[0].mxu0
      %v7998 = vadd.f32 0.0, %v7997
      %v7999 = vpop.f32.mrb[0].mxu0
      %8000 = vdwg.mxu0
      %s8001 = scalar_lea.vmem %s51, 56
      %v8002 = vld [vmem:[%s8001] sm:$0xff]
      %v8004 = vsel %vm4161, %v7998, 0
      %8006 = vmatprep.subr.mxu0 0.0
      %8007 = vmatpush1.msra.mxu0 %v8002
      %8008 = vmatprep.subr.mxu0 0.0
      %8009 = vmatpush1.msra.mxu0 0.0
      %8010 = vmatprep.subr.mxu0 0.0
      %8011 = vmatpush1.msra.mxu0 0.0
      %8012 = vmatprep.subr.mxu0 0.0
      %8013 = vmatpush1.msra.mxu0 0.0
      %8014 = vmatprep.subr.mxu0 0.0
      %8015 = vmatpush1.msra.mxu0 0.0
      %8016 = vmatprep.subr.mxu0 0.0
      %8017 = vmatpush1.msra.mxu0 0.0
      %8018 = vmatprep.subr.mxu0 0.0
      %8019 = vmatpush1.msra.mxu0 0.0
      %8020 = vmatprep.subr.mxu0 0.0
      %8021 = vmatpush1.msra.mxu0 0.0
      %8022 = vmatprep.subr.mxu0 0.0
      %8023 = vmatpush1.msra.mxu0 0.0
      %8024 = vmatprep.subr.mxu0 0.0
      %8025 = vmatpush1.msra.mxu0 0.0
      %8026 = vmatprep.subr.mxu0 0.0
      %8027 = vmatpush1.msra.mxu0 0.0
      %8028 = vmatprep.subr.mxu0 0.0
      %8029 = vmatpush1.msra.mxu0 0.0
      %8030 = vmatprep.subr.mxu0 0.0
      %8031 = vmatpush1.msra.mxu0 0.0
      %8032 = vmatprep.subr.mxu0 0.0
      %8033 = vmatpush1.msra.mxu0 0.0
      %8034 = vmatprep.subr.mxu0 0.0
      %8035 = vmatpush1.msra.mxu0 0.0
      %8036 = vmatprep.subr.mxu0 0.0
      %8037 = vmatpush1.msra.mxu0 0.0
      %8038 = vmatprep.subr.mxu0 0.0
      %8039 = vmatpush1.msra.mxu0 0.0
      %8040 = vmatprep.subr.mxu0 0.0
      %8041 = vmatpush1.msra.mxu0 0.0
      %8042 = vmatprep.subr.mxu0 0.0
      %8043 = vmatpush1.msra.mxu0 0.0
      %8044 = vmatprep.subr.mxu0 0.0
      %8045 = vmatpush1.msra.mxu0 0.0
      %8046 = vmatprep.subr.mxu0 0.0
      %8047 = vmatpush1.msra.mxu0 0.0
      %8048 = vmatprep.subr.mxu0 0.0
      %8049 = vmatpush1.msra.mxu0 0.0
      %8050 = vmatprep.subr.mxu0 0.0
      %8051 = vmatpush1.msra.mxu0 0.0
      %8052 = vmatprep.subr.mxu0 0.0
      %8053 = vmatpush1.msra.mxu0 0.0
      %8054 = vmatprep.subr.mxu0 0.0
      %8055 = vmatpush1.msra.mxu0 0.0
      %8056 = vmatprep.subr.mxu0 0.0
      %8057 = vmatpush1.msra.mxu0 0.0
      %8058 = vmatprep.subr.mxu0 0.0
      %8059 = vmatpush1.msra.mxu0 0.0
      %8060 = vmatprep.subr.mxu0 0.0
      %8061 = vmatpush1.msra.mxu0 0.0
      %8062 = vmatprep.subr.mxu0 0.0
      %8063 = vmatpush1.msra.mxu0 0.0
      %8064 = vmatprep.subr.mxu0 0.0
      %8065 = vmatpush1.msra.mxu0 0.0
      %8066 = vmatprep.subr.mxu0 0.0
      %8067 = vmatpush1.msra.mxu0 0.0
      %8068 = vmatprep.subr.mxu0 0.0
      %8069 = vmatpush1.msra.mxu0 0.0
      %8070 = vmatprep.mubr.f32.mxu0 0.0
      %8071 = vmatmul.mubr.f32.gmra.mrb[0].mxu0 %v8004
      %v8072 = vpop.f32.mrb[0].mxu0
      %v8073 = vadd.f32 0.0, %v8072
      %v8074 = vpop.f32.mrb[0].mxu0
      %8075 = vdwg.mxu0
      %v8076 = vadd.f32 %v7587, %v8073
      %v8077 = vadd.f32 %v6088, %v8076
      %s8078 = scalar_lea.vmem %s53, 1
      %v8079 = vld [vmem:[%s8078] sm:$0x1]
      %v8081 = vlaneseq
      %v8082 = vshrl.u32 %v8081, 7
      %v8083 = vsub.s32 0, %v8082
      %v8084 = vrot.slane %v8079, %v8083
      %v8086 = vadd.f32 %v8077, %v8084
      %s8087 = scalar_lea.vmem %s55, 1
      %v8088 = vld [vmem:[%s8087] sm:$0x1]
      %s8089 = scalar_lea.vmem %s57, 1
      %v8090 = vld [vmem:[%s8089] sm:$0x1]
      %v8091 = vsel %vm3501, %v8086, 0.0
      %8092 = vadd.xlane.f32.xlu0 %v8091
      %v8093 = vpop.xlane.xlu0 %8092
      %v8094 = vmul.f32 %v8093, %v3505
      %v8095 = vsub.f32 %v8086, %v8094
      %v8096 = vmul.f32 %v8095, %v8095
      %v8097 = vsel %vm3501, %v8096, 0.0
      %8098 = vadd.xlane.f32.xlu0 %v8097
      %v8099 = vpop.xlane.xlu0 %8098
      %v8100 = vmul.f32 %v8099, %v3505
      %v8101 = vadd.f32 %v8100, 1e-05
      %v8102 = vrsqrt.pop %v8101
      %v8103 = vmul.f32 %v8095, %v8102
      %v8105 = vlaneseq
      %v8106 = vshrl.u32 %v8105, 7
      %v8107 = vsub.s32 0, %v8106
      %v8108 = vrot.slane %v8088, %v8107
      %v8110 = vmul.f32 %v8103, %v8108
      %v8112 = vlaneseq
      %v8113 = vshrl.u32 %v8112, 7
      %v8114 = vsub.s32 0, %v8113
      %v8115 = vrot.slane %v8090, %v8114
      %v8117 = vadd.f32 %v8110, %v8115
      %s8118 = scalar_lea.vmem %s59, 32
      %v8119 = vld [vmem:[%s8118] sm:$0xff]
      %v8120 = vld [vmem:[%s8118 + $0x8] sm:$0xff]
      %v8121 = vld [vmem:[%s8118 + $0x10] sm:$0xff]
      %v8122 = vld [vmem:[%s8118 + $0x18] sm:$0xff]
      %s8123 = scalar_lea.vmem %s61, 1
      %v8124 = vld [vmem:[%s8123] sm:$0x1]
      %v8126 = vlaneseq
      %v8127 = vshrl.u32 %v8126, 7
      %v8128 = vsub.s32 0, %v8127
      %v8129 = vrot.slane %v8124, %v8128
      %v8132 = vsel %vm3537, %v8117, 0
      %8134 = vmatprep.subr.mxu0 0.0
      %8135 = vmatpush1.msra.mxu0 %v8119
      %8136 = vmatprep.subr.mxu0 0.0
      %8137 = vmatpush1.msra.mxu0 %v8120
      %8138 = vmatprep.subr.mxu0 0.0
      %8139 = vmatpush1.msra.mxu0 %v8121
      %8140 = vmatprep.subr.mxu0 0.0
      %8141 = vmatpush1.msra.mxu0 %v8122
      %8142 = vmatprep.subr.mxu0 0.0
      %8143 = vmatpush1.msra.mxu0 0.0
      %8144 = vmatprep.subr.mxu0 0.0
      %8145 = vmatpush1.msra.mxu0 0.0
      %8146 = vmatprep.subr.mxu0 0.0
      %8147 = vmatpush1.msra.mxu0 0.0
      %8148 = vmatprep.subr.mxu0 0.0
      %8149 = vmatpush1.msra.mxu0 0.0
      %8150 = vmatprep.subr.mxu0 0.0
      %8151 = vmatpush1.msra.mxu0 0.0
      %8152 = vmatprep.subr.mxu0 0.0
      %8153 = vmatpush1.msra.mxu0 0.0
      %8154 = vmatprep.subr.mxu0 0.0
      %8155 = vmatpush1.msra.mxu0 0.0
      %8156 = vmatprep.subr.mxu0 0.0
      %8157 = vmatpush1.msra.mxu0 0.0
      %8158 = vmatprep.subr.mxu0 0.0
      %8159 = vmatpush1.msra.mxu0 0.0
      %8160 = vmatprep.subr.mxu0 0.0
      %8161 = vmatpush1.msra.mxu0 0.0
      %8162 = vmatprep.subr.mxu0 0.0
      %8163 = vmatpush1.msra.mxu0 0.0
      %8164 = vmatprep.subr.mxu0 0.0
      %8165 = vmatpush1.msra.mxu0 0.0
      %8166 = vmatprep.subr.mxu0 0.0
      %8167 = vmatpush1.msra.mxu0 0.0
      %8168 = vmatprep.subr.mxu0 0.0
      %8169 = vmatpush1.msra.mxu0 0.0
      %8170 = vmatprep.subr.mxu0 0.0
      %8171 = vmatpush1.msra.mxu0 0.0
      %8172 = vmatprep.subr.mxu0 0.0
      %8173 = vmatpush1.msra.mxu0 0.0
      %8174 = vmatprep.subr.mxu0 0.0
      %8175 = vmatpush1.msra.mxu0 0.0
      %8176 = vmatprep.subr.mxu0 0.0
      %8177 = vmatpush1.msra.mxu0 0.0
      %8178 = vmatprep.subr.mxu0 0.0
      %8179 = vmatpush1.msra.mxu0 0.0
      %8180 = vmatprep.subr.mxu0 0.0
      %8181 = vmatpush1.msra.mxu0 0.0
      %8182 = vmatprep.subr.mxu0 0.0
      %8183 = vmatpush1.msra.mxu0 0.0
      %8184 = vmatprep.subr.mxu0 0.0
      %8185 = vmatpush1.msra.mxu0 0.0
      %8186 = vmatprep.subr.mxu0 0.0
      %8187 = vmatpush1.msra.mxu0 0.0
      %8188 = vmatprep.subr.mxu0 0.0
      %8189 = vmatpush1.msra.mxu0 0.0
      %8190 = vmatprep.subr.mxu0 0.0
      %8191 = vmatpush1.msra.mxu0 0.0
      %8192 = vmatprep.subr.mxu0 0.0
      %8193 = vmatpush1.msra.mxu0 0.0
      %8194 = vmatprep.subr.mxu0 0.0
      %8195 = vmatpush1.msra.mxu0 0.0
      %8196 = vmatprep.subr.mxu0 0.0
      %8197 = vmatpush1.msra.mxu0 0.0
      %8198 = vmatprep.mubr.f32.mxu0 0.0
      %8199 = vmatmul.mubr.f32.gmra.mrb[0].mxu0 %v8132
      %v8200 = vpop.f32.mrb[0].mxu0
      %v8201 = vadd.f32 %v8129, %v8200
      %v8202 = vpop.f32.mrb[0].mxu0
      %8203 = vdwg.mxu0
      %v8204 = vmul.f32 %v8201, %v8201
      %v8205 = vmul.f32 %v8201, %v8204
      %v8206 = vmul.f32 %v8205, 0.044715
      %v8207 = vadd.f32 %v8201, %v8206
      %v8208 = vmul.f32 %v8207, 0.7978846
      %v8209 = vtanh.pop %v8208
      %v8210 = vadd.f32 %v8209, 1.0
      %v8211 = vmul.f32 %v8210, 0.5
      %v8212 = vmul.f32 %v8201, %v8211
      %s8213 = scalar_lea.vmem %s63, 64
      %v8214 = vld [vmem:[%s8213] sm:$0xff]
      %v8215 = vld [vmem:[%s8213 + $0x8] sm:$0xff]
      %v8216 = vld [vmem:[%s8213 + $0x10] sm:$0xff]
      %v8217 = vld [vmem:[%s8213 + $0x18] sm:$0xff]
      %v8218 = vld [vmem:[%s8213 + $0x20] sm:$0xff]
      %v8219 = vld [vmem:[%s8213 + $0x28] sm:$0xff]
      %v8220 = vld [vmem:[%s8213 + $0x30] sm:$0xff]
      %v8221 = vld [vmem:[%s8213 + $0x38] sm:$0xff]
      %s8222 = scalar_lea.vmem %s65, 1
      %v8223 = vld [vmem:[%s8222] sm:$0x1]
      %v8225 = vlaneseq
      %v8226 = vshrl.u32 %v8225, 7
      %v8227 = vsub.s32 0, %v8226
      %v8228 = vrot.slane %v8223, %v8227
      %v8231 = vsel %vm6014, %v8212, 0
      %8233 = vmatprep.subr.mxu0 0.0
      %8234 = vmatpush1.msra.mxu0 %v8214
      %8235 = vmatprep.subr.mxu0 0.0
      %8236 = vmatpush1.msra.mxu0 %v8215
      %8237 = vmatprep.subr.mxu0 0.0
      %8238 = vmatpush1.msra.mxu0 %v8216
      %8239 = vmatprep.subr.mxu0 0.0
      %8240 = vmatpush1.msra.mxu0 %v8217
      %8241 = vmatprep.subr.mxu0 0.0
      %8242 = vmatpush1.msra.mxu0 %v8218
      %8243 = vmatprep.subr.mxu0 0.0
      %8244 = vmatpush1.msra.mxu0 %v8219
      %8245 = vmatprep.subr.mxu0 0.0
      %8246 = vmatpush1.msra.mxu0 %v8220
      %8247 = vmatprep.subr.mxu0 0.0
      %8248 = vmatpush1.msra.mxu0 %v8221
      %8249 = vmatprep.subr.mxu0 0.0
      %8250 = vmatpush1.msra.mxu0 0.0
      %8251 = vmatprep.subr.mxu0 0.0
      %8252 = vmatpush1.msra.mxu0 0.0
      %8253 = vmatprep.subr.mxu0 0.0
      %8254 = vmatpush1.msra.mxu0 0.0
      %8255 = vmatprep.subr.mxu0 0.0
      %8256 = vmatpush1.msra.mxu0 0.0
      %8257 = vmatprep.subr.mxu0 0.0
      %8258 = vmatpush1.msra.mxu0 0.0
      %8259 = vmatprep.subr.mxu0 0.0
      %8260 = vmatpush1.msra.mxu0 0.0
      %8261 = vmatprep.subr.mxu0 0.0
      %8262 = vmatpush1.msra.mxu0 0.0
      %8263 = vmatprep.subr.mxu0 0.0
      %8264 = vmatpush1.msra.mxu0 0.0
      %8265 = vmatprep.subr.mxu0 0.0
      %8266 = vmatpush1.msra.mxu0 0.0
      %8267 = vmatprep.subr.mxu0 0.0
      %8268 = vmatpush1.msra.mxu0 0.0
      %8269 = vmatprep.subr.mxu0 0.0
      %8270 = vmatpush1.msra.mxu0 0.0
      %8271 = vmatprep.subr.mxu0 0.0
      %8272 = vmatpush1.msra.mxu0 0.0
      %8273 = vmatprep.subr.mxu0 0.0
      %8274 = vmatpush1.msra.mxu0 0.0
      %8275 = vmatprep.subr.mxu0 0.0
      %8276 = vmatpush1.msra.mxu0 0.0
      %8277 = vmatprep.subr.mxu0 0.0
      %8278 = vmatpush1.msra.mxu0 0.0
      %8279 = vmatprep.subr.mxu0 0.0
      %8280 = vmatpush1.msra.mxu0 0.0
      %8281 = vmatprep.subr.mxu0 0.0
      %8282 = vmatpush1.msra.mxu0 0.0
      %8283 = vmatprep.subr.mxu0 0.0
      %8284 = vmatpush1.msra.mxu0 0.0
      %8285 = vmatprep.subr.mxu0 0.0
      %8286 = vmatpush1.msra.mxu0 0.0
      %8287 = vmatprep.subr.mxu0 0.0
      %8288 = vmatpush1.msra.mxu0 0.0
      %8289 = vmatprep.subr.mxu0 0.0
      %8290 = vmatpush1.msra.mxu0 0.0
      %8291 = vmatprep.subr.mxu0 0.0
      %8292 = vmatpush1.msra.mxu0 0.0
      %8293 = vmatprep.subr.mxu0 0.0
      %8294 = vmatpush1.msra.mxu0 0.0
      %8295 = vmatprep.subr.mxu0 0.0
      %8296 = vmatpush1.msra.mxu0 0.0
      %8297 = vmatprep.mubr.f32.mxu0 0.0
      %8298 = vmatmul.mubr.f32.gmra.mrb[0].mxu0 %v8231
      %v8299 = vpop.f32.mrb[0].mxu0
      %v8300 = vadd.f32 %v8228, %v8299
      %v8301 = vpop.f32.mrb[0].mxu0
      %8302 = vdwg.mxu0
      %v8303 = vadd.f32 %v8086, %v8300
      %v8304 = vld [vmem:[%s23] sm:$0x1]
      %v8305 = vld [vmem:[%s25] sm:$0x1]
      %v8306 = vsel %vm3501, %v8303, 0.0
      %8307 = vadd.xlane.f32.xlu0 %v8306
      %v8308 = vpop.xlane.xlu0 %8307
      %v8309 = vmul.f32 %v8308, %v3505
      %v8310 = vsub.f32 %v8303, %v8309
      %v8311 = vmul.f32 %v8310, %v8310
      %v8312 = vsel %vm3501, %v8311, 0.0
      %8313 = vadd.xlane.f32.xlu0 %v8312
      %v8314 = vpop.xlane.xlu0 %8313
      %v8315 = vmul.f32 %v8314, %v3505
      %v8316 = vadd.f32 %v8315, 1e-05
      %v8317 = vrsqrt.pop %v8316
      %v8318 = vmul.f32 %v8310, %v8317
      %v8320 = vlaneseq
      %v8321 = vshrl.u32 %v8320, 7
      %v8322 = vsub.s32 0, %v8321
      %v8323 = vrot.slane %v8304, %v8322
      %v8325 = vmul.f32 %v8318, %v8323
      %v8327 = vlaneseq
      %v8328 = vshrl.u32 %v8327, 7
      %v8329 = vsub.s32 0, %v8328
      %v8330 = vrot.slane %v8305, %v8329
      %v8332 = vadd.f32 %v8325, %v8330
      %v8333 = vsel %vm3501, %v8332, 0.0
      %8334 = vadd.xlane.f32.xlu0 %v8333
      %v8335 = vpop.xlane.xlu0 %8334
      %v8336 = vmul.f32 %v8335, %v3505
      %v8337 = vsub.f32 %v8332, %v8336
      %v8338 = vmul.f32 %v8337, %v8337
      %v8339 = vsel %vm3501, %v8338, 0.0
      %8340 = vadd.xlane.f32.xlu0 %v8339
      %v8341 = vpop.xlane.xlu0 %8340
      %v8342 = vmul.f32 %v8341, %v3505
      %v8343 = vadd.f32 %v8342, 1e-05
      %v8344 = vrsqrt.pop %v8343
      %v8345 = vmul.f32 %v8337, %v8344
      %v8346 = vmul.f32 %v8345, %v8323
      %v8347 = vadd.f32 %v8346, %v8330
      %v8348 = vld [vmem:[%s67] sm:$0xff]
      %v8349 = vld [vmem:[%s67 + $0x8] sm:$0xff]
      %v8350 = vld [vmem:[%s67 + $0x10] sm:$0xff]
      %v8351 = vld [vmem:[%s67 + $0x18] sm:$0xff]
      %v8352 = vld [vmem:[%s69] sm:$0x1]
      %v8354 = vlaneseq
      %v8355 = vshrl.u32 %v8354, 7
      %v8356 = vsub.s32 0, %v8355
      %v8357 = vrot.slane %v8352, %v8356
      %v8360 = vsel %vm3537, %v8347, 0
      %8362 = vmatprep.subr.mxu0 0.0
      %8363 = vmatpush1.msra.mxu0 %v8348
      %8364 = vmatprep.subr.mxu0 0.0
      %8365 = vmatpush1.msra.mxu0 %v8349
      %8366 = vmatprep.subr.mxu0 0.0
      %8367 = vmatpush1.msra.mxu0 %v8350
      %8368 = vmatprep.subr.mxu0 0.0
      %8369 = vmatpush1.msra.mxu0 %v8351
      %8370 = vmatprep.subr.mxu0 0.0
      %8371 = vmatpush1.msra.mxu0 0.0
      %8372 = vmatprep.subr.mxu0 0.0
      %8373 = vmatpush1.msra.mxu0 0.0
      %8374 = vmatprep.subr.mxu0 0.0
      %8375 = vmatpush1.msra.mxu0 0.0
      %8376 = vmatprep.subr.mxu0 0.0
      %8377 = vmatpush1.msra.mxu0 0.0
      %8378 = vmatprep.subr.mxu0 0.0
      %8379 = vmatpush1.msra.mxu0 0.0
      %8380 = vmatprep.subr.mxu0 0.0
      %8381 = vmatpush1.msra.mxu0 0.0
      %8382 = vmatprep.subr.mxu0 0.0
      %8383 = vmatpush1.msra.mxu0 0.0
      %8384 = vmatprep.subr.mxu0 0.0
      %8385 = vmatpush1.msra.mxu0 0.0
      %8386 = vmatprep.subr.mxu0 0.0
      %8387 = vmatpush1.msra.mxu0 0.0
      %8388 = vmatprep.subr.mxu0 0.0
      %8389 = vmatpush1.msra.mxu0 0.0
      %8390 = vmatprep.subr.mxu0 0.0
      %8391 = vmatpush1.msra.mxu0 0.0
      %8392 = vmatprep.subr.mxu0 0.0
      %8393 = vmatpush1.msra.mxu0 0.0
      %8394 = vmatprep.subr.mxu0 0.0
      %8395 = vmatpush1.msra.mxu0 0.0
      %8396 = vmatprep.subr.mxu0 0.0
      %8397 = vmatpush1.msra.mxu0 0.0
      %8398 = vmatprep.subr.mxu0 0.0
      %8399 = vmatpush1.msra.mxu0 0.0
      %8400 = vmatprep.subr.mxu0 0.0
      %8401 = vmatpush1.msra.mxu0 0.0
      %8402 = vmatprep.subr.mxu0 0.0
      %8403 = vmatpush1.msra.mxu0 0.0
      %8404 = vmatprep.subr.mxu0 0.0
      %8405 = vmatpush1.msra.mxu0 0.0
      %8406 = vmatprep.subr.mxu0 0.0
      %8407 = vmatpush1.msra.mxu0 0.0
      %8408 = vmatprep.subr.mxu0 0.0
      %8409 = vmatpush1.msra.mxu0 0.0
      %8410 = vmatprep.subr.mxu0 0.0
      %8411 = vmatpush1.msra.mxu0 0.0
      %8412 = vmatprep.subr.mxu0 0.0
      %8413 = vmatpush1.msra.mxu0 0.0
      %8414 = vmatprep.subr.mxu0 0.0
      %8415 = vmatpush1.msra.mxu0 0.0
      %8416 = vmatprep.subr.mxu0 0.0
      %8417 = vmatpush1.msra.mxu0 0.0
      %8418 = vmatprep.subr.mxu0 0.0
      %8419 = vmatpush1.msra.mxu0 0.0
      %8420 = vmatprep.subr.mxu0 0.0
      %8421 = vmatpush1.msra.mxu0 0.0
      %8422 = vmatprep.subr.mxu0 0.0
      %8423 = vmatpush1.msra.mxu0 0.0
      %8424 = vmatprep.subr.mxu0 0.0
      %8425 = vmatpush1.msra.mxu0 0.0
      %8426 = vmatprep.mubr.f32.mxu0 0.0
      %8427 = vmatmul.mubr.f32.gmra.mrb[0].mxu0 %v8360
      %v8428 = vpop.f32.mrb[0].mxu0
      %v8429 = vadd.f32 %v8357, %v8428
      %v8430 = vpop.f32.mrb[0].mxu0
      %8431 = vdwg.mxu0
      %vm8432 = vcmask 126976
      %8433 = vst.msk [vmem:[%s1139] sm:$0x1f] %vm8432, %v8429
      %p8434 = scmp.lt.s32.totalorder %s82, 1
      %s8435 = scalar_select %p8434, %s82, 1
      %s8436 = smul.addr %s8435, 8
      %s8437 = scalar_lea.vmem %s71, %s8436
      // Predicated region
      $region161: #{_device_forward.1} parent=159 // pred_check
        %p8438 = pneg %p860
      $region162: #{_device_forward.1} parent=159 // pred_check_branch
        %8440 = sbr.rel (%p8438) target = $region164
      $region163: #{_device_forward.1} parent=159 // pred_region
        _
      $region164: #{_device_forward.1} parent=159 // pred_fallthru
        _
    $region160: #{_device_forward.1} parent=5 // pred_fallthru
      _
    %p8441 = scmp.le.s32.totalorder 2, %s77
    // Predicated region
    $region165: #{_device_forward.1} parent=5 // pred_check
      %p8442 = pneg %p8441
    $region166: #{_device_forward.1} parent=5 // pred_check_branch
      %8444 = sbr.rel (%p8442) target = $region168
    $region167: #{_device_forward.1} parent=5 // pred_region
      %s8445 = ssub.s32 %s77, 2
      // Predicated region
      $region169: #{_device_forward.1} parent=167 // pred_check
        %p8446 = pneg %p866
      $region170: #{_device_forward.1} parent=167 // pred_check_branch
        %8448 = sbr.rel (%p8446) target = $region172
      $region171: #{_device_forward.1} parent=167 // pred_region
        %p8449 = scmp.lt.s32.totalorder %s83, 1
        %s8450 = scalar_select %p8449, %s83, 1
        %s8451 = smul.addr %s8450, 8
        %s8452 = scalar_lea.vmem %s71, %s8451
      $region172: #{_device_forward.1} parent=167 // pred_fallthru
        _
    $region168: #{_device_forward.1} parent=5 // pred_fallthru
      _
  $region6: #{_device_forward.1} parent=0 // loop_footer
    %s81 = sadd.s32 1, %s77
  $region7: #{_device_forward.1} parent=0 // loop_footer_branch
    %76 = sbr.rel target = $region3
  $region8: #{_device_forward.1} parent=0 // loop_exit
    _

</llo_original>
